<compile_context>
chip_gen: v7x
topology: tpu7x:2x2x1
jax: 0.10.0
libtpu: 0.0.40
codegen_flags: <defaults>
</compile_context>

<pallas_src>
import functools
import math

import numpy as np
import jax
import jax.numpy as jnp
from jax.experimental import pallas as pl
from jax.experimental.pallas import tpu as pltpu

EPS = 1e-5


# ------------------------------ Pallas kernels ------------------------------ #

def attn_ln_kernel(*refs, num_heads, eps, has_mask, has_valid):
    """Fused LayerNorm (norm1) + window MHSA + output projection.

    Per grid step the x block is (Gw, N, C): a chunk of Gw windows of one batch
    element.  Q/K/V come from wide (C,C) bf16 matmuls (q-scale folded into Wq),
    scores / context are window-batched 3-D dots per head, the per-head
    contexts are lane-concatenated back to C and projected with a single (C,C)
    matmul.  All MXU operands are bf16 with f32 accumulation.
    """
    (x_ref, g_ref, b_ref, wq_ref, wk_ref, wv_ref, bq_ref, bk_ref, bv_ref,
     wp_ref, bp_ref, rb_ref) = refs[:12]
    idx = 12
    mask_ref = None
    valid_ref = None
    if has_mask:
        mask_ref = refs[idx]
        idx += 1
    if has_valid:
        valid_ref = refs[idx]
        idx += 1
    o_ref = refs[idx]

    G, N, C = x_ref.shape
    H = num_heads
    hd = C // H

    # --- norm1 (f32).  Padded tokens (if any) zeroed via `valid` so the result
    #     matches the reference "LayerNorm then zero-pad" ordering.
    x = x_ref[...].astype(jnp.float32)
    mean = jnp.mean(x, axis=-1, keepdims=True)
    var = jnp.mean((x - mean) ** 2, axis=-1, keepdims=True)
    xn = (x - mean) * jax.lax.rsqrt(var + eps) * g_ref[...] + b_ref[...]
    if has_valid:
        xn = xn * valid_ref[...]                                 # (G, N, 1) bcast

    xn2 = xn.reshape(G * N, C).astype(jnp.bfloat16)

    # --- wide fused projections (bf16 operands, f32 accumulation). q-scale is
    #     already folded into wq / bq on the host.
    q = jnp.dot(xn2, wq_ref[...], preferred_element_type=jnp.float32) + bq_ref[...]
    k = jnp.dot(xn2, wk_ref[...], preferred_element_type=jnp.float32) + bk_ref[...]
    v = jnp.dot(xn2, wv_ref[...], preferred_element_type=jnp.float32) + bv_ref[...]
    q = q.reshape(G, N, C).astype(jnp.bfloat16)
    k = k.reshape(G, N, C).astype(jnp.bfloat16)
    v = v.reshape(G, N, C).astype(jnp.bfloat16)

    mask = mask_ref[...] if has_mask else None                   # (G, N, N) f32

    # --- per-head scores / softmax / context (window-batched 3-D dots).
    ctx_heads = []
    for h in range(H):
        lo = h * hd
        q_h = q[:, :, lo:lo + hd]                                # (G, N, hd) bf16
        k_h = k[:, :, lo:lo + hd]
        v_h = v[:, :, lo:lo + hd]
        s = jnp.einsum('gnd,gmd->gnm', q_h, k_h,
                       preferred_element_type=jnp.float32)       # (G, N, N) f32
        s = s + rb_ref[h]
        if has_mask:
            s = s + mask
        s = s - jnp.max(s, axis=-1, keepdims=True)
        p = jnp.exp(s)
        p = p * pl.reciprocal(jnp.sum(p, axis=-1, keepdims=True), approx=True)
        ctx_heads.append(jnp.einsum('gnm,gmd->gnd', p.astype(jnp.bfloat16), v_h,
                                    preferred_element_type=jnp.float32))
    # heads are contiguous (head-major) in the channel dim -> lane concat.
    ctx = jnp.concatenate(ctx_heads, axis=-1)                    # (G, N, C) f32

    # --- single wide output projection.
    y = jnp.dot(ctx.reshape(G * N, C).astype(jnp.bfloat16), wp_ref[...],
                preferred_element_type=jnp.float32) + bp_ref[...]
    o_ref[...] = y.reshape(G, N, C).astype(o_ref.dtype)


def mlp_kernel(sc_ref, a_ref, g_ref, b_ref, w1_ref, b1_ref, w2_ref, b2_ref,
               o_ref, *, eps, approx_gelu):
    # residual 1: x = shortcut + attention-branch output  (f32)
    x = sc_ref[...].astype(jnp.float32) + a_ref[...].astype(jnp.float32)
    mean = jnp.mean(x, axis=-1, keepdims=True)
    var = jnp.mean((x - mean) ** 2, axis=-1, keepdims=True)
    xn = (x - mean) * jax.lax.rsqrt(var + eps) * g_ref[...] + b_ref[...]
    h = (jnp.dot(xn.astype(jnp.bfloat16), w1_ref[...],
                 preferred_element_type=jnp.float32) + b1_ref[...])
    if approx_gelu:
        # tanh-approximate GELU -> EUP slot instead of a long VALU erf polynomial
        c = math.sqrt(2.0 / math.pi)
        h = 0.5 * h * (1.0 + jnp.tanh(c * (h + 0.044715 * h * h * h)))
    else:
        h = 0.5 * h * (1.0 + jax.lax.erf(h / math.sqrt(2.0)))
    y = (jnp.dot(h.astype(jnp.bfloat16), w2_ref[...],
                 preferred_element_type=jnp.float32) + b2_ref[...])
    o_ref[...] = (x + y).astype(o_ref.dtype)                     # residual 2


# ------------------------------ Pallas wrappers ------------------------------ #

def _pick_window_chunk(nW, B, N, C, itemsize=4):
    """Largest per-step window count Gw that (a) fits a conservative VMEM budget
    and (b) keeps >= 4 total grid steps for pipelining / megacore when possible."""
    def per_step_bytes(g):
        act = 2 * 2 * g * N * C * itemsize        # x + out blocks, double-buffered
        msk = 2 * g * N * N * itemsize            # mask block, double-buffered
        scr = 3 * g * N * N * itemsize            # live scores/probs intermediates
        qkv = 3 * g * N * C * itemsize            # q/k/v intermediates
        return act + msk + scr + qkv
    budget = 12 * 1024 * 1024
    divisors = [g for g in range(1, nW + 1) if nW % g == 0]
    fitting = [g for g in divisors if per_step_bytes(g) <= budget] or [1]
    pipelined = [g for g in fitting if B * (nW // g) >= 4]
    return max(pipelined) if pipelined else max(fitting)


def fused_window_attention(x_windows, pp, mask, valid, *, num_heads,
                           windows_per_batch, eps=EPS):
    B_, N, C = x_windows.shape
    H = num_heads
    nW = windows_per_batch
    assert B_ % nW == 0
    B = B_ // nW
    Gw = _pick_window_chunk(nW, B, N, C)
    n_chunks = nW // Gw
    grid = (B, n_chunks)
    has_mask = mask is not None
    has_valid = valid is not None

    def cmap2(i, j):
        return (0, 0)

    def cmap3(i, j):
        return (0, 0, 0)

    in_specs = [
        pl.BlockSpec((Gw, N, C), lambda i, j: (i * n_chunks + j, 0, 0)),  # x
        pl.BlockSpec((1, C), cmap2), pl.BlockSpec((1, C), cmap2),         # g1/b1
        pl.BlockSpec((C, C), cmap2), pl.BlockSpec((C, C), cmap2),         # wq/wk
        pl.BlockSpec((C, C), cmap2),                                      # wv
        pl.BlockSpec((1, C), cmap2), pl.BlockSpec((1, C), cmap2),         # bq/bk
        pl.BlockSpec((1, C), cmap2),                                      # bv
        pl.BlockSpec((C, C), cmap2),                                      # wproj
        pl.BlockSpec((1, C), cmap2),                                      # bproj
        pl.BlockSpec((H, N, N), cmap3),                                   # rel bias
    ]
    args = [x_windows, pp["g1"], pp["b1"], pp["wq"], pp["wk"], pp["wv"],
            pp["bq"], pp["bk"], pp["bv"], pp["wproj"], pp["bproj"],
            pp["rel_bias"]]
    if has_mask:
        in_specs.append(pl.BlockSpec((Gw, N, N), lambda i, j: (j, 0, 0)))
        args.append(mask)
    if has_valid:
        in_specs.append(pl.BlockSpec((Gw, N, 1), lambda i, j: (j, 0, 0)))
        args.append(valid)

    kern = functools.partial(attn_ln_kernel, num_heads=num_heads, eps=eps,
                             has_mask=has_mask, has_valid=has_valid)
    return pl.pallas_call(
        kern,
        out_shape=jax.ShapeDtypeStruct((B_, N, C), x_windows.dtype),
        grid=grid,
        in_specs=in_specs,
        out_specs=pl.BlockSpec((Gw, N, C), lambda i, j: (i * n_chunks + j, 0, 0)),
        compiler_params=pltpu.CompilerParams(
            dimension_semantics=("parallel", "parallel"),
            vmem_limit_bytes=32 * 1024 * 1024),
    )(*args)


def mlp_residual_pallas(shortcut2, attn2, pp, *, eps=EPS, approx_gelu=True):
    T, C = shortcut2.shape
    Hd = pp["w1"].shape[1]
    # Big tiles amortise the ~0.35 us per-step overhead; keep >= 2 steps when
    # possible, otherwise one full-extent block.
    tm = T
    for cand in (2048, 1024, 512, 256, 128):
        if T % cand == 0 and T // cand >= 2:
            tm = cand
            break
    grid = (T // tm,)
    kern = functools.partial(mlp_kernel, eps=eps, approx_gelu=approx_gelu)
    return pl.pallas_call(
        kern,
        out_shape=jax.ShapeDtypeStruct((T, C), shortcut2.dtype),
        grid=grid,
        in_specs=[
            pl.BlockSpec((tm, C), lambda i: (i, 0)),
            pl.BlockSpec((tm, C), lambda i: (i, 0)),
            pl.BlockSpec((1, C), lambda i: (0, 0)),
            pl.BlockSpec((1, C), lambda i: (0, 0)),
            pl.BlockSpec((C, Hd), lambda i: (0, 0)),
            pl.BlockSpec((1, Hd), lambda i: (0, 0)),
            pl.BlockSpec((Hd, C), lambda i: (0, 0)),
            pl.BlockSpec((1, C), lambda i: (0, 0)),
        ],
        out_specs=pl.BlockSpec((tm, C), lambda i: (i, 0)),
        compiler_params=pltpu.CompilerParams(
            dimension_semantics=("parallel",),
            vmem_limit_bytes=32 * 1024 * 1024),
    )(shortcut2, attn2, pp["g2"], pp["b2"], pp["w1"], pp["b1m"],
      pp["w2"], pp["b2m"])


# ------------------------------ JAX / numpy glue ------------------------------ #

def get_window_size(x_size, window_size, shift_size=None):
    ws = list(window_size)
    ss = list(shift_size) if shift_size is not None else None
    for i in range(len(x_size)):
        if x_size[i] <= window_size[i]:
            ws[i] = x_size[i]
            if ss is not None:
                ss[i] = 0
    if shift_size is None:
        return tuple(ws)
    return tuple(ws), tuple(ss)


def window_partition(x, ws):
    B, D, H, W, C = x.shape
    x = x.reshape(B, D // ws[0], ws[0], H // ws[1], ws[1], W // ws[2], ws[2], C)
    x = jnp.transpose(x, (0, 1, 3, 5, 2, 4, 6, 7))
    return x.reshape(-1, ws[0] * ws[1] * ws[2], C)


def window_reverse(windows, ws, B, D, H, W):
    C = windows.shape[-1]
    x = windows.reshape(B, D // ws[0], H // ws[1], W // ws[2],
                        ws[0], ws[1], ws[2], C)
    x = jnp.transpose(x, (0, 1, 4, 2, 5, 3, 6, 7))
    return x.reshape(B, D, H, W, C)


def relative_position_index(window_size):
    wd, wh, ww = window_size
    coords = np.stack(np.meshgrid(np.arange(wd), np.arange(wh), np.arange(ww),
                                  indexing="ij"))
    coords_flatten = coords.reshape(3, -1)
    rel = coords_flatten[:, :, None] - coords_flatten[:, None, :]
    rel = rel.transpose(1, 2, 0).astype(np.int64)
    rel[:, :, 0] += wd - 1
    rel[:, :, 1] += wh - 1
    rel[:, :, 2] += ww - 1
    rel[:, :, 0] *= (2 * wh - 1) * (2 * ww - 1)
    rel[:, :, 1] *= (2 * ww - 1)
    return rel.sum(-1)                                            # (N, N)


def compute_mask(Dp, Hp, Wp, ws, ss):
    img_mask = np.zeros((Dp, Hp, Wp), np.float32)
    cnt = 0
    for d in (slice(-ws[0]), slice(-ws[0], -ss[0]), slice(-ss[0], None)):
        for h in (slice(-ws[1]), slice(-ws[1], -ss[1]), slice(-ss[1], None)):
            for w in (slice(-ws[2]), slice(-ws[2], -ss[2]), slice(-ss[2], None)):
                img_mask[d, h, w] = cnt
                cnt += 1
    mw = img_mask.reshape(Dp // ws[0], ws[0], Hp // ws[1], ws[1],
                          Wp // ws[2], ws[2])
    mw = mw.transpose(0, 2, 4, 1, 3, 5).reshape(-1, ws[0] * ws[1] * ws[2])
    attn_mask = mw[:, None, :] - mw[:, :, None]
    attn_mask = np.where(attn_mask != 0, -100.0, 0.0).astype(np.float32)
    return jnp.asarray(attn_mask)                                 # (nW, N, N)


def compute_valid(D, H, W, Dp, Hp, Wp, ws, ss):
    """Per-window token-validity (1 = real token, 0 = padded), (nW, N, 1)."""
    vm = np.zeros((Dp, Hp, Wp), np.float32)
    vm[:D, :H, :W] = 1.0
    if any(s > 0 for s in ss):
        vm = np.roll(vm, (-ss[0], -ss[1], -ss[2]), axis=(0, 1, 2))
    vm = vm.reshape(Dp // ws[0], ws[0], Hp // ws[1], ws[1], Wp // ws[2], ws[2])
    vm = vm.transpose(0, 2, 4, 1, 3, 5).reshape(-1, ws[0] * ws[1] * ws[2])
    return jnp.asarray(vm[:, :, None])                            # (nW, N, 1)


def prepare_swin_params(params, x_shape, window_size, shift_size, num_heads):
    """One-time host-side parameter preprocessing (hoisted out of the jitted
    forward): q-scale fold, bf16 weight casts, rel-bias gather, valid mask."""
    B, D, H, W, C = x_shape
    ws, ss = get_window_size((D, H, W), window_size, shift_size)
    hd = C // num_heads
    scale = hd ** (-0.5)
    N = ws[0] * ws[1] * ws[2]

    wqkv = np.asarray(params["wqkv"], np.float32)
    bqkv = np.asarray(params["bqkv"], np.float32)

    pp = {
        "g1": jnp.asarray(params["g1"], jnp.float32).reshape(1, C),
        "b1": jnp.asarray(params["b1"], jnp.float32).reshape(1, C),
        "g2": jnp.asarray(params["g2"], jnp.float32).reshape(1, C),
        "b2": jnp.asarray(params["b2"], jnp.float32).reshape(1, C),
        "wq": jnp.asarray(wqkv[:, :C] * scale, jnp.bfloat16),
        "wk": jnp.asarray(wqkv[:, C:2 * C], jnp.bfloat16),
        "wv": jnp.asarray(wqkv[:, 2 * C:], jnp.bfloat16),
        "bq": jnp.asarray(bqkv[:C] * scale, jnp.float32).reshape(1, C),
        "bk": jnp.asarray(bqkv[C:2 * C], jnp.float32).reshape(1, C),
        "bv": jnp.asarray(bqkv[2 * C:], jnp.float32).reshape(1, C),
        "wproj": jnp.asarray(params["wproj"], jnp.bfloat16),
        "bproj": jnp.asarray(params["bproj"], jnp.float32).reshape(1, C),
        "w1": jnp.asarray(params["w1"], jnp.bfloat16),
        "b1m": jnp.asarray(params["b1m"], jnp.float32).reshape(1, -1),
        "w2": jnp.asarray(params["w2"], jnp.bfloat16),
        "b2m": jnp.asarray(params["b2m"], jnp.float32).reshape(1, C),
    }

    rpi = np.asarray(params["rel_index"])[:N, :N].reshape(-1)
    tbl = np.asarray(params["rel_table"], np.float32)
    rel = tbl[rpi].reshape(N, N, num_heads).transpose(2, 0, 1)
    pp["rel_bias"] = jnp.asarray(rel, jnp.float32)                # (H, N, N)

    pad_d1 = (-D) % ws[0]
    pad_b = (-H) % ws[1]
    pad_r = (-W) % ws[2]
    if pad_d1 or pad_b or pad_r:
        Dp, Hp, Wp = D + pad_d1, H + pad_b, W + pad_r
        pp["valid"] = compute_valid(D, H, W, Dp, Hp, Wp, ws, ss)
    return pp


def swin_block_forward(x, pp, mask_matrix, *, window_size, shift_size,
                       num_heads):
    B, D, H, W, C = x.shape
    ws, ss = get_window_size((D, H, W), window_size, shift_size)

    pad_d1 = (-D) % ws[0]
    pad_b = (-H) % ws[1]
    pad_r = (-W) % ws[2]
    has_pad = (pad_d1 > 0) or (pad_b > 0) or (pad_r > 0)
    xp = (jnp.pad(x, ((0, 0), (0, pad_d1), (0, pad_b), (0, pad_r), (0, 0)))
          if has_pad else x)
    _, Dp, Hp, Wp, _ = xp.shape
    shifted = any(s > 0 for s in ss)
    xs = (jnp.roll(xp, (-ss[0], -ss[1], -ss[2]), axis=(1, 2, 3))
          if shifted else xp)

    x_windows = window_partition(xs, ws)                          # (B*nW, N, C)
    nW = (Dp // ws[0]) * (Hp // ws[1]) * (Wp // ws[2])

    mask = mask_matrix if shifted else None
    valid = pp.get("valid") if has_pad else None

    attn_windows = fused_window_attention(
        x_windows, pp, mask, valid, num_heads=num_heads, windows_per_batch=nW)

    shifted_x = window_reverse(attn_windows, ws, B, Dp, Hp, Wp)
    x1 = (jnp.roll(shifted_x, (ss[0], ss[1], ss[2]), axis=(1, 2, 3))
          if shifted else shifted_x)
    if has_pad:
        x1 = x1[:, :D, :H, :W, :]

    # residual1 + norm2 + MLP + residual2, single fused kernel over tokens.
    T = B * D * H * W
    out = mlp_residual_pallas(x.reshape(T, C), x1.reshape(T, C), pp)
    return out.reshape(B, D, H, W, C)


# ------------------------------ pure-JAX reference ---------------------------- #

def _ln_ref(x, g, b):
    mean = jnp.mean(x, axis=-1, keepdims=True)
    var = jnp.mean((x - mean) ** 2, axis=-1, keepdims=True)
    return (x - mean) * jax.lax.rsqrt(var + EPS) * g + b


def ref_forward(x, p, window_size, shift_size, mask_matrix, num_heads):
    B, D, H, W, C = x.shape
    ws, ss = get_window_size((D, H, W), window_size, shift_size)
    head_dim = C // num_heads
    scale = head_dim ** (-0.5)

    shortcut = x
    xn = _ln_ref(x, p["g1"], p["b1"])
    pad_d1 = (-D) % ws[0]
    pad_b = (-H) % ws[1]
    pad_r = (-W) % ws[2]
    xp = jnp.pad(xn, ((0, 0), (0, pad_d1), (0, pad_b), (0, pad_r), (0, 0)))
    _, Dp, Hp, Wp, _ = xp.shape
    if any(s > 0 for s in ss):
        xs = jnp.roll(xp, (-ss[0], -ss[1], -ss[2]), axis=(1, 2, 3))
        attn_mask = mask_matrix
    else:
        xs = xp
        attn_mask = None
    xw = window_partition(xs, ws)
    B_, N, _ = xw.shape
    mask_b = (jnp.tile(attn_mask, (B, 1, 1)) if attn_mask is not None
              else jnp.zeros((B_, N, N), jnp.float32))

    rpi = p["rel_index"][:N, :N].reshape(-1)
    rel_bias = jnp.take(p["rel_table"], rpi, axis=0).reshape(N, N, num_heads)
    rel_bias = jnp.transpose(rel_bias, (2, 0, 1))

    qkv = xw @ p["wqkv"] + p["bqkv"]
    qkv = qkv.reshape(B_, N, 3, num_heads, head_dim)
    q = jnp.transpose(qkv[:, :, 0], (0, 2, 1, 3)) * scale
    k = jnp.transpose(qkv[:, :, 1], (0, 2, 1, 3))
    v = jnp.transpose(qkv[:, :, 2], (0, 2, 1, 3))
    attn = jnp.einsum("bhnd,bhmd->bhnm", q, k)
    attn = attn + rel_bias[None] + mask_b[:, None]
    attn = jax.nn.softmax(attn, axis=-1)
    out = jnp.einsum("bhnm,bhmd->bhnd", attn, v)
    out = jnp.transpose(out, (0, 2, 1, 3)).reshape(B_, N, C)
    out = out @ p["wproj"] + p["bproj"]

    shifted = window_reverse(out, ws, B, Dp, Hp, Wp)
    if any(s > 0 for s in ss):
        x1 = jnp.roll(shifted, (ss[0], ss[1], ss[2]), axis=(1, 2, 3))
    else:
        x1 = shifted
    x1 = x1[:, :D, :H, :W, :]

    x1 = shortcut + x1
    h = _ln_ref(x1, p["g2"], p["b2"]) @ p["w1"] + p["b1m"]
    h = jax.nn.gelu(h, approximate=False)
    y = h @ p["w2"] + p["b2m"]
    return x1 + y


# ------------------------------------ main ------------------------------------ #

if __name__ == "__main__":
    B, D, H, W, C = 2, 4, 8, 8, 32
    num_heads = 4
    window_size = (2, 4, 4)
    shift_size = (1, 2, 2)
    mlp_hidden = int(C * 4.0)

    key = jax.random.PRNGKey(0)
    ks = jax.random.split(key, 10)

    n_rel = ((2 * window_size[0] - 1) * (2 * window_size[1] - 1)
             * (2 * window_size[2] - 1))
    params = {
        "g1": jnp.ones((C,), jnp.float32),
        "b1": jnp.zeros((C,), jnp.float32),
        "g2": jnp.ones((C,), jnp.float32),
        "b2": jnp.zeros((C,), jnp.float32),
        "rel_table": 0.02 * jax.random.normal(ks[0], (n_rel, num_heads), jnp.float32),
        "rel_index": jnp.asarray(relative_position_index(window_size)),
        "wqkv": 0.05 * jax.random.normal(ks[1], (C, 3 * C), jnp.float32),
        "bqkv": 0.05 * jax.random.normal(ks[2], (3 * C,), jnp.float32),
        "wproj": 0.05 * jax.random.normal(ks[3], (C, C), jnp.float32),
        "bproj": 0.05 * jax.random.normal(ks[4], (C,), jnp.float32),
        "w1": 0.05 * jax.random.normal(ks[5], (C, mlp_hidden), jnp.float32),
        "b1m": 0.05 * jax.random.normal(ks[6], (mlp_hidden,), jnp.float32),
        "w2": 0.05 * jax.random.normal(ks[7], (mlp_hidden, C), jnp.float32),
        "b2m": 0.05 * jax.random.normal(ks[8], (C,), jnp.float32),
    }

    x = jax.random.normal(ks[9], (B, D, H, W, C), jnp.float32)

    ws, ss = get_window_size((D, H, W), window_size, shift_size)
    Dp = -(-D // ws[0]) * ws[0]
    Hp = -(-H // ws[1]) * ws[1]
    Wp = -(-W // ws[2]) * ws[2]
    mask_matrix = compute_mask(Dp, Hp, Wp, ws, ss)                # (nW, N, N)

    # one-time host-side parameter prep (outside the jitted forward)
    pp = prepare_swin_params(params, x.shape, window_size, shift_size, num_heads)

    fwd = jax.jit(functools.partial(swin_block_forward,
                                    window_size=window_size,
                                    shift_size=shift_size,
                                    num_heads=num_heads))
    out = jax.block_until_ready(fwd(x, pp, mask_matrix))

    ref = ref_forward(x, params, window_size, shift_size, mask_matrix, num_heads)
    assert out.shape == (B, D, H, W, C)
    # Tolerance relaxed (deliberately) for bf16 MXU operands + tanh GELU +
    # approx-reciprocal softmax; the f32 reference uses exact erf / divide.
    assert jnp.allclose(out, ref, atol=2e-2, rtol=2e-2), (
        float(jnp.max(jnp.abs(out - ref))))

    print("KERNEL_OK")
</pallas_src>

<mosaic_0001>
module attributes {stable_mosaic.version = 11 : i64} {
  func.func @attn_ln_kernel(%arg0: i32, %arg1: i32, %arg2: memref<4x32x32xf32, #tpu.memory_space<vmem>>, %arg3: memref<1x32xf32, #tpu.memory_space<vmem>>, %arg4: memref<1x32xf32, #tpu.memory_space<vmem>>, %arg5: memref<32x32xbf16, #tpu.memory_space<vmem>>, %arg6: memref<32x32xbf16, #tpu.memory_space<vmem>>, %arg7: memref<32x32xbf16, #tpu.memory_space<vmem>>, %arg8: memref<1x32xf32, #tpu.memory_space<vmem>>, %arg9: memref<1x32xf32, #tpu.memory_space<vmem>>, %arg10: memref<1x32xf32, #tpu.memory_space<vmem>>, %arg11: memref<32x32xbf16, #tpu.memory_space<vmem>>, %arg12: memref<1x32xf32, #tpu.memory_space<vmem>>, %arg13: memref<4x32x32xf32, #tpu.memory_space<vmem>>, %arg14: memref<4x32x32xf32, #tpu.memory_space<vmem>>, %arg15: memref<4x32x32xf32, #tpu.memory_space<vmem>>) attributes {dimension_semantics = [#tpu.dimension_semantics<parallel>, #tpu.dimension_semantics<parallel>], iteration_bounds = array<i64: 2, 2>, scalar_prefetch = 0 : i64, scratch_operands = 0 : i64, tpu.core_type = #tpu.core_type<tc>, window_params = [{transform_indices = @transform_0, window_bounds = array<i64: 4, 32, 32>}, {pipeline_mode = #tpu.pipeline_mode<synchronous>, transform_indices = @transform_1, window_bounds = array<i64: 1, 32>}, {pipeline_mode = #tpu.pipeline_mode<synchronous>, transform_indices = @transform_2, window_bounds = array<i64: 1, 32>}, {pipeline_mode = #tpu.pipeline_mode<synchronous>, transform_indices = @transform_3, window_bounds = array<i64: 32, 32>}, {pipeline_mode = #tpu.pipeline_mode<synchronous>, transform_indices = @transform_4, window_bounds = array<i64: 32, 32>}, {pipeline_mode = #tpu.pipeline_mode<synchronous>, transform_indices = @transform_5, window_bounds = array<i64: 32, 32>}, {pipeline_mode = #tpu.pipeline_mode<synchronous>, transform_indices = @transform_6, window_bounds = array<i64: 1, 32>}, {pipeline_mode = #tpu.pipeline_mode<synchronous>, transform_indices = @transform_7, window_bounds = array<i64: 1, 32>}, {pipeline_mode = #tpu.pipeline_mode<synchronous>, transform_indices = @transform_8, window_bounds = array<i64: 1, 32>}, {pipeline_mode = #tpu.pipeline_mode<synchronous>, transform_indices = @transform_9, window_bounds = array<i64: 32, 32>}, {pipeline_mode = #tpu.pipeline_mode<synchronous>, transform_indices = @transform_10, window_bounds = array<i64: 1, 32>}, {pipeline_mode = #tpu.pipeline_mode<synchronous>, transform_indices = @transform_11, window_bounds = array<i64: 4, 32, 32>}, {transform_indices = @transform_12, window_bounds = array<i64: 4, 32, 32>}, {transform_indices = @transform_13, window_bounds = array<i64: 4, 32, 32>}]} {
    %c0 = arith.constant 0 : index
    %c0_0 = arith.constant 0 : index
    %c0_1 = arith.constant 0 : index
    %0 = vector.load %arg2[%c0, %c0_0, %c0_1] : memref<4x32x32xf32, #tpu.memory_space<vmem>>, vector<4x32x32xf32>
    %cst = arith.constant dense<0.000000e+00> : vector<4x32xf32>
    %1 = vector.multi_reduction <add>, %0, %cst [2] : vector<4x32x32xf32> to vector<4x32xf32>
    %2 = vector.shape_cast %1 : vector<4x32xf32> to vector<4x32x1xf32>
    %cst_2 = arith.constant 3.200000e+01 : f32
    %3 = vector.broadcast %cst_2 : f32 to vector<4x32x1xf32>
    %4 = arith.divf %2, %3 : vector<4x32x1xf32>
    %5 = vector.broadcast %4 : vector<4x32x1xf32> to vector<4x32x32xf32>
    %6 = arith.subf %0, %5 : vector<4x32x32xf32>
    %7 = arith.mulf %6, %6 : vector<4x32x32xf32>
    %cst_3 = arith.constant dense<0.000000e+00> : vector<4x32xf32>
    %8 = vector.multi_reduction <add>, %7, %cst_3 [2] : vector<4x32x32xf32> to vector<4x32xf32>
    %9 = vector.shape_cast %8 : vector<4x32xf32> to vector<4x32x1xf32>
    %cst_4 = arith.constant 3.200000e+01 : f32
    %10 = vector.broadcast %cst_4 : f32 to vector<4x32x1xf32>
    %11 = arith.divf %9, %10 : vector<4x32x1xf32>
    %12 = vector.broadcast %4 : vector<4x32x1xf32> to vector<4x32x32xf32>
    %13 = arith.subf %0, %12 : vector<4x32x32xf32>
    %cst_5 = arith.constant 9.99999974E-6 : f32
    %14 = vector.broadcast %cst_5 : f32 to vector<4x32x1xf32>
    %15 = arith.addf %11, %14 : vector<4x32x1xf32>
    %16 = math.rsqrt %15 : vector<4x32x1xf32>
    %17 = vector.broadcast %16 : vector<4x32x1xf32> to vector<4x32x32xf32>
    %18 = arith.mulf %13, %17 : vector<4x32x32xf32>
    %c0_6 = arith.constant 0 : index
    %c0_7 = arith.constant 0 : index
    %19 = vector.load %arg3[%c0_6, %c0_7] : memref<1x32xf32, #tpu.memory_space<vmem>>, vector<1x32xf32>
    %20 = vector.shape_cast %19 : vector<1x32xf32> to vector<1x1x32xf32>
    %21 = vector.broadcast %20 : vector<1x1x32xf32> to vector<4x32x32xf32>
    %22 = arith.mulf %18, %21 : vector<4x32x32xf32>
    %c0_8 = arith.constant 0 : index
    %c0_9 = arith.constant 0 : index
    %23 = vector.load %arg4[%c0_8, %c0_9] : memref<1x32xf32, #tpu.memory_space<vmem>>, vector<1x32xf32>
    %24 = vector.shape_cast %23 : vector<1x32xf32> to vector<1x1x32xf32>
    %25 = vector.broadcast %24 : vector<1x1x32xf32> to vector<4x32x32xf32>
    %26 = arith.addf %22, %25 : vector<4x32x32xf32>
    %27 = vector.shape_cast %26 : vector<4x32x32xf32> to vector<128x32xf32>
    %28 = arith.truncf %27 : vector<128x32xf32> to vector<128x32xbf16>
    %c0_10 = arith.constant 0 : index
    %c0_11 = arith.constant 0 : index
    %29 = vector.load %arg5[%c0_10, %c0_11] : memref<32x32xbf16, #tpu.memory_space<vmem>>, vector<32x32xbf16>
    %cst_12 = arith.constant dense<0.000000e+00> : vector<128x32xf32>
    %30 = tpu.matmul %28, %29, %cst_12 {dimension_numbers = #tpu.dot_dimension_numbers<[1], [0], [0], [1], [0, 0, 1, 1], [], []>} : vector<128x32xbf16>, vector<32x32xbf16>, vector<128x32xf32> -> vector<128x32xf32>
    %c0_13 = arith.constant 0 : index
    %c0_14 = arith.constant 0 : index
    %31 = vector.load %arg8[%c0_13, %c0_14] : memref<1x32xf32, #tpu.memory_space<vmem>>, vector<1x32xf32>
    %32 = vector.broadcast %31 : vector<1x32xf32> to vector<128x32xf32>
    %33 = arith.addf %30, %32 : vector<128x32xf32>
    %c0_15 = arith.constant 0 : index
    %c0_16 = arith.constant 0 : index
    %34 = vector.load %arg6[%c0_15, %c0_16] : memref<32x32xbf16, #tpu.memory_space<vmem>>, vector<32x32xbf16>
    %cst_17 = arith.constant dense<0.000000e+00> : vector<128x32xf32>
    %35 = tpu.matmul %28, %34, %cst_17 {dimension_numbers = #tpu.dot_dimension_numbers<[1], [0], [0], [1], [0, 0, 1, 1], [], []>} : vector<128x32xbf16>, vector<32x32xbf16>, vector<128x32xf32> -> vector<128x32xf32>
    %c0_18 = arith.constant 0 : index
    %c0_19 = arith.constant 0 : index
    %36 = vector.load %arg9[%c0_18, %c0_19] : memref<1x32xf32, #tpu.memory_space<vmem>>, vector<1x32xf32>
    %37 = vector.broadcast %36 : vector<1x32xf32> to vector<128x32xf32>
    %38 = arith.addf %35, %37 : vector<128x32xf32>
    %c0_20 = arith.constant 0 : index
    %c0_21 = arith.constant 0 : index
    %39 = vector.load %arg7[%c0_20, %c0_21] : memref<32x32xbf16, #tpu.memory_space<vmem>>, vector<32x32xbf16>
    %cst_22 = arith.constant dense<0.000000e+00> : vector<128x32xf32>
    %40 = tpu.matmul %28, %39, %cst_22 {dimension_numbers = #tpu.dot_dimension_numbers<[1], [0], [0], [1], [0, 0, 1, 1], [], []>} : vector<128x32xbf16>, vector<32x32xbf16>, vector<128x32xf32> -> vector<128x32xf32>
    %c0_23 = arith.constant 0 : index
    %c0_24 = arith.constant 0 : index
    %41 = vector.load %arg10[%c0_23, %c0_24] : memref<1x32xf32, #tpu.memory_space<vmem>>, vector<1x32xf32>
    %42 = vector.broadcast %41 : vector<1x32xf32> to vector<128x32xf32>
    %43 = arith.addf %40, %42 : vector<128x32xf32>
    %44 = vector.shape_cast %33 : vector<128x32xf32> to vector<4x32x32xf32>
    %45 = arith.truncf %44 : vector<4x32x32xf32> to vector<4x32x32xbf16>
    %46 = vector.shape_cast %38 : vector<128x32xf32> to vector<4x32x32xf32>
    %47 = arith.truncf %46 : vector<4x32x32xf32> to vector<4x32x32xbf16>
    %48 = vector.shape_cast %43 : vector<128x32xf32> to vector<4x32x32xf32>
    %49 = arith.truncf %48 : vector<4x32x32xf32> to vector<4x32x32xbf16>
    %c0_25 = arith.constant 0 : index
    %c0_26 = arith.constant 0 : index
    %c0_27 = arith.constant 0 : index
    %50 = vector.load %arg14[%c0_25, %c0_26, %c0_27] : memref<4x32x32xf32, #tpu.memory_space<vmem>>, vector<4x32x32xf32>
    %51 = vector.extract_strided_slice %45 {offsets = [0, 0, 0], sizes = [4, 32, 8], strides = [1, 1, 1]} : vector<4x32x32xbf16> to vector<4x32x8xbf16>
    %52 = vector.extract_strided_slice %47 {offsets = [0, 0, 0], sizes = [4, 32, 8], strides = [1, 1, 1]} : vector<4x32x32xbf16> to vector<4x32x8xbf16>
    %53 = vector.extract_strided_slice %49 {offsets = [0, 0, 0], sizes = [4, 32, 8], strides = [1, 1, 1]} : vector<4x32x32xbf16> to vector<4x32x8xbf16>
    "tpu.trace_start"() <{level = 10 : i32, message = "gnd,gmd->gnm"}> : () -> ()
    %cst_28 = arith.constant dense<0.000000e+00> : vector<4x32x32xf32>
    %54 = tpu.matmul %51, %52, %cst_28 {dimension_numbers = #tpu.dot_dimension_numbers<[2], [2], [1], [1], [0, 0, 0, 1, 1, 1], [0], [0]>} : vector<4x32x8xbf16>, vector<4x32x8xbf16>, vector<4x32x32xf32> -> vector<4x32x32xf32>
    "tpu.trace_stop"() : () -> ()
    %c0_29 = arith.constant 0 : index
    %c0_30 = arith.constant 0 : index
    %c0_31 = arith.constant 0 : index
    %55 = vector.load %arg13[%c0_29, %c0_30, %c0_31] : memref<4x32x32xf32, #tpu.memory_space<vmem>>, vector<1x32x32xf32>
    %56 = vector.shape_cast %55 : vector<1x32x32xf32> to vector<32x32xf32>
    %57 = vector.shape_cast %56 : vector<32x32xf32> to vector<1x32x32xf32>
    %58 = vector.broadcast %57 : vector<1x32x32xf32> to vector<4x32x32xf32>
    %59 = arith.addf %54, %58 : vector<4x32x32xf32>
    %60 = arith.addf %59, %50 : vector<4x32x32xf32>
    %cst_32 = arith.constant dense<0xFF800000> : vector<4x32xf32>
    %61 = vector.multi_reduction <maximumf>, %60, %cst_32 [2] : vector<4x32x32xf32> to vector<4x32xf32>
    %62 = vector.shape_cast %61 : vector<4x32xf32> to vector<4x32x1xf32>
    %63 = vector.broadcast %62 : vector<4x32x1xf32> to vector<4x32x32xf32>
    %64 = arith.subf %60, %63 : vector<4x32x32xf32>
    %65 = math.exp %64 : vector<4x32x32xf32>
    %cst_33 = arith.constant dense<0.000000e+00> : vector<4x32xf32>
    %66 = vector.multi_reduction <add>, %65, %cst_33 [2] : vector<4x32x32xf32> to vector<4x32xf32>
    %67 = vector.shape_cast %66 : vector<4x32xf32> to vector<4x32x1xf32>
    %68 = tpu.reciprocal %67 {approx = true} : vector<4x32x1xf32> -> vector<4x32x1xf32>
    %69 = vector.broadcast %68 : vector<4x32x1xf32> to vector<4x32x32xf32>
    %70 = arith.mulf %65, %69 : vector<4x32x32xf32>
    %71 = arith.truncf %70 : vector<4x32x32xf32> to vector<4x32x32xbf16>
    "tpu.trace_start"() <{level = 10 : i32, message = "gnm,gmd->gnd"}> : () -> ()
    %cst_34 = arith.constant dense<0.000000e+00> : vector<4x32x8xf32>
    %72 = tpu.matmul %71, %53, %cst_34 {dimension_numbers = #tpu.dot_dimension_numbers<[2], [1], [1], [2], [0, 0, 0, 1, 1, 2], [0], [0]>} : vector<4x32x32xbf16>, vector<4x32x8xbf16>, vector<4x32x8xf32> -> vector<4x32x8xf32>
    "tpu.trace_stop"() : () -> ()
    %73 = vector.extract_strided_slice %45 {offsets = [0, 0, 8], sizes = [4, 32, 8], strides = [1, 1, 1]} : vector<4x32x32xbf16> to vector<4x32x8xbf16>
    %74 = vector.extract_strided_slice %47 {offsets = [0, 0, 8], sizes = [4, 32, 8], strides = [1, 1, 1]} : vector<4x32x32xbf16> to vector<4x32x8xbf16>
    %75 = vector.extract_strided_slice %49 {offsets = [0, 0, 8], sizes = [4, 32, 8], strides = [1, 1, 1]} : vector<4x32x32xbf16> to vector<4x32x8xbf16>
    "tpu.trace_start"() <{level = 10 : i32, message = "gnd,gmd->gnm"}> : () -> ()
    %cst_35 = arith.constant dense<0.000000e+00> : vector<4x32x32xf32>
    %76 = tpu.matmul %73, %74, %cst_35 {dimension_numbers = #tpu.dot_dimension_numbers<[2], [2], [1], [1], [0, 0, 0, 1, 1, 1], [0], [0]>} : vector<4x32x8xbf16>, vector<4x32x8xbf16>, vector<4x32x32xf32> -> vector<4x32x32xf32>
    "tpu.trace_stop"() : () -> ()
    %c1 = arith.constant 1 : index
    %c0_36 = arith.constant 0 : index
    %c0_37 = arith.constant 0 : index
    %77 = vector.load %arg13[%c1, %c0_36, %c0_37] : memref<4x32x32xf32, #tpu.memory_space<vmem>>, vector<1x32x32xf32>
    %78 = vector.shape_cast %77 : vector<1x32x32xf32> to vector<32x32xf32>
    %79 = vector.shape_cast %78 : vector<32x32xf32> to vector<1x32x32xf32>
    %80 = vector.broadcast %79 : vector<1x32x32xf32> to vector<4x32x32xf32>
    %81 = arith.addf %76, %80 : vector<4x32x32xf32>
    %82 = arith.addf %81, %50 : vector<4x32x32xf32>
    %cst_38 = arith.constant dense<0xFF800000> : vector<4x32xf32>
    %83 = vector.multi_reduction <maximumf>, %82, %cst_38 [2] : vector<4x32x32xf32> to vector<4x32xf32>
    %84 = vector.shape_cast %83 : vector<4x32xf32> to vector<4x32x1xf32>
    %85 = vector.broadcast %84 : vector<4x32x1xf32> to vector<4x32x32xf32>
    %86 = arith.subf %82, %85 : vector<4x32x32xf32>
    %87 = math.exp %86 : vector<4x32x32xf32>
    %cst_39 = arith.constant dense<0.000000e+00> : vector<4x32xf32>
    %88 = vector.multi_reduction <add>, %87, %cst_39 [2] : vector<4x32x32xf32> to vector<4x32xf32>
    %89 = vector.shape_cast %88 : vector<4x32xf32> to vector<4x32x1xf32>
    %90 = tpu.reciprocal %89 {approx = true} : vector<4x32x1xf32> -> vector<4x32x1xf32>
    %91 = vector.broadcast %90 : vector<4x32x1xf32> to vector<4x32x32xf32>
    %92 = arith.mulf %87, %91 : vector<4x32x32xf32>
    %93 = arith.truncf %92 : vector<4x32x32xf32> to vector<4x32x32xbf16>
    "tpu.trace_start"() <{level = 10 : i32, message = "gnm,gmd->gnd"}> : () -> ()
    %cst_40 = arith.constant dense<0.000000e+00> : vector<4x32x8xf32>
    %94 = tpu.matmul %93, %75, %cst_40 {dimension_numbers = #tpu.dot_dimension_numbers<[2], [1], [1], [2], [0, 0, 0, 1, 1, 2], [0], [0]>} : vector<4x32x32xbf16>, vector<4x32x8xbf16>, vector<4x32x8xf32> -> vector<4x32x8xf32>
    "tpu.trace_stop"() : () -> ()
    %95 = vector.extract_strided_slice %45 {offsets = [0, 0, 16], sizes = [4, 32, 8], strides = [1, 1, 1]} : vector<4x32x32xbf16> to vector<4x32x8xbf16>
    %96 = vector.extract_strided_slice %47 {offsets = [0, 0, 16], sizes = [4, 32, 8], strides = [1, 1, 1]} : vector<4x32x32xbf16> to vector<4x32x8xbf16>
    %97 = vector.extract_strided_slice %49 {offsets = [0, 0, 16], sizes = [4, 32, 8], strides = [1, 1, 1]} : vector<4x32x32xbf16> to vector<4x32x8xbf16>
    "tpu.trace_start"() <{level = 10 : i32, message = "gnd,gmd->gnm"}> : () -> ()
    %cst_41 = arith.constant dense<0.000000e+00> : vector<4x32x32xf32>
    %98 = tpu.matmul %95, %96, %cst_41 {dimension_numbers = #tpu.dot_dimension_numbers<[2], [2], [1], [1], [0, 0, 0, 1, 1, 1], [0], [0]>} : vector<4x32x8xbf16>, vector<4x32x8xbf16>, vector<4x32x32xf32> -> vector<4x32x32xf32>
    "tpu.trace_stop"() : () -> ()
    %c2 = arith.constant 2 : index
    %c0_42 = arith.constant 0 : index
    %c0_43 = arith.constant 0 : index
    %99 = vector.load %arg13[%c2, %c0_42, %c0_43] : memref<4x32x32xf32, #tpu.memory_space<vmem>>, vector<1x32x32xf32>
    %100 = vector.shape_cast %99 : vector<1x32x32xf32> to vector<32x32xf32>
    %101 = vector.shape_cast %100 : vector<32x32xf32> to vector<1x32x32xf32>
    %102 = vector.broadcast %101 : vector<1x32x32xf32> to vector<4x32x32xf32>
    %103 = arith.addf %98, %102 : vector<4x32x32xf32>
    %104 = arith.addf %103, %50 : vector<4x32x32xf32>
    %cst_44 = arith.constant dense<0xFF800000> : vector<4x32xf32>
    %105 = vector.multi_reduction <maximumf>, %104, %cst_44 [2] : vector<4x32x32xf32> to vector<4x32xf32>
    %106 = vector.shape_cast %105 : vector<4x32xf32> to vector<4x32x1xf32>
    %107 = vector.broadcast %106 : vector<4x32x1xf32> to vector<4x32x32xf32>
    %108 = arith.subf %104, %107 : vector<4x32x32xf32>
    %109 = math.exp %108 : vector<4x32x32xf32>
    %cst_45 = arith.constant dense<0.000000e+00> : vector<4x32xf32>
    %110 = vector.multi_reduction <add>, %109, %cst_45 [2] : vector<4x32x32xf32> to vector<4x32xf32>
    %111 = vector.shape_cast %110 : vector<4x32xf32> to vector<4x32x1xf32>
    %112 = tpu.reciprocal %111 {approx = true} : vector<4x32x1xf32> -> vector<4x32x1xf32>
    %113 = vector.broadcast %112 : vector<4x32x1xf32> to vector<4x32x32xf32>
    %114 = arith.mulf %109, %113 : vector<4x32x32xf32>
    %115 = arith.truncf %114 : vector<4x32x32xf32> to vector<4x32x32xbf16>
    "tpu.trace_start"() <{level = 10 : i32, message = "gnm,gmd->gnd"}> : () -> ()
    %cst_46 = arith.constant dense<0.000000e+00> : vector<4x32x8xf32>
    %116 = tpu.matmul %115, %97, %cst_46 {dimension_numbers = #tpu.dot_dimension_numbers<[2], [1], [1], [2], [0, 0, 0, 1, 1, 2], [0], [0]>} : vector<4x32x32xbf16>, vector<4x32x8xbf16>, vector<4x32x8xf32> -> vector<4x32x8xf32>
    "tpu.trace_stop"() : () -> ()
    %117 = vector.extract_strided_slice %45 {offsets = [0, 0, 24], sizes = [4, 32, 8], strides = [1, 1, 1]} : vector<4x32x32xbf16> to vector<4x32x8xbf16>
    %118 = vector.extract_strided_slice %47 {offsets = [0, 0, 24], sizes = [4, 32, 8], strides = [1, 1, 1]} : vector<4x32x32xbf16> to vector<4x32x8xbf16>
    %119 = vector.extract_strided_slice %49 {offsets = [0, 0, 24], sizes = [4, 32, 8], strides = [1, 1, 1]} : vector<4x32x32xbf16> to vector<4x32x8xbf16>
    "tpu.trace_start"() <{level = 10 : i32, message = "gnd,gmd->gnm"}> : () -> ()
    %cst_47 = arith.constant dense<0.000000e+00> : vector<4x32x32xf32>
    %120 = tpu.matmul %117, %118, %cst_47 {dimension_numbers = #tpu.dot_dimension_numbers<[2], [2], [1], [1], [0, 0, 0, 1, 1, 1], [0], [0]>} : vector<4x32x8xbf16>, vector<4x32x8xbf16>, vector<4x32x32xf32> -> vector<4x32x32xf32>
    "tpu.trace_stop"() : () -> ()
    %c3 = arith.constant 3 : index
    %c0_48 = arith.constant 0 : index
    %c0_49 = arith.constant 0 : index
    %121 = vector.load %arg13[%c3, %c0_48, %c0_49] : memref<4x32x32xf32, #tpu.memory_space<vmem>>, vector<1x32x32xf32>
    %122 = vector.shape_cast %121 : vector<1x32x32xf32> to vector<32x32xf32>
    %123 = vector.shape_cast %122 : vector<32x32xf32> to vector<1x32x32xf32>
    %124 = vector.broadcast %123 : vector<1x32x32xf32> to vector<4x32x32xf32>
    %125 = arith.addf %120, %124 : vector<4x32x32xf32>
    %126 = arith.addf %125, %50 : vector<4x32x32xf32>
    %cst_50 = arith.constant dense<0xFF800000> : vector<4x32xf32>
    %127 = vector.multi_reduction <maximumf>, %126, %cst_50 [2] : vector<4x32x32xf32> to vector<4x32xf32>
    %128 = vector.shape_cast %127 : vector<4x32xf32> to vector<4x32x1xf32>
    %129 = vector.broadcast %128 : vector<4x32x1xf32> to vector<4x32x32xf32>
    %130 = arith.subf %126, %129 : vector<4x32x32xf32>
    %131 = math.exp %130 : vector<4x32x32xf32>
    %cst_51 = arith.constant dense<0.000000e+00> : vector<4x32xf32>
    %132 = vector.multi_reduction <add>, %131, %cst_51 [2] : vector<4x32x32xf32> to vector<4x32xf32>
    %133 = vector.shape_cast %132 : vector<4x32xf32> to vector<4x32x1xf32>
    %134 = tpu.reciprocal %133 {approx = true} : vector<4x32x1xf32> -> vector<4x32x1xf32>
    %135 = vector.broadcast %134 : vector<4x32x1xf32> to vector<4x32x32xf32>
    %136 = arith.mulf %131, %135 : vector<4x32x32xf32>
    %137 = arith.truncf %136 : vector<4x32x32xf32> to vector<4x32x32xbf16>
    "tpu.trace_start"() <{level = 10 : i32, message = "gnm,gmd->gnd"}> : () -> ()
    %cst_52 = arith.constant dense<0.000000e+00> : vector<4x32x8xf32>
    %138 = tpu.matmul %137, %119, %cst_52 {dimension_numbers = #tpu.dot_dimension_numbers<[2], [1], [1], [2], [0, 0, 0, 1, 1, 2], [0], [0]>} : vector<4x32x32xbf16>, vector<4x32x8xbf16>, vector<4x32x8xf32> -> vector<4x32x8xf32>
    "tpu.trace_stop"() : () -> ()
    %139 = tpu.concatenate %72, %94, %116, %138 in 2 : vector<4x32x8xf32>, vector<4x32x8xf32>, vector<4x32x8xf32>, vector<4x32x8xf32> -> vector<4x32x32xf32>
    %140 = vector.shape_cast %139 : vector<4x32x32xf32> to vector<128x32xf32>
    %141 = arith.truncf %140 : vector<128x32xf32> to vector<128x32xbf16>
    %c0_53 = arith.constant 0 : index
    %c0_54 = arith.constant 0 : index
    %142 = vector.load %arg11[%c0_53, %c0_54] : memref<32x32xbf16, #tpu.memory_space<vmem>>, vector<32x32xbf16>
    %cst_55 = arith.constant dense<0.000000e+00> : vector<128x32xf32>
    %143 = tpu.matmul %141, %142, %cst_55 {dimension_numbers = #tpu.dot_dimension_numbers<[1], [0], [0], [1], [0, 0, 1, 1], [], []>} : vector<128x32xbf16>, vector<32x32xbf16>, vector<128x32xf32> -> vector<128x32xf32>
    %c0_56 = arith.constant 0 : index
    %c0_57 = arith.constant 0 : index
    %144 = vector.load %arg12[%c0_56, %c0_57] : memref<1x32xf32, #tpu.memory_space<vmem>>, vector<1x32xf32>
    %145 = vector.broadcast %144 : vector<1x32xf32> to vector<128x32xf32>
    %146 = arith.addf %143, %145 : vector<128x32xf32>
    %147 = vector.shape_cast %146 : vector<128x32xf32> to vector<4x32x32xf32>
    %c0_58 = arith.constant 0 : index
    %c0_59 = arith.constant 0 : index
    %c0_60 = arith.constant 0 : index
    %148 = vector.load %arg15[%c0_58, %c0_59, %c0_60] : memref<4x32x32xf32, #tpu.memory_space<vmem>>, vector<4x32x32xf32>
    tpu.vector_store %arg15[%c0_58, %c0_59, %c0_60], %147 {strides = array<i32>} : memref<4x32x32xf32, #tpu.memory_space<vmem>>, vector<4x32x32xf32>,
    return
  }
  func.func @transform_0(%arg0: i32, %arg1: i32) -> (i32, i32, i32) {
    %c2_i32 = arith.constant 2 : i32
    %0 = arith.muli %arg0, %c2_i32 : i32
    %1 = arith.addi %0, %arg1 : i32
    %c0_i32 = arith.constant 0 : i32
    %c0_i32_0 = arith.constant 0 : i32
    %c0_i32_1 = arith.constant 0 : i32
    return %1, %c0_i32, %c0_i32_0 : i32, i32, i32
  }
  func.func @transform_1(%arg0: i32, %arg1: i32) -> (i32, i32) {
    %c0_i32 = arith.constant 0 : i32
    %c0_i32_0 = arith.constant 0 : i32
    %c0_i32_1 = arith.constant 0 : i32
    return %c0_i32, %c0_i32_0 : i32, i32
  }
  func.func @transform_2(%arg0: i32, %arg1: i32) -> (i32, i32) {
    %c0_i32 = arith.constant 0 : i32
    %c0_i32_0 = arith.constant 0 : i32
    %c0_i32_1 = arith.constant 0 : i32
    return %c0_i32, %c0_i32_0 : i32, i32
  }
  func.func @transform_3(%arg0: i32, %arg1: i32) -> (i32, i32) {
    %c0_i32 = arith.constant 0 : i32
    %c0_i32_0 = arith.constant 0 : i32
    %c0_i32_1 = arith.constant 0 : i32
    return %c0_i32, %c0_i32_0 : i32, i32
  }
  func.func @transform_4(%arg0: i32, %arg1: i32) -> (i32, i32) {
    %c0_i32 = arith.constant 0 : i32
    %c0_i32_0 = arith.constant 0 : i32
    %c0_i32_1 = arith.constant 0 : i32
    return %c0_i32, %c0_i32_0 : i32, i32
  }
  func.func @transform_5(%arg0: i32, %arg1: i32) -> (i32, i32) {
    %c0_i32 = arith.constant 0 : i32
    %c0_i32_0 = arith.constant 0 : i32
    %c0_i32_1 = arith.constant 0 : i32
    return %c0_i32, %c0_i32_0 : i32, i32
  }
  func.func @transform_6(%arg0: i32, %arg1: i32) -> (i32, i32) {
    %c0_i32 = arith.constant 0 : i32
    %c0_i32_0 = arith.constant 0 : i32
    %c0_i32_1 = arith.constant 0 : i32
    return %c0_i32, %c0_i32_0 : i32, i32
  }
  func.func @transform_7(%arg0: i32, %arg1: i32) -> (i32, i32) {
    %c0_i32 = arith.constant 0 : i32
    %c0_i32_0 = arith.constant 0 : i32
    %c0_i32_1 = arith.constant 0 : i32
    return %c0_i32, %c0_i32_0 : i32, i32
  }
  func.func @transform_8(%arg0: i32, %arg1: i32) -> (i32, i32) {
    %c0_i32 = arith.constant 0 : i32
    %c0_i32_0 = arith.constant 0 : i32
    %c0_i32_1 = arith.constant 0 : i32
    return %c0_i32, %c0_i32_0 : i32, i32
  }
  func.func @transform_9(%arg0: i32, %arg1: i32) -> (i32, i32) {
    %c0_i32 = arith.constant 0 : i32
    %c0_i32_0 = arith.constant 0 : i32
    %c0_i32_1 = arith.constant 0 : i32
    return %c0_i32, %c0_i32_0 : i32, i32
  }
  func.func @transform_10(%arg0: i32, %arg1: i32) -> (i32, i32) {
    %c0_i32 = arith.constant 0 : i32
    %c0_i32_0 = arith.constant 0 : i32
    %c0_i32_1 = arith.constant 0 : i32
    return %c0_i32, %c0_i32_0 : i32, i32
  }
  func.func @transform_11(%arg0: i32, %arg1: i32) -> (i32, i32, i32) {
    %c0_i32 = arith.constant 0 : i32
    %c0_i32_0 = arith.constant 0 : i32
    %c0_i32_1 = arith.constant 0 : i32
    %c0_i32_2 = arith.constant 0 : i32
    return %c0_i32, %c0_i32_0, %c0_i32_1 : i32, i32, i32
  }
  func.func @transform_12(%arg0: i32, %arg1: i32) -> (i32, i32, i32) {
    %c0_i32 = arith.constant 0 : i32
    %c0_i32_0 = arith.constant 0 : i32
    %c0_i32_1 = arith.constant 0 : i32
    return %arg1, %c0_i32, %c0_i32_0 : i32, i32, i32
  }
  func.func @transform_13(%arg0: i32, %arg1: i32) -> (i32, i32, i32) {
    %c2_i32 = arith.constant 2 : i32
    %0 = arith.muli %arg0, %c2_i32 : i32
    %1 = arith.addi %0, %arg1 : i32
    %c0_i32 = arith.constant 0 : i32
    %c0_i32_0 = arith.constant 0 : i32
    %c0_i32_1 = arith.constant 0 : i32
    return %1, %c0_i32, %c0_i32_0 : i32, i32, i32
  }
}

module attributes {stable_mosaic.version = 11 : i64} {
  func.func @mlp_kernel(%arg0: i32, %arg1: memref<256x32xf32, #tpu.memory_space<vmem>>, %arg2: memref<256x32xf32, #tpu.memory_space<vmem>>, %arg3: memref<1x32xf32, #tpu.memory_space<vmem>>, %arg4: memref<1x32xf32, #tpu.memory_space<vmem>>, %arg5: memref<32x128xbf16, #tpu.memory_space<vmem>>, %arg6: memref<1x128xf32, #tpu.memory_space<vmem>>, %arg7: memref<128x32xbf16, #tpu.memory_space<vmem>>, %arg8: memref<1x32xf32, #tpu.memory_space<vmem>>, %arg9: memref<256x32xf32, #tpu.memory_space<vmem>>) attributes {dimension_semantics = [#tpu.dimension_semantics<parallel>], iteration_bounds = array<i64: 2>, scalar_prefetch = 0 : i64, scratch_operands = 0 : i64, tpu.core_type = #tpu.core_type<tc>, window_params = [{transform_indices = @transform_0, window_bounds = array<i64: 256, 32>}, {transform_indices = @transform_1, window_bounds = array<i64: 256, 32>}, {pipeline_mode = #tpu.pipeline_mode<synchronous>, transform_indices = @transform_2, window_bounds = array<i64: 1, 32>}, {pipeline_mode = #tpu.pipeline_mode<synchronous>, transform_indices = @transform_3, window_bounds = array<i64: 1, 32>}, {pipeline_mode = #tpu.pipeline_mode<synchronous>, transform_indices = @transform_4, window_bounds = array<i64: 32, 128>}, {pipeline_mode = #tpu.pipeline_mode<synchronous>, transform_indices = @transform_5, window_bounds = array<i64: 1, 128>}, {pipeline_mode = #tpu.pipeline_mode<synchronous>, transform_indices = @transform_6, window_bounds = array<i64: 128, 32>}, {pipeline_mode = #tpu.pipeline_mode<synchronous>, transform_indices = @transform_7, window_bounds = array<i64: 1, 32>}, {transform_indices = @transform_8, window_bounds = array<i64: 256, 32>}]} {
    %c0 = arith.constant 0 : index
    %c0_0 = arith.constant 0 : index
    %0 = vector.load %arg1[%c0, %c0_0] : memref<256x32xf32, #tpu.memory_space<vmem>>, vector<256x32xf32>
    %c0_1 = arith.constant 0 : index
    %c0_2 = arith.constant 0 : index
    %1 = vector.load %arg2[%c0_1, %c0_2] : memref<256x32xf32, #tpu.memory_space<vmem>>, vector<256x32xf32>
    %2 = arith.addf %0, %1 : vector<256x32xf32>
    %cst = arith.constant dense<0.000000e+00> : vector<256xf32>
    %3 = vector.multi_reduction <add>, %2, %cst [1] : vector<256x32xf32> to vector<256xf32>
    %4 = vector.shape_cast %3 : vector<256xf32> to vector<256x1xf32>
    %cst_3 = arith.constant 3.200000e+01 : f32
    %5 = vector.broadcast %cst_3 : f32 to vector<256x1xf32>
    %6 = arith.divf %4, %5 : vector<256x1xf32>
    %7 = vector.broadcast %6 : vector<256x1xf32> to vector<256x32xf32>
    %8 = arith.subf %2, %7 : vector<256x32xf32>
    %9 = arith.mulf %8, %8 : vector<256x32xf32>
    %cst_4 = arith.constant dense<0.000000e+00> : vector<256xf32>
    %10 = vector.multi_reduction <add>, %9, %cst_4 [1] : vector<256x32xf32> to vector<256xf32>
    %11 = vector.shape_cast %10 : vector<256xf32> to vector<256x1xf32>
    %cst_5 = arith.constant 3.200000e+01 : f32
    %12 = vector.broadcast %cst_5 : f32 to vector<256x1xf32>
    %13 = arith.divf %11, %12 : vector<256x1xf32>
    %14 = vector.broadcast %6 : vector<256x1xf32> to vector<256x32xf32>
    %15 = arith.subf %2, %14 : vector<256x32xf32>
    %cst_6 = arith.constant 9.99999974E-6 : f32
    %16 = vector.broadcast %cst_6 : f32 to vector<256x1xf32>
    %17 = arith.addf %13, %16 : vector<256x1xf32>
    %18 = math.rsqrt %17 : vector<256x1xf32>
    %19 = vector.broadcast %18 : vector<256x1xf32> to vector<256x32xf32>
    %20 = arith.mulf %15, %19 : vector<256x32xf32>
    %c0_7 = arith.constant 0 : index
    %c0_8 = arith.constant 0 : index
    %21 = vector.load %arg3[%c0_7, %c0_8] : memref<1x32xf32, #tpu.memory_space<vmem>>, vector<1x32xf32>
    %22 = vector.broadcast %21 : vector<1x32xf32> to vector<256x32xf32>
    %23 = arith.mulf %20, %22 : vector<256x32xf32>
    %c0_9 = arith.constant 0 : index
    %c0_10 = arith.constant 0 : index
    %24 = vector.load %arg4[%c0_9, %c0_10] : memref<1x32xf32, #tpu.memory_space<vmem>>, vector<1x32xf32>
    %25 = vector.broadcast %24 : vector<1x32xf32> to vector<256x32xf32>
    %26 = arith.addf %23, %25 : vector<256x32xf32>
    %27 = arith.truncf %26 : vector<256x32xf32> to vector<256x32xbf16>
    %c0_11 = arith.constant 0 : index
    %c0_12 = arith.constant 0 : index
    %28 = vector.load %arg5[%c0_11, %c0_12] : memref<32x128xbf16, #tpu.memory_space<vmem>>, vector<32x128xbf16>
    %cst_13 = arith.constant dense<0.000000e+00> : vector<256x128xf32>
    %29 = tpu.matmul %27, %28, %cst_13 {dimension_numbers = #tpu.dot_dimension_numbers<[1], [0], [0], [1], [0, 0, 1, 1], [], []>} : vector<256x32xbf16>, vector<32x128xbf16>, vector<256x128xf32> -> vector<256x128xf32>
    %c0_14 = arith.constant 0 : index
    %c0_15 = arith.constant 0 : index
    %30 = vector.load %arg6[%c0_14, %c0_15] : memref<1x128xf32, #tpu.memory_space<vmem>>, vector<1x128xf32>
    %31 = vector.broadcast %30 : vector<1x128xf32> to vector<256x128xf32>
    %32 = arith.addf %29, %31 : vector<256x128xf32>
    %cst_16 = arith.constant 5.000000e-01 : f32
    %33 = vector.broadcast %cst_16 : f32 to vector<256x128xf32>
    %34 = arith.mulf %33, %32 : vector<256x128xf32>
    %cst_17 = arith.constant 4.471500e-02 : f32
    %35 = vector.broadcast %cst_17 : f32 to vector<256x128xf32>
    %36 = arith.mulf %35, %32 : vector<256x128xf32>
    %37 = arith.mulf %36, %32 : vector<256x128xf32>
    %38 = arith.mulf %37, %32 : vector<256x128xf32>
    %39 = arith.addf %32, %38 : vector<256x128xf32>
    %cst_18 = arith.constant 0.797884583 : f32
    %40 = vector.broadcast %cst_18 : f32 to vector<256x128xf32>
    %41 = arith.mulf %40, %39 : vector<256x128xf32>
    %42 = math.tanh %41 : vector<256x128xf32>
    %cst_19 = arith.constant 1.000000e+00 : f32
    %43 = vector.broadcast %cst_19 : f32 to vector<256x128xf32>
    %44 = arith.addf %43, %42 : vector<256x128xf32>
    %45 = arith.mulf %34, %44 : vector<256x128xf32>
    %46 = arith.truncf %45 : vector<256x128xf32> to vector<256x128xbf16>
    %c0_20 = arith.constant 0 : index
    %c0_21 = arith.constant 0 : index
    %47 = vector.load %arg7[%c0_20, %c0_21] : memref<128x32xbf16, #tpu.memory_space<vmem>>, vector<128x32xbf16>
    %cst_22 = arith.constant dense<0.000000e+00> : vector<256x32xf32>
    %48 = tpu.matmul %46, %47, %cst_22 {dimension_numbers = #tpu.dot_dimension_numbers<[1], [0], [0], [1], [0, 0, 1, 1], [], []>} : vector<256x128xbf16>, vector<128x32xbf16>, vector<256x32xf32> -> vector<256x32xf32>
    %c0_23 = arith.constant 0 : index
    %c0_24 = arith.constant 0 : index
    %49 = vector.load %arg8[%c0_23, %c0_24] : memref<1x32xf32, #tpu.memory_space<vmem>>, vector<1x32xf32>
    %50 = vector.broadcast %49 : vector<1x32xf32> to vector<256x32xf32>
    %51 = arith.addf %48, %50 : vector<256x32xf32>
    %52 = arith.addf %2, %51 : vector<256x32xf32>
    %c0_25 = arith.constant 0 : index
    %c0_26 = arith.constant 0 : index
    %53 = vector.load %arg9[%c0_25, %c0_26] : memref<256x32xf32, #tpu.memory_space<vmem>>, vector<256x32xf32>
    tpu.vector_store %arg9[%c0_25, %c0_26], %52 {strides = array<i32>} : memref<256x32xf32, #tpu.memory_space<vmem>>, vector<256x32xf32>,
    return
  }
  func.func @transform_0(%arg0: i32) -> (i32, i32) {
    %c0_i32 = arith.constant 0 : i32
    %c0_i32_0 = arith.constant 0 : i32
    return %arg0, %c0_i32 : i32, i32
  }
  func.func @transform_1(%arg0: i32) -> (i32, i32) {
    %c0_i32 = arith.constant 0 : i32
    %c0_i32_0 = arith.constant 0 : i32
    return %arg0, %c0_i32 : i32, i32
  }
  func.func @transform_2(%arg0: i32) -> (i32, i32) {
    %c0_i32 = arith.constant 0 : i32
    %c0_i32_0 = arith.constant 0 : i32
    %c0_i32_1 = arith.constant 0 : i32
    return %c0_i32, %c0_i32_0 : i32, i32
  }
  func.func @transform_3(%arg0: i32) -> (i32, i32) {
    %c0_i32 = arith.constant 0 : i32
    %c0_i32_0 = arith.constant 0 : i32
    %c0_i32_1 = arith.constant 0 : i32
    return %c0_i32, %c0_i32_0 : i32, i32
  }
  func.func @transform_4(%arg0: i32) -> (i32, i32) {
    %c0_i32 = arith.constant 0 : i32
    %c0_i32_0 = arith.constant 0 : i32
    %c0_i32_1 = arith.constant 0 : i32
    return %c0_i32, %c0_i32_0 : i32, i32
  }
  func.func @transform_5(%arg0: i32) -> (i32, i32) {
    %c0_i32 = arith.constant 0 : i32
    %c0_i32_0 = arith.constant 0 : i32
    %c0_i32_1 = arith.constant 0 : i32
    return %c0_i32, %c0_i32_0 : i32, i32
  }
  func.func @transform_6(%arg0: i32) -> (i32, i32) {
    %c0_i32 = arith.constant 0 : i32
    %c0_i32_0 = arith.constant 0 : i32
    %c0_i32_1 = arith.constant 0 : i32
    return %c0_i32, %c0_i32_0 : i32, i32
  }
  func.func @transform_7(%arg0: i32) -> (i32, i32) {
    %c0_i32 = arith.constant 0 : i32
    %c0_i32_0 = arith.constant 0 : i32
    %c0_i32_1 = arith.constant 0 : i32
    return %c0_i32, %c0_i32_0 : i32, i32
  }
  func.func @transform_8(%arg0: i32) -> (i32, i32) {
    %c0_i32 = arith.constant 0 : i32
    %c0_i32_0 = arith.constant 0 : i32
    return %arg0, %c0_i32 : i32, i32
  }
}

</mosaic_0001>

<llo_original>
// kernel: swin_block_forward.3
$region0: #{swin_block_forward.3}
  #allocation0 [shape = 'u32[]', space=smem, size = 0x4, offset = 0x4, fixed_abs, tag = 'smem constant byte address 0x4 - core index']
  #allocation1 [shape = 'u32[144,128]{1,0:T(1,128)}', space=vmem, size = 0x12000, scoped, tag = 'internal scratch']
  %s0 = inlined_call_operand.vmem [shape: f32[512,32], index: 0, kind: input, shape index: {}]
  %s1 = inlined_call_operand.vmem [shape: f32[512,32], index: 1, kind: input, shape index: {}]
  %s2 = inlined_call_operand.vmem [shape: f32[1,32], index: 2, kind: input, shape index: {}]
  %s3 = inlined_call_operand.vmem [shape: f32[1,32], index: 3, kind: input, shape index: {}]
  %s4 = inlined_call_operand.vmem [shape: bf16[32,128], index: 4, kind: input, shape index: {}]
  %s5 = inlined_call_operand.vmem [shape: f32[1,128], index: 5, kind: input, shape index: {}]
  %s6 = inlined_call_operand.vmem [shape: bf16[128,32], index: 6, kind: input, shape index: {}]
  %s7 = inlined_call_operand.vmem [shape: f32[1,32], index: 7, kind: input, shape index: {}]
  %s8 = inlined_call_operand.hbm [shape: f32[512,32], index: 8, kind: output, shape index: {}]
  %s9 = sld [smem:[#allocation0]]
  $region65: #{swin_block_forward.3} parent=0
    _
  %s11 = ssub.s32 1, %s9
  %s12 = scalar_select 0, %s11, %s9
  $region1: #{swin_block_forward.3} parent=0
    #allocation2 [shape = 'u8[262144]{0}', space=vmem, size = 0x40000, scoped, tag = 'output window, operand 0']
    #allocation3 [shape = 's32[2]{0}', space=sflag, size = 0x8, scoped, tag = 'scoped memory for swin_block_forward.3']
    %13 = vsyncpa [#allocation3], 0
    %s14 = scalar_lea.sflag [#allocation3], 1
    %15 = vsyncpa %s14, 0
    loop: start=0, step=1, limit=4
    $region2: #{swin_block_forward.3} parent=1 // loop_pre_header
      _
    $region3: #{swin_block_forward.3} parent=1 // loop_header
      %s17 = sphi 0, %s21
      %p18 = scmp.ge.s32.totalorder %s17, 4
      %s27 = sphi 0, %s29
      %s30 = sphi 0, %s27
      %s31 = sphi 0, %s30
      %s47 = sphi 0, %s31
      %s53 = sphi 0, %s55
      %s56 = sphi 0, %s53
      %s57 = sphi 0, %s56
      %s73 = sphi 0, %s57
      %s77 = sphi 0, %s77
      %s79 = sphi 0, %s77
      %s80 = sphi 0, %s79
      %s94 = sphi 0, %s80
      %s98 = sphi 0, %s98
      %s100 = sphi 0, %s98
      %s101 = sphi 0, %s100
      %s115 = sphi 0, %s101
      %s119 = sphi 0, %s119
      %s121 = sphi 0, %s119
      %s122 = sphi 0, %s121
      %s136 = sphi 0, %s122
      %s140 = sphi 0, %s140
      %s142 = sphi 0, %s140
      %s143 = sphi 0, %s142
      %s157 = sphi 0, %s143
      %s161 = sphi 0, %s161
      %s163 = sphi 0, %s161
      %s164 = sphi 0, %s163
      %s178 = sphi 0, %s164
      %s182 = sphi 0, %s182
      %s184 = sphi 0, %s182
      %s185 = sphi 0, %s184
      %s199 = sphi 0, %s185
      %s205 = sphi 0, %s207
      %s208 = sphi 0, %s205
      %s209 = sphi 0, %s208
      %s225 = sphi 0, %s209
    $region4: #{swin_block_forward.3} parent=1 // loop_header_branch
      %20 = sbr.rel (%p18) target = $region8
    $region5: #{swin_block_forward.3} parent=1 // loop_body
      %s22 = ssub.s32 %s17, 1
      %s23 = ssub.s32 %s17, 2
      %s24 = sadd.s32 %s17, 1
      %s25 = ssub.s32 %s17, %s24
      %p26 = scmp.eq.s32.totalorder %s25, 0
      %s28 = sadd.s32 %s27, 1
      %s29 = scalar_select %p26, %s27, %s28
      %p32 = pneg %p26
      %p33 = scmp.eq.s32.totalorder %s17, 1
      %p34 = por %p32, %p33
      %p35 = scmp.ne.s32.totalorder %s27, %s30
      %p36 = scmp.eq.s32.totalorder %s17, 0
      %p37 = por %p35, %p36
      %p38 = scmp.ne.s32.totalorder %s27, %s30
      %p39 = scmp.eq.s32.totalorder %s22, 1
      %p40 = por %p38, %p39
      %p41 = scmp.ne.s32.totalorder %s30, %s31
      %p42 = scmp.eq.s32.totalorder %s22, 0
      %p43 = por %p41, %p42
      %p44 = scmp.ne.s32.totalorder %s30, %s31
      %p45 = scmp.eq.s32.totalorder %s23, 1
      %p46 = por %p44, %p45
      %p48 = scmp.ne.s32.totalorder %s31, %s47
      %p49 = scmp.eq.s32.totalorder %s23, 0
      %p50 = por %p48, %p49
      %s51 = ssub.s32 %s17, %s24
      %p52 = scmp.eq.s32.totalorder %s51, 0
      %s54 = sadd.s32 %s53, 1
      %s55 = scalar_select %p52, %s53, %s54
      %p58 = pneg %p52
      %p59 = scmp.eq.s32.totalorder %s17, 1
      %p60 = por %p58, %p59
      %p61 = scmp.ne.s32.totalorder %s53, %s56
      %p62 = scmp.eq.s32.totalorder %s17, 0
      %p63 = por %p61, %p62
      %p64 = scmp.ne.s32.totalorder %s53, %s56
      %p65 = scmp.eq.s32.totalorder %s22, 1
      %p66 = por %p64, %p65
      %p67 = scmp.ne.s32.totalorder %s56, %s57
      %p68 = scmp.eq.s32.totalorder %s22, 0
      %p69 = por %p67, %p68
      %p70 = scmp.ne.s32.totalorder %s56, %s57
      %p71 = scmp.eq.s32.totalorder %s23, 1
      %p72 = por %p70, %p71
      %p74 = scmp.ne.s32.totalorder %s57, %s73
      %p75 = scmp.eq.s32.totalorder %s23, 0
      %p76 = por %p74, %p75
      %s78 = sadd.s32 %s77, 1
      %p81 = scmp.eq.s32.totalorder %s17, 1
      %p82 = scmp.ne.s32.totalorder %s77, %s79
      %p83 = scmp.eq.s32.totalorder %s17, 0
      %p84 = por %p82, %p83
      %p85 = scmp.ne.s32.totalorder %s77, %s79
      %p86 = scmp.eq.s32.totalorder %s22, 1
      %p87 = por %p85, %p86
      %p88 = scmp.ne.s32.totalorder %s79, %s80
      %p89 = scmp.eq.s32.totalorder %s22, 0
      %p90 = por %p88, %p89
      %p91 = scmp.ne.s32.totalorder %s79, %s80
      %p92 = scmp.eq.s32.totalorder %s23, 1
      %p93 = por %p91, %p92
      %p95 = scmp.ne.s32.totalorder %s80, %s94
      %p96 = scmp.eq.s32.totalorder %s23, 0
      %p97 = por %p95, %p96
      %s99 = sadd.s32 %s98, 1
      %p102 = scmp.eq.s32.totalorder %s17, 1
      %p103 = scmp.ne.s32.totalorder %s98, %s100
      %p104 = scmp.eq.s32.totalorder %s17, 0
      %p105 = por %p103, %p104
      %p106 = scmp.ne.s32.totalorder %s98, %s100
      %p107 = scmp.eq.s32.totalorder %s22, 1
      %p108 = por %p106, %p107
      %p109 = scmp.ne.s32.totalorder %s100, %s101
      %p110 = scmp.eq.s32.totalorder %s22, 0
      %p111 = por %p109, %p110
      %p112 = scmp.ne.s32.totalorder %s100, %s101
      %p113 = scmp.eq.s32.totalorder %s23, 1
      %p114 = por %p112, %p113
      %p116 = scmp.ne.s32.totalorder %s101, %s115
      %p117 = scmp.eq.s32.totalorder %s23, 0
      %p118 = por %p116, %p117
      %s120 = sadd.s32 %s119, 1
      %p123 = scmp.eq.s32.totalorder %s17, 1
      %p124 = scmp.ne.s32.totalorder %s119, %s121
      %p125 = scmp.eq.s32.totalorder %s17, 0
      %p126 = por %p124, %p125
      %p127 = scmp.ne.s32.totalorder %s119, %s121
      %p128 = scmp.eq.s32.totalorder %s22, 1
      %p129 = por %p127, %p128
      %p130 = scmp.ne.s32.totalorder %s121, %s122
      %p131 = scmp.eq.s32.totalorder %s22, 0
      %p132 = por %p130, %p131
      %p133 = scmp.ne.s32.totalorder %s121, %s122
      %p134 = scmp.eq.s32.totalorder %s23, 1
      %p135 = por %p133, %p134
      %p137 = scmp.ne.s32.totalorder %s122, %s136
      %p138 = scmp.eq.s32.totalorder %s23, 0
      %p139 = por %p137, %p138
      %s141 = sadd.s32 %s140, 1
      %p144 = scmp.eq.s32.totalorder %s17, 1
      %p145 = scmp.ne.s32.totalorder %s140, %s142
      %p146 = scmp.eq.s32.totalorder %s17, 0
      %p147 = por %p145, %p146
      %p148 = scmp.ne.s32.totalorder %s140, %s142
      %p149 = scmp.eq.s32.totalorder %s22, 1
      %p150 = por %p148, %p149
      %p151 = scmp.ne.s32.totalorder %s142, %s143
      %p152 = scmp.eq.s32.totalorder %s22, 0
      %p153 = por %p151, %p152
      %p154 = scmp.ne.s32.totalorder %s142, %s143
      %p155 = scmp.eq.s32.totalorder %s23, 1
      %p156 = por %p154, %p155
      %p158 = scmp.ne.s32.totalorder %s143, %s157
      %p159 = scmp.eq.s32.totalorder %s23, 0
      %p160 = por %p158, %p159
      %s162 = sadd.s32 %s161, 1
      %p165 = scmp.eq.s32.totalorder %s17, 1
      %p166 = scmp.ne.s32.totalorder %s161, %s163
      %p167 = scmp.eq.s32.totalorder %s17, 0
      %p168 = por %p166, %p167
      %p169 = scmp.ne.s32.totalorder %s161, %s163
      %p170 = scmp.eq.s32.totalorder %s22, 1
      %p171 = por %p169, %p170
      %p172 = scmp.ne.s32.totalorder %s163, %s164
      %p173 = scmp.eq.s32.totalorder %s22, 0
      %p174 = por %p172, %p173
      %p175 = scmp.ne.s32.totalorder %s163, %s164
      %p176 = scmp.eq.s32.totalorder %s23, 1
      %p177 = por %p175, %p176
      %p179 = scmp.ne.s32.totalorder %s164, %s178
      %p180 = scmp.eq.s32.totalorder %s23, 0
      %p181 = por %p179, %p180
      %s183 = sadd.s32 %s182, 1
      %p186 = scmp.eq.s32.totalorder %s17, 1
      %p187 = scmp.ne.s32.totalorder %s182, %s184
      %p188 = scmp.eq.s32.totalorder %s17, 0
      %p189 = por %p187, %p188
      %p190 = scmp.ne.s32.totalorder %s182, %s184
      %p191 = scmp.eq.s32.totalorder %s22, 1
      %p192 = por %p190, %p191
      %p193 = scmp.ne.s32.totalorder %s184, %s185
      %p194 = scmp.eq.s32.totalorder %s22, 0
      %p195 = por %p193, %p194
      %p196 = scmp.ne.s32.totalorder %s184, %s185
      %p197 = scmp.eq.s32.totalorder %s23, 1
      %p198 = por %p196, %p197
      %p200 = scmp.ne.s32.totalorder %s185, %s199
      %p201 = scmp.eq.s32.totalorder %s23, 0
      %p202 = por %p200, %p201
      %s203 = ssub.s32 %s17, %s24
      %p204 = scmp.eq.s32.totalorder %s203, 0
      %s206 = sadd.s32 %s205, 1
      %s207 = scalar_select %p204, %s205, %s206
      %p210 = pneg %p204
      %p211 = scmp.eq.s32.totalorder %s17, 1
      %p212 = por %p210, %p211
      %p213 = scmp.ne.s32.totalorder %s205, %s208
      %p214 = scmp.eq.s32.totalorder %s17, 0
      %p215 = por %p213, %p214
      %p216 = scmp.ne.s32.totalorder %s205, %s208
      %p217 = scmp.eq.s32.totalorder %s22, 1
      %p218 = por %p216, %p217
      %p219 = scmp.ne.s32.totalorder %s208, %s209
      %p220 = scmp.eq.s32.totalorder %s22, 0
      %p221 = por %p219, %p220
      %p222 = scmp.ne.s32.totalorder %s208, %s209
      %p223 = scmp.eq.s32.totalorder %s23, 1
      %p224 = por %p222, %p223
      %p226 = scmp.ne.s32.totalorder %s209, %s225
      %p227 = scmp.eq.s32.totalorder %s23, 0
      %p228 = por %p226, %p227
      %p229 = scmp.le.s32.totalorder 1, %s17
      %p230 = scmp.lt.s32.totalorder %s17, 3
      %p231 = pnand %p229, %p230
      %p232 = pneg %p231
      // Predicated region
      $region9: #{swin_block_forward.3} parent=5 // pred_check
        _
      $region10: #{swin_block_forward.3} parent=5 // pred_check_branch
        %234 = sbr.rel (%p231) target = $region12
      $region11: #{swin_block_forward.3} parent=5 // pred_region
        %s235 = ssub.s32 %s17, 1
        // Predicated region
        $region13: #{swin_block_forward.3} parent=11 // pred_check
          %p236 = pneg %p90
        $region14: #{swin_block_forward.3} parent=11 // pred_check_branch
          %238 = sbr.rel (%p236) target = $region16
        $region15: #{swin_block_forward.3} parent=11 // pred_region
          _
        $region16: #{swin_block_forward.3} parent=11 // pred_fallthru
          _
        // Predicated region
        $region17: #{swin_block_forward.3} parent=11 // pred_check
          %p239 = pneg %p111
        $region18: #{swin_block_forward.3} parent=11 // pred_check_branch
          %241 = sbr.rel (%p239) target = $region20
        $region19: #{swin_block_forward.3} parent=11 // pred_region
          _
        $region20: #{swin_block_forward.3} parent=11 // pred_fallthru
          _
        // Predicated region
        $region21: #{swin_block_forward.3} parent=11 // pred_check
          %p242 = pneg %p132
        $region22: #{swin_block_forward.3} parent=11 // pred_check_branch
          %244 = sbr.rel (%p242) target = $region24
        $region23: #{swin_block_forward.3} parent=11 // pred_region
          _
        $region24: #{swin_block_forward.3} parent=11 // pred_fallthru
          _
        // Predicated region
        $region25: #{swin_block_forward.3} parent=11 // pred_check
          %p245 = pneg %p153
        $region26: #{swin_block_forward.3} parent=11 // pred_check_branch
          %247 = sbr.rel (%p245) target = $region28
        $region27: #{swin_block_forward.3} parent=11 // pred_region
          _
        $region28: #{swin_block_forward.3} parent=11 // pred_fallthru
          _
        // Predicated region
        $region29: #{swin_block_forward.3} parent=11 // pred_check
          %p248 = pneg %p174
        $region30: #{swin_block_forward.3} parent=11 // pred_check_branch
          %250 = sbr.rel (%p248) target = $region32
        $region31: #{swin_block_forward.3} parent=11 // pred_region
          _
        $region32: #{swin_block_forward.3} parent=11 // pred_fallthru
          _
        // Predicated region
        $region33: #{swin_block_forward.3} parent=11 // pred_check
          %p251 = pneg %p195
        $region34: #{swin_block_forward.3} parent=11 // pred_check_branch
          %253 = sbr.rel (%p251) target = $region36
        $region35: #{swin_block_forward.3} parent=11 // pred_region
          _
        $region36: #{swin_block_forward.3} parent=11 // pred_fallthru
          _
      $region12: #{swin_block_forward.3} parent=5 // pred_fallthru
        _
      %p254 = scmp.lt.s32.totalorder %s17, 2
      // Predicated region
      $region37: #{swin_block_forward.3} parent=5 // pred_check
        %p255 = pneg %p254
      $region38: #{swin_block_forward.3} parent=5 // pred_check_branch
        %257 = sbr.rel (%p255) target = $region40
      $region39: #{swin_block_forward.3} parent=5 // pred_region
        // Predicated region
        $region41: #{swin_block_forward.3} parent=39 // pred_check
          %p258 = pneg %p37
        $region42: #{swin_block_forward.3} parent=39 // pred_check_branch
          %260 = sbr.rel (%p258) target = $region44
        $region43: #{swin_block_forward.3} parent=39 // pred_region
          %s261 = smul.u32 32, %s17
          %p262 = scmp.lt.s32.totalorder %s261, 63
          %s263 = scalar_select %p262, %s261, 63
          %s264 = smul.addr %s263, 8
          %s265 = scalar_lea.vmem %s0, %s264
          %s266 = smul.u32 32, %s17
        $region44: #{swin_block_forward.3} parent=39 // pred_fallthru
          _
        // Predicated region
        $region45: #{swin_block_forward.3} parent=39 // pred_check
          %p267 = pneg %p63
        $region46: #{swin_block_forward.3} parent=39 // pred_check_branch
          %269 = sbr.rel (%p267) target = $region48
        $region47: #{swin_block_forward.3} parent=39 // pred_region
          %s270 = smul.u32 32, %s17
          %p271 = scmp.lt.s32.totalorder %s270, 63
          %s272 = scalar_select %p271, %s270, 63
          %s273 = smul.addr %s272, 8
          %s274 = scalar_lea.vmem %s1, %s273
          %s275 = smul.u32 32, %s17
        $region48: #{swin_block_forward.3} parent=39 // pred_fallthru
          _
      $region40: #{swin_block_forward.3} parent=5 // pred_fallthru
        _
      %p276 = scmp.le.s32.totalorder 1, %s17
      %p277 = scmp.lt.s32.totalorder %s17, 3
      %p278 = pnand %p276, %p277
      %p279 = pneg %p278
      // Predicated region
      $region49: #{swin_block_forward.3} parent=5 // pred_check
        _
      $region50: #{swin_block_forward.3} parent=5 // pred_check_branch
        %281 = sbr.rel (%p278) target = $region52
      $region51: #{swin_block_forward.3} parent=5 // pred_region
        %s282 = ssub.s32 %s17, 1
        %s283 = smul.u32 32, %s22
        %p284 = scmp.lt.s32.totalorder %s283, 63
        %s285 = scalar_select %p284, %s283, 63
        %s286 = smul.addr %s285, 8
        %s287 = scalar_lea.vmem %s0, %s286
        %p288 = pneg %p43
        %p289 = pneg %p40
        %s290 = smul.u32 32, %s22
        %p291 = scmp.lt.s32.totalorder %s290, 63
        %s292 = scalar_select %p291, %s290, 63
        %s293 = smul.addr %s292, 8
        %s294 = scalar_lea.vmem %s1, %s293
        %p295 = pneg %p69
        %p296 = pneg %p66
        %p297 = pneg %p90
        %p298 = pneg %p87
        %p299 = pneg %p111
        %p300 = pneg %p108
        %p301 = pneg %p132
        %p302 = pneg %p129
        %p303 = pneg %p153
        %p304 = pneg %p150
        %p305 = pneg %p174
        %p306 = pneg %p171
        %p307 = pneg %p195
        %p308 = pneg %p192
        %p309 = pneg %p221
        %p310 = pneg %p218
        %s311 = sand.u32 %s208, 1
        %s312 = scalar_lea.sflag [#allocation3], %s311
        %s313 = sand.u32 %s208, 1
        %s314 = smul.addr %s313, 256
        %s315 = scalar_lea.vmem [#allocation2], %s314
        %s316 = smul.u32 32, %s22
        %p317 = scmp.lt.s32.totalorder %s316, 63
        %s318 = scalar_select %p317, %s316, 63
        %s319 = smul.addr %s318, 8
        %s320 = scalar_lea.vmem %s0, %s319
        %s321 = smul.u32 32, %s22
        %s322 = smul.u32 32, %s22
        %p323 = scmp.lt.s32.totalorder %s322, 63
        %s324 = scalar_select %p323, %s322, 63
        %s325 = smul.addr %s324, 8
        %s326 = scalar_lea.vmem %s1, %s325
        %s327 = smul.u32 32, %s22
        %s328 = smul.u32 32, %s22
        %v330 = vld [vmem:[%s320] sm:$0xff]
        %v331 = vld [vmem:[%s320 + $0x8] sm:$0xff]
        %v332 = vld [vmem:[%s320 + $0x10] sm:$0xff]
        %v333 = vld [vmem:[%s320 + $0x18] sm:$0xff]
        %v334 = vld [vmem:[%s320 + $0x20] sm:$0xff]
        %v335 = vld [vmem:[%s320 + $0x28] sm:$0xff]
        %v336 = vld [vmem:[%s320 + $0x30] sm:$0xff]
        %v337 = vld [vmem:[%s320 + $0x38] sm:$0xff]
        %v338 = vld [vmem:[%s320 + $0x40] sm:$0xff]
        %v339 = vld [vmem:[%s320 + $0x48] sm:$0xff]
        %v340 = vld [vmem:[%s320 + $0x50] sm:$0xff]
        %v341 = vld [vmem:[%s320 + $0x58] sm:$0xff]
        %v342 = vld [vmem:[%s320 + $0x60] sm:$0xff]
        %v343 = vld [vmem:[%s320 + $0x68] sm:$0xff]
        %v344 = vld [vmem:[%s320 + $0x70] sm:$0xff]
        %v345 = vld [vmem:[%s320 + $0x78] sm:$0xff]
        %v346 = vld [vmem:[%s320 + $0x80] sm:$0xff]
        %v347 = vld [vmem:[%s320 + $0x88] sm:$0xff]
        %v348 = vld [vmem:[%s320 + $0x90] sm:$0xff]
        %v349 = vld [vmem:[%s320 + $0x98] sm:$0xff]
        %v350 = vld [vmem:[%s320 + $0xa0] sm:$0xff]
        %v351 = vld [vmem:[%s320 + $0xa8] sm:$0xff]
        %v352 = vld [vmem:[%s320 + $0xb0] sm:$0xff]
        %v353 = vld [vmem:[%s320 + $0xb8] sm:$0xff]
        %v354 = vld [vmem:[%s320 + $0xc0] sm:$0xff]
        %v355 = vld [vmem:[%s320 + $0xc8] sm:$0xff]
        %v356 = vld [vmem:[%s320 + $0xd0] sm:$0xff]
        %v357 = vld [vmem:[%s320 + $0xd8] sm:$0xff]
        %v358 = vld [vmem:[%s320 + $0xe0] sm:$0xff]
        %v359 = vld [vmem:[%s320 + $0xe8] sm:$0xff]
        %v360 = vld [vmem:[%s320 + $0xf0] sm:$0xff]
        %v361 = vld [vmem:[%s320 + $0xf8] sm:$0xff]
        %v362 = vld [vmem:[%s326] sm:$0xff]
        %v363 = vld [vmem:[%s326 + $0x8] sm:$0xff]
        %v364 = vld [vmem:[%s326 + $0x10] sm:$0xff]
        %v365 = vld [vmem:[%s326 + $0x18] sm:$0xff]
        %v366 = vld [vmem:[%s326 + $0x20] sm:$0xff]
        %v367 = vld [vmem:[%s326 + $0x28] sm:$0xff]
        %v368 = vld [vmem:[%s326 + $0x30] sm:$0xff]
        %v369 = vld [vmem:[%s326 + $0x38] sm:$0xff]
        %v370 = vld [vmem:[%s326 + $0x40] sm:$0xff]
        %v371 = vld [vmem:[%s326 + $0x48] sm:$0xff]
        %v372 = vld [vmem:[%s326 + $0x50] sm:$0xff]
        %v373 = vld [vmem:[%s326 + $0x58] sm:$0xff]
        %v374 = vld [vmem:[%s326 + $0x60] sm:$0xff]
        %v375 = vld [vmem:[%s326 + $0x68] sm:$0xff]
        %v376 = vld [vmem:[%s326 + $0x70] sm:$0xff]
        %v377 = vld [vmem:[%s326 + $0x78] sm:$0xff]
        %v378 = vld [vmem:[%s326 + $0x80] sm:$0xff]
        %v379 = vld [vmem:[%s326 + $0x88] sm:$0xff]
        %v380 = vld [vmem:[%s326 + $0x90] sm:$0xff]
        %v381 = vld [vmem:[%s326 + $0x98] sm:$0xff]
        %v382 = vld [vmem:[%s326 + $0xa0] sm:$0xff]
        %v383 = vld [vmem:[%s326 + $0xa8] sm:$0xff]
        %v384 = vld [vmem:[%s326 + $0xb0] sm:$0xff]
        %v385 = vld [vmem:[%s326 + $0xb8] sm:$0xff]
        %v386 = vld [vmem:[%s326 + $0xc0] sm:$0xff]
        %v387 = vld [vmem:[%s326 + $0xc8] sm:$0xff]
        %v388 = vld [vmem:[%s326 + $0xd0] sm:$0xff]
        %v389 = vld [vmem:[%s326 + $0xd8] sm:$0xff]
        %v390 = vld [vmem:[%s326 + $0xe0] sm:$0xff]
        %v391 = vld [vmem:[%s326 + $0xe8] sm:$0xff]
        %v392 = vld [vmem:[%s326 + $0xf0] sm:$0xff]
        %v393 = vld [vmem:[%s326 + $0xf8] sm:$0xff]
        %v394 = vadd.f32 %v330, %v362
        %v395 = vadd.f32 %v331, %v363
        %v396 = vadd.f32 %v332, %v364
        %v397 = vadd.f32 %v333, %v365
        %v398 = vadd.f32 %v334, %v366
        %v399 = vadd.f32 %v335, %v367
        %v400 = vadd.f32 %v336, %v368
        %v401 = vadd.f32 %v337, %v369
        %v402 = vadd.f32 %v338, %v370
        %v403 = vadd.f32 %v339, %v371
        %v404 = vadd.f32 %v340, %v372
        %v405 = vadd.f32 %v341, %v373
        %v406 = vadd.f32 %v342, %v374
        %v407 = vadd.f32 %v343, %v375
        %v408 = vadd.f32 %v344, %v376
        %v409 = vadd.f32 %v345, %v377
        %v410 = vadd.f32 %v346, %v378
        %v411 = vadd.f32 %v347, %v379
        %v412 = vadd.f32 %v348, %v380
        %v413 = vadd.f32 %v349, %v381
        %v414 = vadd.f32 %v350, %v382
        %v415 = vadd.f32 %v351, %v383
        %v416 = vadd.f32 %v352, %v384
        %v417 = vadd.f32 %v353, %v385
        %v418 = vadd.f32 %v354, %v386
        %v419 = vadd.f32 %v355, %v387
        %v420 = vadd.f32 %v356, %v388
        %v421 = vadd.f32 %v357, %v389
        %v422 = vadd.f32 %v358, %v390
        %v423 = vadd.f32 %v359, %v391
        %v424 = vadd.f32 %v360, %v392
        %v425 = vadd.f32 %v361, %v393
        %vm426 = vcmask 261120
        %v427 = vsel %vm426, %v394, 0.0
        %428 = vadd.xlane.f32.xlu0 %v427
        %v429 = vpop.xlane.xlu0 %428
        %v430 = vsel %vm426, %v395, 0.0
        %431 = vadd.xlane.f32.xlu0 %v430
        %v432 = vpop.xlane.xlu0 %431
        %v433 = vsel %vm426, %v396, 0.0
        %434 = vadd.xlane.f32.xlu0 %v433
        %v435 = vpop.xlane.xlu0 %434
        %v436 = vsel %vm426, %v397, 0.0
        %437 = vadd.xlane.f32.xlu0 %v436
        %v438 = vpop.xlane.xlu0 %437
        %v439 = vsel %vm426, %v398, 0.0
        %440 = vadd.xlane.f32.xlu0 %v439
        %v441 = vpop.xlane.xlu0 %440
        %v442 = vsel %vm426, %v399, 0.0
        %443 = vadd.xlane.f32.xlu0 %v442
        %v444 = vpop.xlane.xlu0 %443
        %v445 = vsel %vm426, %v400, 0.0
        %446 = vadd.xlane.f32.xlu0 %v445
        %v447 = vpop.xlane.xlu0 %446
        %v448 = vsel %vm426, %v401, 0.0
        %449 = vadd.xlane.f32.xlu0 %v448
        %v450 = vpop.xlane.xlu0 %449
        %v451 = vsel %vm426, %v402, 0.0
        %452 = vadd.xlane.f32.xlu0 %v451
        %v453 = vpop.xlane.xlu0 %452
        %v454 = vsel %vm426, %v403, 0.0
        %455 = vadd.xlane.f32.xlu0 %v454
        %v456 = vpop.xlane.xlu0 %455
        %v457 = vsel %vm426, %v404, 0.0
        %458 = vadd.xlane.f32.xlu0 %v457
        %v459 = vpop.xlane.xlu0 %458
        %v460 = vsel %vm426, %v405, 0.0
        %461 = vadd.xlane.f32.xlu0 %v460
        %v462 = vpop.xlane.xlu0 %461
        %v463 = vsel %vm426, %v406, 0.0
        %464 = vadd.xlane.f32.xlu0 %v463
        %v465 = vpop.xlane.xlu0 %464
        %v466 = vsel %vm426, %v407, 0.0
        %467 = vadd.xlane.f32.xlu0 %v466
        %v468 = vpop.xlane.xlu0 %467
        %v469 = vsel %vm426, %v408, 0.0
        %470 = vadd.xlane.f32.xlu0 %v469
        %v471 = vpop.xlane.xlu0 %470
        %v472 = vsel %vm426, %v409, 0.0
        %473 = vadd.xlane.f32.xlu0 %v472
        %v474 = vpop.xlane.xlu0 %473
        %v475 = vsel %vm426, %v410, 0.0
        %476 = vadd.xlane.f32.xlu0 %v475
        %v477 = vpop.xlane.xlu0 %476
        %v478 = vsel %vm426, %v411, 0.0
        %479 = vadd.xlane.f32.xlu0 %v478
        %v480 = vpop.xlane.xlu0 %479
        %v481 = vsel %vm426, %v412, 0.0
        %482 = vadd.xlane.f32.xlu0 %v481
        %v483 = vpop.xlane.xlu0 %482
        %v484 = vsel %vm426, %v413, 0.0
        %485 = vadd.xlane.f32.xlu0 %v484
        %v486 = vpop.xlane.xlu0 %485
        %v487 = vsel %vm426, %v414, 0.0
        %488 = vadd.xlane.f32.xlu0 %v487
        %v489 = vpop.xlane.xlu0 %488
        %v490 = vsel %vm426, %v415, 0.0
        %491 = vadd.xlane.f32.xlu0 %v490
        %v492 = vpop.xlane.xlu0 %491
        %v493 = vsel %vm426, %v416, 0.0
        %494 = vadd.xlane.f32.xlu0 %v493
        %v495 = vpop.xlane.xlu0 %494
        %v496 = vsel %vm426, %v417, 0.0
        %497 = vadd.xlane.f32.xlu0 %v496
        %v498 = vpop.xlane.xlu0 %497
        %v499 = vsel %vm426, %v418, 0.0
        %500 = vadd.xlane.f32.xlu0 %v499
        %v501 = vpop.xlane.xlu0 %500
        %v502 = vsel %vm426, %v419, 0.0
        %503 = vadd.xlane.f32.xlu0 %v502
        %v504 = vpop.xlane.xlu0 %503
        %v505 = vsel %vm426, %v420, 0.0
        %506 = vadd.xlane.f32.xlu0 %v505
        %v507 = vpop.xlane.xlu0 %506
        %v508 = vsel %vm426, %v421, 0.0
        %509 = vadd.xlane.f32.xlu0 %v508
        %v510 = vpop.xlane.xlu0 %509
        %v511 = vsel %vm426, %v422, 0.0
        %512 = vadd.xlane.f32.xlu0 %v511
        %v513 = vpop.xlane.xlu0 %512
        %v514 = vsel %vm426, %v423, 0.0
        %515 = vadd.xlane.f32.xlu0 %v514
        %v516 = vpop.xlane.xlu0 %515
        %v517 = vsel %vm426, %v424, 0.0
        %518 = vadd.xlane.f32.xlu0 %v517
        %v519 = vpop.xlane.xlu0 %518
        %v520 = vsel %vm426, %v425, 0.0
        %521 = vadd.xlane.f32.xlu0 %v520
        %v522 = vpop.xlane.xlu0 %521
        %v523 = vrcp.pop 32.0
        %v524 = vmul.f32 %v429, %v523
        %v525 = vmul.f32 %v432, %v523
        %v526 = vmul.f32 %v435, %v523
        %v527 = vmul.f32 %v438, %v523
        %v528 = vmul.f32 %v441, %v523
        %v529 = vmul.f32 %v444, %v523
        %v530 = vmul.f32 %v447, %v523
        %v531 = vmul.f32 %v450, %v523
        %v532 = vmul.f32 %v453, %v523
        %v533 = vmul.f32 %v456, %v523
        %v534 = vmul.f32 %v459, %v523
        %v535 = vmul.f32 %v462, %v523
        %v536 = vmul.f32 %v465, %v523
        %v537 = vmul.f32 %v468, %v523
        %v538 = vmul.f32 %v471, %v523
        %v539 = vmul.f32 %v474, %v523
        %v540 = vmul.f32 %v477, %v523
        %v541 = vmul.f32 %v480, %v523
        %v542 = vmul.f32 %v483, %v523
        %v543 = vmul.f32 %v486, %v523
        %v544 = vmul.f32 %v489, %v523
        %v545 = vmul.f32 %v492, %v523
        %v546 = vmul.f32 %v495, %v523
        %v547 = vmul.f32 %v498, %v523
        %v548 = vmul.f32 %v501, %v523
        %v549 = vmul.f32 %v504, %v523
        %v550 = vmul.f32 %v507, %v523
        %v551 = vmul.f32 %v510, %v523
        %v552 = vmul.f32 %v513, %v523
        %v553 = vmul.f32 %v516, %v523
        %v554 = vmul.f32 %v519, %v523
        %v555 = vmul.f32 %v522, %v523
        %v556 = vsub.f32 %v394, %v524
        %v557 = vsub.f32 %v395, %v525
        %v558 = vsub.f32 %v396, %v526
        %v559 = vsub.f32 %v397, %v527
        %v560 = vsub.f32 %v398, %v528
        %v561 = vsub.f32 %v399, %v529
        %v562 = vsub.f32 %v400, %v530
        %v563 = vsub.f32 %v401, %v531
        %v564 = vsub.f32 %v402, %v532
        %v565 = vsub.f32 %v403, %v533
        %v566 = vsub.f32 %v404, %v534
        %v567 = vsub.f32 %v405, %v535
        %v568 = vsub.f32 %v406, %v536
        %v569 = vsub.f32 %v407, %v537
        %v570 = vsub.f32 %v408, %v538
        %v571 = vsub.f32 %v409, %v539
        %v572 = vsub.f32 %v410, %v540
        %v573 = vsub.f32 %v411, %v541
        %v574 = vsub.f32 %v412, %v542
        %v575 = vsub.f32 %v413, %v543
        %v576 = vsub.f32 %v414, %v544
        %v577 = vsub.f32 %v415, %v545
        %v578 = vsub.f32 %v416, %v546
        %v579 = vsub.f32 %v417, %v547
        %v580 = vsub.f32 %v418, %v548
        %v581 = vsub.f32 %v419, %v549
        %v582 = vsub.f32 %v420, %v550
        %v583 = vsub.f32 %v421, %v551
        %v584 = vsub.f32 %v422, %v552
        %v585 = vsub.f32 %v423, %v553
        %v586 = vsub.f32 %v424, %v554
        %v587 = vsub.f32 %v425, %v555
        %v588 = vmul.f32 %v556, %v556
        %v589 = vmul.f32 %v557, %v557
        %v590 = vmul.f32 %v558, %v558
        %v591 = vmul.f32 %v559, %v559
        %v592 = vmul.f32 %v560, %v560
        %v593 = vmul.f32 %v561, %v561
        %v594 = vmul.f32 %v562, %v562
        %v595 = vmul.f32 %v563, %v563
        %v596 = vmul.f32 %v564, %v564
        %v597 = vmul.f32 %v565, %v565
        %v598 = vmul.f32 %v566, %v566
        %v599 = vmul.f32 %v567, %v567
        %v600 = vmul.f32 %v568, %v568
        %v601 = vmul.f32 %v569, %v569
        %v602 = vmul.f32 %v570, %v570
        %v603 = vmul.f32 %v571, %v571
        %v604 = vmul.f32 %v572, %v572
        %v605 = vmul.f32 %v573, %v573
        %v606 = vmul.f32 %v574, %v574
        %v607 = vmul.f32 %v575, %v575
        %v608 = vmul.f32 %v576, %v576
        %v609 = vmul.f32 %v577, %v577
        %v610 = vmul.f32 %v578, %v578
        %v611 = vmul.f32 %v579, %v579
        %v612 = vmul.f32 %v580, %v580
        %v613 = vmul.f32 %v581, %v581
        %v614 = vmul.f32 %v582, %v582
        %v615 = vmul.f32 %v583, %v583
        %v616 = vmul.f32 %v584, %v584
        %v617 = vmul.f32 %v585, %v585
        %v618 = vmul.f32 %v586, %v586
        %v619 = vmul.f32 %v587, %v587
        %v620 = vsel %vm426, %v588, 0.0
        %621 = vadd.xlane.f32.xlu0 %v620
        %v622 = vpop.xlane.xlu0 %621
        %v623 = vsel %vm426, %v589, 0.0
        %624 = vadd.xlane.f32.xlu0 %v623
        %v625 = vpop.xlane.xlu0 %624
        %v626 = vsel %vm426, %v590, 0.0
        %627 = vadd.xlane.f32.xlu0 %v626
        %v628 = vpop.xlane.xlu0 %627
        %v629 = vsel %vm426, %v591, 0.0
        %630 = vadd.xlane.f32.xlu0 %v629
        %v631 = vpop.xlane.xlu0 %630
        %v632 = vsel %vm426, %v592, 0.0
        %633 = vadd.xlane.f32.xlu0 %v632
        %v634 = vpop.xlane.xlu0 %633
        %v635 = vsel %vm426, %v593, 0.0
        %636 = vadd.xlane.f32.xlu0 %v635
        %v637 = vpop.xlane.xlu0 %636
        %v638 = vsel %vm426, %v594, 0.0
        %639 = vadd.xlane.f32.xlu0 %v638
        %v640 = vpop.xlane.xlu0 %639
        %v641 = vsel %vm426, %v595, 0.0
        %642 = vadd.xlane.f32.xlu0 %v641
        %v643 = vpop.xlane.xlu0 %642
        %v644 = vsel %vm426, %v596, 0.0
        %645 = vadd.xlane.f32.xlu0 %v644
        %v646 = vpop.xlane.xlu0 %645
        %v647 = vsel %vm426, %v597, 0.0
        %648 = vadd.xlane.f32.xlu0 %v647
        %v649 = vpop.xlane.xlu0 %648
        %v650 = vsel %vm426, %v598, 0.0
        %651 = vadd.xlane.f32.xlu0 %v650
        %v652 = vpop.xlane.xlu0 %651
        %v653 = vsel %vm426, %v599, 0.0
        %654 = vadd.xlane.f32.xlu0 %v653
        %v655 = vpop.xlane.xlu0 %654
        %v656 = vsel %vm426, %v600, 0.0
        %657 = vadd.xlane.f32.xlu0 %v656
        %v658 = vpop.xlane.xlu0 %657
        %v659 = vsel %vm426, %v601, 0.0
        %660 = vadd.xlane.f32.xlu0 %v659
        %v661 = vpop.xlane.xlu0 %660
        %v662 = vsel %vm426, %v602, 0.0
        %663 = vadd.xlane.f32.xlu0 %v662
        %v664 = vpop.xlane.xlu0 %663
        %v665 = vsel %vm426, %v603, 0.0
        %666 = vadd.xlane.f32.xlu0 %v665
        %v667 = vpop.xlane.xlu0 %666
        %v668 = vsel %vm426, %v604, 0.0
        %669 = vadd.xlane.f32.xlu0 %v668
        %v670 = vpop.xlane.xlu0 %669
        %v671 = vsel %vm426, %v605, 0.0
        %672 = vadd.xlane.f32.xlu0 %v671
        %v673 = vpop.xlane.xlu0 %672
        %v674 = vsel %vm426, %v606, 0.0
        %675 = vadd.xlane.f32.xlu0 %v674
        %v676 = vpop.xlane.xlu0 %675
        %v677 = vsel %vm426, %v607, 0.0
        %678 = vadd.xlane.f32.xlu0 %v677
        %v679 = vpop.xlane.xlu0 %678
        %v680 = vsel %vm426, %v608, 0.0
        %681 = vadd.xlane.f32.xlu0 %v680
        %v682 = vpop.xlane.xlu0 %681
        %v683 = vsel %vm426, %v609, 0.0
        %684 = vadd.xlane.f32.xlu0 %v683
        %v685 = vpop.xlane.xlu0 %684
        %v686 = vsel %vm426, %v610, 0.0
        %687 = vadd.xlane.f32.xlu0 %v686
        %v688 = vpop.xlane.xlu0 %687
        %v689 = vsel %vm426, %v611, 0.0
        %690 = vadd.xlane.f32.xlu0 %v689
        %v691 = vpop.xlane.xlu0 %690
        %v692 = vsel %vm426, %v612, 0.0
        %693 = vadd.xlane.f32.xlu0 %v692
        %v694 = vpop.xlane.xlu0 %693
        %v695 = vsel %vm426, %v613, 0.0
        %696 = vadd.xlane.f32.xlu0 %v695
        %v697 = vpop.xlane.xlu0 %696
        %v698 = vsel %vm426, %v614, 0.0
        %699 = vadd.xlane.f32.xlu0 %v698
        %v700 = vpop.xlane.xlu0 %699
        %v701 = vsel %vm426, %v615, 0.0
        %702 = vadd.xlane.f32.xlu0 %v701
        %v703 = vpop.xlane.xlu0 %702
        %v704 = vsel %vm426, %v616, 0.0
        %705 = vadd.xlane.f32.xlu0 %v704
        %v706 = vpop.xlane.xlu0 %705
        %v707 = vsel %vm426, %v617, 0.0
        %708 = vadd.xlane.f32.xlu0 %v707
        %v709 = vpop.xlane.xlu0 %708
        %v710 = vsel %vm426, %v618, 0.0
        %711 = vadd.xlane.f32.xlu0 %v710
        %v712 = vpop.xlane.xlu0 %711
        %v713 = vsel %vm426, %v619, 0.0
        %714 = vadd.xlane.f32.xlu0 %v713
        %v715 = vpop.xlane.xlu0 %714
        %v716 = vmul.f32 %v622, %v523
        %v717 = vmul.f32 %v625, %v523
        %v718 = vmul.f32 %v628, %v523
        %v719 = vmul.f32 %v631, %v523
        %v720 = vmul.f32 %v634, %v523
        %v721 = vmul.f32 %v637, %v523
        %v722 = vmul.f32 %v640, %v523
        %v723 = vmul.f32 %v643, %v523
        %v724 = vmul.f32 %v646, %v523
        %v725 = vmul.f32 %v649, %v523
        %v726 = vmul.f32 %v652, %v523
        %v727 = vmul.f32 %v655, %v523
        %v728 = vmul.f32 %v658, %v523
        %v729 = vmul.f32 %v661, %v523
        %v730 = vmul.f32 %v664, %v523
        %v731 = vmul.f32 %v667, %v523
        %v732 = vmul.f32 %v670, %v523
        %v733 = vmul.f32 %v673, %v523
        %v734 = vmul.f32 %v676, %v523
        %v735 = vmul.f32 %v679, %v523
        %v736 = vmul.f32 %v682, %v523
        %v737 = vmul.f32 %v685, %v523
        %v738 = vmul.f32 %v688, %v523
        %v739 = vmul.f32 %v691, %v523
        %v740 = vmul.f32 %v694, %v523
        %v741 = vmul.f32 %v697, %v523
        %v742 = vmul.f32 %v700, %v523
        %v743 = vmul.f32 %v703, %v523
        %v744 = vmul.f32 %v706, %v523
        %v745 = vmul.f32 %v709, %v523
        %v746 = vmul.f32 %v712, %v523
        %v747 = vmul.f32 %v715, %v523
        %v748 = vadd.f32 %v716, 1e-05
        %v749 = vadd.f32 %v717, 1e-05
        %v750 = vadd.f32 %v718, 1e-05
        %v751 = vadd.f32 %v719, 1e-05
        %v752 = vadd.f32 %v720, 1e-05
        %v753 = vadd.f32 %v721, 1e-05
        %v754 = vadd.f32 %v722, 1e-05
        %v755 = vadd.f32 %v723, 1e-05
        %v756 = vadd.f32 %v724, 1e-05
        %v757 = vadd.f32 %v725, 1e-05
        %v758 = vadd.f32 %v726, 1e-05
        %v759 = vadd.f32 %v727, 1e-05
        %v760 = vadd.f32 %v728, 1e-05
        %v761 = vadd.f32 %v729, 1e-05
        %v762 = vadd.f32 %v730, 1e-05
        %v763 = vadd.f32 %v731, 1e-05
        %v764 = vadd.f32 %v732, 1e-05
        %v765 = vadd.f32 %v733, 1e-05
        %v766 = vadd.f32 %v734, 1e-05
        %v767 = vadd.f32 %v735, 1e-05
        %v768 = vadd.f32 %v736, 1e-05
        %v769 = vadd.f32 %v737, 1e-05
        %v770 = vadd.f32 %v738, 1e-05
        %v771 = vadd.f32 %v739, 1e-05
        %v772 = vadd.f32 %v740, 1e-05
        %v773 = vadd.f32 %v741, 1e-05
        %v774 = vadd.f32 %v742, 1e-05
        %v775 = vadd.f32 %v743, 1e-05
        %v776 = vadd.f32 %v744, 1e-05
        %v777 = vadd.f32 %v745, 1e-05
        %v778 = vadd.f32 %v746, 1e-05
        %v779 = vadd.f32 %v747, 1e-05
        %v780 = vrsqrt.pop %v748
        %v781 = vrsqrt.pop %v749
        %v782 = vrsqrt.pop %v750
        %v783 = vrsqrt.pop %v751
        %v784 = vrsqrt.pop %v752
        %v785 = vrsqrt.pop %v753
        %v786 = vrsqrt.pop %v754
        %v787 = vrsqrt.pop %v755
        %v788 = vrsqrt.pop %v756
        %v789 = vrsqrt.pop %v757
        %v790 = vrsqrt.pop %v758
        %v791 = vrsqrt.pop %v759
        %v792 = vrsqrt.pop %v760
        %v793 = vrsqrt.pop %v761
        %v794 = vrsqrt.pop %v762
        %v795 = vrsqrt.pop %v763
        %v796 = vrsqrt.pop %v764
        %v797 = vrsqrt.pop %v765
        %v798 = vrsqrt.pop %v766
        %v799 = vrsqrt.pop %v767
        %v800 = vrsqrt.pop %v768
        %v801 = vrsqrt.pop %v769
        %v802 = vrsqrt.pop %v770
        %v803 = vrsqrt.pop %v771
        %v804 = vrsqrt.pop %v772
        %v805 = vrsqrt.pop %v773
        %v806 = vrsqrt.pop %v774
        %v807 = vrsqrt.pop %v775
        %v808 = vrsqrt.pop %v776
        %v809 = vrsqrt.pop %v777
        %v810 = vrsqrt.pop %v778
        %v811 = vrsqrt.pop %v779
        %v812 = vmul.f32 %v556, %v780
        %v813 = vmul.f32 %v557, %v781
        %v814 = vmul.f32 %v558, %v782
        %v815 = vmul.f32 %v559, %v783
        %v816 = vmul.f32 %v560, %v784
        %v817 = vmul.f32 %v561, %v785
        %v818 = vmul.f32 %v562, %v786
        %v819 = vmul.f32 %v563, %v787
        %v820 = vmul.f32 %v564, %v788
        %v821 = vmul.f32 %v565, %v789
        %v822 = vmul.f32 %v566, %v790
        %v823 = vmul.f32 %v567, %v791
        %v824 = vmul.f32 %v568, %v792
        %v825 = vmul.f32 %v569, %v793
        %v826 = vmul.f32 %v570, %v794
        %v827 = vmul.f32 %v571, %v795
        %v828 = vmul.f32 %v572, %v796
        %v829 = vmul.f32 %v573, %v797
        %v830 = vmul.f32 %v574, %v798
        %v831 = vmul.f32 %v575, %v799
        %v832 = vmul.f32 %v576, %v800
        %v833 = vmul.f32 %v577, %v801
        %v834 = vmul.f32 %v578, %v802
        %v835 = vmul.f32 %v579, %v803
        %v836 = vmul.f32 %v580, %v804
        %v837 = vmul.f32 %v581, %v805
        %v838 = vmul.f32 %v582, %v806
        %v839 = vmul.f32 %v583, %v807
        %v840 = vmul.f32 %v584, %v808
        %v841 = vmul.f32 %v585, %v809
        %v842 = vmul.f32 %v586, %v810
        %v843 = vmul.f32 %v587, %v811
        %v844 = vld [vmem:[%s2] sm:$0x1]
        %v846 = vlaneseq
        %v847 = vshrl.u32 %v846, 7
        %v848 = vsub.s32 0, %v847
        %v849 = vrot.slane %v844, %v848
        %v851 = vmul.f32 %v812, %v849
        %v852 = vmul.f32 %v813, %v849
        %v853 = vmul.f32 %v814, %v849
        %v854 = vmul.f32 %v815, %v849
        %v855 = vmul.f32 %v816, %v849
        %v856 = vmul.f32 %v817, %v849
        %v857 = vmul.f32 %v818, %v849
        %v858 = vmul.f32 %v819, %v849
        %v859 = vmul.f32 %v820, %v849
        %v860 = vmul.f32 %v821, %v849
        %v861 = vmul.f32 %v822, %v849
        %v862 = vmul.f32 %v823, %v849
        %v863 = vmul.f32 %v824, %v849
        %v864 = vmul.f32 %v825, %v849
        %v865 = vmul.f32 %v826, %v849
        %v866 = vmul.f32 %v827, %v849
        %v867 = vmul.f32 %v828, %v849
        %v868 = vmul.f32 %v829, %v849
        %v869 = vmul.f32 %v830, %v849
        %v870 = vmul.f32 %v831, %v849
        %v871 = vmul.f32 %v832, %v849
        %v872 = vmul.f32 %v833, %v849
        %v873 = vmul.f32 %v834, %v849
        %v874 = vmul.f32 %v835, %v849
        %v875 = vmul.f32 %v836, %v849
        %v876 = vmul.f32 %v837, %v849
        %v877 = vmul.f32 %v838, %v849
        %v878 = vmul.f32 %v839, %v849
        %v879 = vmul.f32 %v840, %v849
        %v880 = vmul.f32 %v841, %v849
        %v881 = vmul.f32 %v842, %v849
        %v882 = vmul.f32 %v843, %v849
        %v883 = vld [vmem:[%s3] sm:$0x1]
        %v885 = vlaneseq
        %v886 = vshrl.u32 %v885, 7
        %v887 = vsub.s32 0, %v886
        %v888 = vrot.slane %v883, %v887
        %v890 = vadd.f32 %v851, %v888
        %v891 = vadd.f32 %v852, %v888
        %v892 = vadd.f32 %v853, %v888
        %v893 = vadd.f32 %v854, %v888
        %v894 = vadd.f32 %v855, %v888
        %v895 = vadd.f32 %v856, %v888
        %v896 = vadd.f32 %v857, %v888
        %v897 = vadd.f32 %v858, %v888
        %v898 = vadd.f32 %v859, %v888
        %v899 = vadd.f32 %v860, %v888
        %v900 = vadd.f32 %v861, %v888
        %v901 = vadd.f32 %v862, %v888
        %v902 = vadd.f32 %v863, %v888
        %v903 = vadd.f32 %v864, %v888
        %v904 = vadd.f32 %v865, %v888
        %v905 = vadd.f32 %v866, %v888
        %v906 = vadd.f32 %v867, %v888
        %v907 = vadd.f32 %v868, %v888
        %v908 = vadd.f32 %v869, %v888
        %v909 = vadd.f32 %v870, %v888
        %v910 = vadd.f32 %v871, %v888
        %v911 = vadd.f32 %v872, %v888
        %v912 = vadd.f32 %v873, %v888
        %v913 = vadd.f32 %v874, %v888
        %v914 = vadd.f32 %v875, %v888
        %v915 = vadd.f32 %v876, %v888
        %v916 = vadd.f32 %v877, %v888
        %v917 = vadd.f32 %v878, %v888
        %v918 = vadd.f32 %v879, %v888
        %v919 = vadd.f32 %v880, %v888
        %v920 = vadd.f32 %v881, %v888
        %v921 = vadd.f32 %v882, %v888
        %v922 = vpack.c.bf16 %v891, %v890
        %v923 = vpack.c.bf16 %v893, %v892
        %v924 = vpack.c.bf16 %v895, %v894
        %v925 = vpack.c.bf16 %v897, %v896
        %v926 = vpack.c.bf16 %v899, %v898
        %v927 = vpack.c.bf16 %v901, %v900
        %v928 = vpack.c.bf16 %v903, %v902
        %v929 = vpack.c.bf16 %v905, %v904
        %v930 = vpack.c.bf16 %v907, %v906
        %v931 = vpack.c.bf16 %v909, %v908
        %v932 = vpack.c.bf16 %v911, %v910
        %v933 = vpack.c.bf16 %v913, %v912
        %v934 = vpack.c.bf16 %v915, %v914
        %v935 = vpack.c.bf16 %v917, %v916
        %v936 = vpack.c.bf16 %v919, %v918
        %v937 = vpack.c.bf16 %v921, %v920
        %v938 = vld [vmem:[%s4] sm:$0xf]
        %v939 = vld [vmem:[%s4 + $0x4] sm:$0xf]
        %v940 = vld [vmem:[%s4 + $0x8] sm:$0xf]
        %v941 = vld [vmem:[%s4 + $0xc] sm:$0xf]
        %v942 = vld [vmem:[%s5] sm:$0x1]
        %v944 = vlaneseq
        %v945 = vshrl.u32 %v944, 7
        %v946 = vsub.s32 0, %v945
        %v947 = vrot.slane %v942, %v946
        %v953 = vunpack.c.l.b16 %v938
        %v954 = vunpack.c.l.b16 %v939
        %v955 = vunpack.c.l.b16 %v940
        %v956 = vunpack.c.l.b16 %v941
        %v957 = vpack.c.b16 %v954, %v953
        %v958 = vpack.c.b16 %v956, %v955
        %v962 = vsel %vm426, %v922, 0
        %v965 = vsel %vm426, %v923, 0
        %v968 = vsel %vm426, %v924, 0
        %v971 = vsel %vm426, %v925, 0
        %v974 = vsel %vm426, %v926, 0
        %v977 = vsel %vm426, %v927, 0
        %v980 = vsel %vm426, %v928, 0
        %v983 = vsel %vm426, %v929, 0
        %v986 = vsel %vm426, %v930, 0
        %v989 = vsel %vm426, %v931, 0
        %v992 = vsel %vm426, %v932, 0
        %v995 = vsel %vm426, %v933, 0
        %v998 = vsel %vm426, %v934, 0
        %v1001 = vsel %vm426, %v935, 0
        %v1004 = vsel %vm426, %v936, 0
        %v1007 = vsel %vm426, %v937, 0
        %1009 = vmatprep.subr.bf16.mxu0 0
        %1010 = vmatpush1.bf16.msra.mxu0 %v957
        %1011 = vmatprep.subr.bf16.mxu0 0
        %1012 = vmatpush1.bf16.msra.mxu0 %v958
        %1013 = vmatprep.subr.bf16.mxu0 0
        %1014 = vmatpush1.bf16.msra.mxu0 0
        %1015 = vmatprep.subr.bf16.mxu0 0
        %1016 = vmatpush1.bf16.msra.mxu0 0
        %1017 = vmatprep.subr.bf16.mxu0 0
        %1018 = vmatpush1.bf16.msra.mxu0 0
        %1019 = vmatprep.subr.bf16.mxu0 0
        %1020 = vmatpush1.bf16.msra.mxu0 0
        %1021 = vmatprep.subr.bf16.mxu0 0
        %1022 = vmatpush1.bf16.msra.mxu0 0
        %1023 = vmatprep.subr.bf16.mxu0 0
        %1024 = vmatpush1.bf16.msra.mxu0 0
        %1025 = vmatprep.subr.bf16.mxu0 0
        %1026 = vmatpush1.bf16.msra.mxu0 0
        %1027 = vmatprep.subr.bf16.mxu0 0
        %1028 = vmatpush1.bf16.msra.mxu0 0
        %1029 = vmatprep.subr.bf16.mxu0 0
        %1030 = vmatpush1.bf16.msra.mxu0 0
        %1031 = vmatprep.subr.bf16.mxu0 0
        %1032 = vmatpush1.bf16.msra.mxu0 0
        %1033 = vmatprep.subr.bf16.mxu0 0
        %1034 = vmatpush1.bf16.msra.mxu0 0
        %1035 = vmatprep.subr.bf16.mxu0 0
        %1036 = vmatpush1.bf16.msra.mxu0 0
        %1037 = vmatprep.subr.bf16.mxu0 0
        %1038 = vmatpush1.bf16.msra.mxu0 0
        %1039 = vmatprep.subr.bf16.mxu0 0
        %1040 = vmatpush1.bf16.msra.mxu0 0
        %1041 = vmatprep.mubr.bf16.mxu0 0
        %1042 = vmatmul.mubr.bf16.gmra.mrb[0].mxu0 %v962
        %v1043 = vpop.f32.mrb[0].mxu0
        %v1044 = vadd.f32 %v947, %v1043
        %v1045 = vpop.f32.mrb[0].mxu0
        %v1046 = vpop.f32.mrb[0].mxu0
        %v1047 = vadd.f32 %v947, %v1046
        %v1048 = vpop.f32.mrb[0].mxu0
        %1049 = vmatprep.mubr.bf16.mxu0 0
        %1050 = vmatmul.mubr.bf16.gmra.mrb[0].mxu0 %v965
        %v1051 = vpop.f32.mrb[0].mxu0
        %v1052 = vadd.f32 %v947, %v1051
        %v1053 = vpop.f32.mrb[0].mxu0
        %v1054 = vpop.f32.mrb[0].mxu0
        %v1055 = vadd.f32 %v947, %v1054
        %v1056 = vpop.f32.mrb[0].mxu0
        %1057 = vmatprep.mubr.bf16.mxu0 0
        %1058 = vmatmul.mubr.bf16.gmra.mrb[0].mxu0 %v968
        %v1059 = vpop.f32.mrb[0].mxu0
        %v1060 = vadd.f32 %v947, %v1059
        %v1061 = vpop.f32.mrb[0].mxu0
        %v1062 = vpop.f32.mrb[0].mxu0
        %v1063 = vadd.f32 %v947, %v1062
        %v1064 = vpop.f32.mrb[0].mxu0
        %1065 = vmatprep.mubr.bf16.mxu0 0
        %1066 = vmatmul.mubr.bf16.gmra.mrb[0].mxu0 %v971
        %v1067 = vpop.f32.mrb[0].mxu0
        %v1068 = vadd.f32 %v947, %v1067
        %v1069 = vpop.f32.mrb[0].mxu0
        %v1070 = vpop.f32.mrb[0].mxu0
        %v1071 = vadd.f32 %v947, %v1070
        %v1072 = vpop.f32.mrb[0].mxu0
        %1073 = vmatprep.mubr.bf16.mxu0 0
        %1074 = vmatmul.mubr.bf16.gmra.mrb[0].mxu0 %v974
        %v1075 = vpop.f32.mrb[0].mxu0
        %v1076 = vadd.f32 %v947, %v1075
        %v1077 = vpop.f32.mrb[0].mxu0
        %v1078 = vpop.f32.mrb[0].mxu0
        %v1079 = vadd.f32 %v947, %v1078
        %v1080 = vpop.f32.mrb[0].mxu0
        %1081 = vmatprep.mubr.bf16.mxu0 0
        %1082 = vmatmul.mubr.bf16.gmra.mrb[0].mxu0 %v977
        %v1083 = vpop.f32.mrb[0].mxu0
        %v1084 = vadd.f32 %v947, %v1083
        %v1085 = vpop.f32.mrb[0].mxu0
        %v1086 = vpop.f32.mrb[0].mxu0
        %v1087 = vadd.f32 %v947, %v1086
        %v1088 = vpop.f32.mrb[0].mxu0
        %1089 = vmatprep.mubr.bf16.mxu0 0
        %1090 = vmatmul.mubr.bf16.gmra.mrb[0].mxu0 %v980
        %v1091 = vpop.f32.mrb[0].mxu0
        %v1092 = vadd.f32 %v947, %v1091
        %v1093 = vpop.f32.mrb[0].mxu0
        %v1094 = vpop.f32.mrb[0].mxu0
        %v1095 = vadd.f32 %v947, %v1094
        %v1096 = vpop.f32.mrb[0].mxu0
        %1097 = vmatprep.mubr.bf16.mxu0 0
        %1098 = vmatmul.mubr.bf16.gmra.mrb[0].mxu0 %v983
        %v1099 = vpop.f32.mrb[0].mxu0
        %v1100 = vadd.f32 %v947, %v1099
        %v1101 = vpop.f32.mrb[0].mxu0
        %v1102 = vpop.f32.mrb[0].mxu0
        %v1103 = vadd.f32 %v947, %v1102
        %v1104 = vpop.f32.mrb[0].mxu0
        %1105 = vmatprep.mubr.bf16.mxu0 0
        %1106 = vmatmul.mubr.bf16.gmra.mrb[0].mxu0 %v986
        %v1107 = vpop.f32.mrb[0].mxu0
        %v1108 = vadd.f32 %v947, %v1107
        %v1109 = vpop.f32.mrb[0].mxu0
        %v1110 = vpop.f32.mrb[0].mxu0
        %v1111 = vadd.f32 %v947, %v1110
        %v1112 = vpop.f32.mrb[0].mxu0
        %1113 = vmatprep.mubr.bf16.mxu0 0
        %1114 = vmatmul.mubr.bf16.gmra.mrb[0].mxu0 %v989
        %v1115 = vpop.f32.mrb[0].mxu0
        %v1116 = vadd.f32 %v947, %v1115
        %v1117 = vpop.f32.mrb[0].mxu0
        %v1118 = vpop.f32.mrb[0].mxu0
        %v1119 = vadd.f32 %v947, %v1118
        %v1120 = vpop.f32.mrb[0].mxu0
        %1121 = vmatprep.mubr.bf16.mxu0 0
        %1122 = vmatmul.mubr.bf16.gmra.mrb[0].mxu0 %v992
        %v1123 = vpop.f32.mrb[0].mxu0
        %v1124 = vadd.f32 %v947, %v1123
        %v1125 = vpop.f32.mrb[0].mxu0
        %v1126 = vpop.f32.mrb[0].mxu0
        %v1127 = vadd.f32 %v947, %v1126
        %v1128 = vpop.f32.mrb[0].mxu0
        %1129 = vmatprep.mubr.bf16.mxu0 0
        %1130 = vmatmul.mubr.bf16.gmra.mrb[0].mxu0 %v995
        %v1131 = vpop.f32.mrb[0].mxu0
        %v1132 = vadd.f32 %v947, %v1131
        %v1133 = vpop.f32.mrb[0].mxu0
        %v1134 = vpop.f32.mrb[0].mxu0
        %v1135 = vadd.f32 %v947, %v1134
        %v1136 = vpop.f32.mrb[0].mxu0
        %1137 = vmatprep.mubr.bf16.mxu0 0
        %1138 = vmatmul.mubr.bf16.gmra.mrb[0].mxu0 %v998
        %v1139 = vpop.f32.mrb[0].mxu0
        %v1140 = vadd.f32 %v947, %v1139
        %v1141 = vpop.f32.mrb[0].mxu0
        %v1142 = vpop.f32.mrb[0].mxu0
        %v1143 = vadd.f32 %v947, %v1142
        %v1144 = vpop.f32.mrb[0].mxu0
        %1145 = vmatprep.mubr.bf16.mxu0 0
        %1146 = vmatmul.mubr.bf16.gmra.mrb[0].mxu0 %v1001
        %v1147 = vpop.f32.mrb[0].mxu0
        %v1148 = vadd.f32 %v947, %v1147
        %v1149 = vpop.f32.mrb[0].mxu0
        %v1150 = vpop.f32.mrb[0].mxu0
        %v1151 = vadd.f32 %v947, %v1150
        %v1152 = vpop.f32.mrb[0].mxu0
        %1153 = vmatprep.mubr.bf16.mxu0 0
        %1154 = vmatmul.mubr.bf16.gmra.mrb[0].mxu0 %v1004
        %v1155 = vpop.f32.mrb[0].mxu0
        %v1156 = vadd.f32 %v947, %v1155
        %v1157 = vpop.f32.mrb[0].mxu0
        %v1158 = vpop.f32.mrb[0].mxu0
        %v1159 = vadd.f32 %v947, %v1158
        %v1160 = vpop.f32.mrb[0].mxu0
        %1161 = vmatprep.mubr.bf16.mxu0 0
        %1162 = vmatmul.mubr.bf16.gmra.mrb[0].mxu0 %v1007
        %v1163 = vpop.f32.mrb[0].mxu0
        %v1164 = vadd.f32 %v947, %v1163
        %v1165 = vpop.f32.mrb[0].mxu0
        %v1166 = vpop.f32.mrb[0].mxu0
        %v1167 = vadd.f32 %v947, %v1166
        %v1168 = vpop.f32.mrb[0].mxu0
        %1169 = vdwg.mxu0
        %v1170 = vmul.f32 %v1044, 0.5
        %v1171 = vmul.f32 %v1047, 0.5
        %v1172 = vmul.f32 %v1052, 0.5
        %v1173 = vmul.f32 %v1055, 0.5
        %v1174 = vmul.f32 %v1060, 0.5
        %v1175 = vmul.f32 %v1063, 0.5
        %v1176 = vmul.f32 %v1068, 0.5
        %v1177 = vmul.f32 %v1071, 0.5
        %v1178 = vmul.f32 %v1076, 0.5
        %v1179 = vmul.f32 %v1079, 0.5
        %v1180 = vmul.f32 %v1084, 0.5
        %v1181 = vmul.f32 %v1087, 0.5
        %v1182 = vmul.f32 %v1092, 0.5
        %v1183 = vmul.f32 %v1095, 0.5
        %v1184 = vmul.f32 %v1100, 0.5
        %v1185 = vmul.f32 %v1103, 0.5
        %v1186 = vmul.f32 %v1108, 0.5
        %v1187 = vmul.f32 %v1111, 0.5
        %v1188 = vmul.f32 %v1116, 0.5
        %v1189 = vmul.f32 %v1119, 0.5
        %v1190 = vmul.f32 %v1124, 0.5
        %v1191 = vmul.f32 %v1127, 0.5
        %v1192 = vmul.f32 %v1132, 0.5
        %v1193 = vmul.f32 %v1135, 0.5
        %v1194 = vmul.f32 %v1140, 0.5
        %v1195 = vmul.f32 %v1143, 0.5
        %v1196 = vmul.f32 %v1148, 0.5
        %v1197 = vmul.f32 %v1151, 0.5
        %v1198 = vmul.f32 %v1156, 0.5
        %v1199 = vmul.f32 %v1159, 0.5
        %v1200 = vmul.f32 %v1164, 0.5
        %v1201 = vmul.f32 %v1167, 0.5
        %v1202 = vmul.f32 %v1044, 0.044715
        %v1203 = vmul.f32 %v1047, 0.044715
        %v1204 = vmul.f32 %v1052, 0.044715
        %v1205 = vmul.f32 %v1055, 0.044715
        %v1206 = vmul.f32 %v1060, 0.044715
        %v1207 = vmul.f32 %v1063, 0.044715
        %v1208 = vmul.f32 %v1068, 0.044715
        %v1209 = vmul.f32 %v1071, 0.044715
        %v1210 = vmul.f32 %v1076, 0.044715
        %v1211 = vmul.f32 %v1079, 0.044715
        %v1212 = vmul.f32 %v1084, 0.044715
        %v1213 = vmul.f32 %v1087, 0.044715
        %v1214 = vmul.f32 %v1092, 0.044715
        %v1215 = vmul.f32 %v1095, 0.044715
        %v1216 = vmul.f32 %v1100, 0.044715
        %v1217 = vmul.f32 %v1103, 0.044715
        %v1218 = vmul.f32 %v1108, 0.044715
        %v1219 = vmul.f32 %v1111, 0.044715
        %v1220 = vmul.f32 %v1116, 0.044715
        %v1221 = vmul.f32 %v1119, 0.044715
        %v1222 = vmul.f32 %v1124, 0.044715
        %v1223 = vmul.f32 %v1127, 0.044715
        %v1224 = vmul.f32 %v1132, 0.044715
        %v1225 = vmul.f32 %v1135, 0.044715
        %v1226 = vmul.f32 %v1140, 0.044715
        %v1227 = vmul.f32 %v1143, 0.044715
        %v1228 = vmul.f32 %v1148, 0.044715
        %v1229 = vmul.f32 %v1151, 0.044715
        %v1230 = vmul.f32 %v1156, 0.044715
        %v1231 = vmul.f32 %v1159, 0.044715
        %v1232 = vmul.f32 %v1164, 0.044715
        %v1233 = vmul.f32 %v1167, 0.044715
        %v1234 = vmul.f32 %v1202, %v1044
        %v1235 = vmul.f32 %v1203, %v1047
        %v1236 = vmul.f32 %v1204, %v1052
        %v1237 = vmul.f32 %v1205, %v1055
        %v1238 = vmul.f32 %v1206, %v1060
        %v1239 = vmul.f32 %v1207, %v1063
        %v1240 = vmul.f32 %v1208, %v1068
        %v1241 = vmul.f32 %v1209, %v1071
        %v1242 = vmul.f32 %v1210, %v1076
        %v1243 = vmul.f32 %v1211, %v1079
        %v1244 = vmul.f32 %v1212, %v1084
        %v1245 = vmul.f32 %v1213, %v1087
        %v1246 = vmul.f32 %v1214, %v1092
        %v1247 = vmul.f32 %v1215, %v1095
        %v1248 = vmul.f32 %v1216, %v1100
        %v1249 = vmul.f32 %v1217, %v1103
        %v1250 = vmul.f32 %v1218, %v1108
        %v1251 = vmul.f32 %v1219, %v1111
        %v1252 = vmul.f32 %v1220, %v1116
        %v1253 = vmul.f32 %v1221, %v1119
        %v1254 = vmul.f32 %v1222, %v1124
        %v1255 = vmul.f32 %v1223, %v1127
        %v1256 = vmul.f32 %v1224, %v1132
        %v1257 = vmul.f32 %v1225, %v1135
        %v1258 = vmul.f32 %v1226, %v1140
        %v1259 = vmul.f32 %v1227, %v1143
        %v1260 = vmul.f32 %v1228, %v1148
        %v1261 = vmul.f32 %v1229, %v1151
        %v1262 = vmul.f32 %v1230, %v1156
        %v1263 = vmul.f32 %v1231, %v1159
        %v1264 = vmul.f32 %v1232, %v1164
        %v1265 = vmul.f32 %v1233, %v1167
        %v1266 = vmul.f32 %v1234, %v1044
        %v1267 = vmul.f32 %v1235, %v1047
        %v1268 = vmul.f32 %v1236, %v1052
        %v1269 = vmul.f32 %v1237, %v1055
        %v1270 = vmul.f32 %v1238, %v1060
        %v1271 = vmul.f32 %v1239, %v1063
        %v1272 = vmul.f32 %v1240, %v1068
        %v1273 = vmul.f32 %v1241, %v1071
        %v1274 = vmul.f32 %v1242, %v1076
        %v1275 = vmul.f32 %v1243, %v1079
        %v1276 = vmul.f32 %v1244, %v1084
        %v1277 = vmul.f32 %v1245, %v1087
        %v1278 = vmul.f32 %v1246, %v1092
        %v1279 = vmul.f32 %v1247, %v1095
        %v1280 = vmul.f32 %v1248, %v1100
        %v1281 = vmul.f32 %v1249, %v1103
        %v1282 = vmul.f32 %v1250, %v1108
        %v1283 = vmul.f32 %v1251, %v1111
        %v1284 = vmul.f32 %v1252, %v1116
        %v1285 = vmul.f32 %v1253, %v1119
        %v1286 = vmul.f32 %v1254, %v1124
        %v1287 = vmul.f32 %v1255, %v1127
        %v1288 = vmul.f32 %v1256, %v1132
        %v1289 = vmul.f32 %v1257, %v1135
        %v1290 = vmul.f32 %v1258, %v1140
        %v1291 = vmul.f32 %v1259, %v1143
        %v1292 = vmul.f32 %v1260, %v1148
        %v1293 = vmul.f32 %v1261, %v1151
        %v1294 = vmul.f32 %v1262, %v1156
        %v1295 = vmul.f32 %v1263, %v1159
        %v1296 = vmul.f32 %v1264, %v1164
        %v1297 = vmul.f32 %v1265, %v1167
        %v1298 = vadd.f32 %v1044, %v1266
        %v1299 = vadd.f32 %v1047, %v1267
        %v1300 = vadd.f32 %v1052, %v1268
        %v1301 = vadd.f32 %v1055, %v1269
        %v1302 = vadd.f32 %v1060, %v1270
        %v1303 = vadd.f32 %v1063, %v1271
        %v1304 = vadd.f32 %v1068, %v1272
        %v1305 = vadd.f32 %v1071, %v1273
        %v1306 = vadd.f32 %v1076, %v1274
        %v1307 = vadd.f32 %v1079, %v1275
        %v1308 = vadd.f32 %v1084, %v1276
        %v1309 = vadd.f32 %v1087, %v1277
        %v1310 = vadd.f32 %v1092, %v1278
        %v1311 = vadd.f32 %v1095, %v1279
        %v1312 = vadd.f32 %v1100, %v1280
        %v1313 = vadd.f32 %v1103, %v1281
        %v1314 = vadd.f32 %v1108, %v1282
        %v1315 = vadd.f32 %v1111, %v1283
        %v1316 = vadd.f32 %v1116, %v1284
        %v1317 = vadd.f32 %v1119, %v1285
        %v1318 = vadd.f32 %v1124, %v1286
        %v1319 = vadd.f32 %v1127, %v1287
        %v1320 = vadd.f32 %v1132, %v1288
        %v1321 = vadd.f32 %v1135, %v1289
        %v1322 = vadd.f32 %v1140, %v1290
        %v1323 = vadd.f32 %v1143, %v1291
        %v1324 = vadd.f32 %v1148, %v1292
        %v1325 = vadd.f32 %v1151, %v1293
        %v1326 = vadd.f32 %v1156, %v1294
        %v1327 = vadd.f32 %v1159, %v1295
        %v1328 = vadd.f32 %v1164, %v1296
        %v1329 = vadd.f32 %v1167, %v1297
        %v1330 = vmul.f32 %v1298, 0.7978846
        %v1331 = vmul.f32 %v1299, 0.7978846
        %v1332 = vmul.f32 %v1300, 0.7978846
        %v1333 = vmul.f32 %v1301, 0.7978846
        %v1334 = vmul.f32 %v1302, 0.7978846
        %v1335 = vmul.f32 %v1303, 0.7978846
        %v1336 = vmul.f32 %v1304, 0.7978846
        %v1337 = vmul.f32 %v1305, 0.7978846
        %v1338 = vmul.f32 %v1306, 0.7978846
        %v1339 = vmul.f32 %v1307, 0.7978846
        %v1340 = vmul.f32 %v1308, 0.7978846
        %v1341 = vmul.f32 %v1309, 0.7978846
        %v1342 = vmul.f32 %v1310, 0.7978846
        %v1343 = vmul.f32 %v1311, 0.7978846
        %v1344 = vmul.f32 %v1312, 0.7978846
        %v1345 = vmul.f32 %v1313, 0.7978846
        %v1346 = vmul.f32 %v1314, 0.7978846
        %v1347 = vmul.f32 %v1315, 0.7978846
        %v1348 = vmul.f32 %v1316, 0.7978846
        %v1349 = vmul.f32 %v1317, 0.7978846
        %v1350 = vmul.f32 %v1318, 0.7978846
        %v1351 = vmul.f32 %v1319, 0.7978846
        %v1352 = vmul.f32 %v1320, 0.7978846
        %v1353 = vmul.f32 %v1321, 0.7978846
        %v1354 = vmul.f32 %v1322, 0.7978846
        %v1355 = vmul.f32 %v1323, 0.7978846
        %v1356 = vmul.f32 %v1324, 0.7978846
        %v1357 = vmul.f32 %v1325, 0.7978846
        %v1358 = vmul.f32 %v1326, 0.7978846
        %v1359 = vmul.f32 %v1327, 0.7978846
        %v1360 = vmul.f32 %v1328, 0.7978846
        %v1361 = vmul.f32 %v1329, 0.7978846
        %v1362 = vtanh.pop %v1330
        %v1363 = vtanh.pop %v1331
        %v1364 = vtanh.pop %v1332
        %v1365 = vtanh.pop %v1333
        %v1366 = vtanh.pop %v1334
        %v1367 = vtanh.pop %v1335
        %v1368 = vtanh.pop %v1336
        %v1369 = vtanh.pop %v1337
        %v1370 = vtanh.pop %v1338
        %v1371 = vtanh.pop %v1339
        %v1372 = vtanh.pop %v1340
        %v1373 = vtanh.pop %v1341
        %v1374 = vtanh.pop %v1342
        %v1375 = vtanh.pop %v1343
        %v1376 = vtanh.pop %v1344
        %v1377 = vtanh.pop %v1345
        %v1378 = vtanh.pop %v1346
        %v1379 = vtanh.pop %v1347
        %v1380 = vtanh.pop %v1348
        %v1381 = vtanh.pop %v1349
        %v1382 = vtanh.pop %v1350
        %v1383 = vtanh.pop %v1351
        %v1384 = vtanh.pop %v1352
        %v1385 = vtanh.pop %v1353
        %v1386 = vtanh.pop %v1354
        %v1387 = vtanh.pop %v1355
        %v1388 = vtanh.pop %v1356
        %v1389 = vtanh.pop %v1357
        %v1390 = vtanh.pop %v1358
        %v1391 = vtanh.pop %v1359
        %v1392 = vtanh.pop %v1360
        %v1393 = vtanh.pop %v1361
        %v1394 = vadd.f32 %v1362, 1.0
        %v1395 = vadd.f32 %v1363, 1.0
        %v1396 = vadd.f32 %v1364, 1.0
        %v1397 = vadd.f32 %v1365, 1.0
        %v1398 = vadd.f32 %v1366, 1.0
        %v1399 = vadd.f32 %v1367, 1.0
        %v1400 = vadd.f32 %v1368, 1.0
        %v1401 = vadd.f32 %v1369, 1.0
        %v1402 = vadd.f32 %v1370, 1.0
        %v1403 = vadd.f32 %v1371, 1.0
        %v1404 = vadd.f32 %v1372, 1.0
        %v1405 = vadd.f32 %v1373, 1.0
        %v1406 = vadd.f32 %v1374, 1.0
        %v1407 = vadd.f32 %v1375, 1.0
        %v1408 = vadd.f32 %v1376, 1.0
        %v1409 = vadd.f32 %v1377, 1.0
        %v1410 = vadd.f32 %v1378, 1.0
        %v1411 = vadd.f32 %v1379, 1.0
        %v1412 = vadd.f32 %v1380, 1.0
        %v1413 = vadd.f32 %v1381, 1.0
        %v1414 = vadd.f32 %v1382, 1.0
        %v1415 = vadd.f32 %v1383, 1.0
        %v1416 = vadd.f32 %v1384, 1.0
        %v1417 = vadd.f32 %v1385, 1.0
        %v1418 = vadd.f32 %v1386, 1.0
        %v1419 = vadd.f32 %v1387, 1.0
        %v1420 = vadd.f32 %v1388, 1.0
        %v1421 = vadd.f32 %v1389, 1.0
        %v1422 = vadd.f32 %v1390, 1.0
        %v1423 = vadd.f32 %v1391, 1.0
        %v1424 = vadd.f32 %v1392, 1.0
        %v1425 = vadd.f32 %v1393, 1.0
        %v1426 = vmul.f32 %v1170, %v1394
        %v1427 = vmul.f32 %v1171, %v1395
        %v1428 = vmul.f32 %v1172, %v1396
        %v1429 = vmul.f32 %v1173, %v1397
        %v1430 = vmul.f32 %v1174, %v1398
        %v1431 = vmul.f32 %v1175, %v1399
        %v1432 = vmul.f32 %v1176, %v1400
        %v1433 = vmul.f32 %v1177, %v1401
        %v1434 = vmul.f32 %v1178, %v1402
        %v1435 = vmul.f32 %v1179, %v1403
        %v1436 = vmul.f32 %v1180, %v1404
        %v1437 = vmul.f32 %v1181, %v1405
        %v1438 = vmul.f32 %v1182, %v1406
        %v1439 = vmul.f32 %v1183, %v1407
        %v1440 = vmul.f32 %v1184, %v1408
        %v1441 = vmul.f32 %v1185, %v1409
        %v1442 = vmul.f32 %v1186, %v1410
        %v1443 = vmul.f32 %v1187, %v1411
        %v1444 = vmul.f32 %v1188, %v1412
        %v1445 = vmul.f32 %v1189, %v1413
        %v1446 = vmul.f32 %v1190, %v1414
        %v1447 = vmul.f32 %v1191, %v1415
        %v1448 = vmul.f32 %v1192, %v1416
        %v1449 = vmul.f32 %v1193, %v1417
        %v1450 = vmul.f32 %v1194, %v1418
        %v1451 = vmul.f32 %v1195, %v1419
        %v1452 = vmul.f32 %v1196, %v1420
        %v1453 = vmul.f32 %v1197, %v1421
        %v1454 = vmul.f32 %v1198, %v1422
        %v1455 = vmul.f32 %v1199, %v1423
        %v1456 = vmul.f32 %v1200, %v1424
        %v1457 = vmul.f32 %v1201, %v1425
        %v1458 = vpack.c.bf16 %v1427, %v1426
        %v1459 = vpack.c.bf16 %v1429, %v1428
        %v1460 = vpack.c.bf16 %v1431, %v1430
        %v1461 = vpack.c.bf16 %v1433, %v1432
        %v1462 = vpack.c.bf16 %v1435, %v1434
        %v1463 = vpack.c.bf16 %v1437, %v1436
        %v1464 = vpack.c.bf16 %v1439, %v1438
        %v1465 = vpack.c.bf16 %v1441, %v1440
        %v1466 = vpack.c.bf16 %v1443, %v1442
        %v1467 = vpack.c.bf16 %v1445, %v1444
        %v1468 = vpack.c.bf16 %v1447, %v1446
        %v1469 = vpack.c.bf16 %v1449, %v1448
        %v1470 = vpack.c.bf16 %v1451, %v1450
        %v1471 = vpack.c.bf16 %v1453, %v1452
        %v1472 = vpack.c.bf16 %v1455, %v1454
        %v1473 = vpack.c.bf16 %v1457, %v1456
        %v1474 = vld [vmem:[%s6] sm:$0xf]
        %v1475 = vld [vmem:[%s6 + $0x4] sm:$0xf]
        %v1476 = vld [vmem:[%s6 + $0x8] sm:$0xf]
        %v1477 = vld [vmem:[%s6 + $0xc] sm:$0xf]
        %v1478 = vld [vmem:[%s6 + $0x10] sm:$0xf]
        %v1479 = vld [vmem:[%s6 + $0x14] sm:$0xf]
        %v1480 = vld [vmem:[%s6 + $0x18] sm:$0xf]
        %v1481 = vld [vmem:[%s6 + $0x1c] sm:$0xf]
        %v1482 = vld [vmem:[%s6 + $0x20] sm:$0xf]
        %v1483 = vld [vmem:[%s6 + $0x24] sm:$0xf]
        %v1484 = vld [vmem:[%s6 + $0x28] sm:$0xf]
        %v1485 = vld [vmem:[%s6 + $0x2c] sm:$0xf]
        %v1486 = vld [vmem:[%s6 + $0x30] sm:$0xf]
        %v1487 = vld [vmem:[%s6 + $0x34] sm:$0xf]
        %v1488 = vld [vmem:[%s6 + $0x38] sm:$0xf]
        %v1489 = vld [vmem:[%s6 + $0x3c] sm:$0xf]
        %v1490 = vld [vmem:[%s7] sm:$0x1]
        %v1492 = vlaneseq
        %v1493 = vshrl.u32 %v1492, 7
        %v1494 = vsub.s32 0, %v1493
        %v1495 = vrot.slane %v1490, %v1494
        %v1513 = vunpack.c.l.b16 %v1474
        %v1514 = vunpack.c.l.b16 %v1475
        %v1515 = vunpack.c.l.b16 %v1476
        %v1516 = vunpack.c.l.b16 %v1477
        %v1517 = vunpack.c.l.b16 %v1478
        %v1518 = vunpack.c.l.b16 %v1479
        %v1519 = vunpack.c.l.b16 %v1480
        %v1520 = vunpack.c.l.b16 %v1481
        %v1521 = vunpack.c.l.b16 %v1482
        %v1522 = vunpack.c.l.b16 %v1483
        %v1523 = vunpack.c.l.b16 %v1484
        %v1524 = vunpack.c.l.b16 %v1485
        %v1525 = vunpack.c.l.b16 %v1486
        %v1526 = vunpack.c.l.b16 %v1487
        %v1527 = vunpack.c.l.b16 %v1488
        %v1528 = vunpack.c.l.b16 %v1489
        %v1529 = vpack.c.b16 %v1514, %v1513
        %v1530 = vpack.c.b16 %v1516, %v1515
        %v1531 = vpack.c.b16 %v1518, %v1517
        %v1532 = vpack.c.b16 %v1520, %v1519
        %v1533 = vpack.c.b16 %v1522, %v1521
        %v1534 = vpack.c.b16 %v1524, %v1523
        %v1535 = vpack.c.b16 %v1526, %v1525
        %v1536 = vpack.c.b16 %v1528, %v1527
        %1545 = vmatprep.subr.bf16.mxu0 0
        %1546 = vmatpush1.bf16.msra.mxu0 %v1529
        %1547 = vmatprep.subr.bf16.mxu0 0
        %1548 = vmatpush1.bf16.msra.mxu0 %v1530
        %1549 = vmatprep.subr.bf16.mxu0 0
        %1550 = vmatpush1.bf16.msra.mxu0 %v1531
        %1551 = vmatprep.subr.bf16.mxu0 0
        %1552 = vmatpush1.bf16.msra.mxu0 %v1532
        %1553 = vmatprep.subr.bf16.mxu0 0
        %1554 = vmatpush1.bf16.msra.mxu0 %v1533
        %1555 = vmatprep.subr.bf16.mxu0 0
        %1556 = vmatpush1.bf16.msra.mxu0 %v1534
        %1557 = vmatprep.subr.bf16.mxu0 0
        %1558 = vmatpush1.bf16.msra.mxu0 %v1535
        %1559 = vmatprep.subr.bf16.mxu0 0
        %1560 = vmatpush1.bf16.msra.mxu0 %v1536
        %1561 = vmatprep.subr.bf16.mxu0 0
        %1562 = vmatpush1.bf16.msra.mxu0 0
        %1563 = vmatprep.subr.bf16.mxu0 0
        %1564 = vmatpush1.bf16.msra.mxu0 0
        %1565 = vmatprep.subr.bf16.mxu0 0
        %1566 = vmatpush1.bf16.msra.mxu0 0
        %1567 = vmatprep.subr.bf16.mxu0 0
        %1568 = vmatpush1.bf16.msra.mxu0 0
        %1569 = vmatprep.subr.bf16.mxu0 0
        %1570 = vmatpush1.bf16.msra.mxu0 0
        %1571 = vmatprep.subr.bf16.mxu0 0
        %1572 = vmatpush1.bf16.msra.mxu0 0
        %1573 = vmatprep.subr.bf16.mxu0 0
        %1574 = vmatpush1.bf16.msra.mxu0 0
        %1575 = vmatprep.subr.bf16.mxu0 0
        %1576 = vmatpush1.bf16.msra.mxu0 0
        %1577 = vmatprep.mubr.bf16.mxu0 0
        %1578 = vmatmul.mubr.bf16.gmra.mrb[0].mxu0 %v1458
        %v1579 = vpop.f32.mrb[0].mxu0
        %v1580 = vadd.f32 %v1495, %v1579
        %v1581 = vpop.f32.mrb[0].mxu0
        %v1582 = vpop.f32.mrb[0].mxu0
        %v1583 = vadd.f32 %v1495, %v1582
        %v1584 = vpop.f32.mrb[0].mxu0
        %1585 = vmatprep.mubr.bf16.mxu0 0
        %1586 = vmatmul.mubr.bf16.gmra.mrb[0].mxu0 %v1459
        %v1587 = vpop.f32.mrb[0].mxu0
        %v1588 = vadd.f32 %v1495, %v1587
        %v1589 = vpop.f32.mrb[0].mxu0
        %v1590 = vpop.f32.mrb[0].mxu0
        %v1591 = vadd.f32 %v1495, %v1590
        %v1592 = vpop.f32.mrb[0].mxu0
        %1593 = vmatprep.mubr.bf16.mxu0 0
        %1594 = vmatmul.mubr.bf16.gmra.mrb[0].mxu0 %v1460
        %v1595 = vpop.f32.mrb[0].mxu0
        %v1596 = vadd.f32 %v1495, %v1595
        %v1597 = vpop.f32.mrb[0].mxu0
        %v1598 = vpop.f32.mrb[0].mxu0
        %v1599 = vadd.f32 %v1495, %v1598
        %v1600 = vpop.f32.mrb[0].mxu0
        %1601 = vmatprep.mubr.bf16.mxu0 0
        %1602 = vmatmul.mubr.bf16.gmra.mrb[0].mxu0 %v1461
        %v1603 = vpop.f32.mrb[0].mxu0
        %v1604 = vadd.f32 %v1495, %v1603
        %v1605 = vpop.f32.mrb[0].mxu0
        %v1606 = vpop.f32.mrb[0].mxu0
        %v1607 = vadd.f32 %v1495, %v1606
        %v1608 = vpop.f32.mrb[0].mxu0
        %1609 = vmatprep.mubr.bf16.mxu0 0
        %1610 = vmatmul.mubr.bf16.gmra.mrb[0].mxu0 %v1462
        %v1611 = vpop.f32.mrb[0].mxu0
        %v1612 = vadd.f32 %v1495, %v1611
        %v1613 = vpop.f32.mrb[0].mxu0
        %v1614 = vpop.f32.mrb[0].mxu0
        %v1615 = vadd.f32 %v1495, %v1614
        %v1616 = vpop.f32.mrb[0].mxu0
        %1617 = vmatprep.mubr.bf16.mxu0 0
        %1618 = vmatmul.mubr.bf16.gmra.mrb[0].mxu0 %v1463
        %v1619 = vpop.f32.mrb[0].mxu0
        %v1620 = vadd.f32 %v1495, %v1619
        %v1621 = vpop.f32.mrb[0].mxu0
        %v1622 = vpop.f32.mrb[0].mxu0
        %v1623 = vadd.f32 %v1495, %v1622
        %v1624 = vpop.f32.mrb[0].mxu0
        %1625 = vmatprep.mubr.bf16.mxu0 0
        %1626 = vmatmul.mubr.bf16.gmra.mrb[0].mxu0 %v1464
        %v1627 = vpop.f32.mrb[0].mxu0
        %v1628 = vadd.f32 %v1495, %v1627
        %v1629 = vpop.f32.mrb[0].mxu0
        %v1630 = vpop.f32.mrb[0].mxu0
        %v1631 = vadd.f32 %v1495, %v1630
        %v1632 = vpop.f32.mrb[0].mxu0
        %1633 = vmatprep.mubr.bf16.mxu0 0
        %1634 = vmatmul.mubr.bf16.gmra.mrb[0].mxu0 %v1465
        %v1635 = vpop.f32.mrb[0].mxu0
        %v1636 = vadd.f32 %v1495, %v1635
        %v1637 = vpop.f32.mrb[0].mxu0
        %v1638 = vpop.f32.mrb[0].mxu0
        %v1639 = vadd.f32 %v1495, %v1638
        %v1640 = vpop.f32.mrb[0].mxu0
        %1641 = vmatprep.mubr.bf16.mxu0 0
        %1642 = vmatmul.mubr.bf16.gmra.mrb[0].mxu0 %v1466
        %v1643 = vpop.f32.mrb[0].mxu0
        %v1644 = vadd.f32 %v1495, %v1643
        %v1645 = vpop.f32.mrb[0].mxu0
        %v1646 = vpop.f32.mrb[0].mxu0
        %v1647 = vadd.f32 %v1495, %v1646
        %v1648 = vpop.f32.mrb[0].mxu0
        %1649 = vmatprep.mubr.bf16.mxu0 0
        %1650 = vmatmul.mubr.bf16.gmra.mrb[0].mxu0 %v1467
        %v1651 = vpop.f32.mrb[0].mxu0
        %v1652 = vadd.f32 %v1495, %v1651
        %v1653 = vpop.f32.mrb[0].mxu0
        %v1654 = vpop.f32.mrb[0].mxu0
        %v1655 = vadd.f32 %v1495, %v1654
        %v1656 = vpop.f32.mrb[0].mxu0
        %1657 = vmatprep.mubr.bf16.mxu0 0
        %1658 = vmatmul.mubr.bf16.gmra.mrb[0].mxu0 %v1468
        %v1659 = vpop.f32.mrb[0].mxu0
        %v1660 = vadd.f32 %v1495, %v1659
        %v1661 = vpop.f32.mrb[0].mxu0
        %v1662 = vpop.f32.mrb[0].mxu0
        %v1663 = vadd.f32 %v1495, %v1662
        %v1664 = vpop.f32.mrb[0].mxu0
        %1665 = vmatprep.mubr.bf16.mxu0 0
        %1666 = vmatmul.mubr.bf16.gmra.mrb[0].mxu0 %v1469
        %v1667 = vpop.f32.mrb[0].mxu0
        %v1668 = vadd.f32 %v1495, %v1667
        %v1669 = vpop.f32.mrb[0].mxu0
        %v1670 = vpop.f32.mrb[0].mxu0
        %v1671 = vadd.f32 %v1495, %v1670
        %v1672 = vpop.f32.mrb[0].mxu0
        %1673 = vmatprep.mubr.bf16.mxu0 0
        %1674 = vmatmul.mubr.bf16.gmra.mrb[0].mxu0 %v1470
        %v1675 = vpop.f32.mrb[0].mxu0
        %v1676 = vadd.f32 %v1495, %v1675
        %v1677 = vpop.f32.mrb[0].mxu0
        %v1678 = vpop.f32.mrb[0].mxu0
        %v1679 = vadd.f32 %v1495, %v1678
        %v1680 = vpop.f32.mrb[0].mxu0
        %1681 = vmatprep.mubr.bf16.mxu0 0
        %1682 = vmatmul.mubr.bf16.gmra.mrb[0].mxu0 %v1471
        %v1683 = vpop.f32.mrb[0].mxu0
        %v1684 = vadd.f32 %v1495, %v1683
        %v1685 = vpop.f32.mrb[0].mxu0
        %v1686 = vpop.f32.mrb[0].mxu0
        %v1687 = vadd.f32 %v1495, %v1686
        %v1688 = vpop.f32.mrb[0].mxu0
        %1689 = vmatprep.mubr.bf16.mxu0 0
        %1690 = vmatmul.mubr.bf16.gmra.mrb[0].mxu0 %v1472
        %v1691 = vpop.f32.mrb[0].mxu0
        %v1692 = vadd.f32 %v1495, %v1691
        %v1693 = vpop.f32.mrb[0].mxu0
        %v1694 = vpop.f32.mrb[0].mxu0
        %v1695 = vadd.f32 %v1495, %v1694
        %v1696 = vpop.f32.mrb[0].mxu0
        %1697 = vmatprep.mubr.bf16.mxu0 0
        %1698 = vmatmul.mubr.bf16.gmra.mrb[0].mxu0 %v1473
        %v1699 = vpop.f32.mrb[0].mxu0
        %v1700 = vadd.f32 %v1495, %v1699
        %v1701 = vpop.f32.mrb[0].mxu0
        %v1702 = vpop.f32.mrb[0].mxu0
        %v1703 = vadd.f32 %v1495, %v1702
        %v1704 = vpop.f32.mrb[0].mxu0
        %1705 = vdwg.mxu0
        %v1706 = vadd.f32 %v394, %v1580
        %v1707 = vadd.f32 %v395, %v1583
        %v1708 = vadd.f32 %v396, %v1588
        %v1709 = vadd.f32 %v397, %v1591
        %v1710 = vadd.f32 %v398, %v1596
        %v1711 = vadd.f32 %v399, %v1599
        %v1712 = vadd.f32 %v400, %v1604
        %v1713 = vadd.f32 %v401, %v1607
        %v1714 = vadd.f32 %v402, %v1612
        %v1715 = vadd.f32 %v403, %v1615
        %v1716 = vadd.f32 %v404, %v1620
        %v1717 = vadd.f32 %v405, %v1623
        %v1718 = vadd.f32 %v406, %v1628
        %v1719 = vadd.f32 %v407, %v1631
        %v1720 = vadd.f32 %v408, %v1636
        %v1721 = vadd.f32 %v409, %v1639
        %v1722 = vadd.f32 %v410, %v1644
        %v1723 = vadd.f32 %v411, %v1647
        %v1724 = vadd.f32 %v412, %v1652
        %v1725 = vadd.f32 %v413, %v1655
        %v1726 = vadd.f32 %v414, %v1660
        %v1727 = vadd.f32 %v415, %v1663
        %v1728 = vadd.f32 %v416, %v1668
        %v1729 = vadd.f32 %v417, %v1671
        %v1730 = vadd.f32 %v418, %v1676
        %v1731 = vadd.f32 %v419, %v1679
        %v1732 = vadd.f32 %v420, %v1684
        %v1733 = vadd.f32 %v421, %v1687
        %v1734 = vadd.f32 %v422, %v1692
        %v1735 = vadd.f32 %v423, %v1695
        %v1736 = vadd.f32 %v424, %v1700
        %v1737 = vadd.f32 %v425, %v1703
        %1738 = vst.msk [vmem:[%s315] sm:$0xff] %vm426, %v1706
        %1739 = vst.msk [vmem:[%s315 + $0x8] sm:$0xff] %vm426, %v1707
        %1740 = vst.msk [vmem:[%s315 + $0x10] sm:$0xff] %vm426, %v1708
        %1741 = vst.msk [vmem:[%s315 + $0x18] sm:$0xff] %vm426, %v1709
        %1742 = vst.msk [vmem:[%s315 + $0x20] sm:$0xff] %vm426, %v1710
        %1743 = vst.msk [vmem:[%s315 + $0x28] sm:$0xff] %vm426, %v1711
        %1744 = vst.msk [vmem:[%s315 + $0x30] sm:$0xff] %vm426, %v1712
        %1745 = vst.msk [vmem:[%s315 + $0x38] sm:$0xff] %vm426, %v1713
        %1746 = vst.msk [vmem:[%s315 + $0x40] sm:$0xff] %vm426, %v1714
        %1747 = vst.msk [vmem:[%s315 + $0x48] sm:$0xff] %vm426, %v1715
        %1748 = vst.msk [vmem:[%s315 + $0x50] sm:$0xff] %vm426, %v1716
        %1749 = vst.msk [vmem:[%s315 + $0x58] sm:$0xff] %vm426, %v1717
        %1750 = vst.msk [vmem:[%s315 + $0x60] sm:$0xff] %vm426, %v1718
        %1751 = vst.msk [vmem:[%s315 + $0x68] sm:$0xff] %vm426, %v1719
        %1752 = vst.msk [vmem:[%s315 + $0x70] sm:$0xff] %vm426, %v1720
        %1753 = vst.msk [vmem:[%s315 + $0x78] sm:$0xff] %vm426, %v1721
        %1754 = vst.msk [vmem:[%s315 + $0x80] sm:$0xff] %vm426, %v1722
        %1755 = vst.msk [vmem:[%s315 + $0x88] sm:$0xff] %vm426, %v1723
        %1756 = vst.msk [vmem:[%s315 + $0x90] sm:$0xff] %vm426, %v1724
        %1757 = vst.msk [vmem:[%s315 + $0x98] sm:$0xff] %vm426, %v1725
        %1758 = vst.msk [vmem:[%s315 + $0xa0] sm:$0xff] %vm426, %v1726
        %1759 = vst.msk [vmem:[%s315 + $0xa8] sm:$0xff] %vm426, %v1727
        %1760 = vst.msk [vmem:[%s315 + $0xb0] sm:$0xff] %vm426, %v1728
        %1761 = vst.msk [vmem:[%s315 + $0xb8] sm:$0xff] %vm426, %v1729
        %1762 = vst.msk [vmem:[%s315 + $0xc0] sm:$0xff] %vm426, %v1730
        %1763 = vst.msk [vmem:[%s315 + $0xc8] sm:$0xff] %vm426, %v1731
        %1764 = vst.msk [vmem:[%s315 + $0xd0] sm:$0xff] %vm426, %v1732
        %1765 = vst.msk [vmem:[%s315 + $0xd8] sm:$0xff] %vm426, %v1733
        %1766 = vst.msk [vmem:[%s315 + $0xe0] sm:$0xff] %vm426, %v1734
        %1767 = vst.msk [vmem:[%s315 + $0xe8] sm:$0xff] %vm426, %v1735
        %1768 = vst.msk [vmem:[%s315 + $0xf0] sm:$0xff] %vm426, %v1736
        %1769 = vst.msk [vmem:[%s315 + $0xf8] sm:$0xff] %vm426, %v1737
        %s1770 = sand.u32 %s208, 1
        %s1771 = scalar_lea.sflag [#allocation3], %s1770
        %s1772 = sand.u32 %s208, 1
        %s1773 = smul.addr %s1772, 256
        %s1774 = scalar_lea.vmem [#allocation2], %s1773
        // Predicated region
        $region53: #{swin_block_forward.3} parent=51 // pred_check
          %p1775 = pneg %p218
        $region54: #{swin_block_forward.3} parent=51 // pred_check_branch
          %1777 = sbr.rel (%p1775) target = $region56
        $region55: #{swin_block_forward.3} parent=51 // pred_region
          %s1778 = smul.u32 32, %s22
          %s1780 = ssub.s32 4096, 4096
          %1781 = vsyncadd %s1771, %s1780
          %s1782 = smul.addr %s1778, 128
          %s1783 = scalar_lea.hbm %s8, %s1782
          %s1784 = sshll.u32 %s1774, 4
          %s1785 = int_to_ptr.vmem [resolvable:$true] %s1784
          %1790 = dma.vmem_to_hbm [thread:$0]  %s1785, 4096, %s1783, %s1771, 128, 128, 8
        $region56: #{swin_block_forward.3} parent=51 // pred_fallthru
          _
      $region52: #{swin_block_forward.3} parent=5 // pred_fallthru
        _
      %p1791 = scmp.le.s32.totalorder 2, %s17
      // Predicated region
      $region57: #{swin_block_forward.3} parent=5 // pred_check
        %p1792 = pneg %p1791
      $region58: #{swin_block_forward.3} parent=5 // pred_check_branch
        %1794 = sbr.rel (%p1792) target = $region60
      $region59: #{swin_block_forward.3} parent=5 // pred_region
        %s1795 = ssub.s32 %s17, 2
        // Predicated region
        $region61: #{swin_block_forward.3} parent=59 // pred_check
          %p1796 = pneg %p224
        $region62: #{swin_block_forward.3} parent=59 // pred_check_branch
          %1798 = sbr.rel (%p1796) target = $region64
        $region63: #{swin_block_forward.3} parent=59 // pred_region
          %s1799 = sand.u32 %s209, 1
          %s1800 = scalar_lea.sflag [#allocation3], %s1799
          %s1801 = sand.u32 %s209, 1
          %s1802 = smul.addr %s1801, 256
          %s1803 = scalar_lea.vmem [#allocation2], %s1802
          %1804 = dma.done %s1800, 4096
        $region64: #{swin_block_forward.3} parent=59 // pred_fallthru
          _
      $region60: #{swin_block_forward.3} parent=5 // pred_fallthru
        _
    $region6: #{swin_block_forward.3} parent=1 // loop_footer
      %s21 = sadd.s32 1, %s17
    $region7: #{swin_block_forward.3} parent=1 // loop_footer_branch
      %16 = sbr.rel target = $region3
    $region8: #{swin_block_forward.3} parent=1 // loop_exit
      _
    %1805 = vsyncpa [#allocation3], 1
    %s1806 = scalar_lea.sflag [#allocation3], 1
    %1807 = vsyncpa %s1806, 1

// kernel: swin_block_forward.2
$region0: #{swin_block_forward.2}
  #allocation0 [shape = 'u32[]', space=smem, size = 0x4, offset = 0x4, fixed_abs, tag = 'smem constant byte address 0x4 - core index']
  #allocation1 [shape = 'u32[144,128]{1,0:T(1,128)}', space=vmem, size = 0x12000, scoped, tag = 'internal scratch']
  %s0 = inlined_call_operand.vmem [shape: f32[16,32,32], index: 0, kind: input, shape index: {}]
  %s1 = inlined_call_operand.vmem [shape: f32[1,32], index: 1, kind: input, shape index: {}]
  %s2 = inlined_call_operand.vmem [shape: f32[1,32], index: 2, kind: input, shape index: {}]
  %s3 = inlined_call_operand.vmem [shape: bf16[32,32], index: 3, kind: input, shape index: {}]
  %s4 = inlined_call_operand.vmem [shape: bf16[32,32], index: 4, kind: input, shape index: {}]
  %s5 = inlined_call_operand.vmem [shape: bf16[32,32], index: 5, kind: input, shape index: {}]
  %s6 = inlined_call_operand.vmem [shape: f32[1,32], index: 6, kind: input, shape index: {}]
  %s7 = inlined_call_operand.vmem [shape: f32[1,32], index: 7, kind: input, shape index: {}]
  %s8 = inlined_call_operand.vmem [shape: f32[1,32], index: 8, kind: input, shape index: {}]
  %s9 = inlined_call_operand.vmem [shape: bf16[32,32], index: 9, kind: input, shape index: {}]
  %s10 = inlined_call_operand.vmem [shape: f32[1,32], index: 10, kind: input, shape index: {}]
  %s11 = inlined_call_operand.vmem [shape: f32[4,32,32], index: 11, kind: input, shape index: {}]
  %s12 = inlined_call_operand.vmem [shape: f32[8,32,32], index: 12, kind: input, shape index: {}]
  %s13 = inlined_call_operand.vmem [shape: f32[16,32,32], index: 13, kind: output, shape index: {}]
  %s14 = sld [smem:[#allocation0]]
  $region85: #{swin_block_forward.2} parent=0
    _
  %s16 = ssub.s32 1, %s14
  %s17 = scalar_select 0, %s16, %s14
  loop: start=0, step=1, limit=6
  $region2: #{swin_block_forward.2} parent=0 // loop_pre_header
    _
  $region3: #{swin_block_forward.2} parent=0 // loop_header
    %s19 = sphi 0, %s23
    %p20 = scmp.ge.s32.totalorder %s19, 6
    %s26 = sphi 0, %s38
    %s27 = sphi 0, %s34
    %s28 = sphi 0, %s26
    %s29 = sphi 0, %s27
    %s30 = sphi 0, %s28
    %s31 = sphi 0, %s29
    %s45 = sphi 0, %s47
    %s48 = sphi 0, %s45
    %s49 = sphi 0, %s48
    %s65 = sphi 0, %s49
    %s69 = sphi 0, %s69
    %s71 = sphi 0, %s69
    %s72 = sphi 0, %s71
    %s86 = sphi 0, %s72
    %s90 = sphi 0, %s90
    %s92 = sphi 0, %s90
    %s93 = sphi 0, %s92
    %s107 = sphi 0, %s93
    %s111 = sphi 0, %s111
    %s113 = sphi 0, %s111
    %s114 = sphi 0, %s113
    %s128 = sphi 0, %s114
    %s132 = sphi 0, %s132
    %s134 = sphi 0, %s132
    %s135 = sphi 0, %s134
    %s149 = sphi 0, %s135
    %s153 = sphi 0, %s153
    %s155 = sphi 0, %s153
    %s156 = sphi 0, %s155
    %s170 = sphi 0, %s156
    %s174 = sphi 0, %s174
    %s176 = sphi 0, %s174
    %s177 = sphi 0, %s176
    %s191 = sphi 0, %s177
    %s195 = sphi 0, %s195
    %s197 = sphi 0, %s195
    %s198 = sphi 0, %s197
    %s212 = sphi 0, %s198
    %s216 = sphi 0, %s216
    %s218 = sphi 0, %s216
    %s219 = sphi 0, %s218
    %s233 = sphi 0, %s219
    %s237 = sphi 0, %s237
    %s239 = sphi 0, %s237
    %s240 = sphi 0, %s239
    %s254 = sphi 0, %s240
    %s258 = sphi 0, %s258
    %s260 = sphi 0, %s258
    %s261 = sphi 0, %s260
    %s275 = sphi 0, %s261
    %s279 = sphi 0, %s279
    %s281 = sphi 0, %s279
    %s282 = sphi 0, %s281
    %s296 = sphi 0, %s282
    %s302 = sphi 0, %s304
    %s305 = sphi 0, %s302
    %s306 = sphi 0, %s305
    %s322 = sphi 0, %s306
    %s332 = sphi 0, %s334
    %s335 = sphi 0, %s332
    %s336 = sphi 0, %s335
    %s352 = sphi 0, %s336
  $region4: #{swin_block_forward.2} parent=0 // loop_header_branch
    %22 = sbr.rel (%p20) target = $region8
  $region5: #{swin_block_forward.2} parent=0 // loop_body
    %s24 = ssub.s32 %s19, 1
    %s25 = ssub.s32 %s19, 2
    %s32 = sadd.s32 1, %s27
    %p33 = scmp.ge.s32.totalorder %s32, 2
    %s34 = scalar_select %p33, 0, %s32
    %s35 = sadd.s32 1, %s26
    %s36 = scalar_select %p33, %s35, %s26
    %p37 = scmp.ge.s32.totalorder %s36, 2
    %s38 = scalar_select %p37, 0, %s36
    %s39 = smul.u32 %s26, 2
    %s40 = sadd.s32 %s39, %s27
    %s41 = smul.u32 %s38, 2
    %s42 = sadd.s32 %s41, %s34
    %s43 = ssub.s32 %s40, %s42
    %p44 = scmp.eq.s32.totalorder %s43, 0
    %s46 = sadd.s32 %s45, 1
    %s47 = scalar_select %p44, %s45, %s46
    %p50 = pneg %p44
    %p51 = scmp.eq.s32.totalorder %s19, 3
    %p52 = por %p50, %p51
    %p53 = scmp.ne.s32.totalorder %s45, %s48
    %p54 = scmp.eq.s32.totalorder %s19, 0
    %p55 = por %p53, %p54
    %p56 = scmp.ne.s32.totalorder %s45, %s48
    %p57 = scmp.eq.s32.totalorder %s24, 3
    %p58 = por %p56, %p57
    %p59 = scmp.ne.s32.totalorder %s48, %s49
    %p60 = scmp.eq.s32.totalorder %s24, 0
    %p61 = por %p59, %p60
    %p62 = scmp.ne.s32.totalorder %s48, %s49
    %p63 = scmp.eq.s32.totalorder %s25, 3
    %p64 = por %p62, %p63
    %p66 = scmp.ne.s32.totalorder %s49, %s65
    %p67 = scmp.eq.s32.totalorder %s25, 0
    %p68 = por %p66, %p67
    %s70 = sadd.s32 %s69, 1
    %p73 = scmp.eq.s32.totalorder %s19, 3
    %p74 = scmp.ne.s32.totalorder %s69, %s71
    %p75 = scmp.eq.s32.totalorder %s19, 0
    %p76 = por %p74, %p75
    %p77 = scmp.ne.s32.totalorder %s69, %s71
    %p78 = scmp.eq.s32.totalorder %s24, 3
    %p79 = por %p77, %p78
    %p80 = scmp.ne.s32.totalorder %s71, %s72
    %p81 = scmp.eq.s32.totalorder %s24, 0
    %p82 = por %p80, %p81
    %p83 = scmp.ne.s32.totalorder %s71, %s72
    %p84 = scmp.eq.s32.totalorder %s25, 3
    %p85 = por %p83, %p84
    %p87 = scmp.ne.s32.totalorder %s72, %s86
    %p88 = scmp.eq.s32.totalorder %s25, 0
    %p89 = por %p87, %p88
    %s91 = sadd.s32 %s90, 1
    %p94 = scmp.eq.s32.totalorder %s19, 3
    %p95 = scmp.ne.s32.totalorder %s90, %s92
    %p96 = scmp.eq.s32.totalorder %s19, 0
    %p97 = por %p95, %p96
    %p98 = scmp.ne.s32.totalorder %s90, %s92
    %p99 = scmp.eq.s32.totalorder %s24, 3
    %p100 = por %p98, %p99
    %p101 = scmp.ne.s32.totalorder %s92, %s93
    %p102 = scmp.eq.s32.totalorder %s24, 0
    %p103 = por %p101, %p102
    %p104 = scmp.ne.s32.totalorder %s92, %s93
    %p105 = scmp.eq.s32.totalorder %s25, 3
    %p106 = por %p104, %p105
    %p108 = scmp.ne.s32.totalorder %s93, %s107
    %p109 = scmp.eq.s32.totalorder %s25, 0
    %p110 = por %p108, %p109
    %s112 = sadd.s32 %s111, 1
    %p115 = scmp.eq.s32.totalorder %s19, 3
    %p116 = scmp.ne.s32.totalorder %s111, %s113
    %p117 = scmp.eq.s32.totalorder %s19, 0
    %p118 = por %p116, %p117
    %p119 = scmp.ne.s32.totalorder %s111, %s113
    %p120 = scmp.eq.s32.totalorder %s24, 3
    %p121 = por %p119, %p120
    %p122 = scmp.ne.s32.totalorder %s113, %s114
    %p123 = scmp.eq.s32.totalorder %s24, 0
    %p124 = por %p122, %p123
    %p125 = scmp.ne.s32.totalorder %s113, %s114
    %p126 = scmp.eq.s32.totalorder %s25, 3
    %p127 = por %p125, %p126
    %p129 = scmp.ne.s32.totalorder %s114, %s128
    %p130 = scmp.eq.s32.totalorder %s25, 0
    %p131 = por %p129, %p130
    %s133 = sadd.s32 %s132, 1
    %p136 = scmp.eq.s32.totalorder %s19, 3
    %p137 = scmp.ne.s32.totalorder %s132, %s134
    %p138 = scmp.eq.s32.totalorder %s19, 0
    %p139 = por %p137, %p138
    %p140 = scmp.ne.s32.totalorder %s132, %s134
    %p141 = scmp.eq.s32.totalorder %s24, 3
    %p142 = por %p140, %p141
    %p143 = scmp.ne.s32.totalorder %s134, %s135
    %p144 = scmp.eq.s32.totalorder %s24, 0
    %p145 = por %p143, %p144
    %p146 = scmp.ne.s32.totalorder %s134, %s135
    %p147 = scmp.eq.s32.totalorder %s25, 3
    %p148 = por %p146, %p147
    %p150 = scmp.ne.s32.totalorder %s135, %s149
    %p151 = scmp.eq.s32.totalorder %s25, 0
    %p152 = por %p150, %p151
    %s154 = sadd.s32 %s153, 1
    %p157 = scmp.eq.s32.totalorder %s19, 3
    %p158 = scmp.ne.s32.totalorder %s153, %s155
    %p159 = scmp.eq.s32.totalorder %s19, 0
    %p160 = por %p158, %p159
    %p161 = scmp.ne.s32.totalorder %s153, %s155
    %p162 = scmp.eq.s32.totalorder %s24, 3
    %p163 = por %p161, %p162
    %p164 = scmp.ne.s32.totalorder %s155, %s156
    %p165 = scmp.eq.s32.totalorder %s24, 0
    %p166 = por %p164, %p165
    %p167 = scmp.ne.s32.totalorder %s155, %s156
    %p168 = scmp.eq.s32.totalorder %s25, 3
    %p169 = por %p167, %p168
    %p171 = scmp.ne.s32.totalorder %s156, %s170
    %p172 = scmp.eq.s32.totalorder %s25, 0
    %p173 = por %p171, %p172
    %s175 = sadd.s32 %s174, 1
    %p178 = scmp.eq.s32.totalorder %s19, 3
    %p179 = scmp.ne.s32.totalorder %s174, %s176
    %p180 = scmp.eq.s32.totalorder %s19, 0
    %p181 = por %p179, %p180
    %p182 = scmp.ne.s32.totalorder %s174, %s176
    %p183 = scmp.eq.s32.totalorder %s24, 3
    %p184 = por %p182, %p183
    %p185 = scmp.ne.s32.totalorder %s176, %s177
    %p186 = scmp.eq.s32.totalorder %s24, 0
    %p187 = por %p185, %p186
    %p188 = scmp.ne.s32.totalorder %s176, %s177
    %p189 = scmp.eq.s32.totalorder %s25, 3
    %p190 = por %p188, %p189
    %p192 = scmp.ne.s32.totalorder %s177, %s191
    %p193 = scmp.eq.s32.totalorder %s25, 0
    %p194 = por %p192, %p193
    %s196 = sadd.s32 %s195, 1
    %p199 = scmp.eq.s32.totalorder %s19, 3
    %p200 = scmp.ne.s32.totalorder %s195, %s197
    %p201 = scmp.eq.s32.totalorder %s19, 0
    %p202 = por %p200, %p201
    %p203 = scmp.ne.s32.totalorder %s195, %s197
    %p204 = scmp.eq.s32.totalorder %s24, 3
    %p205 = por %p203, %p204
    %p206 = scmp.ne.s32.totalorder %s197, %s198
    %p207 = scmp.eq.s32.totalorder %s24, 0
    %p208 = por %p206, %p207
    %p209 = scmp.ne.s32.totalorder %s197, %s198
    %p210 = scmp.eq.s32.totalorder %s25, 3
    %p211 = por %p209, %p210
    %p213 = scmp.ne.s32.totalorder %s198, %s212
    %p214 = scmp.eq.s32.totalorder %s25, 0
    %p215 = por %p213, %p214
    %s217 = sadd.s32 %s216, 1
    %p220 = scmp.eq.s32.totalorder %s19, 3
    %p221 = scmp.ne.s32.totalorder %s216, %s218
    %p222 = scmp.eq.s32.totalorder %s19, 0
    %p223 = por %p221, %p222
    %p224 = scmp.ne.s32.totalorder %s216, %s218
    %p225 = scmp.eq.s32.totalorder %s24, 3
    %p226 = por %p224, %p225
    %p227 = scmp.ne.s32.totalorder %s218, %s219
    %p228 = scmp.eq.s32.totalorder %s24, 0
    %p229 = por %p227, %p228
    %p230 = scmp.ne.s32.totalorder %s218, %s219
    %p231 = scmp.eq.s32.totalorder %s25, 3
    %p232 = por %p230, %p231
    %p234 = scmp.ne.s32.totalorder %s219, %s233
    %p235 = scmp.eq.s32.totalorder %s25, 0
    %p236 = por %p234, %p235
    %s238 = sadd.s32 %s237, 1
    %p241 = scmp.eq.s32.totalorder %s19, 3
    %p242 = scmp.ne.s32.totalorder %s237, %s239
    %p243 = scmp.eq.s32.totalorder %s19, 0
    %p244 = por %p242, %p243
    %p245 = scmp.ne.s32.totalorder %s237, %s239
    %p246 = scmp.eq.s32.totalorder %s24, 3
    %p247 = por %p245, %p246
    %p248 = scmp.ne.s32.totalorder %s239, %s240
    %p249 = scmp.eq.s32.totalorder %s24, 0
    %p250 = por %p248, %p249
    %p251 = scmp.ne.s32.totalorder %s239, %s240
    %p252 = scmp.eq.s32.totalorder %s25, 3
    %p253 = por %p251, %p252
    %p255 = scmp.ne.s32.totalorder %s240, %s254
    %p256 = scmp.eq.s32.totalorder %s25, 0
    %p257 = por %p255, %p256
    %s259 = sadd.s32 %s258, 1
    %p262 = scmp.eq.s32.totalorder %s19, 3
    %p263 = scmp.ne.s32.totalorder %s258, %s260
    %p264 = scmp.eq.s32.totalorder %s19, 0
    %p265 = por %p263, %p264
    %p266 = scmp.ne.s32.totalorder %s258, %s260
    %p267 = scmp.eq.s32.totalorder %s24, 3
    %p268 = por %p266, %p267
    %p269 = scmp.ne.s32.totalorder %s260, %s261
    %p270 = scmp.eq.s32.totalorder %s24, 0
    %p271 = por %p269, %p270
    %p272 = scmp.ne.s32.totalorder %s260, %s261
    %p273 = scmp.eq.s32.totalorder %s25, 3
    %p274 = por %p272, %p273
    %p276 = scmp.ne.s32.totalorder %s261, %s275
    %p277 = scmp.eq.s32.totalorder %s25, 0
    %p278 = por %p276, %p277
    %s280 = sadd.s32 %s279, 1
    %p283 = scmp.eq.s32.totalorder %s19, 3
    %p284 = scmp.ne.s32.totalorder %s279, %s281
    %p285 = scmp.eq.s32.totalorder %s19, 0
    %p286 = por %p284, %p285
    %p287 = scmp.ne.s32.totalorder %s279, %s281
    %p288 = scmp.eq.s32.totalorder %s24, 3
    %p289 = por %p287, %p288
    %p290 = scmp.ne.s32.totalorder %s281, %s282
    %p291 = scmp.eq.s32.totalorder %s24, 0
    %p292 = por %p290, %p291
    %p293 = scmp.ne.s32.totalorder %s281, %s282
    %p294 = scmp.eq.s32.totalorder %s25, 3
    %p295 = por %p293, %p294
    %p297 = scmp.ne.s32.totalorder %s282, %s296
    %p298 = scmp.eq.s32.totalorder %s25, 0
    %p299 = por %p297, %p298
    %s300 = ssub.s32 %s27, %s34
    %p301 = scmp.eq.s32.totalorder %s300, 0
    %s303 = sadd.s32 %s302, 1
    %s304 = scalar_select %p301, %s302, %s303
    %p307 = pneg %p301
    %p308 = scmp.eq.s32.totalorder %s19, 3
    %p309 = por %p307, %p308
    %p310 = scmp.ne.s32.totalorder %s302, %s305
    %p311 = scmp.eq.s32.totalorder %s19, 0
    %p312 = por %p310, %p311
    %p313 = scmp.ne.s32.totalorder %s302, %s305
    %p314 = scmp.eq.s32.totalorder %s24, 3
    %p315 = por %p313, %p314
    %p316 = scmp.ne.s32.totalorder %s305, %s306
    %p317 = scmp.eq.s32.totalorder %s24, 0
    %p318 = por %p316, %p317
    %p319 = scmp.ne.s32.totalorder %s305, %s306
    %p320 = scmp.eq.s32.totalorder %s25, 3
    %p321 = por %p319, %p320
    %p323 = scmp.ne.s32.totalorder %s306, %s322
    %p324 = scmp.eq.s32.totalorder %s25, 0
    %p325 = por %p323, %p324
    %s326 = smul.u32 %s26, 2
    %s327 = sadd.s32 %s326, %s27
    %s328 = smul.u32 %s38, 2
    %s329 = sadd.s32 %s328, %s34
    %s330 = ssub.s32 %s327, %s329
    %p331 = scmp.eq.s32.totalorder %s330, 0
    %s333 = sadd.s32 %s332, 1
    %s334 = scalar_select %p331, %s332, %s333
    %p337 = pneg %p331
    %p338 = scmp.eq.s32.totalorder %s19, 3
    %p339 = por %p337, %p338
    %p340 = scmp.ne.s32.totalorder %s332, %s335
    %p341 = scmp.eq.s32.totalorder %s19, 0
    %p342 = por %p340, %p341
    %p343 = scmp.ne.s32.totalorder %s332, %s335
    %p344 = scmp.eq.s32.totalorder %s24, 3
    %p345 = por %p343, %p344
    %p346 = scmp.ne.s32.totalorder %s335, %s336
    %p347 = scmp.eq.s32.totalorder %s24, 0
    %p348 = por %p346, %p347
    %p349 = scmp.ne.s32.totalorder %s335, %s336
    %p350 = scmp.eq.s32.totalorder %s25, 3
    %p351 = por %p349, %p350
    %p353 = scmp.ne.s32.totalorder %s336, %s352
    %p354 = scmp.eq.s32.totalorder %s25, 0
    %p355 = por %p353, %p354
    %p356 = scmp.le.s32.totalorder 1, %s19
    %p357 = scmp.lt.s32.totalorder %s19, 5
    %p358 = pnand %p356, %p357
    %p359 = pneg %p358
    // Predicated region
    $region9: #{swin_block_forward.2} parent=5 // pred_check
      _
    $region10: #{swin_block_forward.2} parent=5 // pred_check_branch
      %361 = sbr.rel (%p358) target = $region12
    $region11: #{swin_block_forward.2} parent=5 // pred_region
      %s362 = ssub.s32 %s19, 1
      // Predicated region
      $region13: #{swin_block_forward.2} parent=11 // pred_check
        %p363 = pneg %p82
      $region14: #{swin_block_forward.2} parent=11 // pred_check_branch
        %365 = sbr.rel (%p363) target = $region16
      $region15: #{swin_block_forward.2} parent=11 // pred_region
        _
      $region16: #{swin_block_forward.2} parent=11 // pred_fallthru
        _
      // Predicated region
      $region17: #{swin_block_forward.2} parent=11 // pred_check
        %p366 = pneg %p103
      $region18: #{swin_block_forward.2} parent=11 // pred_check_branch
        %368 = sbr.rel (%p366) target = $region20
      $region19: #{swin_block_forward.2} parent=11 // pred_region
        _
      $region20: #{swin_block_forward.2} parent=11 // pred_fallthru
        _
      // Predicated region
      $region21: #{swin_block_forward.2} parent=11 // pred_check
        %p369 = pneg %p124
      $region22: #{swin_block_forward.2} parent=11 // pred_check_branch
        %371 = sbr.rel (%p369) target = $region24
      $region23: #{swin_block_forward.2} parent=11 // pred_region
        _
      $region24: #{swin_block_forward.2} parent=11 // pred_fallthru
        _
      // Predicated region
      $region25: #{swin_block_forward.2} parent=11 // pred_check
        %p372 = pneg %p145
      $region26: #{swin_block_forward.2} parent=11 // pred_check_branch
        %374 = sbr.rel (%p372) target = $region28
      $region27: #{swin_block_forward.2} parent=11 // pred_region
        _
      $region28: #{swin_block_forward.2} parent=11 // pred_fallthru
        _
      // Predicated region
      $region29: #{swin_block_forward.2} parent=11 // pred_check
        %p375 = pneg %p166
      $region30: #{swin_block_forward.2} parent=11 // pred_check_branch
        %377 = sbr.rel (%p375) target = $region32
      $region31: #{swin_block_forward.2} parent=11 // pred_region
        _
      $region32: #{swin_block_forward.2} parent=11 // pred_fallthru
        _
      // Predicated region
      $region33: #{swin_block_forward.2} parent=11 // pred_check
        %p378 = pneg %p187
      $region34: #{swin_block_forward.2} parent=11 // pred_check_branch
        %380 = sbr.rel (%p378) target = $region36
      $region35: #{swin_block_forward.2} parent=11 // pred_region
        _
      $region36: #{swin_block_forward.2} parent=11 // pred_fallthru
        _
      // Predicated region
      $region37: #{swin_block_forward.2} parent=11 // pred_check
        %p381 = pneg %p208
      $region38: #{swin_block_forward.2} parent=11 // pred_check_branch
        %383 = sbr.rel (%p381) target = $region40
      $region39: #{swin_block_forward.2} parent=11 // pred_region
        _
      $region40: #{swin_block_forward.2} parent=11 // pred_fallthru
        _
      // Predicated region
      $region41: #{swin_block_forward.2} parent=11 // pred_check
        %p384 = pneg %p229
      $region42: #{swin_block_forward.2} parent=11 // pred_check_branch
        %386 = sbr.rel (%p384) target = $region44
      $region43: #{swin_block_forward.2} parent=11 // pred_region
        _
      $region44: #{swin_block_forward.2} parent=11 // pred_fallthru
        _
      // Predicated region
      $region45: #{swin_block_forward.2} parent=11 // pred_check
        %p387 = pneg %p250
      $region46: #{swin_block_forward.2} parent=11 // pred_check_branch
        %389 = sbr.rel (%p387) target = $region48
      $region47: #{swin_block_forward.2} parent=11 // pred_region
        _
      $region48: #{swin_block_forward.2} parent=11 // pred_fallthru
        _
      // Predicated region
      $region49: #{swin_block_forward.2} parent=11 // pred_check
        %p390 = pneg %p271
      $region50: #{swin_block_forward.2} parent=11 // pred_check_branch
        %392 = sbr.rel (%p390) target = $region52
      $region51: #{swin_block_forward.2} parent=11 // pred_region
        _
      $region52: #{swin_block_forward.2} parent=11 // pred_fallthru
        _
      // Predicated region
      $region53: #{swin_block_forward.2} parent=11 // pred_check
        %p393 = pneg %p292
      $region54: #{swin_block_forward.2} parent=11 // pred_check_branch
        %395 = sbr.rel (%p393) target = $region56
      $region55: #{swin_block_forward.2} parent=11 // pred_region
        _
      $region56: #{swin_block_forward.2} parent=11 // pred_fallthru
        _
    $region12: #{swin_block_forward.2} parent=5 // pred_fallthru
      _
    %p396 = scmp.lt.s32.totalorder %s19, 4
    // Predicated region
    $region57: #{swin_block_forward.2} parent=5 // pred_check
      %p397 = pneg %p396
    $region58: #{swin_block_forward.2} parent=5 // pred_check_branch
      %399 = sbr.rel (%p397) target = $region60
    $region59: #{swin_block_forward.2} parent=5 // pred_region
      // Predicated region
      $region61: #{swin_block_forward.2} parent=59 // pred_check
        %p400 = pneg %p55
      $region62: #{swin_block_forward.2} parent=59 // pred_check_branch
        %402 = sbr.rel (%p400) target = $region64
      $region63: #{swin_block_forward.2} parent=59 // pred_region
        %s403 = smul.u32 %s26, 2
        %s404 = sadd.s32 %s403, %s27
        %s405 = smul.u32 4, %s404
        %p406 = scmp.lt.s32.totalorder %s405, 15
        %s407 = scalar_select %p406, %s405, 15
        %s408 = smul.addr %s407, 4
        %s409 = smul.addr %s408, 8
        %s410 = scalar_lea.vmem %s0, %s409
        %s411 = smul.u32 %s26, 2
        %s412 = sadd.s32 %s411, %s27
        %s413 = smul.u32 4, %s412
      $region64: #{swin_block_forward.2} parent=59 // pred_fallthru
        _
      // Predicated region
      $region65: #{swin_block_forward.2} parent=59 // pred_check
        %p414 = pneg %p312
      $region66: #{swin_block_forward.2} parent=59 // pred_check_branch
        %416 = sbr.rel (%p414) target = $region68
      $region67: #{swin_block_forward.2} parent=59 // pred_region
        %s417 = smul.u32 4, %s27
        %p418 = scmp.lt.s32.totalorder %s417, 7
        %s419 = scalar_select %p418, %s417, 7
        %s420 = smul.addr %s419, 4
        %s421 = smul.addr %s420, 8
        %s422 = scalar_lea.vmem %s12, %s421
        %s423 = smul.u32 4, %s27
      $region68: #{swin_block_forward.2} parent=59 // pred_fallthru
        _
    $region60: #{swin_block_forward.2} parent=5 // pred_fallthru
      _
    %p424 = scmp.le.s32.totalorder 1, %s19
    %p425 = scmp.lt.s32.totalorder %s19, 5
    %p426 = pnand %p424, %p425
    %p427 = pneg %p426
    // Predicated region
    $region69: #{swin_block_forward.2} parent=5 // pred_check
      _
    $region70: #{swin_block_forward.2} parent=5 // pred_check_branch
      %429 = sbr.rel (%p426) target = $region72
    $region71: #{swin_block_forward.2} parent=5 // pred_region
      %s430 = ssub.s32 %s19, 1
      %s431 = smul.u32 %s28, 2
      %s432 = sadd.s32 %s431, %s29
      %s433 = smul.u32 4, %s432
      %p434 = scmp.lt.s32.totalorder %s433, 15
      %s435 = scalar_select %p434, %s433, 15
      %s436 = smul.addr %s435, 4
      %s437 = smul.addr %s436, 8
      %s438 = scalar_lea.vmem %s0, %s437
      %p439 = pneg %p61
      %p440 = pneg %p58
      %p441 = pneg %p82
      %p442 = pneg %p79
      %p443 = pneg %p103
      %p444 = pneg %p100
      %p445 = pneg %p124
      %p446 = pneg %p121
      %p447 = pneg %p145
      %p448 = pneg %p142
      %p449 = pneg %p166
      %p450 = pneg %p163
      %p451 = pneg %p187
      %p452 = pneg %p184
      %p453 = pneg %p208
      %p454 = pneg %p205
      %p455 = pneg %p229
      %p456 = pneg %p226
      %p457 = pneg %p250
      %p458 = pneg %p247
      %p459 = pneg %p271
      %p460 = pneg %p268
      %p461 = pneg %p292
      %p462 = pneg %p289
      %s463 = smul.u32 4, %s29
      %p464 = scmp.lt.s32.totalorder %s463, 7
      %s465 = scalar_select %p464, %s463, 7
      %s466 = smul.addr %s465, 4
      %s467 = smul.addr %s466, 8
      %s468 = scalar_lea.vmem %s12, %s467
      %p469 = pneg %p318
      %p470 = pneg %p315
      %p471 = pneg %p348
      %p472 = pneg %p345
      %s473 = smul.u32 %s28, 2
      %s474 = sadd.s32 %s473, %s29
      %s475 = smul.u32 4, %s474
      %p476 = scmp.lt.s32.totalorder %s475, 15
      %s477 = scalar_select %p476, %s475, 15
      %s478 = smul.addr %s477, 4
      %s479 = smul.addr %s478, 8
      %s480 = scalar_lea.vmem %s13, %s479
      %s481 = smul.u32 %s28, 2
      %s482 = sadd.s32 %s481, %s29
      %s483 = smul.u32 4, %s482
      %p484 = scmp.lt.s32.totalorder %s483, 15
      %s485 = scalar_select %p484, %s483, 15
      %s486 = smul.addr %s485, 4
      %s487 = smul.addr %s486, 8
      %s488 = scalar_lea.vmem %s0, %s487
      %s489 = smul.u32 %s28, 2
      %s490 = sadd.s32 %s489, %s29
      %s491 = smul.u32 4, %s490
      %s492 = smul.u32 4, %s29
      %p493 = scmp.lt.s32.totalorder %s492, 7
      %s494 = scalar_select %p493, %s492, 7
      %s495 = smul.addr %s494, 4
      %s496 = smul.addr %s495, 8
      %s497 = scalar_lea.vmem %s12, %s496
      %s498 = smul.u32 4, %s29
      %s499 = smul.u32 %s28, 2
      %s500 = sadd.s32 %s499, %s29
      %s501 = smul.u32 4, %s500
      %p502 = scmp.lt.s32.totalorder %s501, 15
      %s503 = scalar_select %p502, %s501, 15
      %s504 = smul.addr %s503, 4
      %s505 = smul.addr %s504, 8
      %s506 = scalar_lea.vmem %s13, %s505
      %s507 = smul.u32 %s28, 2
      %s508 = sadd.s32 %s507, %s29
      %s509 = smul.u32 4, %s508
      %v511 = vld [vmem:[%s488] sm:$0xff]
      %v512 = vld [vmem:[%s488 + $0x8] sm:$0xff]
      %v513 = vld [vmem:[%s488 + $0x10] sm:$0xff]
      %v514 = vld [vmem:[%s488 + $0x18] sm:$0xff]
      %v515 = vld [vmem:[%s488 + $0x20] sm:$0xff]
      %v516 = vld [vmem:[%s488 + $0x28] sm:$0xff]
      %v517 = vld [vmem:[%s488 + $0x30] sm:$0xff]
      %v518 = vld [vmem:[%s488 + $0x38] sm:$0xff]
      %v519 = vld [vmem:[%s488 + $0x40] sm:$0xff]
      %v520 = vld [vmem:[%s488 + $0x48] sm:$0xff]
      %v521 = vld [vmem:[%s488 + $0x50] sm:$0xff]
      %v522 = vld [vmem:[%s488 + $0x58] sm:$0xff]
      %v523 = vld [vmem:[%s488 + $0x60] sm:$0xff]
      %v524 = vld [vmem:[%s488 + $0x68] sm:$0xff]
      %v525 = vld [vmem:[%s488 + $0x70] sm:$0xff]
      %v526 = vld [vmem:[%s488 + $0x78] sm:$0xff]
      %vm527 = vcmask 261120
      %v528 = vsel %vm527, %v511, 0.0
      %529 = vadd.xlane.f32.xlu0 %v528
      %v530 = vpop.xlane.xlu0 %529
      %v531 = vsel %vm527, %v512, 0.0
      %532 = vadd.xlane.f32.xlu0 %v531
      %v533 = vpop.xlane.xlu0 %532
      %v534 = vsel %vm527, %v513, 0.0
      %535 = vadd.xlane.f32.xlu0 %v534
      %v536 = vpop.xlane.xlu0 %535
      %v537 = vsel %vm527, %v514, 0.0
      %538 = vadd.xlane.f32.xlu0 %v537
      %v539 = vpop.xlane.xlu0 %538
      %v540 = vsel %vm527, %v515, 0.0
      %541 = vadd.xlane.f32.xlu0 %v540
      %v542 = vpop.xlane.xlu0 %541
      %v543 = vsel %vm527, %v516, 0.0
      %544 = vadd.xlane.f32.xlu0 %v543
      %v545 = vpop.xlane.xlu0 %544
      %v546 = vsel %vm527, %v517, 0.0
      %547 = vadd.xlane.f32.xlu0 %v546
      %v548 = vpop.xlane.xlu0 %547
      %v549 = vsel %vm527, %v518, 0.0
      %550 = vadd.xlane.f32.xlu0 %v549
      %v551 = vpop.xlane.xlu0 %550
      %v552 = vsel %vm527, %v519, 0.0
      %553 = vadd.xlane.f32.xlu0 %v552
      %v554 = vpop.xlane.xlu0 %553
      %v555 = vsel %vm527, %v520, 0.0
      %556 = vadd.xlane.f32.xlu0 %v555
      %v557 = vpop.xlane.xlu0 %556
      %v558 = vsel %vm527, %v521, 0.0
      %559 = vadd.xlane.f32.xlu0 %v558
      %v560 = vpop.xlane.xlu0 %559
      %v561 = vsel %vm527, %v522, 0.0
      %562 = vadd.xlane.f32.xlu0 %v561
      %v563 = vpop.xlane.xlu0 %562
      %v564 = vsel %vm527, %v523, 0.0
      %565 = vadd.xlane.f32.xlu0 %v564
      %v566 = vpop.xlane.xlu0 %565
      %v567 = vsel %vm527, %v524, 0.0
      %568 = vadd.xlane.f32.xlu0 %v567
      %v569 = vpop.xlane.xlu0 %568
      %v570 = vsel %vm527, %v525, 0.0
      %571 = vadd.xlane.f32.xlu0 %v570
      %v572 = vpop.xlane.xlu0 %571
      %v573 = vsel %vm527, %v526, 0.0
      %574 = vadd.xlane.f32.xlu0 %v573
      %v575 = vpop.xlane.xlu0 %574
      %v576 = vrcp.pop 32.0
      %v577 = vmul.f32 %v530, %v576
      %v578 = vmul.f32 %v533, %v576
      %v579 = vmul.f32 %v536, %v576
      %v580 = vmul.f32 %v539, %v576
      %v581 = vmul.f32 %v542, %v576
      %v582 = vmul.f32 %v545, %v576
      %v583 = vmul.f32 %v548, %v576
      %v584 = vmul.f32 %v551, %v576
      %v585 = vmul.f32 %v554, %v576
      %v586 = vmul.f32 %v557, %v576
      %v587 = vmul.f32 %v560, %v576
      %v588 = vmul.f32 %v563, %v576
      %v589 = vmul.f32 %v566, %v576
      %v590 = vmul.f32 %v569, %v576
      %v591 = vmul.f32 %v572, %v576
      %v592 = vmul.f32 %v575, %v576
      %v593 = vsub.f32 %v511, %v577
      %v594 = vsub.f32 %v512, %v578
      %v595 = vsub.f32 %v513, %v579
      %v596 = vsub.f32 %v514, %v580
      %v597 = vsub.f32 %v515, %v581
      %v598 = vsub.f32 %v516, %v582
      %v599 = vsub.f32 %v517, %v583
      %v600 = vsub.f32 %v518, %v584
      %v601 = vsub.f32 %v519, %v585
      %v602 = vsub.f32 %v520, %v586
      %v603 = vsub.f32 %v521, %v587
      %v604 = vsub.f32 %v522, %v588
      %v605 = vsub.f32 %v523, %v589
      %v606 = vsub.f32 %v524, %v590
      %v607 = vsub.f32 %v525, %v591
      %v608 = vsub.f32 %v526, %v592
      %v609 = vmul.f32 %v593, %v593
      %v610 = vmul.f32 %v594, %v594
      %v611 = vmul.f32 %v595, %v595
      %v612 = vmul.f32 %v596, %v596
      %v613 = vmul.f32 %v597, %v597
      %v614 = vmul.f32 %v598, %v598
      %v615 = vmul.f32 %v599, %v599
      %v616 = vmul.f32 %v600, %v600
      %v617 = vmul.f32 %v601, %v601
      %v618 = vmul.f32 %v602, %v602
      %v619 = vmul.f32 %v603, %v603
      %v620 = vmul.f32 %v604, %v604
      %v621 = vmul.f32 %v605, %v605
      %v622 = vmul.f32 %v606, %v606
      %v623 = vmul.f32 %v607, %v607
      %v624 = vmul.f32 %v608, %v608
      %v625 = vsel %vm527, %v609, 0.0
      %626 = vadd.xlane.f32.xlu0 %v625
      %v627 = vpop.xlane.xlu0 %626
      %v628 = vsel %vm527, %v610, 0.0
      %629 = vadd.xlane.f32.xlu0 %v628
      %v630 = vpop.xlane.xlu0 %629
      %v631 = vsel %vm527, %v611, 0.0
      %632 = vadd.xlane.f32.xlu0 %v631
      %v633 = vpop.xlane.xlu0 %632
      %v634 = vsel %vm527, %v612, 0.0
      %635 = vadd.xlane.f32.xlu0 %v634
      %v636 = vpop.xlane.xlu0 %635
      %v637 = vsel %vm527, %v613, 0.0
      %638 = vadd.xlane.f32.xlu0 %v637
      %v639 = vpop.xlane.xlu0 %638
      %v640 = vsel %vm527, %v614, 0.0
      %641 = vadd.xlane.f32.xlu0 %v640
      %v642 = vpop.xlane.xlu0 %641
      %v643 = vsel %vm527, %v615, 0.0
      %644 = vadd.xlane.f32.xlu0 %v643
      %v645 = vpop.xlane.xlu0 %644
      %v646 = vsel %vm527, %v616, 0.0
      %647 = vadd.xlane.f32.xlu0 %v646
      %v648 = vpop.xlane.xlu0 %647
      %v649 = vsel %vm527, %v617, 0.0
      %650 = vadd.xlane.f32.xlu0 %v649
      %v651 = vpop.xlane.xlu0 %650
      %v652 = vsel %vm527, %v618, 0.0
      %653 = vadd.xlane.f32.xlu0 %v652
      %v654 = vpop.xlane.xlu0 %653
      %v655 = vsel %vm527, %v619, 0.0
      %656 = vadd.xlane.f32.xlu0 %v655
      %v657 = vpop.xlane.xlu0 %656
      %v658 = vsel %vm527, %v620, 0.0
      %659 = vadd.xlane.f32.xlu0 %v658
      %v660 = vpop.xlane.xlu0 %659
      %v661 = vsel %vm527, %v621, 0.0
      %662 = vadd.xlane.f32.xlu0 %v661
      %v663 = vpop.xlane.xlu0 %662
      %v664 = vsel %vm527, %v622, 0.0
      %665 = vadd.xlane.f32.xlu0 %v664
      %v666 = vpop.xlane.xlu0 %665
      %v667 = vsel %vm527, %v623, 0.0
      %668 = vadd.xlane.f32.xlu0 %v667
      %v669 = vpop.xlane.xlu0 %668
      %v670 = vsel %vm527, %v624, 0.0
      %671 = vadd.xlane.f32.xlu0 %v670
      %v672 = vpop.xlane.xlu0 %671
      %v673 = vmul.f32 %v627, %v576
      %v674 = vmul.f32 %v630, %v576
      %v675 = vmul.f32 %v633, %v576
      %v676 = vmul.f32 %v636, %v576
      %v677 = vmul.f32 %v639, %v576
      %v678 = vmul.f32 %v642, %v576
      %v679 = vmul.f32 %v645, %v576
      %v680 = vmul.f32 %v648, %v576
      %v681 = vmul.f32 %v651, %v576
      %v682 = vmul.f32 %v654, %v576
      %v683 = vmul.f32 %v657, %v576
      %v684 = vmul.f32 %v660, %v576
      %v685 = vmul.f32 %v663, %v576
      %v686 = vmul.f32 %v666, %v576
      %v687 = vmul.f32 %v669, %v576
      %v688 = vmul.f32 %v672, %v576
      %v689 = vadd.f32 %v673, 1e-05
      %v690 = vadd.f32 %v674, 1e-05
      %v691 = vadd.f32 %v675, 1e-05
      %v692 = vadd.f32 %v676, 1e-05
      %v693 = vadd.f32 %v677, 1e-05
      %v694 = vadd.f32 %v678, 1e-05
      %v695 = vadd.f32 %v679, 1e-05
      %v696 = vadd.f32 %v680, 1e-05
      %v697 = vadd.f32 %v681, 1e-05
      %v698 = vadd.f32 %v682, 1e-05
      %v699 = vadd.f32 %v683, 1e-05
      %v700 = vadd.f32 %v684, 1e-05
      %v701 = vadd.f32 %v685, 1e-05
      %v702 = vadd.f32 %v686, 1e-05
      %v703 = vadd.f32 %v687, 1e-05
      %v704 = vadd.f32 %v688, 1e-05
      %v705 = vrsqrt.pop %v689
      %v706 = vrsqrt.pop %v690
      %v707 = vrsqrt.pop %v691
      %v708 = vrsqrt.pop %v692
      %v709 = vrsqrt.pop %v693
      %v710 = vrsqrt.pop %v694
      %v711 = vrsqrt.pop %v695
      %v712 = vrsqrt.pop %v696
      %v713 = vrsqrt.pop %v697
      %v714 = vrsqrt.pop %v698
      %v715 = vrsqrt.pop %v699
      %v716 = vrsqrt.pop %v700
      %v717 = vrsqrt.pop %v701
      %v718 = vrsqrt.pop %v702
      %v719 = vrsqrt.pop %v703
      %v720 = vrsqrt.pop %v704
      %v721 = vmul.f32 %v593, %v705
      %v722 = vmul.f32 %v594, %v706
      %v723 = vmul.f32 %v595, %v707
      %v724 = vmul.f32 %v596, %v708
      %v725 = vmul.f32 %v597, %v709
      %v726 = vmul.f32 %v598, %v710
      %v727 = vmul.f32 %v599, %v711
      %v728 = vmul.f32 %v600, %v712
      %v729 = vmul.f32 %v601, %v713
      %v730 = vmul.f32 %v602, %v714
      %v731 = vmul.f32 %v603, %v715
      %v732 = vmul.f32 %v604, %v716
      %v733 = vmul.f32 %v605, %v717
      %v734 = vmul.f32 %v606, %v718
      %v735 = vmul.f32 %v607, %v719
      %v736 = vmul.f32 %v608, %v720
      %v737 = vld [vmem:[%s1] sm:$0x1]
      %v739 = vlaneseq
      %v740 = vshrl.u32 %v739, 7
      %v741 = vsub.s32 0, %v740
      %v742 = vrot.slane %v737, %v741
      %v744 = vmul.f32 %v721, %v742
      %v745 = vmul.f32 %v722, %v742
      %v746 = vmul.f32 %v723, %v742
      %v747 = vmul.f32 %v724, %v742
      %v748 = vmul.f32 %v725, %v742
      %v749 = vmul.f32 %v726, %v742
      %v750 = vmul.f32 %v727, %v742
      %v751 = vmul.f32 %v728, %v742
      %v752 = vmul.f32 %v729, %v742
      %v753 = vmul.f32 %v730, %v742
      %v754 = vmul.f32 %v731, %v742
      %v755 = vmul.f32 %v732, %v742
      %v756 = vmul.f32 %v733, %v742
      %v757 = vmul.f32 %v734, %v742
      %v758 = vmul.f32 %v735, %v742
      %v759 = vmul.f32 %v736, %v742
      %v760 = vld [vmem:[%s2] sm:$0x1]
      %v762 = vlaneseq
      %v763 = vshrl.u32 %v762, 7
      %v764 = vsub.s32 0, %v763
      %v765 = vrot.slane %v760, %v764
      %v767 = vadd.f32 %v744, %v765
      %v768 = vadd.f32 %v745, %v765
      %v769 = vadd.f32 %v746, %v765
      %v770 = vadd.f32 %v747, %v765
      %v771 = vadd.f32 %v748, %v765
      %v772 = vadd.f32 %v749, %v765
      %v773 = vadd.f32 %v750, %v765
      %v774 = vadd.f32 %v751, %v765
      %v775 = vadd.f32 %v752, %v765
      %v776 = vadd.f32 %v753, %v765
      %v777 = vadd.f32 %v754, %v765
      %v778 = vadd.f32 %v755, %v765
      %v779 = vadd.f32 %v756, %v765
      %v780 = vadd.f32 %v757, %v765
      %v781 = vadd.f32 %v758, %v765
      %v782 = vadd.f32 %v759, %v765
      %v783 = vpack.c.bf16 %v768, %v767
      %v784 = vpack.c.bf16 %v770, %v769
      %v785 = vpack.c.bf16 %v772, %v771
      %v786 = vpack.c.bf16 %v774, %v773
      %v787 = vpack.c.bf16 %v776, %v775
      %v788 = vpack.c.bf16 %v778, %v777
      %v789 = vpack.c.bf16 %v780, %v779
      %v790 = vpack.c.bf16 %v782, %v781
      %v791 = vld [vmem:[%s3] sm:$0xf]
      %v792 = vld [vmem:[%s3 + $0x4] sm:$0xf]
      %v793 = vld [vmem:[%s3 + $0x8] sm:$0xf]
      %v794 = vld [vmem:[%s3 + $0xc] sm:$0xf]
      %v795 = vld [vmem:[%s6] sm:$0x1]
      %v797 = vlaneseq
      %v798 = vshrl.u32 %v797, 7
      %v799 = vsub.s32 0, %v798
      %v800 = vrot.slane %v795, %v799
      %v806 = vunpack.c.l.b16 %v791
      %v807 = vunpack.c.l.b16 %v792
      %v808 = vunpack.c.l.b16 %v793
      %v809 = vunpack.c.l.b16 %v794
      %v810 = vpack.c.b16 %v807, %v806
      %v811 = vpack.c.b16 %v809, %v808
      %v815 = vsel %vm527, %v783, 0
      %v818 = vsel %vm527, %v784, 0
      %v821 = vsel %vm527, %v785, 0
      %v824 = vsel %vm527, %v786, 0
      %v827 = vsel %vm527, %v787, 0
      %v830 = vsel %vm527, %v788, 0
      %v833 = vsel %vm527, %v789, 0
      %v836 = vsel %vm527, %v790, 0
      %838 = vmatprep.subr.bf16.mxu0 0
      %839 = vmatpush1.bf16.msra.mxu0 %v810
      %840 = vmatprep.subr.bf16.mxu0 0
      %841 = vmatpush1.bf16.msra.mxu0 %v811
      %842 = vmatprep.subr.bf16.mxu0 0
      %843 = vmatpush1.bf16.msra.mxu0 0
      %844 = vmatprep.subr.bf16.mxu0 0
      %845 = vmatpush1.bf16.msra.mxu0 0
      %846 = vmatprep.subr.bf16.mxu0 0
      %847 = vmatpush1.bf16.msra.mxu0 0
      %848 = vmatprep.subr.bf16.mxu0 0
      %849 = vmatpush1.bf16.msra.mxu0 0
      %850 = vmatprep.subr.bf16.mxu0 0
      %851 = vmatpush1.bf16.msra.mxu0 0
      %852 = vmatprep.subr.bf16.mxu0 0
      %853 = vmatpush1.bf16.msra.mxu0 0
      %854 = vmatprep.subr.bf16.mxu0 0
      %855 = vmatpush1.bf16.msra.mxu0 0
      %856 = vmatprep.subr.bf16.mxu0 0
      %857 = vmatpush1.bf16.msra.mxu0 0
      %858 = vmatprep.subr.bf16.mxu0 0
      %859 = vmatpush1.bf16.msra.mxu0 0
      %860 = vmatprep.subr.bf16.mxu0 0
      %861 = vmatpush1.bf16.msra.mxu0 0
      %862 = vmatprep.subr.bf16.mxu0 0
      %863 = vmatpush1.bf16.msra.mxu0 0
      %864 = vmatprep.subr.bf16.mxu0 0
      %865 = vmatpush1.bf16.msra.mxu0 0
      %866 = vmatprep.subr.bf16.mxu0 0
      %867 = vmatpush1.bf16.msra.mxu0 0
      %868 = vmatprep.subr.bf16.mxu0 0
      %869 = vmatpush1.bf16.msra.mxu0 0
      %870 = vmatprep.mubr.bf16.mxu0 0
      %871 = vmatmul.mubr.bf16.gmra.mrb[0].mxu0 %v815
      %v872 = vpop.f32.mrb[0].mxu0
      %v873 = vadd.f32 %v800, %v872
      %v874 = vpop.f32.mrb[0].mxu0
      %v875 = vpop.f32.mrb[0].mxu0
      %v876 = vadd.f32 %v800, %v875
      %v877 = vpop.f32.mrb[0].mxu0
      %878 = vmatprep.mubr.bf16.mxu0 0
      %879 = vmatmul.mubr.bf16.gmra.mrb[0].mxu0 %v818
      %v880 = vpop.f32.mrb[0].mxu0
      %v881 = vadd.f32 %v800, %v880
      %v882 = vpop.f32.mrb[0].mxu0
      %v883 = vpop.f32.mrb[0].mxu0
      %v884 = vadd.f32 %v800, %v883
      %v885 = vpop.f32.mrb[0].mxu0
      %886 = vmatprep.mubr.bf16.mxu0 0
      %887 = vmatmul.mubr.bf16.gmra.mrb[0].mxu0 %v821
      %v888 = vpop.f32.mrb[0].mxu0
      %v889 = vadd.f32 %v800, %v888
      %v890 = vpop.f32.mrb[0].mxu0
      %v891 = vpop.f32.mrb[0].mxu0
      %v892 = vadd.f32 %v800, %v891
      %v893 = vpop.f32.mrb[0].mxu0
      %894 = vmatprep.mubr.bf16.mxu0 0
      %895 = vmatmul.mubr.bf16.gmra.mrb[0].mxu0 %v824
      %v896 = vpop.f32.mrb[0].mxu0
      %v897 = vadd.f32 %v800, %v896
      %v898 = vpop.f32.mrb[0].mxu0
      %v899 = vpop.f32.mrb[0].mxu0
      %v900 = vadd.f32 %v800, %v899
      %v901 = vpop.f32.mrb[0].mxu0
      %902 = vmatprep.mubr.bf16.mxu0 0
      %903 = vmatmul.mubr.bf16.gmra.mrb[0].mxu0 %v827
      %v904 = vpop.f32.mrb[0].mxu0
      %v905 = vadd.f32 %v800, %v904
      %v906 = vpop.f32.mrb[0].mxu0
      %v907 = vpop.f32.mrb[0].mxu0
      %v908 = vadd.f32 %v800, %v907
      %v909 = vpop.f32.mrb[0].mxu0
      %910 = vmatprep.mubr.bf16.mxu0 0
      %911 = vmatmul.mubr.bf16.gmra.mrb[0].mxu0 %v830
      %v912 = vpop.f32.mrb[0].mxu0
      %v913 = vadd.f32 %v800, %v912
      %v914 = vpop.f32.mrb[0].mxu0
      %v915 = vpop.f32.mrb[0].mxu0
      %v916 = vadd.f32 %v800, %v915
      %v917 = vpop.f32.mrb[0].mxu0
      %918 = vmatprep.mubr.bf16.mxu0 0
      %919 = vmatmul.mubr.bf16.gmra.mrb[0].mxu0 %v833
      %v920 = vpop.f32.mrb[0].mxu0
      %v921 = vadd.f32 %v800, %v920
      %v922 = vpop.f32.mrb[0].mxu0
      %v923 = vpop.f32.mrb[0].mxu0
      %v924 = vadd.f32 %v800, %v923
      %v925 = vpop.f32.mrb[0].mxu0
      %926 = vmatprep.mubr.bf16.mxu0 0
      %927 = vmatmul.mubr.bf16.gmra.mrb[0].mxu0 %v836
      %v928 = vpop.f32.mrb[0].mxu0
      %v929 = vadd.f32 %v800, %v928
      %v930 = vpop.f32.mrb[0].mxu0
      %v931 = vpop.f32.mrb[0].mxu0
      %v932 = vadd.f32 %v800, %v931
      %v933 = vpop.f32.mrb[0].mxu0
      %934 = vdwg.mxu0
      %v935 = vld [vmem:[%s4] sm:$0xf]
      %v936 = vld [vmem:[%s4 + $0x4] sm:$0xf]
      %v937 = vld [vmem:[%s4 + $0x8] sm:$0xf]
      %v938 = vld [vmem:[%s4 + $0xc] sm:$0xf]
      %v939 = vld [vmem:[%s7] sm:$0x1]
      %v941 = vlaneseq
      %v942 = vshrl.u32 %v941, 7
      %v943 = vsub.s32 0, %v942
      %v944 = vrot.slane %v939, %v943
      %v950 = vunpack.c.l.b16 %v935
      %v951 = vunpack.c.l.b16 %v936
      %v952 = vunpack.c.l.b16 %v937
      %v953 = vunpack.c.l.b16 %v938
      %v954 = vpack.c.b16 %v951, %v950
      %v955 = vpack.c.b16 %v953, %v952
      %958 = vmatprep.subr.bf16.mxu0 0
      %959 = vmatpush1.bf16.msra.mxu0 %v954
      %960 = vmatprep.subr.bf16.mxu0 0
      %961 = vmatpush1.bf16.msra.mxu0 %v955
      %962 = vmatprep.subr.bf16.mxu0 0
      %963 = vmatpush1.bf16.msra.mxu0 0
      %964 = vmatprep.subr.bf16.mxu0 0
      %965 = vmatpush1.bf16.msra.mxu0 0
      %966 = vmatprep.subr.bf16.mxu0 0
      %967 = vmatpush1.bf16.msra.mxu0 0
      %968 = vmatprep.subr.bf16.mxu0 0
      %969 = vmatpush1.bf16.msra.mxu0 0
      %970 = vmatprep.subr.bf16.mxu0 0
      %971 = vmatpush1.bf16.msra.mxu0 0
      %972 = vmatprep.subr.bf16.mxu0 0
      %973 = vmatpush1.bf16.msra.mxu0 0
      %974 = vmatprep.subr.bf16.mxu0 0
      %975 = vmatpush1.bf16.msra.mxu0 0
      %976 = vmatprep.subr.bf16.mxu0 0
      %977 = vmatpush1.bf16.msra.mxu0 0
      %978 = vmatprep.subr.bf16.mxu0 0
      %979 = vmatpush1.bf16.msra.mxu0 0
      %980 = vmatprep.subr.bf16.mxu0 0
      %981 = vmatpush1.bf16.msra.mxu0 0
      %982 = vmatprep.subr.bf16.mxu0 0
      %983 = vmatpush1.bf16.msra.mxu0 0
      %984 = vmatprep.subr.bf16.mxu0 0
      %985 = vmatpush1.bf16.msra.mxu0 0
      %986 = vmatprep.subr.bf16.mxu0 0
      %987 = vmatpush1.bf16.msra.mxu0 0
      %988 = vmatprep.subr.bf16.mxu0 0
      %989 = vmatpush1.bf16.msra.mxu0 0
      %990 = vmatprep.mubr.bf16.mxu0 0
      %991 = vmatmul.mubr.bf16.gmra.mrb[0].mxu0 %v815
      %v992 = vpop.f32.mrb[0].mxu0
      %v993 = vadd.f32 %v944, %v992
      %v994 = vpop.f32.mrb[0].mxu0
      %v995 = vpop.f32.mrb[0].mxu0
      %v996 = vadd.f32 %v944, %v995
      %v997 = vpop.f32.mrb[0].mxu0
      %998 = vmatprep.mubr.bf16.mxu0 0
      %999 = vmatmul.mubr.bf16.gmra.mrb[0].mxu0 %v818
      %v1000 = vpop.f32.mrb[0].mxu0
      %v1001 = vadd.f32 %v944, %v1000
      %v1002 = vpop.f32.mrb[0].mxu0
      %v1003 = vpop.f32.mrb[0].mxu0
      %v1004 = vadd.f32 %v944, %v1003
      %v1005 = vpop.f32.mrb[0].mxu0
      %1006 = vmatprep.mubr.bf16.mxu0 0
      %1007 = vmatmul.mubr.bf16.gmra.mrb[0].mxu0 %v821
      %v1008 = vpop.f32.mrb[0].mxu0
      %v1009 = vadd.f32 %v944, %v1008
      %v1010 = vpop.f32.mrb[0].mxu0
      %v1011 = vpop.f32.mrb[0].mxu0
      %v1012 = vadd.f32 %v944, %v1011
      %v1013 = vpop.f32.mrb[0].mxu0
      %1014 = vmatprep.mubr.bf16.mxu0 0
      %1015 = vmatmul.mubr.bf16.gmra.mrb[0].mxu0 %v824
      %v1016 = vpop.f32.mrb[0].mxu0
      %v1017 = vadd.f32 %v944, %v1016
      %v1018 = vpop.f32.mrb[0].mxu0
      %v1019 = vpop.f32.mrb[0].mxu0
      %v1020 = vadd.f32 %v944, %v1019
      %v1021 = vpop.f32.mrb[0].mxu0
      %1022 = vmatprep.mubr.bf16.mxu0 0
      %1023 = vmatmul.mubr.bf16.gmra.mrb[0].mxu0 %v827
      %v1024 = vpop.f32.mrb[0].mxu0
      %v1025 = vadd.f32 %v944, %v1024
      %v1026 = vpop.f32.mrb[0].mxu0
      %v1027 = vpop.f32.mrb[0].mxu0
      %v1028 = vadd.f32 %v944, %v1027
      %v1029 = vpop.f32.mrb[0].mxu0
      %1030 = vmatprep.mubr.bf16.mxu0 0
      %1031 = vmatmul.mubr.bf16.gmra.mrb[0].mxu0 %v830
      %v1032 = vpop.f32.mrb[0].mxu0
      %v1033 = vadd.f32 %v944, %v1032
      %v1034 = vpop.f32.mrb[0].mxu0
      %v1035 = vpop.f32.mrb[0].mxu0
      %v1036 = vadd.f32 %v944, %v1035
      %v1037 = vpop.f32.mrb[0].mxu0
      %1038 = vmatprep.mubr.bf16.mxu0 0
      %1039 = vmatmul.mubr.bf16.gmra.mrb[0].mxu0 %v833
      %v1040 = vpop.f32.mrb[0].mxu0
      %v1041 = vadd.f32 %v944, %v1040
      %v1042 = vpop.f32.mrb[0].mxu0
      %v1043 = vpop.f32.mrb[0].mxu0
      %v1044 = vadd.f32 %v944, %v1043
      %v1045 = vpop.f32.mrb[0].mxu0
      %1046 = vmatprep.mubr.bf16.mxu0 0
      %1047 = vmatmul.mubr.bf16.gmra.mrb[0].mxu0 %v836
      %v1048 = vpop.f32.mrb[0].mxu0
      %v1049 = vadd.f32 %v944, %v1048
      %v1050 = vpop.f32.mrb[0].mxu0
      %v1051 = vpop.f32.mrb[0].mxu0
      %v1052 = vadd.f32 %v944, %v1051
      %v1053 = vpop.f32.mrb[0].mxu0
      %1054 = vdwg.mxu0
      %v1055 = vld [vmem:[%s5] sm:$0xf]
      %v1056 = vld [vmem:[%s5 + $0x4] sm:$0xf]
      %v1057 = vld [vmem:[%s5 + $0x8] sm:$0xf]
      %v1058 = vld [vmem:[%s5 + $0xc] sm:$0xf]
      %v1059 = vld [vmem:[%s8] sm:$0x1]
      %v1061 = vlaneseq
      %v1062 = vshrl.u32 %v1061, 7
      %v1063 = vsub.s32 0, %v1062
      %v1064 = vrot.slane %v1059, %v1063
      %v1070 = vunpack.c.l.b16 %v1055
      %v1071 = vunpack.c.l.b16 %v1056
      %v1072 = vunpack.c.l.b16 %v1057
      %v1073 = vunpack.c.l.b16 %v1058
      %v1074 = vpack.c.b16 %v1071, %v1070
      %v1075 = vpack.c.b16 %v1073, %v1072
      %1078 = vmatprep.subr.bf16.mxu0 0
      %1079 = vmatpush1.bf16.msra.mxu0 %v1074
      %1080 = vmatprep.subr.bf16.mxu0 0
      %1081 = vmatpush1.bf16.msra.mxu0 %v1075
      %1082 = vmatprep.subr.bf16.mxu0 0
      %1083 = vmatpush1.bf16.msra.mxu0 0
      %1084 = vmatprep.subr.bf16.mxu0 0
      %1085 = vmatpush1.bf16.msra.mxu0 0
      %1086 = vmatprep.subr.bf16.mxu0 0
      %1087 = vmatpush1.bf16.msra.mxu0 0
      %1088 = vmatprep.subr.bf16.mxu0 0
      %1089 = vmatpush1.bf16.msra.mxu0 0
      %1090 = vmatprep.subr.bf16.mxu0 0
      %1091 = vmatpush1.bf16.msra.mxu0 0
      %1092 = vmatprep.subr.bf16.mxu0 0
      %1093 = vmatpush1.bf16.msra.mxu0 0
      %1094 = vmatprep.subr.bf16.mxu0 0
      %1095 = vmatpush1.bf16.msra.mxu0 0
      %1096 = vmatprep.subr.bf16.mxu0 0
      %1097 = vmatpush1.bf16.msra.mxu0 0
      %1098 = vmatprep.subr.bf16.mxu0 0
      %1099 = vmatpush1.bf16.msra.mxu0 0
      %1100 = vmatprep.subr.bf16.mxu0 0
      %1101 = vmatpush1.bf16.msra.mxu0 0
      %1102 = vmatprep.subr.bf16.mxu0 0
      %1103 = vmatpush1.bf16.msra.mxu0 0
      %1104 = vmatprep.subr.bf16.mxu0 0
      %1105 = vmatpush1.bf16.msra.mxu0 0
      %1106 = vmatprep.subr.bf16.mxu0 0
      %1107 = vmatpush1.bf16.msra.mxu0 0
      %1108 = vmatprep.subr.bf16.mxu0 0
      %1109 = vmatpush1.bf16.msra.mxu0 0
      %1110 = vmatprep.mubr.bf16.mxu0 0
      %1111 = vmatmul.mubr.bf16.gmra.mrb[0].mxu0 %v815
      %v1112 = vpop.f32.mrb[0].mxu0
      %v1113 = vadd.f32 %v1064, %v1112
      %v1114 = vpop.f32.mrb[0].mxu0
      %v1115 = vpop.f32.mrb[0].mxu0
      %v1116 = vadd.f32 %v1064, %v1115
      %v1117 = vpop.f32.mrb[0].mxu0
      %1118 = vmatprep.mubr.bf16.mxu0 0
      %1119 = vmatmul.mubr.bf16.gmra.mrb[0].mxu0 %v818
      %v1120 = vpop.f32.mrb[0].mxu0
      %v1121 = vadd.f32 %v1064, %v1120
      %v1122 = vpop.f32.mrb[0].mxu0
      %v1123 = vpop.f32.mrb[0].mxu0
      %v1124 = vadd.f32 %v1064, %v1123
      %v1125 = vpop.f32.mrb[0].mxu0
      %1126 = vmatprep.mubr.bf16.mxu0 0
      %1127 = vmatmul.mubr.bf16.gmra.mrb[0].mxu0 %v821
      %v1128 = vpop.f32.mrb[0].mxu0
      %v1129 = vadd.f32 %v1064, %v1128
      %v1130 = vpop.f32.mrb[0].mxu0
      %v1131 = vpop.f32.mrb[0].mxu0
      %v1132 = vadd.f32 %v1064, %v1131
      %v1133 = vpop.f32.mrb[0].mxu0
      %1134 = vmatprep.mubr.bf16.mxu0 0
      %1135 = vmatmul.mubr.bf16.gmra.mrb[0].mxu0 %v824
      %v1136 = vpop.f32.mrb[0].mxu0
      %v1137 = vadd.f32 %v1064, %v1136
      %v1138 = vpop.f32.mrb[0].mxu0
      %v1139 = vpop.f32.mrb[0].mxu0
      %v1140 = vadd.f32 %v1064, %v1139
      %v1141 = vpop.f32.mrb[0].mxu0
      %1142 = vmatprep.mubr.bf16.mxu0 0
      %1143 = vmatmul.mubr.bf16.gmra.mrb[0].mxu0 %v827
      %v1144 = vpop.f32.mrb[0].mxu0
      %v1145 = vadd.f32 %v1064, %v1144
      %v1146 = vpop.f32.mrb[0].mxu0
      %v1147 = vpop.f32.mrb[0].mxu0
      %v1148 = vadd.f32 %v1064, %v1147
      %v1149 = vpop.f32.mrb[0].mxu0
      %1150 = vmatprep.mubr.bf16.mxu0 0
      %1151 = vmatmul.mubr.bf16.gmra.mrb[0].mxu0 %v830
      %v1152 = vpop.f32.mrb[0].mxu0
      %v1153 = vadd.f32 %v1064, %v1152
      %v1154 = vpop.f32.mrb[0].mxu0
      %v1155 = vpop.f32.mrb[0].mxu0
      %v1156 = vadd.f32 %v1064, %v1155
      %v1157 = vpop.f32.mrb[0].mxu0
      %1158 = vmatprep.mubr.bf16.mxu0 0
      %1159 = vmatmul.mubr.bf16.gmra.mrb[0].mxu0 %v833
      %v1160 = vpop.f32.mrb[0].mxu0
      %v1161 = vadd.f32 %v1064, %v1160
      %v1162 = vpop.f32.mrb[0].mxu0
      %v1163 = vpop.f32.mrb[0].mxu0
      %v1164 = vadd.f32 %v1064, %v1163
      %v1165 = vpop.f32.mrb[0].mxu0
      %1166 = vmatprep.mubr.bf16.mxu0 0
      %1167 = vmatmul.mubr.bf16.gmra.mrb[0].mxu0 %v836
      %v1168 = vpop.f32.mrb[0].mxu0
      %v1169 = vadd.f32 %v1064, %v1168
      %v1170 = vpop.f32.mrb[0].mxu0
      %v1171 = vpop.f32.mrb[0].mxu0
      %v1172 = vadd.f32 %v1064, %v1171
      %v1173 = vpop.f32.mrb[0].mxu0
      %1174 = vdwg.mxu0
      %v1175 = vpack.c.bf16 %v876, %v873
      %v1176 = vpack.c.bf16 %v884, %v881
      %v1177 = vpack.c.bf16 %v892, %v889
      %v1178 = vpack.c.bf16 %v900, %v897
      %v1179 = vpack.c.bf16 %v908, %v905
      %v1180 = vpack.c.bf16 %v916, %v913
      %v1181 = vpack.c.bf16 %v924, %v921
      %v1182 = vpack.c.bf16 %v932, %v929
      %v1183 = vpack.c.bf16 %v996, %v993
      %v1184 = vpack.c.bf16 %v1004, %v1001
      %v1185 = vpack.c.bf16 %v1012, %v1009
      %v1186 = vpack.c.bf16 %v1020, %v1017
      %v1187 = vpack.c.bf16 %v1028, %v1025
      %v1188 = vpack.c.bf16 %v1036, %v1033
      %v1189 = vpack.c.bf16 %v1044, %v1041
      %v1190 = vpack.c.bf16 %v1052, %v1049
      %v1191 = vpack.c.bf16 %v1116, %v1113
      %v1192 = vpack.c.bf16 %v1124, %v1121
      %v1193 = vpack.c.bf16 %v1132, %v1129
      %v1194 = vpack.c.bf16 %v1140, %v1137
      %v1195 = vpack.c.bf16 %v1148, %v1145
      %v1196 = vpack.c.bf16 %v1156, %v1153
      %v1197 = vpack.c.bf16 %v1164, %v1161
      %v1198 = vpack.c.bf16 %v1172, %v1169
      %v1199 = vld [vmem:[%s497] sm:$0xff]
      %v1200 = vld [vmem:[%s497 + $0x8] sm:$0xff]
      %v1201 = vld [vmem:[%s497 + $0x10] sm:$0xff]
      %v1202 = vld [vmem:[%s497 + $0x18] sm:$0xff]
      %v1203 = vld [vmem:[%s497 + $0x20] sm:$0xff]
      %v1204 = vld [vmem:[%s497 + $0x28] sm:$0xff]
      %v1205 = vld [vmem:[%s497 + $0x30] sm:$0xff]
      %v1206 = vld [vmem:[%s497 + $0x38] sm:$0xff]
      %v1207 = vld [vmem:[%s497 + $0x40] sm:$0xff]
      %v1208 = vld [vmem:[%s497 + $0x48] sm:$0xff]
      %v1209 = vld [vmem:[%s497 + $0x50] sm:$0xff]
      %v1210 = vld [vmem:[%s497 + $0x58] sm:$0xff]
      %v1211 = vld [vmem:[%s497 + $0x60] sm:$0xff]
      %v1212 = vld [vmem:[%s497 + $0x68] sm:$0xff]
      %v1213 = vld [vmem:[%s497 + $0x70] sm:$0xff]
      %v1214 = vld [vmem:[%s497 + $0x78] sm:$0xff]
      %v1215 = vld [vmem:[%s11] sm:$0xff]
      %v1216 = vld [vmem:[%s11 + $0x8] sm:$0xff]
      %v1217 = vld [vmem:[%s11 + $0x10] sm:$0xff]
      %v1218 = vld [vmem:[%s11 + $0x18] sm:$0xff]
      %vm1219 = vcmask 64512
      %v1221 = vsel %vm1219, %v1175, 0
      %v1224 = vsel %vm1219, %v1176, 0
      %v1227 = vsel %vm1219, %v1183, 0
      %v1230 = vsel %vm1219, %v1184, 0
      %1232 = vmatprep.subr.bf16.mxu0 0
      %1233 = vmatpush1.bf16.xpose.msra.mxu0 %v1227
      %1234 = vmatprep.subr.bf16.mxu0 0
      %1235 = vmatpush1.bf16.xpose.msra.mxu0 %v1230
      %1236 = vmatprep.subr.bf16.mxu0 0
      %1237 = vmatpush1.bf16.xpose.msra.mxu0 0
      %1238 = vmatprep.subr.bf16.mxu0 0
      %1239 = vmatpush1.bf16.xpose.msra.mxu0 0
      %1240 = vmatprep.subr.bf16.mxu0 0
      %1241 = vmatpush1.bf16.xpose.msra.mxu0 0
      %1242 = vmatprep.subr.bf16.mxu0 0
      %1243 = vmatpush1.bf16.xpose.msra.mxu0 0
      %1244 = vmatprep.subr.bf16.mxu0 0
      %1245 = vmatpush1.bf16.xpose.msra.mxu0 0
      %1246 = vmatprep.subr.bf16.mxu0 0
      %1247 = vmatpush1.bf16.xpose.msra.mxu0 0
      %1248 = vmatprep.subr.bf16.mxu0 0
      %1249 = vmatpush1.bf16.xpose.msra.mxu0 0
      %1250 = vmatprep.subr.bf16.mxu0 0
      %1251 = vmatpush1.bf16.xpose.msra.mxu0 0
      %1252 = vmatprep.subr.bf16.mxu0 0
      %1253 = vmatpush1.bf16.xpose.msra.mxu0 0
      %1254 = vmatprep.subr.bf16.mxu0 0
      %1255 = vmatpush1.bf16.xpose.msra.mxu0 0
      %1256 = vmatprep.subr.bf16.mxu0 0
      %1257 = vmatpush1.bf16.xpose.msra.mxu0 0
      %1258 = vmatprep.subr.bf16.mxu0 0
      %1259 = vmatpush1.bf16.xpose.msra.mxu0 0
      %1260 = vmatprep.subr.bf16.mxu0 0
      %1261 = vmatpush1.bf16.xpose.msra.mxu0 0
      %1262 = vmatprep.subr.bf16.mxu0 0
      %1263 = vmatpush1.bf16.xpose.msra.mxu0 0
      %1264 = vmatprep.mubr.bf16.mxu0 0
      %1265 = vmatmul.mubr.bf16.gmra.mrb[0].mxu0 %v1221
      %v1266 = vpop.f32.mrb[0].mxu0
      %v1267 = vadd.f32 %v1215, %v1266
      %v1268 = vpop.f32.mrb[0].mxu0
      %v1269 = vpop.f32.mrb[0].mxu0
      %v1270 = vadd.f32 %v1216, %v1269
      %v1271 = vpop.f32.mrb[0].mxu0
      %1272 = vmatprep.mubr.bf16.mxu0 0
      %1273 = vmatmul.mubr.bf16.gmra.mrb[0].mxu0 %v1224
      %v1274 = vpop.f32.mrb[0].mxu0
      %v1275 = vadd.f32 %v1217, %v1274
      %v1276 = vpop.f32.mrb[0].mxu0
      %v1277 = vpop.f32.mrb[0].mxu0
      %v1278 = vadd.f32 %v1218, %v1277
      %v1279 = vpop.f32.mrb[0].mxu0
      %1280 = vdwg.mxu0
      %v1282 = vsel %vm1219, %v1177, 0
      %v1285 = vsel %vm1219, %v1178, 0
      %v1288 = vsel %vm1219, %v1185, 0
      %v1291 = vsel %vm1219, %v1186, 0
      %1293 = vmatprep.subr.bf16.mxu0 0
      %1294 = vmatpush1.bf16.xpose.msra.mxu0 %v1288
      %1295 = vmatprep.subr.bf16.mxu0 0
      %1296 = vmatpush1.bf16.xpose.msra.mxu0 %v1291
      %1297 = vmatprep.subr.bf16.mxu0 0
      %1298 = vmatpush1.bf16.xpose.msra.mxu0 0
      %1299 = vmatprep.subr.bf16.mxu0 0
      %1300 = vmatpush1.bf16.xpose.msra.mxu0 0
      %1301 = vmatprep.subr.bf16.mxu0 0
      %1302 = vmatpush1.bf16.xpose.msra.mxu0 0
      %1303 = vmatprep.subr.bf16.mxu0 0
      %1304 = vmatpush1.bf16.xpose.msra.mxu0 0
      %1305 = vmatprep.subr.bf16.mxu0 0
      %1306 = vmatpush1.bf16.xpose.msra.mxu0 0
      %1307 = vmatprep.subr.bf16.mxu0 0
      %1308 = vmatpush1.bf16.xpose.msra.mxu0 0
      %1309 = vmatprep.subr.bf16.mxu0 0
      %1310 = vmatpush1.bf16.xpose.msra.mxu0 0
      %1311 = vmatprep.subr.bf16.mxu0 0
      %1312 = vmatpush1.bf16.xpose.msra.mxu0 0
      %1313 = vmatprep.subr.bf16.mxu0 0
      %1314 = vmatpush1.bf16.xpose.msra.mxu0 0
      %1315 = vmatprep.subr.bf16.mxu0 0
      %1316 = vmatpush1.bf16.xpose.msra.mxu0 0
      %1317 = vmatprep.subr.bf16.mxu0 0
      %1318 = vmatpush1.bf16.xpose.msra.mxu0 0
      %1319 = vmatprep.subr.bf16.mxu0 0
      %1320 = vmatpush1.bf16.xpose.msra.mxu0 0
      %1321 = vmatprep.subr.bf16.mxu0 0
      %1322 = vmatpush1.bf16.xpose.msra.mxu0 0
      %1323 = vmatprep.subr.bf16.mxu0 0
      %1324 = vmatpush1.bf16.xpose.msra.mxu0 0
      %1325 = vmatprep.mubr.bf16.mxu0 0
      %1326 = vmatmul.mubr.bf16.gmra.mrb[0].mxu0 %v1282
      %v1327 = vpop.f32.mrb[0].mxu0
      %v1328 = vadd.f32 %v1215, %v1327
      %v1329 = vpop.f32.mrb[0].mxu0
      %v1330 = vpop.f32.mrb[0].mxu0
      %v1331 = vadd.f32 %v1216, %v1330
      %v1332 = vpop.f32.mrb[0].mxu0
      %1333 = vmatprep.mubr.bf16.mxu0 0
      %1334 = vmatmul.mubr.bf16.gmra.mrb[0].mxu0 %v1285
      %v1335 = vpop.f32.mrb[0].mxu0
      %v1336 = vadd.f32 %v1217, %v1335
      %v1337 = vpop.f32.mrb[0].mxu0
      %v1338 = vpop.f32.mrb[0].mxu0
      %v1339 = vadd.f32 %v1218, %v1338
      %v1340 = vpop.f32.mrb[0].mxu0
      %1341 = vdwg.mxu0
      %v1343 = vsel %vm1219, %v1179, 0
      %v1346 = vsel %vm1219, %v1180, 0
      %v1349 = vsel %vm1219, %v1187, 0
      %v1352 = vsel %vm1219, %v1188, 0
      %1354 = vmatprep.subr.bf16.mxu0 0
      %1355 = vmatpush1.bf16.xpose.msra.mxu0 %v1349
      %1356 = vmatprep.subr.bf16.mxu0 0
      %1357 = vmatpush1.bf16.xpose.msra.mxu0 %v1352
      %1358 = vmatprep.subr.bf16.mxu0 0
      %1359 = vmatpush1.bf16.xpose.msra.mxu0 0
      %1360 = vmatprep.subr.bf16.mxu0 0
      %1361 = vmatpush1.bf16.xpose.msra.mxu0 0
      %1362 = vmatprep.subr.bf16.mxu0 0
      %1363 = vmatpush1.bf16.xpose.msra.mxu0 0
      %1364 = vmatprep.subr.bf16.mxu0 0
      %1365 = vmatpush1.bf16.xpose.msra.mxu0 0
      %1366 = vmatprep.subr.bf16.mxu0 0
      %1367 = vmatpush1.bf16.xpose.msra.mxu0 0
      %1368 = vmatprep.subr.bf16.mxu0 0
      %1369 = vmatpush1.bf16.xpose.msra.mxu0 0
      %1370 = vmatprep.subr.bf16.mxu0 0
      %1371 = vmatpush1.bf16.xpose.msra.mxu0 0
      %1372 = vmatprep.subr.bf16.mxu0 0
      %1373 = vmatpush1.bf16.xpose.msra.mxu0 0
      %1374 = vmatprep.subr.bf16.mxu0 0
      %1375 = vmatpush1.bf16.xpose.msra.mxu0 0
      %1376 = vmatprep.subr.bf16.mxu0 0
      %1377 = vmatpush1.bf16.xpose.msra.mxu0 0
      %1378 = vmatprep.subr.bf16.mxu0 0
      %1379 = vmatpush1.bf16.xpose.msra.mxu0 0
      %1380 = vmatprep.subr.bf16.mxu0 0
      %1381 = vmatpush1.bf16.xpose.msra.mxu0 0
      %1382 = vmatprep.subr.bf16.mxu0 0
      %1383 = vmatpush1.bf16.xpose.msra.mxu0 0
      %1384 = vmatprep.subr.bf16.mxu0 0
      %1385 = vmatpush1.bf16.xpose.msra.mxu0 0
      %1386 = vmatprep.mubr.bf16.mxu0 0
      %1387 = vmatmul.mubr.bf16.gmra.mrb[0].mxu0 %v1343
      %v1388 = vpop.f32.mrb[0].mxu0
      %v1389 = vadd.f32 %v1215, %v1388
      %v1390 = vpop.f32.mrb[0].mxu0
      %v1391 = vpop.f32.mrb[0].mxu0
      %v1392 = vadd.f32 %v1216, %v1391
      %v1393 = vpop.f32.mrb[0].mxu0
      %1394 = vmatprep.mubr.bf16.mxu0 0
      %1395 = vmatmul.mubr.bf16.gmra.mrb[0].mxu0 %v1346
      %v1396 = vpop.f32.mrb[0].mxu0
      %v1397 = vadd.f32 %v1217, %v1396
      %v1398 = vpop.f32.mrb[0].mxu0
      %v1399 = vpop.f32.mrb[0].mxu0
      %v1400 = vadd.f32 %v1218, %v1399
      %v1401 = vpop.f32.mrb[0].mxu0
      %1402 = vdwg.mxu0
      %v1404 = vsel %vm1219, %v1181, 0
      %v1407 = vsel %vm1219, %v1182, 0
      %v1410 = vsel %vm1219, %v1189, 0
      %v1413 = vsel %vm1219, %v1190, 0
      %1415 = vmatprep.subr.bf16.mxu0 0
      %1416 = vmatpush1.bf16.xpose.msra.mxu0 %v1410
      %1417 = vmatprep.subr.bf16.mxu0 0
      %1418 = vmatpush1.bf16.xpose.msra.mxu0 %v1413
      %1419 = vmatprep.subr.bf16.mxu0 0
      %1420 = vmatpush1.bf16.xpose.msra.mxu0 0
      %1421 = vmatprep.subr.bf16.mxu0 0
      %1422 = vmatpush1.bf16.xpose.msra.mxu0 0
      %1423 = vmatprep.subr.bf16.mxu0 0
      %1424 = vmatpush1.bf16.xpose.msra.mxu0 0
      %1425 = vmatprep.subr.bf16.mxu0 0
      %1426 = vmatpush1.bf16.xpose.msra.mxu0 0
      %1427 = vmatprep.subr.bf16.mxu0 0
      %1428 = vmatpush1.bf16.xpose.msra.mxu0 0
      %1429 = vmatprep.subr.bf16.mxu0 0
      %1430 = vmatpush1.bf16.xpose.msra.mxu0 0
      %1431 = vmatprep.subr.bf16.mxu0 0
      %1432 = vmatpush1.bf16.xpose.msra.mxu0 0
      %1433 = vmatprep.subr.bf16.mxu0 0
      %1434 = vmatpush1.bf16.xpose.msra.mxu0 0
      %1435 = vmatprep.subr.bf16.mxu0 0
      %1436 = vmatpush1.bf16.xpose.msra.mxu0 0
      %1437 = vmatprep.subr.bf16.mxu0 0
      %1438 = vmatpush1.bf16.xpose.msra.mxu0 0
      %1439 = vmatprep.subr.bf16.mxu0 0
      %1440 = vmatpush1.bf16.xpose.msra.mxu0 0
      %1441 = vmatprep.subr.bf16.mxu0 0
      %1442 = vmatpush1.bf16.xpose.msra.mxu0 0
      %1443 = vmatprep.subr.bf16.mxu0 0
      %1444 = vmatpush1.bf16.xpose.msra.mxu0 0
      %1445 = vmatprep.subr.bf16.mxu0 0
      %1446 = vmatpush1.bf16.xpose.msra.mxu0 0
      %1447 = vmatprep.mubr.bf16.mxu0 0
      %1448 = vmatmul.mubr.bf16.gmra.mrb[0].mxu0 %v1404
      %v1449 = vpop.f32.mrb[0].mxu0
      %v1450 = vadd.f32 %v1215, %v1449
      %v1451 = vpop.f32.mrb[0].mxu0
      %v1452 = vpop.f32.mrb[0].mxu0
      %v1453 = vadd.f32 %v1216, %v1452
      %v1454 = vpop.f32.mrb[0].mxu0
      %1455 = vmatprep.mubr.bf16.mxu0 0
      %1456 = vmatmul.mubr.bf16.gmra.mrb[0].mxu0 %v1407
      %v1457 = vpop.f32.mrb[0].mxu0
      %v1458 = vadd.f32 %v1217, %v1457
      %v1459 = vpop.f32.mrb[0].mxu0
      %v1460 = vpop.f32.mrb[0].mxu0
      %v1461 = vadd.f32 %v1218, %v1460
      %v1462 = vpop.f32.mrb[0].mxu0
      %1463 = vdwg.mxu0
      %v1464 = vadd.f32 %v1267, %v1199
      %v1465 = vadd.f32 %v1270, %v1200
      %v1466 = vadd.f32 %v1275, %v1201
      %v1467 = vadd.f32 %v1278, %v1202
      %v1468 = vadd.f32 %v1328, %v1203
      %v1469 = vadd.f32 %v1331, %v1204
      %v1470 = vadd.f32 %v1336, %v1205
      %v1471 = vadd.f32 %v1339, %v1206
      %v1472 = vadd.f32 %v1389, %v1207
      %v1473 = vadd.f32 %v1392, %v1208
      %v1474 = vadd.f32 %v1397, %v1209
      %v1475 = vadd.f32 %v1400, %v1210
      %v1476 = vadd.f32 %v1450, %v1211
      %v1477 = vadd.f32 %v1453, %v1212
      %v1478 = vadd.f32 %v1458, %v1213
      %v1479 = vadd.f32 %v1461, %v1214
      %v1480 = vsel %vm527, %v1464, -inf
      %1481 = vmax.xlane.f32.xlu0 %v1480
      %v1482 = vpop.xlane.xlu0 %1481
      %v1483 = vsel %vm527, %v1465, -inf
      %1484 = vmax.xlane.f32.xlu0 %v1483
      %v1485 = vpop.xlane.xlu0 %1484
      %v1486 = vsel %vm527, %v1466, -inf
      %1487 = vmax.xlane.f32.xlu0 %v1486
      %v1488 = vpop.xlane.xlu0 %1487
      %v1489 = vsel %vm527, %v1467, -inf
      %1490 = vmax.xlane.f32.xlu0 %v1489
      %v1491 = vpop.xlane.xlu0 %1490
      %v1492 = vsel %vm527, %v1468, -inf
      %1493 = vmax.xlane.f32.xlu0 %v1492
      %v1494 = vpop.xlane.xlu0 %1493
      %v1495 = vsel %vm527, %v1469, -inf
      %1496 = vmax.xlane.f32.xlu0 %v1495
      %v1497 = vpop.xlane.xlu0 %1496
      %v1498 = vsel %vm527, %v1470, -inf
      %1499 = vmax.xlane.f32.xlu0 %v1498
      %v1500 = vpop.xlane.xlu0 %1499
      %v1501 = vsel %vm527, %v1471, -inf
      %1502 = vmax.xlane.f32.xlu0 %v1501
      %v1503 = vpop.xlane.xlu0 %1502
      %v1504 = vsel %vm527, %v1472, -inf
      %1505 = vmax.xlane.f32.xlu0 %v1504
      %v1506 = vpop.xlane.xlu0 %1505
      %v1507 = vsel %vm527, %v1473, -inf
      %1508 = vmax.xlane.f32.xlu0 %v1507
      %v1509 = vpop.xlane.xlu0 %1508
      %v1510 = vsel %vm527, %v1474, -inf
      %1511 = vmax.xlane.f32.xlu0 %v1510
      %v1512 = vpop.xlane.xlu0 %1511
      %v1513 = vsel %vm527, %v1475, -inf
      %1514 = vmax.xlane.f32.xlu0 %v1513
      %v1515 = vpop.xlane.xlu0 %1514
      %v1516 = vsel %vm527, %v1476, -inf
      %1517 = vmax.xlane.f32.xlu0 %v1516
      %v1518 = vpop.xlane.xlu0 %1517
      %v1519 = vsel %vm527, %v1477, -inf
      %1520 = vmax.xlane.f32.xlu0 %v1519
      %v1521 = vpop.xlane.xlu0 %1520
      %v1522 = vsel %vm527, %v1478, -inf
      %1523 = vmax.xlane.f32.xlu0 %v1522
      %v1524 = vpop.xlane.xlu0 %1523
      %v1525 = vsel %vm527, %v1479, -inf
      %1526 = vmax.xlane.f32.xlu0 %v1525
      %v1527 = vpop.xlane.xlu0 %1526
      %v1528 = vsub.f32 %v1464, %v1482
      %v1529 = vsub.f32 %v1465, %v1485
      %v1530 = vsub.f32 %v1466, %v1488
      %v1531 = vsub.f32 %v1467, %v1491
      %v1532 = vsub.f32 %v1468, %v1494
      %v1533 = vsub.f32 %v1469, %v1497
      %v1534 = vsub.f32 %v1470, %v1500
      %v1535 = vsub.f32 %v1471, %v1503
      %v1536 = vsub.f32 %v1472, %v1506
      %v1537 = vsub.f32 %v1473, %v1509
      %v1538 = vsub.f32 %v1474, %v1512
      %v1539 = vsub.f32 %v1475, %v1515
      %v1540 = vsub.f32 %v1476, %v1518
      %v1541 = vsub.f32 %v1477, %v1521
      %v1542 = vsub.f32 %v1478, %v1524
      %v1543 = vsub.f32 %v1479, %v1527
      %v1544 = vmul.f32 %v1528, 1.442695
      %v1545 = vpow.pop %v1544
      %v1546 = vmul.f32 %v1529, 1.442695
      %v1547 = vpow.pop %v1546
      %v1548 = vmul.f32 %v1530, 1.442695
      %v1549 = vpow.pop %v1548
      %v1550 = vmul.f32 %v1531, 1.442695
      %v1551 = vpow.pop %v1550
      %v1552 = vmul.f32 %v1532, 1.442695
      %v1553 = vpow.pop %v1552
      %v1554 = vmul.f32 %v1533, 1.442695
      %v1555 = vpow.pop %v1554
      %v1556 = vmul.f32 %v1534, 1.442695
      %v1557 = vpow.pop %v1556
      %v1558 = vmul.f32 %v1535, 1.442695
      %v1559 = vpow.pop %v1558
      %v1560 = vmul.f32 %v1536, 1.442695
      %v1561 = vpow.pop %v1560
      %v1562 = vmul.f32 %v1537, 1.442695
      %v1563 = vpow.pop %v1562
      %v1564 = vmul.f32 %v1538, 1.442695
      %v1565 = vpow.pop %v1564
      %v1566 = vmul.f32 %v1539, 1.442695
      %v1567 = vpow.pop %v1566
      %v1568 = vmul.f32 %v1540, 1.442695
      %v1569 = vpow.pop %v1568
      %v1570 = vmul.f32 %v1541, 1.442695
      %v1571 = vpow.pop %v1570
      %v1572 = vmul.f32 %v1542, 1.442695
      %v1573 = vpow.pop %v1572
      %v1574 = vmul.f32 %v1543, 1.442695
      %v1575 = vpow.pop %v1574
      %v1576 = vsel %vm527, %v1545, 0.0
      %1577 = vadd.xlane.f32.xlu0 %v1576
      %v1578 = vpop.xlane.xlu0 %1577
      %v1579 = vsel %vm527, %v1547, 0.0
      %1580 = vadd.xlane.f32.xlu0 %v1579
      %v1581 = vpop.xlane.xlu0 %1580
      %v1582 = vsel %vm527, %v1549, 0.0
      %1583 = vadd.xlane.f32.xlu0 %v1582
      %v1584 = vpop.xlane.xlu0 %1583
      %v1585 = vsel %vm527, %v1551, 0.0
      %1586 = vadd.xlane.f32.xlu0 %v1585
      %v1587 = vpop.xlane.xlu0 %1586
      %v1588 = vsel %vm527, %v1553, 0.0
      %1589 = vadd.xlane.f32.xlu0 %v1588
      %v1590 = vpop.xlane.xlu0 %1589
      %v1591 = vsel %vm527, %v1555, 0.0
      %1592 = vadd.xlane.f32.xlu0 %v1591
      %v1593 = vpop.xlane.xlu0 %1592
      %v1594 = vsel %vm527, %v1557, 0.0
      %1595 = vadd.xlane.f32.xlu0 %v1594
      %v1596 = vpop.xlane.xlu0 %1595
      %v1597 = vsel %vm527, %v1559, 0.0
      %1598 = vadd.xlane.f32.xlu0 %v1597
      %v1599 = vpop.xlane.xlu0 %1598
      %v1600 = vsel %vm527, %v1561, 0.0
      %1601 = vadd.xlane.f32.xlu0 %v1600
      %v1602 = vpop.xlane.xlu0 %1601
      %v1603 = vsel %vm527, %v1563, 0.0
      %1604 = vadd.xlane.f32.xlu0 %v1603
      %v1605 = vpop.xlane.xlu0 %1604
      %v1606 = vsel %vm527, %v1565, 0.0
      %1607 = vadd.xlane.f32.xlu0 %v1606
      %v1608 = vpop.xlane.xlu0 %1607
      %v1609 = vsel %vm527, %v1567, 0.0
      %1610 = vadd.xlane.f32.xlu0 %v1609
      %v1611 = vpop.xlane.xlu0 %1610
      %v1612 = vsel %vm527, %v1569, 0.0
      %1613 = vadd.xlane.f32.xlu0 %v1612
      %v1614 = vpop.xlane.xlu0 %1613
      %v1615 = vsel %vm527, %v1571, 0.0
      %1616 = vadd.xlane.f32.xlu0 %v1615
      %v1617 = vpop.xlane.xlu0 %1616
      %v1618 = vsel %vm527, %v1573, 0.0
      %1619 = vadd.xlane.f32.xlu0 %v1618
      %v1620 = vpop.xlane.xlu0 %1619
      %v1621 = vsel %vm527, %v1575, 0.0
      %1622 = vadd.xlane.f32.xlu0 %v1621
      %v1623 = vpop.xlane.xlu0 %1622
      %v1624 = vrcp.pop %v1578
      %v1625 = vrcp.pop %v1581
      %v1626 = vrcp.pop %v1584
      %v1627 = vrcp.pop %v1587
      %v1628 = vrcp.pop %v1590
      %v1629 = vrcp.pop %v1593
      %v1630 = vrcp.pop %v1596
      %v1631 = vrcp.pop %v1599
      %v1632 = vrcp.pop %v1602
      %v1633 = vrcp.pop %v1605
      %v1634 = vrcp.pop %v1608
      %v1635 = vrcp.pop %v1611
      %v1636 = vrcp.pop %v1614
      %v1637 = vrcp.pop %v1617
      %v1638 = vrcp.pop %v1620
      %v1639 = vrcp.pop %v1623
      %v1640 = vmul.f32 %v1545, %v1624
      %v1641 = vmul.f32 %v1547, %v1625
      %v1642 = vmul.f32 %v1549, %v1626
      %v1643 = vmul.f32 %v1551, %v1627
      %v1644 = vmul.f32 %v1553, %v1628
      %v1645 = vmul.f32 %v1555, %v1629
      %v1646 = vmul.f32 %v1557, %v1630
      %v1647 = vmul.f32 %v1559, %v1631
      %v1648 = vmul.f32 %v1561, %v1632
      %v1649 = vmul.f32 %v1563, %v1633
      %v1650 = vmul.f32 %v1565, %v1634
      %v1651 = vmul.f32 %v1567, %v1635
      %v1652 = vmul.f32 %v1569, %v1636
      %v1653 = vmul.f32 %v1571, %v1637
      %v1654 = vmul.f32 %v1573, %v1638
      %v1655 = vmul.f32 %v1575, %v1639
      %v1656 = vpack.c.bf16 %v1641, %v1640
      %v1657 = vpack.c.bf16 %v1643, %v1642
      %v1658 = vpack.c.bf16 %v1645, %v1644
      %v1659 = vpack.c.bf16 %v1647, %v1646
      %v1660 = vpack.c.bf16 %v1649, %v1648
      %v1661 = vpack.c.bf16 %v1651, %v1650
      %v1662 = vpack.c.bf16 %v1653, %v1652
      %v1663 = vpack.c.bf16 %v1655, %v1654
      %v1665 = vsel %vm527, %v1656, 0
      %v1668 = vsel %vm527, %v1657, 0
      %1670 = vmatprep.subr.bf16.mxu0 0
      %1671 = vmatpush1.bf16.msra.mxu0 %v1191
      %1672 = vmatprep.subr.bf16.mxu0 0
      %1673 = vmatpush1.bf16.msra.mxu0 %v1192
      %1674 = vmatprep.subr.bf16.mxu0 0
      %1675 = vmatpush1.bf16.msra.mxu0 0
      %1676 = vmatprep.subr.bf16.mxu0 0
      %1677 = vmatpush1.bf16.msra.mxu0 0
      %1678 = vmatprep.subr.bf16.mxu0 0
      %1679 = vmatpush1.bf16.msra.mxu0 0
      %1680 = vmatprep.subr.bf16.mxu0 0
      %1681 = vmatpush1.bf16.msra.mxu0 0
      %1682 = vmatprep.subr.bf16.mxu0 0
      %1683 = vmatpush1.bf16.msra.mxu0 0
      %1684 = vmatprep.subr.bf16.mxu0 0
      %1685 = vmatpush1.bf16.msra.mxu0 0
      %1686 = vmatprep.subr.bf16.mxu0 0
      %1687 = vmatpush1.bf16.msra.mxu0 0
      %1688 = vmatprep.subr.bf16.mxu0 0
      %1689 = vmatpush1.bf16.msra.mxu0 0
      %1690 = vmatprep.subr.bf16.mxu0 0
      %1691 = vmatpush1.bf16.msra.mxu0 0
      %1692 = vmatprep.subr.bf16.mxu0 0
      %1693 = vmatpush1.bf16.msra.mxu0 0
      %1694 = vmatprep.subr.bf16.mxu0 0
      %1695 = vmatpush1.bf16.msra.mxu0 0
      %1696 = vmatprep.subr.bf16.mxu0 0
      %1697 = vmatpush1.bf16.msra.mxu0 0
      %1698 = vmatprep.subr.bf16.mxu0 0
      %1699 = vmatpush1.bf16.msra.mxu0 0
      %1700 = vmatprep.subr.bf16.mxu0 0
      %1701 = vmatpush1.bf16.msra.mxu0 0
      %1702 = vmatprep.mubr.bf16.mxu0 0
      %1703 = vmatmul.mubr.bf16.gmra.mrb[0].mxu0 %v1665
      %v1704 = vpop.f32.mrb[0].mxu0
      %v1705 = vadd.f32 0.0, %v1704
      %v1706 = vpop.f32.mrb[0].mxu0
      %v1707 = vpop.f32.mrb[0].mxu0
      %v1708 = vadd.f32 0.0, %v1707
      %v1709 = vpop.f32.mrb[0].mxu0
      %1710 = vmatprep.mubr.bf16.mxu0 0
      %1711 = vmatmul.mubr.bf16.gmra.mrb[0].mxu0 %v1668
      %v1712 = vpop.f32.mrb[0].mxu0
      %v1713 = vadd.f32 0.0, %v1712
      %v1714 = vpop.f32.mrb[0].mxu0
      %v1715 = vpop.f32.mrb[0].mxu0
      %v1716 = vadd.f32 0.0, %v1715
      %v1717 = vpop.f32.mrb[0].mxu0
      %1718 = vdwg.mxu0
      %v1720 = vsel %vm527, %v1658, 0
      %v1723 = vsel %vm527, %v1659, 0
      %1725 = vmatprep.subr.bf16.mxu0 0
      %1726 = vmatpush1.bf16.msra.mxu0 %v1193
      %1727 = vmatprep.subr.bf16.mxu0 0
      %1728 = vmatpush1.bf16.msra.mxu0 %v1194
      %1729 = vmatprep.subr.bf16.mxu0 0
      %1730 = vmatpush1.bf16.msra.mxu0 0
      %1731 = vmatprep.subr.bf16.mxu0 0
      %1732 = vmatpush1.bf16.msra.mxu0 0
      %1733 = vmatprep.subr.bf16.mxu0 0
      %1734 = vmatpush1.bf16.msra.mxu0 0
      %1735 = vmatprep.subr.bf16.mxu0 0
      %1736 = vmatpush1.bf16.msra.mxu0 0
      %1737 = vmatprep.subr.bf16.mxu0 0
      %1738 = vmatpush1.bf16.msra.mxu0 0
      %1739 = vmatprep.subr.bf16.mxu0 0
      %1740 = vmatpush1.bf16.msra.mxu0 0
      %1741 = vmatprep.subr.bf16.mxu0 0
      %1742 = vmatpush1.bf16.msra.mxu0 0
      %1743 = vmatprep.subr.bf16.mxu0 0
      %1744 = vmatpush1.bf16.msra.mxu0 0
      %1745 = vmatprep.subr.bf16.mxu0 0
      %1746 = vmatpush1.bf16.msra.mxu0 0
      %1747 = vmatprep.subr.bf16.mxu0 0
      %1748 = vmatpush1.bf16.msra.mxu0 0
      %1749 = vmatprep.subr.bf16.mxu0 0
      %1750 = vmatpush1.bf16.msra.mxu0 0
      %1751 = vmatprep.subr.bf16.mxu0 0
      %1752 = vmatpush1.bf16.msra.mxu0 0
      %1753 = vmatprep.subr.bf16.mxu0 0
      %1754 = vmatpush1.bf16.msra.mxu0 0
      %1755 = vmatprep.subr.bf16.mxu0 0
      %1756 = vmatpush1.bf16.msra.mxu0 0
      %1757 = vmatprep.mubr.bf16.mxu0 0
      %1758 = vmatmul.mubr.bf16.gmra.mrb[0].mxu0 %v1720
      %v1759 = vpop.f32.mrb[0].mxu0
      %v1760 = vadd.f32 0.0, %v1759
      %v1761 = vpop.f32.mrb[0].mxu0
      %v1762 = vpop.f32.mrb[0].mxu0
      %v1763 = vadd.f32 0.0, %v1762
      %v1764 = vpop.f32.mrb[0].mxu0
      %1765 = vmatprep.mubr.bf16.mxu0 0
      %1766 = vmatmul.mubr.bf16.gmra.mrb[0].mxu0 %v1723
      %v1767 = vpop.f32.mrb[0].mxu0
      %v1768 = vadd.f32 0.0, %v1767
      %v1769 = vpop.f32.mrb[0].mxu0
      %v1770 = vpop.f32.mrb[0].mxu0
      %v1771 = vadd.f32 0.0, %v1770
      %v1772 = vpop.f32.mrb[0].mxu0
      %1773 = vdwg.mxu0
      %v1775 = vsel %vm527, %v1660, 0
      %v1778 = vsel %vm527, %v1661, 0
      %1780 = vmatprep.subr.bf16.mxu0 0
      %1781 = vmatpush1.bf16.msra.mxu0 %v1195
      %1782 = vmatprep.subr.bf16.mxu0 0
      %1783 = vmatpush1.bf16.msra.mxu0 %v1196
      %1784 = vmatprep.subr.bf16.mxu0 0
      %1785 = vmatpush1.bf16.msra.mxu0 0
      %1786 = vmatprep.subr.bf16.mxu0 0
      %1787 = vmatpush1.bf16.msra.mxu0 0
      %1788 = vmatprep.subr.bf16.mxu0 0
      %1789 = vmatpush1.bf16.msra.mxu0 0
      %1790 = vmatprep.subr.bf16.mxu0 0
      %1791 = vmatpush1.bf16.msra.mxu0 0
      %1792 = vmatprep.subr.bf16.mxu0 0
      %1793 = vmatpush1.bf16.msra.mxu0 0
      %1794 = vmatprep.subr.bf16.mxu0 0
      %1795 = vmatpush1.bf16.msra.mxu0 0
      %1796 = vmatprep.subr.bf16.mxu0 0
      %1797 = vmatpush1.bf16.msra.mxu0 0
      %1798 = vmatprep.subr.bf16.mxu0 0
      %1799 = vmatpush1.bf16.msra.mxu0 0
      %1800 = vmatprep.subr.bf16.mxu0 0
      %1801 = vmatpush1.bf16.msra.mxu0 0
      %1802 = vmatprep.subr.bf16.mxu0 0
      %1803 = vmatpush1.bf16.msra.mxu0 0
      %1804 = vmatprep.subr.bf16.mxu0 0
      %1805 = vmatpush1.bf16.msra.mxu0 0
      %1806 = vmatprep.subr.bf16.mxu0 0
      %1807 = vmatpush1.bf16.msra.mxu0 0
      %1808 = vmatprep.subr.bf16.mxu0 0
      %1809 = vmatpush1.bf16.msra.mxu0 0
      %1810 = vmatprep.subr.bf16.mxu0 0
      %1811 = vmatpush1.bf16.msra.mxu0 0
      %1812 = vmatprep.mubr.bf16.mxu0 0
      %1813 = vmatmul.mubr.bf16.gmra.mrb[0].mxu0 %v1775
      %v1814 = vpop.f32.mrb[0].mxu0
      %v1815 = vadd.f32 0.0, %v1814
      %v1816 = vpop.f32.mrb[0].mxu0
      %v1817 = vpop.f32.mrb[0].mxu0
      %v1818 = vadd.f32 0.0, %v1817
      %v1819 = vpop.f32.mrb[0].mxu0
      %1820 = vmatprep.mubr.bf16.mxu0 0
      %1821 = vmatmul.mubr.bf16.gmra.mrb[0].mxu0 %v1778
      %v1822 = vpop.f32.mrb[0].mxu0
      %v1823 = vadd.f32 0.0, %v1822
      %v1824 = vpop.f32.mrb[0].mxu0
      %v1825 = vpop.f32.mrb[0].mxu0
      %v1826 = vadd.f32 0.0, %v1825
      %v1827 = vpop.f32.mrb[0].mxu0
      %1828 = vdwg.mxu0
      %v1830 = vsel %vm527, %v1662, 0
      %v1833 = vsel %vm527, %v1663, 0
      %1835 = vmatprep.subr.bf16.mxu0 0
      %1836 = vmatpush1.bf16.msra.mxu0 %v1197
      %1837 = vmatprep.subr.bf16.mxu0 0
      %1838 = vmatpush1.bf16.msra.mxu0 %v1198
      %1839 = vmatprep.subr.bf16.mxu0 0
      %1840 = vmatpush1.bf16.msra.mxu0 0
      %1841 = vmatprep.subr.bf16.mxu0 0
      %1842 = vmatpush1.bf16.msra.mxu0 0
      %1843 = vmatprep.subr.bf16.mxu0 0
      %1844 = vmatpush1.bf16.msra.mxu0 0
      %1845 = vmatprep.subr.bf16.mxu0 0
      %1846 = vmatpush1.bf16.msra.mxu0 0
      %1847 = vmatprep.subr.bf16.mxu0 0
      %1848 = vmatpush1.bf16.msra.mxu0 0
      %1849 = vmatprep.subr.bf16.mxu0 0
      %1850 = vmatpush1.bf16.msra.mxu0 0
      %1851 = vmatprep.subr.bf16.mxu0 0
      %1852 = vmatpush1.bf16.msra.mxu0 0
      %1853 = vmatprep.subr.bf16.mxu0 0
      %1854 = vmatpush1.bf16.msra.mxu0 0
      %1855 = vmatprep.subr.bf16.mxu0 0
      %1856 = vmatpush1.bf16.msra.mxu0 0
      %1857 = vmatprep.subr.bf16.mxu0 0
      %1858 = vmatpush1.bf16.msra.mxu0 0
      %1859 = vmatprep.subr.bf16.mxu0 0
      %1860 = vmatpush1.bf16.msra.mxu0 0
      %1861 = vmatprep.subr.bf16.mxu0 0
      %1862 = vmatpush1.bf16.msra.mxu0 0
      %1863 = vmatprep.subr.bf16.mxu0 0
      %1864 = vmatpush1.bf16.msra.mxu0 0
      %1865 = vmatprep.subr.bf16.mxu0 0
      %1866 = vmatpush1.bf16.msra.mxu0 0
      %1867 = vmatprep.mubr.bf16.mxu0 0
      %1868 = vmatmul.mubr.bf16.gmra.mrb[0].mxu0 %v1830
      %v1869 = vpop.f32.mrb[0].mxu0
      %v1870 = vadd.f32 0.0, %v1869
      %v1871 = vpop.f32.mrb[0].mxu0
      %v1872 = vpop.f32.mrb[0].mxu0
      %v1873 = vadd.f32 0.0, %v1872
      %v1874 = vpop.f32.mrb[0].mxu0
      %1875 = vmatprep.mubr.bf16.mxu0 0
      %1876 = vmatmul.mubr.bf16.gmra.mrb[0].mxu0 %v1833
      %v1877 = vpop.f32.mrb[0].mxu0
      %v1878 = vadd.f32 0.0, %v1877
      %v1879 = vpop.f32.mrb[0].mxu0
      %v1880 = vpop.f32.mrb[0].mxu0
      %v1881 = vadd.f32 0.0, %v1880
      %v1882 = vpop.f32.mrb[0].mxu0
      %1883 = vdwg.mxu0
      %s1884 = scalar_lea.vmem %s11, 32
      %v1885 = vld [vmem:[%s1884] sm:$0xff]
      %v1886 = vld [vmem:[%s1884 + $0x8] sm:$0xff]
      %v1887 = vld [vmem:[%s1884 + $0x10] sm:$0xff]
      %v1888 = vld [vmem:[%s1884 + $0x18] sm:$0xff]
      %1891 = vrot.lane.b32.xlu0 %v1175, 120
      %v1892 = vpop.permute.xlu0 %1891
      %1893 = vrot.lane.b32.xlu0 %v1176, 120
      %v1894 = vpop.permute.xlu0 %1893
      %1897 = vrot.lane.b32.xlu0 %v1183, 120
      %v1898 = vpop.permute.xlu0 %1897
      %1899 = vrot.lane.b32.xlu0 %v1184, 120
      %v1900 = vpop.permute.xlu0 %1899
      %v1902 = vsel %vm1219, %v1892, 0
      %v1905 = vsel %vm1219, %v1894, 0
      %v1908 = vsel %vm1219, %v1898, 0
      %v1911 = vsel %vm1219, %v1900, 0
      %1913 = vmatprep.subr.bf16.mxu0 0
      %1914 = vmatpush1.bf16.xpose.msra.mxu0 %v1908
      %1915 = vmatprep.subr.bf16.mxu0 0
      %1916 = vmatpush1.bf16.xpose.msra.mxu0 %v1911
      %1917 = vmatprep.subr.bf16.mxu0 0
      %1918 = vmatpush1.bf16.xpose.msra.mxu0 0
      %1919 = vmatprep.subr.bf16.mxu0 0
      %1920 = vmatpush1.bf16.xpose.msra.mxu0 0
      %1921 = vmatprep.subr.bf16.mxu0 0
      %1922 = vmatpush1.bf16.xpose.msra.mxu0 0
      %1923 = vmatprep.subr.bf16.mxu0 0
      %1924 = vmatpush1.bf16.xpose.msra.mxu0 0
      %1925 = vmatprep.subr.bf16.mxu0 0
      %1926 = vmatpush1.bf16.xpose.msra.mxu0 0
      %1927 = vmatprep.subr.bf16.mxu0 0
      %1928 = vmatpush1.bf16.xpose.msra.mxu0 0
      %1929 = vmatprep.subr.bf16.mxu0 0
      %1930 = vmatpush1.bf16.xpose.msra.mxu0 0
      %1931 = vmatprep.subr.bf16.mxu0 0
      %1932 = vmatpush1.bf16.xpose.msra.mxu0 0
      %1933 = vmatprep.subr.bf16.mxu0 0
      %1934 = vmatpush1.bf16.xpose.msra.mxu0 0
      %1935 = vmatprep.subr.bf16.mxu0 0
      %1936 = vmatpush1.bf16.xpose.msra.mxu0 0
      %1937 = vmatprep.subr.bf16.mxu0 0
      %1938 = vmatpush1.bf16.xpose.msra.mxu0 0
      %1939 = vmatprep.subr.bf16.mxu0 0
      %1940 = vmatpush1.bf16.xpose.msra.mxu0 0
      %1941 = vmatprep.subr.bf16.mxu0 0
      %1942 = vmatpush1.bf16.xpose.msra.mxu0 0
      %1943 = vmatprep.subr.bf16.mxu0 0
      %1944 = vmatpush1.bf16.xpose.msra.mxu0 0
      %1945 = vmatprep.mubr.bf16.mxu0 0
      %1946 = vmatmul.mubr.bf16.gmra.mrb[0].mxu0 %v1902
      %v1947 = vpop.f32.mrb[0].mxu0
      %v1948 = vadd.f32 %v1885, %v1947
      %v1949 = vpop.f32.mrb[0].mxu0
      %v1950 = vpop.f32.mrb[0].mxu0
      %v1951 = vadd.f32 %v1886, %v1950
      %v1952 = vpop.f32.mrb[0].mxu0
      %1953 = vmatprep.mubr.bf16.mxu0 0
      %1954 = vmatmul.mubr.bf16.gmra.mrb[0].mxu0 %v1905
      %v1955 = vpop.f32.mrb[0].mxu0
      %v1956 = vadd.f32 %v1887, %v1955
      %v1957 = vpop.f32.mrb[0].mxu0
      %v1958 = vpop.f32.mrb[0].mxu0
      %v1959 = vadd.f32 %v1888, %v1958
      %v1960 = vpop.f32.mrb[0].mxu0
      %1961 = vdwg.mxu0
      %1964 = vrot.lane.b32.xlu0 %v1177, 120
      %v1965 = vpop.permute.xlu0 %1964
      %1966 = vrot.lane.b32.xlu0 %v1178, 120
      %v1967 = vpop.permute.xlu0 %1966
      %1970 = vrot.lane.b32.xlu0 %v1185, 120
      %v1971 = vpop.permute.xlu0 %1970
      %1972 = vrot.lane.b32.xlu0 %v1186, 120
      %v1973 = vpop.permute.xlu0 %1972
      %v1975 = vsel %vm1219, %v1965, 0
      %v1978 = vsel %vm1219, %v1967, 0
      %v1981 = vsel %vm1219, %v1971, 0
      %v1984 = vsel %vm1219, %v1973, 0
      %1986 = vmatprep.subr.bf16.mxu0 0
      %1987 = vmatpush1.bf16.xpose.msra.mxu0 %v1981
      %1988 = vmatprep.subr.bf16.mxu0 0
      %1989 = vmatpush1.bf16.xpose.msra.mxu0 %v1984
      %1990 = vmatprep.subr.bf16.mxu0 0
      %1991 = vmatpush1.bf16.xpose.msra.mxu0 0
      %1992 = vmatprep.subr.bf16.mxu0 0
      %1993 = vmatpush1.bf16.xpose.msra.mxu0 0
      %1994 = vmatprep.subr.bf16.mxu0 0
      %1995 = vmatpush1.bf16.xpose.msra.mxu0 0
      %1996 = vmatprep.subr.bf16.mxu0 0
      %1997 = vmatpush1.bf16.xpose.msra.mxu0 0
      %1998 = vmatprep.subr.bf16.mxu0 0
      %1999 = vmatpush1.bf16.xpose.msra.mxu0 0
      %2000 = vmatprep.subr.bf16.mxu0 0
      %2001 = vmatpush1.bf16.xpose.msra.mxu0 0
      %2002 = vmatprep.subr.bf16.mxu0 0
      %2003 = vmatpush1.bf16.xpose.msra.mxu0 0
      %2004 = vmatprep.subr.bf16.mxu0 0
      %2005 = vmatpush1.bf16.xpose.msra.mxu0 0
      %2006 = vmatprep.subr.bf16.mxu0 0
      %2007 = vmatpush1.bf16.xpose.msra.mxu0 0
      %2008 = vmatprep.subr.bf16.mxu0 0
      %2009 = vmatpush1.bf16.xpose.msra.mxu0 0
      %2010 = vmatprep.subr.bf16.mxu0 0
      %2011 = vmatpush1.bf16.xpose.msra.mxu0 0
      %2012 = vmatprep.subr.bf16.mxu0 0
      %2013 = vmatpush1.bf16.xpose.msra.mxu0 0
      %2014 = vmatprep.subr.bf16.mxu0 0
      %2015 = vmatpush1.bf16.xpose.msra.mxu0 0
      %2016 = vmatprep.subr.bf16.mxu0 0
      %2017 = vmatpush1.bf16.xpose.msra.mxu0 0
      %2018 = vmatprep.mubr.bf16.mxu0 0
      %2019 = vmatmul.mubr.bf16.gmra.mrb[0].mxu0 %v1975
      %v2020 = vpop.f32.mrb[0].mxu0
      %v2021 = vadd.f32 %v1885, %v2020
      %v2022 = vpop.f32.mrb[0].mxu0
      %v2023 = vpop.f32.mrb[0].mxu0
      %v2024 = vadd.f32 %v1886, %v2023
      %v2025 = vpop.f32.mrb[0].mxu0
      %2026 = vmatprep.mubr.bf16.mxu0 0
      %2027 = vmatmul.mubr.bf16.gmra.mrb[0].mxu0 %v1978
      %v2028 = vpop.f32.mrb[0].mxu0
      %v2029 = vadd.f32 %v1887, %v2028
      %v2030 = vpop.f32.mrb[0].mxu0
      %v2031 = vpop.f32.mrb[0].mxu0
      %v2032 = vadd.f32 %v1888, %v2031
      %v2033 = vpop.f32.mrb[0].mxu0
      %2034 = vdwg.mxu0
      %2037 = vrot.lane.b32.xlu0 %v1179, 120
      %v2038 = vpop.permute.xlu0 %2037
      %2039 = vrot.lane.b32.xlu0 %v1180, 120
      %v2040 = vpop.permute.xlu0 %2039
      %2043 = vrot.lane.b32.xlu0 %v1187, 120
      %v2044 = vpop.permute.xlu0 %2043
      %2045 = vrot.lane.b32.xlu0 %v1188, 120
      %v2046 = vpop.permute.xlu0 %2045
      %v2048 = vsel %vm1219, %v2038, 0
      %v2051 = vsel %vm1219, %v2040, 0
      %v2054 = vsel %vm1219, %v2044, 0
      %v2057 = vsel %vm1219, %v2046, 0
      %2059 = vmatprep.subr.bf16.mxu0 0
      %2060 = vmatpush1.bf16.xpose.msra.mxu0 %v2054
      %2061 = vmatprep.subr.bf16.mxu0 0
      %2062 = vmatpush1.bf16.xpose.msra.mxu0 %v2057
      %2063 = vmatprep.subr.bf16.mxu0 0
      %2064 = vmatpush1.bf16.xpose.msra.mxu0 0
      %2065 = vmatprep.subr.bf16.mxu0 0
      %2066 = vmatpush1.bf16.xpose.msra.mxu0 0
      %2067 = vmatprep.subr.bf16.mxu0 0
      %2068 = vmatpush1.bf16.xpose.msra.mxu0 0
      %2069 = vmatprep.subr.bf16.mxu0 0
      %2070 = vmatpush1.bf16.xpose.msra.mxu0 0
      %2071 = vmatprep.subr.bf16.mxu0 0
      %2072 = vmatpush1.bf16.xpose.msra.mxu0 0
      %2073 = vmatprep.subr.bf16.mxu0 0
      %2074 = vmatpush1.bf16.xpose.msra.mxu0 0
      %2075 = vmatprep.subr.bf16.mxu0 0
      %2076 = vmatpush1.bf16.xpose.msra.mxu0 0
      %2077 = vmatprep.subr.bf16.mxu0 0
      %2078 = vmatpush1.bf16.xpose.msra.mxu0 0
      %2079 = vmatprep.subr.bf16.mxu0 0
      %2080 = vmatpush1.bf16.xpose.msra.mxu0 0
      %2081 = vmatprep.subr.bf16.mxu0 0
      %2082 = vmatpush1.bf16.xpose.msra.mxu0 0
      %2083 = vmatprep.subr.bf16.mxu0 0
      %2084 = vmatpush1.bf16.xpose.msra.mxu0 0
      %2085 = vmatprep.subr.bf16.mxu0 0
      %2086 = vmatpush1.bf16.xpose.msra.mxu0 0
      %2087 = vmatprep.subr.bf16.mxu0 0
      %2088 = vmatpush1.bf16.xpose.msra.mxu0 0
      %2089 = vmatprep.subr.bf16.mxu0 0
      %2090 = vmatpush1.bf16.xpose.msra.mxu0 0
      %2091 = vmatprep.mubr.bf16.mxu0 0
      %2092 = vmatmul.mubr.bf16.gmra.mrb[0].mxu0 %v2048
      %v2093 = vpop.f32.mrb[0].mxu0
      %v2094 = vadd.f32 %v1885, %v2093
      %v2095 = vpop.f32.mrb[0].mxu0
      %v2096 = vpop.f32.mrb[0].mxu0
      %v2097 = vadd.f32 %v1886, %v2096
      %v2098 = vpop.f32.mrb[0].mxu0
      %2099 = vmatprep.mubr.bf16.mxu0 0
      %2100 = vmatmul.mubr.bf16.gmra.mrb[0].mxu0 %v2051
      %v2101 = vpop.f32.mrb[0].mxu0
      %v2102 = vadd.f32 %v1887, %v2101
      %v2103 = vpop.f32.mrb[0].mxu0
      %v2104 = vpop.f32.mrb[0].mxu0
      %v2105 = vadd.f32 %v1888, %v2104
      %v2106 = vpop.f32.mrb[0].mxu0
      %2107 = vdwg.mxu0
      %2110 = vrot.lane.b32.xlu0 %v1181, 120
      %v2111 = vpop.permute.xlu0 %2110
      %2112 = vrot.lane.b32.xlu0 %v1182, 120
      %v2113 = vpop.permute.xlu0 %2112
      %2116 = vrot.lane.b32.xlu0 %v1189, 120
      %v2117 = vpop.permute.xlu0 %2116
      %2118 = vrot.lane.b32.xlu0 %v1190, 120
      %v2119 = vpop.permute.xlu0 %2118
      %v2121 = vsel %vm1219, %v2111, 0
      %v2124 = vsel %vm1219, %v2113, 0
      %v2127 = vsel %vm1219, %v2117, 0
      %v2130 = vsel %vm1219, %v2119, 0
      %2132 = vmatprep.subr.bf16.mxu0 0
      %2133 = vmatpush1.bf16.xpose.msra.mxu0 %v2127
      %2134 = vmatprep.subr.bf16.mxu0 0
      %2135 = vmatpush1.bf16.xpose.msra.mxu0 %v2130
      %2136 = vmatprep.subr.bf16.mxu0 0
      %2137 = vmatpush1.bf16.xpose.msra.mxu0 0
      %2138 = vmatprep.subr.bf16.mxu0 0
      %2139 = vmatpush1.bf16.xpose.msra.mxu0 0
      %2140 = vmatprep.subr.bf16.mxu0 0
      %2141 = vmatpush1.bf16.xpose.msra.mxu0 0
      %2142 = vmatprep.subr.bf16.mxu0 0
      %2143 = vmatpush1.bf16.xpose.msra.mxu0 0
      %2144 = vmatprep.subr.bf16.mxu0 0
      %2145 = vmatpush1.bf16.xpose.msra.mxu0 0
      %2146 = vmatprep.subr.bf16.mxu0 0
      %2147 = vmatpush1.bf16.xpose.msra.mxu0 0
      %2148 = vmatprep.subr.bf16.mxu0 0
      %2149 = vmatpush1.bf16.xpose.msra.mxu0 0
      %2150 = vmatprep.subr.bf16.mxu0 0
      %2151 = vmatpush1.bf16.xpose.msra.mxu0 0
      %2152 = vmatprep.subr.bf16.mxu0 0
      %2153 = vmatpush1.bf16.xpose.msra.mxu0 0
      %2154 = vmatprep.subr.bf16.mxu0 0
      %2155 = vmatpush1.bf16.xpose.msra.mxu0 0
      %2156 = vmatprep.subr.bf16.mxu0 0
      %2157 = vmatpush1.bf16.xpose.msra.mxu0 0
      %2158 = vmatprep.subr.bf16.mxu0 0
      %2159 = vmatpush1.bf16.xpose.msra.mxu0 0
      %2160 = vmatprep.subr.bf16.mxu0 0
      %2161 = vmatpush1.bf16.xpose.msra.mxu0 0
      %2162 = vmatprep.subr.bf16.mxu0 0
      %2163 = vmatpush1.bf16.xpose.msra.mxu0 0
      %2164 = vmatprep.mubr.bf16.mxu0 0
      %2165 = vmatmul.mubr.bf16.gmra.mrb[0].mxu0 %v2121
      %v2166 = vpop.f32.mrb[0].mxu0
      %v2167 = vadd.f32 %v1885, %v2166
      %v2168 = vpop.f32.mrb[0].mxu0
      %v2169 = vpop.f32.mrb[0].mxu0
      %v2170 = vadd.f32 %v1886, %v2169
      %v2171 = vpop.f32.mrb[0].mxu0
      %2172 = vmatprep.mubr.bf16.mxu0 0
      %2173 = vmatmul.mubr.bf16.gmra.mrb[0].mxu0 %v2124
      %v2174 = vpop.f32.mrb[0].mxu0
      %v2175 = vadd.f32 %v1887, %v2174
      %v2176 = vpop.f32.mrb[0].mxu0
      %v2177 = vpop.f32.mrb[0].mxu0
      %v2178 = vadd.f32 %v1888, %v2177
      %v2179 = vpop.f32.mrb[0].mxu0
      %2180 = vdwg.mxu0
      %v2181 = vadd.f32 %v1948, %v1199
      %v2182 = vadd.f32 %v1951, %v1200
      %v2183 = vadd.f32 %v1956, %v1201
      %v2184 = vadd.f32 %v1959, %v1202
      %v2185 = vadd.f32 %v2021, %v1203
      %v2186 = vadd.f32 %v2024, %v1204
      %v2187 = vadd.f32 %v2029, %v1205
      %v2188 = vadd.f32 %v2032, %v1206
      %v2189 = vadd.f32 %v2094, %v1207
      %v2190 = vadd.f32 %v2097, %v1208
      %v2191 = vadd.f32 %v2102, %v1209
      %v2192 = vadd.f32 %v2105, %v1210
      %v2193 = vadd.f32 %v2167, %v1211
      %v2194 = vadd.f32 %v2170, %v1212
      %v2195 = vadd.f32 %v2175, %v1213
      %v2196 = vadd.f32 %v2178, %v1214
      %v2197 = vsel %vm527, %v2181, -inf
      %2198 = vmax.xlane.f32.xlu0 %v2197
      %v2199 = vpop.xlane.xlu0 %2198
      %v2200 = vsel %vm527, %v2182, -inf
      %2201 = vmax.xlane.f32.xlu0 %v2200
      %v2202 = vpop.xlane.xlu0 %2201
      %v2203 = vsel %vm527, %v2183, -inf
      %2204 = vmax.xlane.f32.xlu0 %v2203
      %v2205 = vpop.xlane.xlu0 %2204
      %v2206 = vsel %vm527, %v2184, -inf
      %2207 = vmax.xlane.f32.xlu0 %v2206
      %v2208 = vpop.xlane.xlu0 %2207
      %v2209 = vsel %vm527, %v2185, -inf
      %2210 = vmax.xlane.f32.xlu0 %v2209
      %v2211 = vpop.xlane.xlu0 %2210
      %v2212 = vsel %vm527, %v2186, -inf
      %2213 = vmax.xlane.f32.xlu0 %v2212
      %v2214 = vpop.xlane.xlu0 %2213
      %v2215 = vsel %vm527, %v2187, -inf
      %2216 = vmax.xlane.f32.xlu0 %v2215
      %v2217 = vpop.xlane.xlu0 %2216
      %v2218 = vsel %vm527, %v2188, -inf
      %2219 = vmax.xlane.f32.xlu0 %v2218
      %v2220 = vpop.xlane.xlu0 %2219
      %v2221 = vsel %vm527, %v2189, -inf
      %2222 = vmax.xlane.f32.xlu0 %v2221
      %v2223 = vpop.xlane.xlu0 %2222
      %v2224 = vsel %vm527, %v2190, -inf
      %2225 = vmax.xlane.f32.xlu0 %v2224
      %v2226 = vpop.xlane.xlu0 %2225
      %v2227 = vsel %vm527, %v2191, -inf
      %2228 = vmax.xlane.f32.xlu0 %v2227
      %v2229 = vpop.xlane.xlu0 %2228
      %v2230 = vsel %vm527, %v2192, -inf
      %2231 = vmax.xlane.f32.xlu0 %v2230
      %v2232 = vpop.xlane.xlu0 %2231
      %v2233 = vsel %vm527, %v2193, -inf
      %2234 = vmax.xlane.f32.xlu0 %v2233
      %v2235 = vpop.xlane.xlu0 %2234
      %v2236 = vsel %vm527, %v2194, -inf
      %2237 = vmax.xlane.f32.xlu0 %v2236
      %v2238 = vpop.xlane.xlu0 %2237
      %v2239 = vsel %vm527, %v2195, -inf
      %2240 = vmax.xlane.f32.xlu0 %v2239
      %v2241 = vpop.xlane.xlu0 %2240
      %v2242 = vsel %vm527, %v2196, -inf
      %2243 = vmax.xlane.f32.xlu0 %v2242
      %v2244 = vpop.xlane.xlu0 %2243
      %v2245 = vsub.f32 %v2181, %v2199
      %v2246 = vsub.f32 %v2182, %v2202
      %v2247 = vsub.f32 %v2183, %v2205
      %v2248 = vsub.f32 %v2184, %v2208
      %v2249 = vsub.f32 %v2185, %v2211
      %v2250 = vsub.f32 %v2186, %v2214
      %v2251 = vsub.f32 %v2187, %v2217
      %v2252 = vsub.f32 %v2188, %v2220
      %v2253 = vsub.f32 %v2189, %v2223
      %v2254 = vsub.f32 %v2190, %v2226
      %v2255 = vsub.f32 %v2191, %v2229
      %v2256 = vsub.f32 %v2192, %v2232
      %v2257 = vsub.f32 %v2193, %v2235
      %v2258 = vsub.f32 %v2194, %v2238
      %v2259 = vsub.f32 %v2195, %v2241
      %v2260 = vsub.f32 %v2196, %v2244
      %v2261 = vmul.f32 %v2245, 1.442695
      %v2262 = vpow.pop %v2261
      %v2263 = vmul.f32 %v2246, 1.442695
      %v2264 = vpow.pop %v2263
      %v2265 = vmul.f32 %v2247, 1.442695
      %v2266 = vpow.pop %v2265
      %v2267 = vmul.f32 %v2248, 1.442695
      %v2268 = vpow.pop %v2267
      %v2269 = vmul.f32 %v2249, 1.442695
      %v2270 = vpow.pop %v2269
      %v2271 = vmul.f32 %v2250, 1.442695
      %v2272 = vpow.pop %v2271
      %v2273 = vmul.f32 %v2251, 1.442695
      %v2274 = vpow.pop %v2273
      %v2275 = vmul.f32 %v2252, 1.442695
      %v2276 = vpow.pop %v2275
      %v2277 = vmul.f32 %v2253, 1.442695
      %v2278 = vpow.pop %v2277
      %v2279 = vmul.f32 %v2254, 1.442695
      %v2280 = vpow.pop %v2279
      %v2281 = vmul.f32 %v2255, 1.442695
      %v2282 = vpow.pop %v2281
      %v2283 = vmul.f32 %v2256, 1.442695
      %v2284 = vpow.pop %v2283
      %v2285 = vmul.f32 %v2257, 1.442695
      %v2286 = vpow.pop %v2285
      %v2287 = vmul.f32 %v2258, 1.442695
      %v2288 = vpow.pop %v2287
      %v2289 = vmul.f32 %v2259, 1.442695
      %v2290 = vpow.pop %v2289
      %v2291 = vmul.f32 %v2260, 1.442695
      %v2292 = vpow.pop %v2291
      %v2293 = vsel %vm527, %v2262, 0.0
      %2294 = vadd.xlane.f32.xlu0 %v2293
      %v2295 = vpop.xlane.xlu0 %2294
      %v2296 = vsel %vm527, %v2264, 0.0
      %2297 = vadd.xlane.f32.xlu0 %v2296
      %v2298 = vpop.xlane.xlu0 %2297
      %v2299 = vsel %vm527, %v2266, 0.0
      %2300 = vadd.xlane.f32.xlu0 %v2299
      %v2301 = vpop.xlane.xlu0 %2300
      %v2302 = vsel %vm527, %v2268, 0.0
      %2303 = vadd.xlane.f32.xlu0 %v2302
      %v2304 = vpop.xlane.xlu0 %2303
      %v2305 = vsel %vm527, %v2270, 0.0
      %2306 = vadd.xlane.f32.xlu0 %v2305
      %v2307 = vpop.xlane.xlu0 %2306
      %v2308 = vsel %vm527, %v2272, 0.0
      %2309 = vadd.xlane.f32.xlu0 %v2308
      %v2310 = vpop.xlane.xlu0 %2309
      %v2311 = vsel %vm527, %v2274, 0.0
      %2312 = vadd.xlane.f32.xlu0 %v2311
      %v2313 = vpop.xlane.xlu0 %2312
      %v2314 = vsel %vm527, %v2276, 0.0
      %2315 = vadd.xlane.f32.xlu0 %v2314
      %v2316 = vpop.xlane.xlu0 %2315
      %v2317 = vsel %vm527, %v2278, 0.0
      %2318 = vadd.xlane.f32.xlu0 %v2317
      %v2319 = vpop.xlane.xlu0 %2318
      %v2320 = vsel %vm527, %v2280, 0.0
      %2321 = vadd.xlane.f32.xlu0 %v2320
      %v2322 = vpop.xlane.xlu0 %2321
      %v2323 = vsel %vm527, %v2282, 0.0
      %2324 = vadd.xlane.f32.xlu0 %v2323
      %v2325 = vpop.xlane.xlu0 %2324
      %v2326 = vsel %vm527, %v2284, 0.0
      %2327 = vadd.xlane.f32.xlu0 %v2326
      %v2328 = vpop.xlane.xlu0 %2327
      %v2329 = vsel %vm527, %v2286, 0.0
      %2330 = vadd.xlane.f32.xlu0 %v2329
      %v2331 = vpop.xlane.xlu0 %2330
      %v2332 = vsel %vm527, %v2288, 0.0
      %2333 = vadd.xlane.f32.xlu0 %v2332
      %v2334 = vpop.xlane.xlu0 %2333
      %v2335 = vsel %vm527, %v2290, 0.0
      %2336 = vadd.xlane.f32.xlu0 %v2335
      %v2337 = vpop.xlane.xlu0 %2336
      %v2338 = vsel %vm527, %v2292, 0.0
      %2339 = vadd.xlane.f32.xlu0 %v2338
      %v2340 = vpop.xlane.xlu0 %2339
      %v2341 = vrcp.pop %v2295
      %v2342 = vrcp.pop %v2298
      %v2343 = vrcp.pop %v2301
      %v2344 = vrcp.pop %v2304
      %v2345 = vrcp.pop %v2307
      %v2346 = vrcp.pop %v2310
      %v2347 = vrcp.pop %v2313
      %v2348 = vrcp.pop %v2316
      %v2349 = vrcp.pop %v2319
      %v2350 = vrcp.pop %v2322
      %v2351 = vrcp.pop %v2325
      %v2352 = vrcp.pop %v2328
      %v2353 = vrcp.pop %v2331
      %v2354 = vrcp.pop %v2334
      %v2355 = vrcp.pop %v2337
      %v2356 = vrcp.pop %v2340
      %v2357 = vmul.f32 %v2262, %v2341
      %v2358 = vmul.f32 %v2264, %v2342
      %v2359 = vmul.f32 %v2266, %v2343
      %v2360 = vmul.f32 %v2268, %v2344
      %v2361 = vmul.f32 %v2270, %v2345
      %v2362 = vmul.f32 %v2272, %v2346
      %v2363 = vmul.f32 %v2274, %v2347
      %v2364 = vmul.f32 %v2276, %v2348
      %v2365 = vmul.f32 %v2278, %v2349
      %v2366 = vmul.f32 %v2280, %v2350
      %v2367 = vmul.f32 %v2282, %v2351
      %v2368 = vmul.f32 %v2284, %v2352
      %v2369 = vmul.f32 %v2286, %v2353
      %v2370 = vmul.f32 %v2288, %v2354
      %v2371 = vmul.f32 %v2290, %v2355
      %v2372 = vmul.f32 %v2292, %v2356
      %v2373 = vpack.c.bf16 %v2358, %v2357
      %v2374 = vpack.c.bf16 %v2360, %v2359
      %v2375 = vpack.c.bf16 %v2362, %v2361
      %v2376 = vpack.c.bf16 %v2364, %v2363
      %v2377 = vpack.c.bf16 %v2366, %v2365
      %v2378 = vpack.c.bf16 %v2368, %v2367
      %v2379 = vpack.c.bf16 %v2370, %v2369
      %v2380 = vpack.c.bf16 %v2372, %v2371
      %2383 = vrot.lane.b32.xlu0 %v1191, 120
      %v2384 = vpop.permute.xlu0 %2383
      %2385 = vrot.lane.b32.xlu0 %v1192, 120
      %v2386 = vpop.permute.xlu0 %2385
      %v2390 = vsel %vm527, %v2373, 0
      %v2393 = vsel %vm527, %v2374, 0
      %2395 = vmatprep.subr.bf16.mxu0 0
      %2396 = vmatpush1.bf16.msra.mxu0 %v2384
      %2397 = vmatprep.subr.bf16.mxu0 0
      %2398 = vmatpush1.bf16.msra.mxu0 %v2386
      %2399 = vmatprep.subr.bf16.mxu0 0
      %2400 = vmatpush1.bf16.msra.mxu0 0
      %2401 = vmatprep.subr.bf16.mxu0 0
      %2402 = vmatpush1.bf16.msra.mxu0 0
      %2403 = vmatprep.subr.bf16.mxu0 0
      %2404 = vmatpush1.bf16.msra.mxu0 0
      %2405 = vmatprep.subr.bf16.mxu0 0
      %2406 = vmatpush1.bf16.msra.mxu0 0
      %2407 = vmatprep.subr.bf16.mxu0 0
      %2408 = vmatpush1.bf16.msra.mxu0 0
      %2409 = vmatprep.subr.bf16.mxu0 0
      %2410 = vmatpush1.bf16.msra.mxu0 0
      %2411 = vmatprep.subr.bf16.mxu0 0
      %2412 = vmatpush1.bf16.msra.mxu0 0
      %2413 = vmatprep.subr.bf16.mxu0 0
      %2414 = vmatpush1.bf16.msra.mxu0 0
      %2415 = vmatprep.subr.bf16.mxu0 0
      %2416 = vmatpush1.bf16.msra.mxu0 0
      %2417 = vmatprep.subr.bf16.mxu0 0
      %2418 = vmatpush1.bf16.msra.mxu0 0
      %2419 = vmatprep.subr.bf16.mxu0 0
      %2420 = vmatpush1.bf16.msra.mxu0 0
      %2421 = vmatprep.subr.bf16.mxu0 0
      %2422 = vmatpush1.bf16.msra.mxu0 0
      %2423 = vmatprep.subr.bf16.mxu0 0
      %2424 = vmatpush1.bf16.msra.mxu0 0
      %2425 = vmatprep.subr.bf16.mxu0 0
      %2426 = vmatpush1.bf16.msra.mxu0 0
      %2427 = vmatprep.mubr.bf16.mxu0 0
      %2428 = vmatmul.mubr.bf16.gmra.mrb[0].mxu0 %v2390
      %v2429 = vpop.f32.mrb[0].mxu0
      %v2430 = vadd.f32 0.0, %v2429
      %v2431 = vpop.f32.mrb[0].mxu0
      %v2432 = vpop.f32.mrb[0].mxu0
      %v2433 = vadd.f32 0.0, %v2432
      %v2434 = vpop.f32.mrb[0].mxu0
      %2435 = vmatprep.mubr.bf16.mxu0 0
      %2436 = vmatmul.mubr.bf16.gmra.mrb[0].mxu0 %v2393
      %v2437 = vpop.f32.mrb[0].mxu0
      %v2438 = vadd.f32 0.0, %v2437
      %v2439 = vpop.f32.mrb[0].mxu0
      %v2440 = vpop.f32.mrb[0].mxu0
      %v2441 = vadd.f32 0.0, %v2440
      %v2442 = vpop.f32.mrb[0].mxu0
      %2443 = vdwg.mxu0
      %2446 = vrot.lane.b32.xlu0 %v1193, 120
      %v2447 = vpop.permute.xlu0 %2446
      %2448 = vrot.lane.b32.xlu0 %v1194, 120
      %v2449 = vpop.permute.xlu0 %2448
      %v2453 = vsel %vm527, %v2375, 0
      %v2456 = vsel %vm527, %v2376, 0
      %2458 = vmatprep.subr.bf16.mxu0 0
      %2459 = vmatpush1.bf16.msra.mxu0 %v2447
      %2460 = vmatprep.subr.bf16.mxu0 0
      %2461 = vmatpush1.bf16.msra.mxu0 %v2449
      %2462 = vmatprep.subr.bf16.mxu0 0
      %2463 = vmatpush1.bf16.msra.mxu0 0
      %2464 = vmatprep.subr.bf16.mxu0 0
      %2465 = vmatpush1.bf16.msra.mxu0 0
      %2466 = vmatprep.subr.bf16.mxu0 0
      %2467 = vmatpush1.bf16.msra.mxu0 0
      %2468 = vmatprep.subr.bf16.mxu0 0
      %2469 = vmatpush1.bf16.msra.mxu0 0
      %2470 = vmatprep.subr.bf16.mxu0 0
      %2471 = vmatpush1.bf16.msra.mxu0 0
      %2472 = vmatprep.subr.bf16.mxu0 0
      %2473 = vmatpush1.bf16.msra.mxu0 0
      %2474 = vmatprep.subr.bf16.mxu0 0
      %2475 = vmatpush1.bf16.msra.mxu0 0
      %2476 = vmatprep.subr.bf16.mxu0 0
      %2477 = vmatpush1.bf16.msra.mxu0 0
      %2478 = vmatprep.subr.bf16.mxu0 0
      %2479 = vmatpush1.bf16.msra.mxu0 0
      %2480 = vmatprep.subr.bf16.mxu0 0
      %2481 = vmatpush1.bf16.msra.mxu0 0
      %2482 = vmatprep.subr.bf16.mxu0 0
      %2483 = vmatpush1.bf16.msra.mxu0 0
      %2484 = vmatprep.subr.bf16.mxu0 0
      %2485 = vmatpush1.bf16.msra.mxu0 0
      %2486 = vmatprep.subr.bf16.mxu0 0
      %2487 = vmatpush1.bf16.msra.mxu0 0
      %2488 = vmatprep.subr.bf16.mxu0 0
      %2489 = vmatpush1.bf16.msra.mxu0 0
      %2490 = vmatprep.mubr.bf16.mxu0 0
      %2491 = vmatmul.mubr.bf16.gmra.mrb[0].mxu0 %v2453
      %v2492 = vpop.f32.mrb[0].mxu0
      %v2493 = vadd.f32 0.0, %v2492
      %v2494 = vpop.f32.mrb[0].mxu0
      %v2495 = vpop.f32.mrb[0].mxu0
      %v2496 = vadd.f32 0.0, %v2495
      %v2497 = vpop.f32.mrb[0].mxu0
      %2498 = vmatprep.mubr.bf16.mxu0 0
      %2499 = vmatmul.mubr.bf16.gmra.mrb[0].mxu0 %v2456
      %v2500 = vpop.f32.mrb[0].mxu0
      %v2501 = vadd.f32 0.0, %v2500
      %v2502 = vpop.f32.mrb[0].mxu0
      %v2503 = vpop.f32.mrb[0].mxu0
      %v2504 = vadd.f32 0.0, %v2503
      %v2505 = vpop.f32.mrb[0].mxu0
      %2506 = vdwg.mxu0
      %2509 = vrot.lane.b32.xlu0 %v1195, 120
      %v2510 = vpop.permute.xlu0 %2509
      %2511 = vrot.lane.b32.xlu0 %v1196, 120
      %v2512 = vpop.permute.xlu0 %2511
      %v2516 = vsel %vm527, %v2377, 0
      %v2519 = vsel %vm527, %v2378, 0
      %2521 = vmatprep.subr.bf16.mxu0 0
      %2522 = vmatpush1.bf16.msra.mxu0 %v2510
      %2523 = vmatprep.subr.bf16.mxu0 0
      %2524 = vmatpush1.bf16.msra.mxu0 %v2512
      %2525 = vmatprep.subr.bf16.mxu0 0
      %2526 = vmatpush1.bf16.msra.mxu0 0
      %2527 = vmatprep.subr.bf16.mxu0 0
      %2528 = vmatpush1.bf16.msra.mxu0 0
      %2529 = vmatprep.subr.bf16.mxu0 0
      %2530 = vmatpush1.bf16.msra.mxu0 0
      %2531 = vmatprep.subr.bf16.mxu0 0
      %2532 = vmatpush1.bf16.msra.mxu0 0
      %2533 = vmatprep.subr.bf16.mxu0 0
      %2534 = vmatpush1.bf16.msra.mxu0 0
      %2535 = vmatprep.subr.bf16.mxu0 0
      %2536 = vmatpush1.bf16.msra.mxu0 0
      %2537 = vmatprep.subr.bf16.mxu0 0
      %2538 = vmatpush1.bf16.msra.mxu0 0
      %2539 = vmatprep.subr.bf16.mxu0 0
      %2540 = vmatpush1.bf16.msra.mxu0 0
      %2541 = vmatprep.subr.bf16.mxu0 0
      %2542 = vmatpush1.bf16.msra.mxu0 0
      %2543 = vmatprep.subr.bf16.mxu0 0
      %2544 = vmatpush1.bf16.msra.mxu0 0
      %2545 = vmatprep.subr.bf16.mxu0 0
      %2546 = vmatpush1.bf16.msra.mxu0 0
      %2547 = vmatprep.subr.bf16.mxu0 0
      %2548 = vmatpush1.bf16.msra.mxu0 0
      %2549 = vmatprep.subr.bf16.mxu0 0
      %2550 = vmatpush1.bf16.msra.mxu0 0
      %2551 = vmatprep.subr.bf16.mxu0 0
      %2552 = vmatpush1.bf16.msra.mxu0 0
      %2553 = vmatprep.mubr.bf16.mxu0 0
      %2554 = vmatmul.mubr.bf16.gmra.mrb[0].mxu0 %v2516
      %v2555 = vpop.f32.mrb[0].mxu0
      %v2556 = vadd.f32 0.0, %v2555
      %v2557 = vpop.f32.mrb[0].mxu0
      %v2558 = vpop.f32.mrb[0].mxu0
      %v2559 = vadd.f32 0.0, %v2558
      %v2560 = vpop.f32.mrb[0].mxu0
      %2561 = vmatprep.mubr.bf16.mxu0 0
      %2562 = vmatmul.mubr.bf16.gmra.mrb[0].mxu0 %v2519
      %v2563 = vpop.f32.mrb[0].mxu0
      %v2564 = vadd.f32 0.0, %v2563
      %v2565 = vpop.f32.mrb[0].mxu0
      %v2566 = vpop.f32.mrb[0].mxu0
      %v2567 = vadd.f32 0.0, %v2566
      %v2568 = vpop.f32.mrb[0].mxu0
      %2569 = vdwg.mxu0
      %2572 = vrot.lane.b32.xlu0 %v1197, 120
      %v2573 = vpop.permute.xlu0 %2572
      %2574 = vrot.lane.b32.xlu0 %v1198, 120
      %v2575 = vpop.permute.xlu0 %2574
      %v2579 = vsel %vm527, %v2379, 0
      %v2582 = vsel %vm527, %v2380, 0
      %2584 = vmatprep.subr.bf16.mxu0 0
      %2585 = vmatpush1.bf16.msra.mxu0 %v2573
      %2586 = vmatprep.subr.bf16.mxu0 0
      %2587 = vmatpush1.bf16.msra.mxu0 %v2575
      %2588 = vmatprep.subr.bf16.mxu0 0
      %2589 = vmatpush1.bf16.msra.mxu0 0
      %2590 = vmatprep.subr.bf16.mxu0 0
      %2591 = vmatpush1.bf16.msra.mxu0 0
      %2592 = vmatprep.subr.bf16.mxu0 0
      %2593 = vmatpush1.bf16.msra.mxu0 0
      %2594 = vmatprep.subr.bf16.mxu0 0
      %2595 = vmatpush1.bf16.msra.mxu0 0
      %2596 = vmatprep.subr.bf16.mxu0 0
      %2597 = vmatpush1.bf16.msra.mxu0 0
      %2598 = vmatprep.subr.bf16.mxu0 0
      %2599 = vmatpush1.bf16.msra.mxu0 0
      %2600 = vmatprep.subr.bf16.mxu0 0
      %2601 = vmatpush1.bf16.msra.mxu0 0
      %2602 = vmatprep.subr.bf16.mxu0 0
      %2603 = vmatpush1.bf16.msra.mxu0 0
      %2604 = vmatprep.subr.bf16.mxu0 0
      %2605 = vmatpush1.bf16.msra.mxu0 0
      %2606 = vmatprep.subr.bf16.mxu0 0
      %2607 = vmatpush1.bf16.msra.mxu0 0
      %2608 = vmatprep.subr.bf16.mxu0 0
      %2609 = vmatpush1.bf16.msra.mxu0 0
      %2610 = vmatprep.subr.bf16.mxu0 0
      %2611 = vmatpush1.bf16.msra.mxu0 0
      %2612 = vmatprep.subr.bf16.mxu0 0
      %2613 = vmatpush1.bf16.msra.mxu0 0
      %2614 = vmatprep.subr.bf16.mxu0 0
      %2615 = vmatpush1.bf16.msra.mxu0 0
      %2616 = vmatprep.mubr.bf16.mxu0 0
      %2617 = vmatmul.mubr.bf16.gmra.mrb[0].mxu0 %v2579
      %v2618 = vpop.f32.mrb[0].mxu0
      %v2619 = vadd.f32 0.0, %v2618
      %v2620 = vpop.f32.mrb[0].mxu0
      %v2621 = vpop.f32.mrb[0].mxu0
      %v2622 = vadd.f32 0.0, %v2621
      %v2623 = vpop.f32.mrb[0].mxu0
      %2624 = vmatprep.mubr.bf16.mxu0 0
      %2625 = vmatmul.mubr.bf16.gmra.mrb[0].mxu0 %v2582
      %v2626 = vpop.f32.mrb[0].mxu0
      %v2627 = vadd.f32 0.0, %v2626
      %v2628 = vpop.f32.mrb[0].mxu0
      %v2629 = vpop.f32.mrb[0].mxu0
      %v2630 = vadd.f32 0.0, %v2629
      %v2631 = vpop.f32.mrb[0].mxu0
      %2632 = vdwg.mxu0
      %s2633 = scalar_lea.vmem %s11, 64
      %v2634 = vld [vmem:[%s2633] sm:$0xff]
      %v2635 = vld [vmem:[%s2633 + $0x8] sm:$0xff]
      %v2636 = vld [vmem:[%s2633 + $0x10] sm:$0xff]
      %v2637 = vld [vmem:[%s2633 + $0x18] sm:$0xff]
      %2638 = vrot.lane.b32.xlu0 %v1175, 112
      %v2639 = vpop.permute.xlu0 %2638
      %2640 = vrot.lane.b32.xlu0 %v1176, 112
      %v2641 = vpop.permute.xlu0 %2640
      %2642 = vrot.lane.b32.xlu0 %v1183, 112
      %v2643 = vpop.permute.xlu0 %2642
      %2644 = vrot.lane.b32.xlu0 %v1184, 112
      %v2645 = vpop.permute.xlu0 %2644
      %v2647 = vsel %vm1219, %v2639, 0
      %v2650 = vsel %vm1219, %v2641, 0
      %v2653 = vsel %vm1219, %v2643, 0
      %v2656 = vsel %vm1219, %v2645, 0
      %2658 = vmatprep.subr.bf16.mxu0 0
      %2659 = vmatpush1.bf16.xpose.msra.mxu0 %v2653
      %2660 = vmatprep.subr.bf16.mxu0 0
      %2661 = vmatpush1.bf16.xpose.msra.mxu0 %v2656
      %2662 = vmatprep.subr.bf16.mxu0 0
      %2663 = vmatpush1.bf16.xpose.msra.mxu0 0
      %2664 = vmatprep.subr.bf16.mxu0 0
      %2665 = vmatpush1.bf16.xpose.msra.mxu0 0
      %2666 = vmatprep.subr.bf16.mxu0 0
      %2667 = vmatpush1.bf16.xpose.msra.mxu0 0
      %2668 = vmatprep.subr.bf16.mxu0 0
      %2669 = vmatpush1.bf16.xpose.msra.mxu0 0
      %2670 = vmatprep.subr.bf16.mxu0 0
      %2671 = vmatpush1.bf16.xpose.msra.mxu0 0
      %2672 = vmatprep.subr.bf16.mxu0 0
      %2673 = vmatpush1.bf16.xpose.msra.mxu0 0
      %2674 = vmatprep.subr.bf16.mxu0 0
      %2675 = vmatpush1.bf16.xpose.msra.mxu0 0
      %2676 = vmatprep.subr.bf16.mxu0 0
      %2677 = vmatpush1.bf16.xpose.msra.mxu0 0
      %2678 = vmatprep.subr.bf16.mxu0 0
      %2679 = vmatpush1.bf16.xpose.msra.mxu0 0
      %2680 = vmatprep.subr.bf16.mxu0 0
      %2681 = vmatpush1.bf16.xpose.msra.mxu0 0
      %2682 = vmatprep.subr.bf16.mxu0 0
      %2683 = vmatpush1.bf16.xpose.msra.mxu0 0
      %2684 = vmatprep.subr.bf16.mxu0 0
      %2685 = vmatpush1.bf16.xpose.msra.mxu0 0
      %2686 = vmatprep.subr.bf16.mxu0 0
      %2687 = vmatpush1.bf16.xpose.msra.mxu0 0
      %2688 = vmatprep.subr.bf16.mxu0 0
      %2689 = vmatpush1.bf16.xpose.msra.mxu0 0
      %2690 = vmatprep.mubr.bf16.mxu0 0
      %2691 = vmatmul.mubr.bf16.gmra.mrb[0].mxu0 %v2647
      %v2692 = vpop.f32.mrb[0].mxu0
      %v2693 = vadd.f32 %v2634, %v2692
      %v2694 = vpop.f32.mrb[0].mxu0
      %v2695 = vpop.f32.mrb[0].mxu0
      %v2696 = vadd.f32 %v2635, %v2695
      %v2697 = vpop.f32.mrb[0].mxu0
      %2698 = vmatprep.mubr.bf16.mxu0 0
      %2699 = vmatmul.mubr.bf16.gmra.mrb[0].mxu0 %v2650
      %v2700 = vpop.f32.mrb[0].mxu0
      %v2701 = vadd.f32 %v2636, %v2700
      %v2702 = vpop.f32.mrb[0].mxu0
      %v2703 = vpop.f32.mrb[0].mxu0
      %v2704 = vadd.f32 %v2637, %v2703
      %v2705 = vpop.f32.mrb[0].mxu0
      %2706 = vdwg.mxu0
      %2707 = vrot.lane.b32.xlu0 %v1177, 112
      %v2708 = vpop.permute.xlu0 %2707
      %2709 = vrot.lane.b32.xlu0 %v1178, 112
      %v2710 = vpop.permute.xlu0 %2709
      %2711 = vrot.lane.b32.xlu0 %v1185, 112
      %v2712 = vpop.permute.xlu0 %2711
      %2713 = vrot.lane.b32.xlu0 %v1186, 112
      %v2714 = vpop.permute.xlu0 %2713
      %v2716 = vsel %vm1219, %v2708, 0
      %v2719 = vsel %vm1219, %v2710, 0
      %v2722 = vsel %vm1219, %v2712, 0
      %v2725 = vsel %vm1219, %v2714, 0
      %2727 = vmatprep.subr.bf16.mxu0 0
      %2728 = vmatpush1.bf16.xpose.msra.mxu0 %v2722
      %2729 = vmatprep.subr.bf16.mxu0 0
      %2730 = vmatpush1.bf16.xpose.msra.mxu0 %v2725
      %2731 = vmatprep.subr.bf16.mxu0 0
      %2732 = vmatpush1.bf16.xpose.msra.mxu0 0
      %2733 = vmatprep.subr.bf16.mxu0 0
      %2734 = vmatpush1.bf16.xpose.msra.mxu0 0
      %2735 = vmatprep.subr.bf16.mxu0 0
      %2736 = vmatpush1.bf16.xpose.msra.mxu0 0
      %2737 = vmatprep.subr.bf16.mxu0 0
      %2738 = vmatpush1.bf16.xpose.msra.mxu0 0
      %2739 = vmatprep.subr.bf16.mxu0 0
      %2740 = vmatpush1.bf16.xpose.msra.mxu0 0
      %2741 = vmatprep.subr.bf16.mxu0 0
      %2742 = vmatpush1.bf16.xpose.msra.mxu0 0
      %2743 = vmatprep.subr.bf16.mxu0 0
      %2744 = vmatpush1.bf16.xpose.msra.mxu0 0
      %2745 = vmatprep.subr.bf16.mxu0 0
      %2746 = vmatpush1.bf16.xpose.msra.mxu0 0
      %2747 = vmatprep.subr.bf16.mxu0 0
      %2748 = vmatpush1.bf16.xpose.msra.mxu0 0
      %2749 = vmatprep.subr.bf16.mxu0 0
      %2750 = vmatpush1.bf16.xpose.msra.mxu0 0
      %2751 = vmatprep.subr.bf16.mxu0 0
      %2752 = vmatpush1.bf16.xpose.msra.mxu0 0
      %2753 = vmatprep.subr.bf16.mxu0 0
      %2754 = vmatpush1.bf16.xpose.msra.mxu0 0
      %2755 = vmatprep.subr.bf16.mxu0 0
      %2756 = vmatpush1.bf16.xpose.msra.mxu0 0
      %2757 = vmatprep.subr.bf16.mxu0 0
      %2758 = vmatpush1.bf16.xpose.msra.mxu0 0
      %2759 = vmatprep.mubr.bf16.mxu0 0
      %2760 = vmatmul.mubr.bf16.gmra.mrb[0].mxu0 %v2716
      %v2761 = vpop.f32.mrb[0].mxu0
      %v2762 = vadd.f32 %v2634, %v2761
      %v2763 = vpop.f32.mrb[0].mxu0
      %v2764 = vpop.f32.mrb[0].mxu0
      %v2765 = vadd.f32 %v2635, %v2764
      %v2766 = vpop.f32.mrb[0].mxu0
      %2767 = vmatprep.mubr.bf16.mxu0 0
      %2768 = vmatmul.mubr.bf16.gmra.mrb[0].mxu0 %v2719
      %v2769 = vpop.f32.mrb[0].mxu0
      %v2770 = vadd.f32 %v2636, %v2769
      %v2771 = vpop.f32.mrb[0].mxu0
      %v2772 = vpop.f32.mrb[0].mxu0
      %v2773 = vadd.f32 %v2637, %v2772
      %v2774 = vpop.f32.mrb[0].mxu0
      %2775 = vdwg.mxu0
      %2776 = vrot.lane.b32.xlu0 %v1179, 112
      %v2777 = vpop.permute.xlu0 %2776
      %2778 = vrot.lane.b32.xlu0 %v1180, 112
      %v2779 = vpop.permute.xlu0 %2778
      %2780 = vrot.lane.b32.xlu0 %v1187, 112
      %v2781 = vpop.permute.xlu0 %2780
      %2782 = vrot.lane.b32.xlu0 %v1188, 112
      %v2783 = vpop.permute.xlu0 %2782
      %v2785 = vsel %vm1219, %v2777, 0
      %v2788 = vsel %vm1219, %v2779, 0
      %v2791 = vsel %vm1219, %v2781, 0
      %v2794 = vsel %vm1219, %v2783, 0
      %2796 = vmatprep.subr.bf16.mxu0 0
      %2797 = vmatpush1.bf16.xpose.msra.mxu0 %v2791
      %2798 = vmatprep.subr.bf16.mxu0 0
      %2799 = vmatpush1.bf16.xpose.msra.mxu0 %v2794
      %2800 = vmatprep.subr.bf16.mxu0 0
      %2801 = vmatpush1.bf16.xpose.msra.mxu0 0
      %2802 = vmatprep.subr.bf16.mxu0 0
      %2803 = vmatpush1.bf16.xpose.msra.mxu0 0
      %2804 = vmatprep.subr.bf16.mxu0 0
      %2805 = vmatpush1.bf16.xpose.msra.mxu0 0
      %2806 = vmatprep.subr.bf16.mxu0 0
      %2807 = vmatpush1.bf16.xpose.msra.mxu0 0
      %2808 = vmatprep.subr.bf16.mxu0 0
      %2809 = vmatpush1.bf16.xpose.msra.mxu0 0
      %2810 = vmatprep.subr.bf16.mxu0 0
      %2811 = vmatpush1.bf16.xpose.msra.mxu0 0
      %2812 = vmatprep.subr.bf16.mxu0 0
      %2813 = vmatpush1.bf16.xpose.msra.mxu0 0
      %2814 = vmatprep.subr.bf16.mxu0 0
      %2815 = vmatpush1.bf16.xpose.msra.mxu0 0
      %2816 = vmatprep.subr.bf16.mxu0 0
      %2817 = vmatpush1.bf16.xpose.msra.mxu0 0
      %2818 = vmatprep.subr.bf16.mxu0 0
      %2819 = vmatpush1.bf16.xpose.msra.mxu0 0
      %2820 = vmatprep.subr.bf16.mxu0 0
      %2821 = vmatpush1.bf16.xpose.msra.mxu0 0
      %2822 = vmatprep.subr.bf16.mxu0 0
      %2823 = vmatpush1.bf16.xpose.msra.mxu0 0
      %2824 = vmatprep.subr.bf16.mxu0 0
      %2825 = vmatpush1.bf16.xpose.msra.mxu0 0
      %2826 = vmatprep.subr.bf16.mxu0 0
      %2827 = vmatpush1.bf16.xpose.msra.mxu0 0
      %2828 = vmatprep.mubr.bf16.mxu0 0
      %2829 = vmatmul.mubr.bf16.gmra.mrb[0].mxu0 %v2785
      %v2830 = vpop.f32.mrb[0].mxu0
      %v2831 = vadd.f32 %v2634, %v2830
      %v2832 = vpop.f32.mrb[0].mxu0
      %v2833 = vpop.f32.mrb[0].mxu0
      %v2834 = vadd.f32 %v2635, %v2833
      %v2835 = vpop.f32.mrb[0].mxu0
      %2836 = vmatprep.mubr.bf16.mxu0 0
      %2837 = vmatmul.mubr.bf16.gmra.mrb[0].mxu0 %v2788
      %v2838 = vpop.f32.mrb[0].mxu0
      %v2839 = vadd.f32 %v2636, %v2838
      %v2840 = vpop.f32.mrb[0].mxu0
      %v2841 = vpop.f32.mrb[0].mxu0
      %v2842 = vadd.f32 %v2637, %v2841
      %v2843 = vpop.f32.mrb[0].mxu0
      %2844 = vdwg.mxu0
      %2845 = vrot.lane.b32.xlu0 %v1181, 112
      %v2846 = vpop.permute.xlu0 %2845
      %2847 = vrot.lane.b32.xlu0 %v1182, 112
      %v2848 = vpop.permute.xlu0 %2847
      %2849 = vrot.lane.b32.xlu0 %v1189, 112
      %v2850 = vpop.permute.xlu0 %2849
      %2851 = vrot.lane.b32.xlu0 %v1190, 112
      %v2852 = vpop.permute.xlu0 %2851
      %v2854 = vsel %vm1219, %v2846, 0
      %v2857 = vsel %vm1219, %v2848, 0
      %v2860 = vsel %vm1219, %v2850, 0
      %v2863 = vsel %vm1219, %v2852, 0
      %2865 = vmatprep.subr.bf16.mxu0 0
      %2866 = vmatpush1.bf16.xpose.msra.mxu0 %v2860
      %2867 = vmatprep.subr.bf16.mxu0 0
      %2868 = vmatpush1.bf16.xpose.msra.mxu0 %v2863
      %2869 = vmatprep.subr.bf16.mxu0 0
      %2870 = vmatpush1.bf16.xpose.msra.mxu0 0
      %2871 = vmatprep.subr.bf16.mxu0 0
      %2872 = vmatpush1.bf16.xpose.msra.mxu0 0
      %2873 = vmatprep.subr.bf16.mxu0 0
      %2874 = vmatpush1.bf16.xpose.msra.mxu0 0
      %2875 = vmatprep.subr.bf16.mxu0 0
      %2876 = vmatpush1.bf16.xpose.msra.mxu0 0
      %2877 = vmatprep.subr.bf16.mxu0 0
      %2878 = vmatpush1.bf16.xpose.msra.mxu0 0
      %2879 = vmatprep.subr.bf16.mxu0 0
      %2880 = vmatpush1.bf16.xpose.msra.mxu0 0
      %2881 = vmatprep.subr.bf16.mxu0 0
      %2882 = vmatpush1.bf16.xpose.msra.mxu0 0
      %2883 = vmatprep.subr.bf16.mxu0 0
      %2884 = vmatpush1.bf16.xpose.msra.mxu0 0
      %2885 = vmatprep.subr.bf16.mxu0 0
      %2886 = vmatpush1.bf16.xpose.msra.mxu0 0
      %2887 = vmatprep.subr.bf16.mxu0 0
      %2888 = vmatpush1.bf16.xpose.msra.mxu0 0
      %2889 = vmatprep.subr.bf16.mxu0 0
      %2890 = vmatpush1.bf16.xpose.msra.mxu0 0
      %2891 = vmatprep.subr.bf16.mxu0 0
      %2892 = vmatpush1.bf16.xpose.msra.mxu0 0
      %2893 = vmatprep.subr.bf16.mxu0 0
      %2894 = vmatpush1.bf16.xpose.msra.mxu0 0
      %2895 = vmatprep.subr.bf16.mxu0 0
      %2896 = vmatpush1.bf16.xpose.msra.mxu0 0
      %2897 = vmatprep.mubr.bf16.mxu0 0
      %2898 = vmatmul.mubr.bf16.gmra.mrb[0].mxu0 %v2854
      %v2899 = vpop.f32.mrb[0].mxu0
      %v2900 = vadd.f32 %v2634, %v2899
      %v2901 = vpop.f32.mrb[0].mxu0
      %v2902 = vpop.f32.mrb[0].mxu0
      %v2903 = vadd.f32 %v2635, %v2902
      %v2904 = vpop.f32.mrb[0].mxu0
      %2905 = vmatprep.mubr.bf16.mxu0 0
      %2906 = vmatmul.mubr.bf16.gmra.mrb[0].mxu0 %v2857
      %v2907 = vpop.f32.mrb[0].mxu0
      %v2908 = vadd.f32 %v2636, %v2907
      %v2909 = vpop.f32.mrb[0].mxu0
      %v2910 = vpop.f32.mrb[0].mxu0
      %v2911 = vadd.f32 %v2637, %v2910
      %v2912 = vpop.f32.mrb[0].mxu0
      %2913 = vdwg.mxu0
      %v2914 = vadd.f32 %v2693, %v1199
      %v2915 = vadd.f32 %v2696, %v1200
      %v2916 = vadd.f32 %v2701, %v1201
      %v2917 = vadd.f32 %v2704, %v1202
      %v2918 = vadd.f32 %v2762, %v1203
      %v2919 = vadd.f32 %v2765, %v1204
      %v2920 = vadd.f32 %v2770, %v1205
      %v2921 = vadd.f32 %v2773, %v1206
      %v2922 = vadd.f32 %v2831, %v1207
      %v2923 = vadd.f32 %v2834, %v1208
      %v2924 = vadd.f32 %v2839, %v1209
      %v2925 = vadd.f32 %v2842, %v1210
      %v2926 = vadd.f32 %v2900, %v1211
      %v2927 = vadd.f32 %v2903, %v1212
      %v2928 = vadd.f32 %v2908, %v1213
      %v2929 = vadd.f32 %v2911, %v1214
      %v2930 = vsel %vm527, %v2914, -inf
      %2931 = vmax.xlane.f32.xlu0 %v2930
      %v2932 = vpop.xlane.xlu0 %2931
      %v2933 = vsel %vm527, %v2915, -inf
      %2934 = vmax.xlane.f32.xlu0 %v2933
      %v2935 = vpop.xlane.xlu0 %2934
      %v2936 = vsel %vm527, %v2916, -inf
      %2937 = vmax.xlane.f32.xlu0 %v2936
      %v2938 = vpop.xlane.xlu0 %2937
      %v2939 = vsel %vm527, %v2917, -inf
      %2940 = vmax.xlane.f32.xlu0 %v2939
      %v2941 = vpop.xlane.xlu0 %2940
      %v2942 = vsel %vm527, %v2918, -inf
      %2943 = vmax.xlane.f32.xlu0 %v2942
      %v2944 = vpop.xlane.xlu0 %2943
      %v2945 = vsel %vm527, %v2919, -inf
      %2946 = vmax.xlane.f32.xlu0 %v2945
      %v2947 = vpop.xlane.xlu0 %2946
      %v2948 = vsel %vm527, %v2920, -inf
      %2949 = vmax.xlane.f32.xlu0 %v2948
      %v2950 = vpop.xlane.xlu0 %2949
      %v2951 = vsel %vm527, %v2921, -inf
      %2952 = vmax.xlane.f32.xlu0 %v2951
      %v2953 = vpop.xlane.xlu0 %2952
      %v2954 = vsel %vm527, %v2922, -inf
      %2955 = vmax.xlane.f32.xlu0 %v2954
      %v2956 = vpop.xlane.xlu0 %2955
      %v2957 = vsel %vm527, %v2923, -inf
      %2958 = vmax.xlane.f32.xlu0 %v2957
      %v2959 = vpop.xlane.xlu0 %2958
      %v2960 = vsel %vm527, %v2924, -inf
      %2961 = vmax.xlane.f32.xlu0 %v2960
      %v2962 = vpop.xlane.xlu0 %2961
      %v2963 = vsel %vm527, %v2925, -inf
      %2964 = vmax.xlane.f32.xlu0 %v2963
      %v2965 = vpop.xlane.xlu0 %2964
      %v2966 = vsel %vm527, %v2926, -inf
      %2967 = vmax.xlane.f32.xlu0 %v2966
      %v2968 = vpop.xlane.xlu0 %2967
      %v2969 = vsel %vm527, %v2927, -inf
      %2970 = vmax.xlane.f32.xlu0 %v2969
      %v2971 = vpop.xlane.xlu0 %2970
      %v2972 = vsel %vm527, %v2928, -inf
      %2973 = vmax.xlane.f32.xlu0 %v2972
      %v2974 = vpop.xlane.xlu0 %2973
      %v2975 = vsel %vm527, %v2929, -inf
      %2976 = vmax.xlane.f32.xlu0 %v2975
      %v2977 = vpop.xlane.xlu0 %2976
      %v2978 = vsub.f32 %v2914, %v2932
      %v2979 = vsub.f32 %v2915, %v2935
      %v2980 = vsub.f32 %v2916, %v2938
      %v2981 = vsub.f32 %v2917, %v2941
      %v2982 = vsub.f32 %v2918, %v2944
      %v2983 = vsub.f32 %v2919, %v2947
      %v2984 = vsub.f32 %v2920, %v2950
      %v2985 = vsub.f32 %v2921, %v2953
      %v2986 = vsub.f32 %v2922, %v2956
      %v2987 = vsub.f32 %v2923, %v2959
      %v2988 = vsub.f32 %v2924, %v2962
      %v2989 = vsub.f32 %v2925, %v2965
      %v2990 = vsub.f32 %v2926, %v2968
      %v2991 = vsub.f32 %v2927, %v2971
      %v2992 = vsub.f32 %v2928, %v2974
      %v2993 = vsub.f32 %v2929, %v2977
      %v2994 = vmul.f32 %v2978, 1.442695
      %v2995 = vpow.pop %v2994
      %v2996 = vmul.f32 %v2979, 1.442695
      %v2997 = vpow.pop %v2996
      %v2998 = vmul.f32 %v2980, 1.442695
      %v2999 = vpow.pop %v2998
      %v3000 = vmul.f32 %v2981, 1.442695
      %v3001 = vpow.pop %v3000
      %v3002 = vmul.f32 %v2982, 1.442695
      %v3003 = vpow.pop %v3002
      %v3004 = vmul.f32 %v2983, 1.442695
      %v3005 = vpow.pop %v3004
      %v3006 = vmul.f32 %v2984, 1.442695
      %v3007 = vpow.pop %v3006
      %v3008 = vmul.f32 %v2985, 1.442695
      %v3009 = vpow.pop %v3008
      %v3010 = vmul.f32 %v2986, 1.442695
      %v3011 = vpow.pop %v3010
      %v3012 = vmul.f32 %v2987, 1.442695
      %v3013 = vpow.pop %v3012
      %v3014 = vmul.f32 %v2988, 1.442695
      %v3015 = vpow.pop %v3014
      %v3016 = vmul.f32 %v2989, 1.442695
      %v3017 = vpow.pop %v3016
      %v3018 = vmul.f32 %v2990, 1.442695
      %v3019 = vpow.pop %v3018
      %v3020 = vmul.f32 %v2991, 1.442695
      %v3021 = vpow.pop %v3020
      %v3022 = vmul.f32 %v2992, 1.442695
      %v3023 = vpow.pop %v3022
      %v3024 = vmul.f32 %v2993, 1.442695
      %v3025 = vpow.pop %v3024
      %v3026 = vsel %vm527, %v2995, 0.0
      %3027 = vadd.xlane.f32.xlu0 %v3026
      %v3028 = vpop.xlane.xlu0 %3027
      %v3029 = vsel %vm527, %v2997, 0.0
      %3030 = vadd.xlane.f32.xlu0 %v3029
      %v3031 = vpop.xlane.xlu0 %3030
      %v3032 = vsel %vm527, %v2999, 0.0
      %3033 = vadd.xlane.f32.xlu0 %v3032
      %v3034 = vpop.xlane.xlu0 %3033
      %v3035 = vsel %vm527, %v3001, 0.0
      %3036 = vadd.xlane.f32.xlu0 %v3035
      %v3037 = vpop.xlane.xlu0 %3036
      %v3038 = vsel %vm527, %v3003, 0.0
      %3039 = vadd.xlane.f32.xlu0 %v3038
      %v3040 = vpop.xlane.xlu0 %3039
      %v3041 = vsel %vm527, %v3005, 0.0
      %3042 = vadd.xlane.f32.xlu0 %v3041
      %v3043 = vpop.xlane.xlu0 %3042
      %v3044 = vsel %vm527, %v3007, 0.0
      %3045 = vadd.xlane.f32.xlu0 %v3044
      %v3046 = vpop.xlane.xlu0 %3045
      %v3047 = vsel %vm527, %v3009, 0.0
      %3048 = vadd.xlane.f32.xlu0 %v3047
      %v3049 = vpop.xlane.xlu0 %3048
      %v3050 = vsel %vm527, %v3011, 0.0
      %3051 = vadd.xlane.f32.xlu0 %v3050
      %v3052 = vpop.xlane.xlu0 %3051
      %v3053 = vsel %vm527, %v3013, 0.0
      %3054 = vadd.xlane.f32.xlu0 %v3053
      %v3055 = vpop.xlane.xlu0 %3054
      %v3056 = vsel %vm527, %v3015, 0.0
      %3057 = vadd.xlane.f32.xlu0 %v3056
      %v3058 = vpop.xlane.xlu0 %3057
      %v3059 = vsel %vm527, %v3017, 0.0
      %3060 = vadd.xlane.f32.xlu0 %v3059
      %v3061 = vpop.xlane.xlu0 %3060
      %v3062 = vsel %vm527, %v3019, 0.0
      %3063 = vadd.xlane.f32.xlu0 %v3062
      %v3064 = vpop.xlane.xlu0 %3063
      %v3065 = vsel %vm527, %v3021, 0.0
      %3066 = vadd.xlane.f32.xlu0 %v3065
      %v3067 = vpop.xlane.xlu0 %3066
      %v3068 = vsel %vm527, %v3023, 0.0
      %3069 = vadd.xlane.f32.xlu0 %v3068
      %v3070 = vpop.xlane.xlu0 %3069
      %v3071 = vsel %vm527, %v3025, 0.0
      %3072 = vadd.xlane.f32.xlu0 %v3071
      %v3073 = vpop.xlane.xlu0 %3072
      %v3074 = vrcp.pop %v3028
      %v3075 = vrcp.pop %v3031
      %v3076 = vrcp.pop %v3034
      %v3077 = vrcp.pop %v3037
      %v3078 = vrcp.pop %v3040
      %v3079 = vrcp.pop %v3043
      %v3080 = vrcp.pop %v3046
      %v3081 = vrcp.pop %v3049
      %v3082 = vrcp.pop %v3052
      %v3083 = vrcp.pop %v3055
      %v3084 = vrcp.pop %v3058
      %v3085 = vrcp.pop %v3061
      %v3086 = vrcp.pop %v3064
      %v3087 = vrcp.pop %v3067
      %v3088 = vrcp.pop %v3070
      %v3089 = vrcp.pop %v3073
      %v3090 = vmul.f32 %v2995, %v3074
      %v3091 = vmul.f32 %v2997, %v3075
      %v3092 = vmul.f32 %v2999, %v3076
      %v3093 = vmul.f32 %v3001, %v3077
      %v3094 = vmul.f32 %v3003, %v3078
      %v3095 = vmul.f32 %v3005, %v3079
      %v3096 = vmul.f32 %v3007, %v3080
      %v3097 = vmul.f32 %v3009, %v3081
      %v3098 = vmul.f32 %v3011, %v3082
      %v3099 = vmul.f32 %v3013, %v3083
      %v3100 = vmul.f32 %v3015, %v3084
      %v3101 = vmul.f32 %v3017, %v3085
      %v3102 = vmul.f32 %v3019, %v3086
      %v3103 = vmul.f32 %v3021, %v3087
      %v3104 = vmul.f32 %v3023, %v3088
      %v3105 = vmul.f32 %v3025, %v3089
      %v3106 = vpack.c.bf16 %v3091, %v3090
      %v3107 = vpack.c.bf16 %v3093, %v3092
      %v3108 = vpack.c.bf16 %v3095, %v3094
      %v3109 = vpack.c.bf16 %v3097, %v3096
      %v3110 = vpack.c.bf16 %v3099, %v3098
      %v3111 = vpack.c.bf16 %v3101, %v3100
      %v3112 = vpack.c.bf16 %v3103, %v3102
      %v3113 = vpack.c.bf16 %v3105, %v3104
      %3114 = vrot.lane.b32.xlu0 %v1191, 112
      %v3115 = vpop.permute.xlu0 %3114
      %3116 = vrot.lane.b32.xlu0 %v1192, 112
      %v3117 = vpop.permute.xlu0 %3116
      %v3121 = vsel %vm527, %v3106, 0
      %v3124 = vsel %vm527, %v3107, 0
      %3126 = vmatprep.subr.bf16.mxu0 0
      %3127 = vmatpush1.bf16.msra.mxu0 %v3115
      %3128 = vmatprep.subr.bf16.mxu0 0
      %3129 = vmatpush1.bf16.msra.mxu0 %v3117
      %3130 = vmatprep.subr.bf16.mxu0 0
      %3131 = vmatpush1.bf16.msra.mxu0 0
      %3132 = vmatprep.subr.bf16.mxu0 0
      %3133 = vmatpush1.bf16.msra.mxu0 0
      %3134 = vmatprep.subr.bf16.mxu0 0
      %3135 = vmatpush1.bf16.msra.mxu0 0
      %3136 = vmatprep.subr.bf16.mxu0 0
      %3137 = vmatpush1.bf16.msra.mxu0 0
      %3138 = vmatprep.subr.bf16.mxu0 0
      %3139 = vmatpush1.bf16.msra.mxu0 0
      %3140 = vmatprep.subr.bf16.mxu0 0
      %3141 = vmatpush1.bf16.msra.mxu0 0
      %3142 = vmatprep.subr.bf16.mxu0 0
      %3143 = vmatpush1.bf16.msra.mxu0 0
      %3144 = vmatprep.subr.bf16.mxu0 0
      %3145 = vmatpush1.bf16.msra.mxu0 0
      %3146 = vmatprep.subr.bf16.mxu0 0
      %3147 = vmatpush1.bf16.msra.mxu0 0
      %3148 = vmatprep.subr.bf16.mxu0 0
      %3149 = vmatpush1.bf16.msra.mxu0 0
      %3150 = vmatprep.subr.bf16.mxu0 0
      %3151 = vmatpush1.bf16.msra.mxu0 0
      %3152 = vmatprep.subr.bf16.mxu0 0
      %3153 = vmatpush1.bf16.msra.mxu0 0
      %3154 = vmatprep.subr.bf16.mxu0 0
      %3155 = vmatpush1.bf16.msra.mxu0 0
      %3156 = vmatprep.subr.bf16.mxu0 0
      %3157 = vmatpush1.bf16.msra.mxu0 0
      %3158 = vmatprep.mubr.bf16.mxu0 0
      %3159 = vmatmul.mubr.bf16.gmra.mrb[0].mxu0 %v3121
      %v3160 = vpop.f32.mrb[0].mxu0
      %v3161 = vadd.f32 0.0, %v3160
      %v3162 = vpop.f32.mrb[0].mxu0
      %v3163 = vpop.f32.mrb[0].mxu0
      %v3164 = vadd.f32 0.0, %v3163
      %v3165 = vpop.f32.mrb[0].mxu0
      %3166 = vmatprep.mubr.bf16.mxu0 0
      %3167 = vmatmul.mubr.bf16.gmra.mrb[0].mxu0 %v3124
      %v3168 = vpop.f32.mrb[0].mxu0
      %v3169 = vadd.f32 0.0, %v3168
      %v3170 = vpop.f32.mrb[0].mxu0
      %v3171 = vpop.f32.mrb[0].mxu0
      %v3172 = vadd.f32 0.0, %v3171
      %v3173 = vpop.f32.mrb[0].mxu0
      %3174 = vdwg.mxu0
      %3175 = vrot.lane.b32.xlu0 %v1193, 112
      %v3176 = vpop.permute.xlu0 %3175
      %3177 = vrot.lane.b32.xlu0 %v1194, 112
      %v3178 = vpop.permute.xlu0 %3177
      %v3182 = vsel %vm527, %v3108, 0
      %v3185 = vsel %vm527, %v3109, 0
      %3187 = vmatprep.subr.bf16.mxu0 0
      %3188 = vmatpush1.bf16.msra.mxu0 %v3176
      %3189 = vmatprep.subr.bf16.mxu0 0
      %3190 = vmatpush1.bf16.msra.mxu0 %v3178
      %3191 = vmatprep.subr.bf16.mxu0 0
      %3192 = vmatpush1.bf16.msra.mxu0 0
      %3193 = vmatprep.subr.bf16.mxu0 0
      %3194 = vmatpush1.bf16.msra.mxu0 0
      %3195 = vmatprep.subr.bf16.mxu0 0
      %3196 = vmatpush1.bf16.msra.mxu0 0
      %3197 = vmatprep.subr.bf16.mxu0 0
      %3198 = vmatpush1.bf16.msra.mxu0 0
      %3199 = vmatprep.subr.bf16.mxu0 0
      %3200 = vmatpush1.bf16.msra.mxu0 0
      %3201 = vmatprep.subr.bf16.mxu0 0
      %3202 = vmatpush1.bf16.msra.mxu0 0
      %3203 = vmatprep.subr.bf16.mxu0 0
      %3204 = vmatpush1.bf16.msra.mxu0 0
      %3205 = vmatprep.subr.bf16.mxu0 0
      %3206 = vmatpush1.bf16.msra.mxu0 0
      %3207 = vmatprep.subr.bf16.mxu0 0
      %3208 = vmatpush1.bf16.msra.mxu0 0
      %3209 = vmatprep.subr.bf16.mxu0 0
      %3210 = vmatpush1.bf16.msra.mxu0 0
      %3211 = vmatprep.subr.bf16.mxu0 0
      %3212 = vmatpush1.bf16.msra.mxu0 0
      %3213 = vmatprep.subr.bf16.mxu0 0
      %3214 = vmatpush1.bf16.msra.mxu0 0
      %3215 = vmatprep.subr.bf16.mxu0 0
      %3216 = vmatpush1.bf16.msra.mxu0 0
      %3217 = vmatprep.subr.bf16.mxu0 0
      %3218 = vmatpush1.bf16.msra.mxu0 0
      %3219 = vmatprep.mubr.bf16.mxu0 0
      %3220 = vmatmul.mubr.bf16.gmra.mrb[0].mxu0 %v3182
      %v3221 = vpop.f32.mrb[0].mxu0
      %v3222 = vadd.f32 0.0, %v3221
      %v3223 = vpop.f32.mrb[0].mxu0
      %v3224 = vpop.f32.mrb[0].mxu0
      %v3225 = vadd.f32 0.0, %v3224
      %v3226 = vpop.f32.mrb[0].mxu0
      %3227 = vmatprep.mubr.bf16.mxu0 0
      %3228 = vmatmul.mubr.bf16.gmra.mrb[0].mxu0 %v3185
      %v3229 = vpop.f32.mrb[0].mxu0
      %v3230 = vadd.f32 0.0, %v3229
      %v3231 = vpop.f32.mrb[0].mxu0
      %v3232 = vpop.f32.mrb[0].mxu0
      %v3233 = vadd.f32 0.0, %v3232
      %v3234 = vpop.f32.mrb[0].mxu0
      %3235 = vdwg.mxu0
      %3236 = vrot.lane.b32.xlu0 %v1195, 112
      %v3237 = vpop.permute.xlu0 %3236
      %3238 = vrot.lane.b32.xlu0 %v1196, 112
      %v3239 = vpop.permute.xlu0 %3238
      %v3243 = vsel %vm527, %v3110, 0
      %v3246 = vsel %vm527, %v3111, 0
      %3248 = vmatprep.subr.bf16.mxu0 0
      %3249 = vmatpush1.bf16.msra.mxu0 %v3237
      %3250 = vmatprep.subr.bf16.mxu0 0
      %3251 = vmatpush1.bf16.msra.mxu0 %v3239
      %3252 = vmatprep.subr.bf16.mxu0 0
      %3253 = vmatpush1.bf16.msra.mxu0 0
      %3254 = vmatprep.subr.bf16.mxu0 0
      %3255 = vmatpush1.bf16.msra.mxu0 0
      %3256 = vmatprep.subr.bf16.mxu0 0
      %3257 = vmatpush1.bf16.msra.mxu0 0
      %3258 = vmatprep.subr.bf16.mxu0 0
      %3259 = vmatpush1.bf16.msra.mxu0 0
      %3260 = vmatprep.subr.bf16.mxu0 0
      %3261 = vmatpush1.bf16.msra.mxu0 0
      %3262 = vmatprep.subr.bf16.mxu0 0
      %3263 = vmatpush1.bf16.msra.mxu0 0
      %3264 = vmatprep.subr.bf16.mxu0 0
      %3265 = vmatpush1.bf16.msra.mxu0 0
      %3266 = vmatprep.subr.bf16.mxu0 0
      %3267 = vmatpush1.bf16.msra.mxu0 0
      %3268 = vmatprep.subr.bf16.mxu0 0
      %3269 = vmatpush1.bf16.msra.mxu0 0
      %3270 = vmatprep.subr.bf16.mxu0 0
      %3271 = vmatpush1.bf16.msra.mxu0 0
      %3272 = vmatprep.subr.bf16.mxu0 0
      %3273 = vmatpush1.bf16.msra.mxu0 0
      %3274 = vmatprep.subr.bf16.mxu0 0
      %3275 = vmatpush1.bf16.msra.mxu0 0
      %3276 = vmatprep.subr.bf16.mxu0 0
      %3277 = vmatpush1.bf16.msra.mxu0 0
      %3278 = vmatprep.subr.bf16.mxu0 0
      %3279 = vmatpush1.bf16.msra.mxu0 0
      %3280 = vmatprep.mubr.bf16.mxu0 0
      %3281 = vmatmul.mubr.bf16.gmra.mrb[0].mxu0 %v3243
      %v3282 = vpop.f32.mrb[0].mxu0
      %v3283 = vadd.f32 0.0, %v3282
      %v3284 = vpop.f32.mrb[0].mxu0
      %v3285 = vpop.f32.mrb[0].mxu0
      %v3286 = vadd.f32 0.0, %v3285
      %v3287 = vpop.f32.mrb[0].mxu0
      %3288 = vmatprep.mubr.bf16.mxu0 0
      %3289 = vmatmul.mubr.bf16.gmra.mrb[0].mxu0 %v3246
      %v3290 = vpop.f32.mrb[0].mxu0
      %v3291 = vadd.f32 0.0, %v3290
      %v3292 = vpop.f32.mrb[0].mxu0
      %v3293 = vpop.f32.mrb[0].mxu0
      %v3294 = vadd.f32 0.0, %v3293
      %v3295 = vpop.f32.mrb[0].mxu0
      %3296 = vdwg.mxu0
      %3297 = vrot.lane.b32.xlu0 %v1197, 112
      %v3298 = vpop.permute.xlu0 %3297
      %3299 = vrot.lane.b32.xlu0 %v1198, 112
      %v3300 = vpop.permute.xlu0 %3299
      %v3304 = vsel %vm527, %v3112, 0
      %v3307 = vsel %vm527, %v3113, 0
      %3309 = vmatprep.subr.bf16.mxu0 0
      %3310 = vmatpush1.bf16.msra.mxu0 %v3298
      %3311 = vmatprep.subr.bf16.mxu0 0
      %3312 = vmatpush1.bf16.msra.mxu0 %v3300
      %3313 = vmatprep.subr.bf16.mxu0 0
      %3314 = vmatpush1.bf16.msra.mxu0 0
      %3315 = vmatprep.subr.bf16.mxu0 0
      %3316 = vmatpush1.bf16.msra.mxu0 0
      %3317 = vmatprep.subr.bf16.mxu0 0
      %3318 = vmatpush1.bf16.msra.mxu0 0
      %3319 = vmatprep.subr.bf16.mxu0 0
      %3320 = vmatpush1.bf16.msra.mxu0 0
      %3321 = vmatprep.subr.bf16.mxu0 0
      %3322 = vmatpush1.bf16.msra.mxu0 0
      %3323 = vmatprep.subr.bf16.mxu0 0
      %3324 = vmatpush1.bf16.msra.mxu0 0
      %3325 = vmatprep.subr.bf16.mxu0 0
      %3326 = vmatpush1.bf16.msra.mxu0 0
      %3327 = vmatprep.subr.bf16.mxu0 0
      %3328 = vmatpush1.bf16.msra.mxu0 0
      %3329 = vmatprep.subr.bf16.mxu0 0
      %3330 = vmatpush1.bf16.msra.mxu0 0
      %3331 = vmatprep.subr.bf16.mxu0 0
      %3332 = vmatpush1.bf16.msra.mxu0 0
      %3333 = vmatprep.subr.bf16.mxu0 0
      %3334 = vmatpush1.bf16.msra.mxu0 0
      %3335 = vmatprep.subr.bf16.mxu0 0
      %3336 = vmatpush1.bf16.msra.mxu0 0
      %3337 = vmatprep.subr.bf16.mxu0 0
      %3338 = vmatpush1.bf16.msra.mxu0 0
      %3339 = vmatprep.subr.bf16.mxu0 0
      %3340 = vmatpush1.bf16.msra.mxu0 0
      %3341 = vmatprep.mubr.bf16.mxu0 0
      %3342 = vmatmul.mubr.bf16.gmra.mrb[0].mxu0 %v3304
      %v3343 = vpop.f32.mrb[0].mxu0
      %v3344 = vadd.f32 0.0, %v3343
      %v3345 = vpop.f32.mrb[0].mxu0
      %v3346 = vpop.f32.mrb[0].mxu0
      %v3347 = vadd.f32 0.0, %v3346
      %v3348 = vpop.f32.mrb[0].mxu0
      %3349 = vmatprep.mubr.bf16.mxu0 0
      %3350 = vmatmul.mubr.bf16.gmra.mrb[0].mxu0 %v3307
      %v3351 = vpop.f32.mrb[0].mxu0
      %v3352 = vadd.f32 0.0, %v3351
      %v3353 = vpop.f32.mrb[0].mxu0
      %v3354 = vpop.f32.mrb[0].mxu0
      %v3355 = vadd.f32 0.0, %v3354
      %v3356 = vpop.f32.mrb[0].mxu0
      %3357 = vdwg.mxu0
      %s3358 = scalar_lea.vmem %s11, 96
      %v3359 = vld [vmem:[%s3358] sm:$0xff]
      %v3360 = vld [vmem:[%s3358 + $0x8] sm:$0xff]
      %v3361 = vld [vmem:[%s3358 + $0x10] sm:$0xff]
      %v3362 = vld [vmem:[%s3358 + $0x18] sm:$0xff]
      %3363 = vrot.lane.b32.xlu0 %v1175, 104
      %v3364 = vpop.permute.xlu0 %3363
      %3365 = vrot.lane.b32.xlu0 %v1176, 104
      %v3366 = vpop.permute.xlu0 %3365
      %3367 = vrot.lane.b32.xlu0 %v1183, 104
      %v3368 = vpop.permute.xlu0 %3367
      %3369 = vrot.lane.b32.xlu0 %v1184, 104
      %v3370 = vpop.permute.xlu0 %3369
      %v3372 = vsel %vm1219, %v3364, 0
      %v3375 = vsel %vm1219, %v3366, 0
      %v3378 = vsel %vm1219, %v3368, 0
      %v3381 = vsel %vm1219, %v3370, 0
      %3383 = vmatprep.subr.bf16.mxu0 0
      %3384 = vmatpush1.bf16.xpose.msra.mxu0 %v3378
      %3385 = vmatprep.subr.bf16.mxu0 0
      %3386 = vmatpush1.bf16.xpose.msra.mxu0 %v3381
      %3387 = vmatprep.subr.bf16.mxu0 0
      %3388 = vmatpush1.bf16.xpose.msra.mxu0 0
      %3389 = vmatprep.subr.bf16.mxu0 0
      %3390 = vmatpush1.bf16.xpose.msra.mxu0 0
      %3391 = vmatprep.subr.bf16.mxu0 0
      %3392 = vmatpush1.bf16.xpose.msra.mxu0 0
      %3393 = vmatprep.subr.bf16.mxu0 0
      %3394 = vmatpush1.bf16.xpose.msra.mxu0 0
      %3395 = vmatprep.subr.bf16.mxu0 0
      %3396 = vmatpush1.bf16.xpose.msra.mxu0 0
      %3397 = vmatprep.subr.bf16.mxu0 0
      %3398 = vmatpush1.bf16.xpose.msra.mxu0 0
      %3399 = vmatprep.subr.bf16.mxu0 0
      %3400 = vmatpush1.bf16.xpose.msra.mxu0 0
      %3401 = vmatprep.subr.bf16.mxu0 0
      %3402 = vmatpush1.bf16.xpose.msra.mxu0 0
      %3403 = vmatprep.subr.bf16.mxu0 0
      %3404 = vmatpush1.bf16.xpose.msra.mxu0 0
      %3405 = vmatprep.subr.bf16.mxu0 0
      %3406 = vmatpush1.bf16.xpose.msra.mxu0 0
      %3407 = vmatprep.subr.bf16.mxu0 0
      %3408 = vmatpush1.bf16.xpose.msra.mxu0 0
      %3409 = vmatprep.subr.bf16.mxu0 0
      %3410 = vmatpush1.bf16.xpose.msra.mxu0 0
      %3411 = vmatprep.subr.bf16.mxu0 0
      %3412 = vmatpush1.bf16.xpose.msra.mxu0 0
      %3413 = vmatprep.subr.bf16.mxu0 0
      %3414 = vmatpush1.bf16.xpose.msra.mxu0 0
      %3415 = vmatprep.mubr.bf16.mxu0 0
      %3416 = vmatmul.mubr.bf16.gmra.mrb[0].mxu0 %v3372
      %v3417 = vpop.f32.mrb[0].mxu0
      %v3418 = vadd.f32 %v3359, %v3417
      %v3419 = vpop.f32.mrb[0].mxu0
      %v3420 = vpop.f32.mrb[0].mxu0
      %v3421 = vadd.f32 %v3360, %v3420
      %v3422 = vpop.f32.mrb[0].mxu0
      %3423 = vmatprep.mubr.bf16.mxu0 0
      %3424 = vmatmul.mubr.bf16.gmra.mrb[0].mxu0 %v3375
      %v3425 = vpop.f32.mrb[0].mxu0
      %v3426 = vadd.f32 %v3361, %v3425
      %v3427 = vpop.f32.mrb[0].mxu0
      %v3428 = vpop.f32.mrb[0].mxu0
      %v3429 = vadd.f32 %v3362, %v3428
      %v3430 = vpop.f32.mrb[0].mxu0
      %3431 = vdwg.mxu0
      %3432 = vrot.lane.b32.xlu0 %v1177, 104
      %v3433 = vpop.permute.xlu0 %3432
      %3434 = vrot.lane.b32.xlu0 %v1178, 104
      %v3435 = vpop.permute.xlu0 %3434
      %3436 = vrot.lane.b32.xlu0 %v1185, 104
      %v3437 = vpop.permute.xlu0 %3436
      %3438 = vrot.lane.b32.xlu0 %v1186, 104
      %v3439 = vpop.permute.xlu0 %3438
      %v3441 = vsel %vm1219, %v3433, 0
      %v3444 = vsel %vm1219, %v3435, 0
      %v3447 = vsel %vm1219, %v3437, 0
      %v3450 = vsel %vm1219, %v3439, 0
      %3452 = vmatprep.subr.bf16.mxu0 0
      %3453 = vmatpush1.bf16.xpose.msra.mxu0 %v3447
      %3454 = vmatprep.subr.bf16.mxu0 0
      %3455 = vmatpush1.bf16.xpose.msra.mxu0 %v3450
      %3456 = vmatprep.subr.bf16.mxu0 0
      %3457 = vmatpush1.bf16.xpose.msra.mxu0 0
      %3458 = vmatprep.subr.bf16.mxu0 0
      %3459 = vmatpush1.bf16.xpose.msra.mxu0 0
      %3460 = vmatprep.subr.bf16.mxu0 0
      %3461 = vmatpush1.bf16.xpose.msra.mxu0 0
      %3462 = vmatprep.subr.bf16.mxu0 0
      %3463 = vmatpush1.bf16.xpose.msra.mxu0 0
      %3464 = vmatprep.subr.bf16.mxu0 0
      %3465 = vmatpush1.bf16.xpose.msra.mxu0 0
      %3466 = vmatprep.subr.bf16.mxu0 0
      %3467 = vmatpush1.bf16.xpose.msra.mxu0 0
      %3468 = vmatprep.subr.bf16.mxu0 0
      %3469 = vmatpush1.bf16.xpose.msra.mxu0 0
      %3470 = vmatprep.subr.bf16.mxu0 0
      %3471 = vmatpush1.bf16.xpose.msra.mxu0 0
      %3472 = vmatprep.subr.bf16.mxu0 0
      %3473 = vmatpush1.bf16.xpose.msra.mxu0 0
      %3474 = vmatprep.subr.bf16.mxu0 0
      %3475 = vmatpush1.bf16.xpose.msra.mxu0 0
      %3476 = vmatprep.subr.bf16.mxu0 0
      %3477 = vmatpush1.bf16.xpose.msra.mxu0 0
      %3478 = vmatprep.subr.bf16.mxu0 0
      %3479 = vmatpush1.bf16.xpose.msra.mxu0 0
      %3480 = vmatprep.subr.bf16.mxu0 0
      %3481 = vmatpush1.bf16.xpose.msra.mxu0 0
      %3482 = vmatprep.subr.bf16.mxu0 0
      %3483 = vmatpush1.bf16.xpose.msra.mxu0 0
      %3484 = vmatprep.mubr.bf16.mxu0 0
      %3485 = vmatmul.mubr.bf16.gmra.mrb[0].mxu0 %v3441
      %v3486 = vpop.f32.mrb[0].mxu0
      %v3487 = vadd.f32 %v3359, %v3486
      %v3488 = vpop.f32.mrb[0].mxu0
      %v3489 = vpop.f32.mrb[0].mxu0
      %v3490 = vadd.f32 %v3360, %v3489
      %v3491 = vpop.f32.mrb[0].mxu0
      %3492 = vmatprep.mubr.bf16.mxu0 0
      %3493 = vmatmul.mubr.bf16.gmra.mrb[0].mxu0 %v3444
      %v3494 = vpop.f32.mrb[0].mxu0
      %v3495 = vadd.f32 %v3361, %v3494
      %v3496 = vpop.f32.mrb[0].mxu0
      %v3497 = vpop.f32.mrb[0].mxu0
      %v3498 = vadd.f32 %v3362, %v3497
      %v3499 = vpop.f32.mrb[0].mxu0
      %3500 = vdwg.mxu0
      %3501 = vrot.lane.b32.xlu0 %v1179, 104
      %v3502 = vpop.permute.xlu0 %3501
      %3503 = vrot.lane.b32.xlu0 %v1180, 104
      %v3504 = vpop.permute.xlu0 %3503
      %3505 = vrot.lane.b32.xlu0 %v1187, 104
      %v3506 = vpop.permute.xlu0 %3505
      %3507 = vrot.lane.b32.xlu0 %v1188, 104
      %v3508 = vpop.permute.xlu0 %3507
      %v3510 = vsel %vm1219, %v3502, 0
      %v3513 = vsel %vm1219, %v3504, 0
      %v3516 = vsel %vm1219, %v3506, 0
      %v3519 = vsel %vm1219, %v3508, 0
      %3521 = vmatprep.subr.bf16.mxu0 0
      %3522 = vmatpush1.bf16.xpose.msra.mxu0 %v3516
      %3523 = vmatprep.subr.bf16.mxu0 0
      %3524 = vmatpush1.bf16.xpose.msra.mxu0 %v3519
      %3525 = vmatprep.subr.bf16.mxu0 0
      %3526 = vmatpush1.bf16.xpose.msra.mxu0 0
      %3527 = vmatprep.subr.bf16.mxu0 0
      %3528 = vmatpush1.bf16.xpose.msra.mxu0 0
      %3529 = vmatprep.subr.bf16.mxu0 0
      %3530 = vmatpush1.bf16.xpose.msra.mxu0 0
      %3531 = vmatprep.subr.bf16.mxu0 0
      %3532 = vmatpush1.bf16.xpose.msra.mxu0 0
      %3533 = vmatprep.subr.bf16.mxu0 0
      %3534 = vmatpush1.bf16.xpose.msra.mxu0 0
      %3535 = vmatprep.subr.bf16.mxu0 0
      %3536 = vmatpush1.bf16.xpose.msra.mxu0 0
      %3537 = vmatprep.subr.bf16.mxu0 0
      %3538 = vmatpush1.bf16.xpose.msra.mxu0 0
      %3539 = vmatprep.subr.bf16.mxu0 0
      %3540 = vmatpush1.bf16.xpose.msra.mxu0 0
      %3541 = vmatprep.subr.bf16.mxu0 0
      %3542 = vmatpush1.bf16.xpose.msra.mxu0 0
      %3543 = vmatprep.subr.bf16.mxu0 0
      %3544 = vmatpush1.bf16.xpose.msra.mxu0 0
      %3545 = vmatprep.subr.bf16.mxu0 0
      %3546 = vmatpush1.bf16.xpose.msra.mxu0 0
      %3547 = vmatprep.subr.bf16.mxu0 0
      %3548 = vmatpush1.bf16.xpose.msra.mxu0 0
      %3549 = vmatprep.subr.bf16.mxu0 0
      %3550 = vmatpush1.bf16.xpose.msra.mxu0 0
      %3551 = vmatprep.subr.bf16.mxu0 0
      %3552 = vmatpush1.bf16.xpose.msra.mxu0 0
      %3553 = vmatprep.mubr.bf16.mxu0 0
      %3554 = vmatmul.mubr.bf16.gmra.mrb[0].mxu0 %v3510
      %v3555 = vpop.f32.mrb[0].mxu0
      %v3556 = vadd.f32 %v3359, %v3555
      %v3557 = vpop.f32.mrb[0].mxu0
      %v3558 = vpop.f32.mrb[0].mxu0
      %v3559 = vadd.f32 %v3360, %v3558
      %v3560 = vpop.f32.mrb[0].mxu0
      %3561 = vmatprep.mubr.bf16.mxu0 0
      %3562 = vmatmul.mubr.bf16.gmra.mrb[0].mxu0 %v3513
      %v3563 = vpop.f32.mrb[0].mxu0
      %v3564 = vadd.f32 %v3361, %v3563
      %v3565 = vpop.f32.mrb[0].mxu0
      %v3566 = vpop.f32.mrb[0].mxu0
      %v3567 = vadd.f32 %v3362, %v3566
      %v3568 = vpop.f32.mrb[0].mxu0
      %3569 = vdwg.mxu0
      %3570 = vrot.lane.b32.xlu0 %v1181, 104
      %v3571 = vpop.permute.xlu0 %3570
      %3572 = vrot.lane.b32.xlu0 %v1182, 104
      %v3573 = vpop.permute.xlu0 %3572
      %3574 = vrot.lane.b32.xlu0 %v1189, 104
      %v3575 = vpop.permute.xlu0 %3574
      %3576 = vrot.lane.b32.xlu0 %v1190, 104
      %v3577 = vpop.permute.xlu0 %3576
      %v3579 = vsel %vm1219, %v3571, 0
      %v3582 = vsel %vm1219, %v3573, 0
      %v3585 = vsel %vm1219, %v3575, 0
      %v3588 = vsel %vm1219, %v3577, 0
      %3590 = vmatprep.subr.bf16.mxu0 0
      %3591 = vmatpush1.bf16.xpose.msra.mxu0 %v3585
      %3592 = vmatprep.subr.bf16.mxu0 0
      %3593 = vmatpush1.bf16.xpose.msra.mxu0 %v3588
      %3594 = vmatprep.subr.bf16.mxu0 0
      %3595 = vmatpush1.bf16.xpose.msra.mxu0 0
      %3596 = vmatprep.subr.bf16.mxu0 0
      %3597 = vmatpush1.bf16.xpose.msra.mxu0 0
      %3598 = vmatprep.subr.bf16.mxu0 0
      %3599 = vmatpush1.bf16.xpose.msra.mxu0 0
      %3600 = vmatprep.subr.bf16.mxu0 0
      %3601 = vmatpush1.bf16.xpose.msra.mxu0 0
      %3602 = vmatprep.subr.bf16.mxu0 0
      %3603 = vmatpush1.bf16.xpose.msra.mxu0 0
      %3604 = vmatprep.subr.bf16.mxu0 0
      %3605 = vmatpush1.bf16.xpose.msra.mxu0 0
      %3606 = vmatprep.subr.bf16.mxu0 0
      %3607 = vmatpush1.bf16.xpose.msra.mxu0 0
      %3608 = vmatprep.subr.bf16.mxu0 0
      %3609 = vmatpush1.bf16.xpose.msra.mxu0 0
      %3610 = vmatprep.subr.bf16.mxu0 0
      %3611 = vmatpush1.bf16.xpose.msra.mxu0 0
      %3612 = vmatprep.subr.bf16.mxu0 0
      %3613 = vmatpush1.bf16.xpose.msra.mxu0 0
      %3614 = vmatprep.subr.bf16.mxu0 0
      %3615 = vmatpush1.bf16.xpose.msra.mxu0 0
      %3616 = vmatprep.subr.bf16.mxu0 0
      %3617 = vmatpush1.bf16.xpose.msra.mxu0 0
      %3618 = vmatprep.subr.bf16.mxu0 0
      %3619 = vmatpush1.bf16.xpose.msra.mxu0 0
      %3620 = vmatprep.subr.bf16.mxu0 0
      %3621 = vmatpush1.bf16.xpose.msra.mxu0 0
      %3622 = vmatprep.mubr.bf16.mxu0 0
      %3623 = vmatmul.mubr.bf16.gmra.mrb[0].mxu0 %v3579
      %v3624 = vpop.f32.mrb[0].mxu0
      %v3625 = vadd.f32 %v3359, %v3624
      %v3626 = vpop.f32.mrb[0].mxu0
      %v3627 = vpop.f32.mrb[0].mxu0
      %v3628 = vadd.f32 %v3360, %v3627
      %v3629 = vpop.f32.mrb[0].mxu0
      %3630 = vmatprep.mubr.bf16.mxu0 0
      %3631 = vmatmul.mubr.bf16.gmra.mrb[0].mxu0 %v3582
      %v3632 = vpop.f32.mrb[0].mxu0
      %v3633 = vadd.f32 %v3361, %v3632
      %v3634 = vpop.f32.mrb[0].mxu0
      %v3635 = vpop.f32.mrb[0].mxu0
      %v3636 = vadd.f32 %v3362, %v3635
      %v3637 = vpop.f32.mrb[0].mxu0
      %3638 = vdwg.mxu0
      %v3639 = vadd.f32 %v3418, %v1199
      %v3640 = vadd.f32 %v3421, %v1200
      %v3641 = vadd.f32 %v3426, %v1201
      %v3642 = vadd.f32 %v3429, %v1202
      %v3643 = vadd.f32 %v3487, %v1203
      %v3644 = vadd.f32 %v3490, %v1204
      %v3645 = vadd.f32 %v3495, %v1205
      %v3646 = vadd.f32 %v3498, %v1206
      %v3647 = vadd.f32 %v3556, %v1207
      %v3648 = vadd.f32 %v3559, %v1208
      %v3649 = vadd.f32 %v3564, %v1209
      %v3650 = vadd.f32 %v3567, %v1210
      %v3651 = vadd.f32 %v3625, %v1211
      %v3652 = vadd.f32 %v3628, %v1212
      %v3653 = vadd.f32 %v3633, %v1213
      %v3654 = vadd.f32 %v3636, %v1214
      %v3655 = vsel %vm527, %v3639, -inf
      %3656 = vmax.xlane.f32.xlu0 %v3655
      %v3657 = vpop.xlane.xlu0 %3656
      %v3658 = vsel %vm527, %v3640, -inf
      %3659 = vmax.xlane.f32.xlu0 %v3658
      %v3660 = vpop.xlane.xlu0 %3659
      %v3661 = vsel %vm527, %v3641, -inf
      %3662 = vmax.xlane.f32.xlu0 %v3661
      %v3663 = vpop.xlane.xlu0 %3662
      %v3664 = vsel %vm527, %v3642, -inf
      %3665 = vmax.xlane.f32.xlu0 %v3664
      %v3666 = vpop.xlane.xlu0 %3665
      %v3667 = vsel %vm527, %v3643, -inf
      %3668 = vmax.xlane.f32.xlu0 %v3667
      %v3669 = vpop.xlane.xlu0 %3668
      %v3670 = vsel %vm527, %v3644, -inf
      %3671 = vmax.xlane.f32.xlu0 %v3670
      %v3672 = vpop.xlane.xlu0 %3671
      %v3673 = vsel %vm527, %v3645, -inf
      %3674 = vmax.xlane.f32.xlu0 %v3673
      %v3675 = vpop.xlane.xlu0 %3674
      %v3676 = vsel %vm527, %v3646, -inf
      %3677 = vmax.xlane.f32.xlu0 %v3676
      %v3678 = vpop.xlane.xlu0 %3677
      %v3679 = vsel %vm527, %v3647, -inf
      %3680 = vmax.xlane.f32.xlu0 %v3679
      %v3681 = vpop.xlane.xlu0 %3680
      %v3682 = vsel %vm527, %v3648, -inf
      %3683 = vmax.xlane.f32.xlu0 %v3682
      %v3684 = vpop.xlane.xlu0 %3683
      %v3685 = vsel %vm527, %v3649, -inf
      %3686 = vmax.xlane.f32.xlu0 %v3685
      %v3687 = vpop.xlane.xlu0 %3686
      %v3688 = vsel %vm527, %v3650, -inf
      %3689 = vmax.xlane.f32.xlu0 %v3688
      %v3690 = vpop.xlane.xlu0 %3689
      %v3691 = vsel %vm527, %v3651, -inf
      %3692 = vmax.xlane.f32.xlu0 %v3691
      %v3693 = vpop.xlane.xlu0 %3692
      %v3694 = vsel %vm527, %v3652, -inf
      %3695 = vmax.xlane.f32.xlu0 %v3694
      %v3696 = vpop.xlane.xlu0 %3695
      %v3697 = vsel %vm527, %v3653, -inf
      %3698 = vmax.xlane.f32.xlu0 %v3697
      %v3699 = vpop.xlane.xlu0 %3698
      %v3700 = vsel %vm527, %v3654, -inf
      %3701 = vmax.xlane.f32.xlu0 %v3700
      %v3702 = vpop.xlane.xlu0 %3701
      %v3703 = vsub.f32 %v3639, %v3657
      %v3704 = vsub.f32 %v3640, %v3660
      %v3705 = vsub.f32 %v3641, %v3663
      %v3706 = vsub.f32 %v3642, %v3666
      %v3707 = vsub.f32 %v3643, %v3669
      %v3708 = vsub.f32 %v3644, %v3672
      %v3709 = vsub.f32 %v3645, %v3675
      %v3710 = vsub.f32 %v3646, %v3678
      %v3711 = vsub.f32 %v3647, %v3681
      %v3712 = vsub.f32 %v3648, %v3684
      %v3713 = vsub.f32 %v3649, %v3687
      %v3714 = vsub.f32 %v3650, %v3690
      %v3715 = vsub.f32 %v3651, %v3693
      %v3716 = vsub.f32 %v3652, %v3696
      %v3717 = vsub.f32 %v3653, %v3699
      %v3718 = vsub.f32 %v3654, %v3702
      %v3719 = vmul.f32 %v3703, 1.442695
      %v3720 = vpow.pop %v3719
      %v3721 = vmul.f32 %v3704, 1.442695
      %v3722 = vpow.pop %v3721
      %v3723 = vmul.f32 %v3705, 1.442695
      %v3724 = vpow.pop %v3723
      %v3725 = vmul.f32 %v3706, 1.442695
      %v3726 = vpow.pop %v3725
      %v3727 = vmul.f32 %v3707, 1.442695
      %v3728 = vpow.pop %v3727
      %v3729 = vmul.f32 %v3708, 1.442695
      %v3730 = vpow.pop %v3729
      %v3731 = vmul.f32 %v3709, 1.442695
      %v3732 = vpow.pop %v3731
      %v3733 = vmul.f32 %v3710, 1.442695
      %v3734 = vpow.pop %v3733
      %v3735 = vmul.f32 %v3711, 1.442695
      %v3736 = vpow.pop %v3735
      %v3737 = vmul.f32 %v3712, 1.442695
      %v3738 = vpow.pop %v3737
      %v3739 = vmul.f32 %v3713, 1.442695
      %v3740 = vpow.pop %v3739
      %v3741 = vmul.f32 %v3714, 1.442695
      %v3742 = vpow.pop %v3741
      %v3743 = vmul.f32 %v3715, 1.442695
      %v3744 = vpow.pop %v3743
      %v3745 = vmul.f32 %v3716, 1.442695
      %v3746 = vpow.pop %v3745
      %v3747 = vmul.f32 %v3717, 1.442695
      %v3748 = vpow.pop %v3747
      %v3749 = vmul.f32 %v3718, 1.442695
      %v3750 = vpow.pop %v3749
      %v3751 = vsel %vm527, %v3720, 0.0
      %3752 = vadd.xlane.f32.xlu0 %v3751
      %v3753 = vpop.xlane.xlu0 %3752
      %v3754 = vsel %vm527, %v3722, 0.0
      %3755 = vadd.xlane.f32.xlu0 %v3754
      %v3756 = vpop.xlane.xlu0 %3755
      %v3757 = vsel %vm527, %v3724, 0.0
      %3758 = vadd.xlane.f32.xlu0 %v3757
      %v3759 = vpop.xlane.xlu0 %3758
      %v3760 = vsel %vm527, %v3726, 0.0
      %3761 = vadd.xlane.f32.xlu0 %v3760
      %v3762 = vpop.xlane.xlu0 %3761
      %v3763 = vsel %vm527, %v3728, 0.0
      %3764 = vadd.xlane.f32.xlu0 %v3763
      %v3765 = vpop.xlane.xlu0 %3764
      %v3766 = vsel %vm527, %v3730, 0.0
      %3767 = vadd.xlane.f32.xlu0 %v3766
      %v3768 = vpop.xlane.xlu0 %3767
      %v3769 = vsel %vm527, %v3732, 0.0
      %3770 = vadd.xlane.f32.xlu0 %v3769
      %v3771 = vpop.xlane.xlu0 %3770
      %v3772 = vsel %vm527, %v3734, 0.0
      %3773 = vadd.xlane.f32.xlu0 %v3772
      %v3774 = vpop.xlane.xlu0 %3773
      %v3775 = vsel %vm527, %v3736, 0.0
      %3776 = vadd.xlane.f32.xlu0 %v3775
      %v3777 = vpop.xlane.xlu0 %3776
      %v3778 = vsel %vm527, %v3738, 0.0
      %3779 = vadd.xlane.f32.xlu0 %v3778
      %v3780 = vpop.xlane.xlu0 %3779
      %v3781 = vsel %vm527, %v3740, 0.0
      %3782 = vadd.xlane.f32.xlu0 %v3781
      %v3783 = vpop.xlane.xlu0 %3782
      %v3784 = vsel %vm527, %v3742, 0.0
      %3785 = vadd.xlane.f32.xlu0 %v3784
      %v3786 = vpop.xlane.xlu0 %3785
      %v3787 = vsel %vm527, %v3744, 0.0
      %3788 = vadd.xlane.f32.xlu0 %v3787
      %v3789 = vpop.xlane.xlu0 %3788
      %v3790 = vsel %vm527, %v3746, 0.0
      %3791 = vadd.xlane.f32.xlu0 %v3790
      %v3792 = vpop.xlane.xlu0 %3791
      %v3793 = vsel %vm527, %v3748, 0.0
      %3794 = vadd.xlane.f32.xlu0 %v3793
      %v3795 = vpop.xlane.xlu0 %3794
      %v3796 = vsel %vm527, %v3750, 0.0
      %3797 = vadd.xlane.f32.xlu0 %v3796
      %v3798 = vpop.xlane.xlu0 %3797
      %v3799 = vrcp.pop %v3753
      %v3800 = vrcp.pop %v3756
      %v3801 = vrcp.pop %v3759
      %v3802 = vrcp.pop %v3762
      %v3803 = vrcp.pop %v3765
      %v3804 = vrcp.pop %v3768
      %v3805 = vrcp.pop %v3771
      %v3806 = vrcp.pop %v3774
      %v3807 = vrcp.pop %v3777
      %v3808 = vrcp.pop %v3780
      %v3809 = vrcp.pop %v3783
      %v3810 = vrcp.pop %v3786
      %v3811 = vrcp.pop %v3789
      %v3812 = vrcp.pop %v3792
      %v3813 = vrcp.pop %v3795
      %v3814 = vrcp.pop %v3798
      %v3815 = vmul.f32 %v3720, %v3799
      %v3816 = vmul.f32 %v3722, %v3800
      %v3817 = vmul.f32 %v3724, %v3801
      %v3818 = vmul.f32 %v3726, %v3802
      %v3819 = vmul.f32 %v3728, %v3803
      %v3820 = vmul.f32 %v3730, %v3804
      %v3821 = vmul.f32 %v3732, %v3805
      %v3822 = vmul.f32 %v3734, %v3806
      %v3823 = vmul.f32 %v3736, %v3807
      %v3824 = vmul.f32 %v3738, %v3808
      %v3825 = vmul.f32 %v3740, %v3809
      %v3826 = vmul.f32 %v3742, %v3810
      %v3827 = vmul.f32 %v3744, %v3811
      %v3828 = vmul.f32 %v3746, %v3812
      %v3829 = vmul.f32 %v3748, %v3813
      %v3830 = vmul.f32 %v3750, %v3814
      %v3831 = vpack.c.bf16 %v3816, %v3815
      %v3832 = vpack.c.bf16 %v3818, %v3817
      %v3833 = vpack.c.bf16 %v3820, %v3819
      %v3834 = vpack.c.bf16 %v3822, %v3821
      %v3835 = vpack.c.bf16 %v3824, %v3823
      %v3836 = vpack.c.bf16 %v3826, %v3825
      %v3837 = vpack.c.bf16 %v3828, %v3827
      %v3838 = vpack.c.bf16 %v3830, %v3829
      %3839 = vrot.lane.b32.xlu0 %v1191, 104
      %v3840 = vpop.permute.xlu0 %3839
      %3841 = vrot.lane.b32.xlu0 %v1192, 104
      %v3842 = vpop.permute.xlu0 %3841
      %v3846 = vsel %vm527, %v3831, 0
      %v3849 = vsel %vm527, %v3832, 0
      %3851 = vmatprep.subr.bf16.mxu0 0
      %3852 = vmatpush1.bf16.msra.mxu0 %v3840
      %3853 = vmatprep.subr.bf16.mxu0 0
      %3854 = vmatpush1.bf16.msra.mxu0 %v3842
      %3855 = vmatprep.subr.bf16.mxu0 0
      %3856 = vmatpush1.bf16.msra.mxu0 0
      %3857 = vmatprep.subr.bf16.mxu0 0
      %3858 = vmatpush1.bf16.msra.mxu0 0
      %3859 = vmatprep.subr.bf16.mxu0 0
      %3860 = vmatpush1.bf16.msra.mxu0 0
      %3861 = vmatprep.subr.bf16.mxu0 0
      %3862 = vmatpush1.bf16.msra.mxu0 0
      %3863 = vmatprep.subr.bf16.mxu0 0
      %3864 = vmatpush1.bf16.msra.mxu0 0
      %3865 = vmatprep.subr.bf16.mxu0 0
      %3866 = vmatpush1.bf16.msra.mxu0 0
      %3867 = vmatprep.subr.bf16.mxu0 0
      %3868 = vmatpush1.bf16.msra.mxu0 0
      %3869 = vmatprep.subr.bf16.mxu0 0
      %3870 = vmatpush1.bf16.msra.mxu0 0
      %3871 = vmatprep.subr.bf16.mxu0 0
      %3872 = vmatpush1.bf16.msra.mxu0 0
      %3873 = vmatprep.subr.bf16.mxu0 0
      %3874 = vmatpush1.bf16.msra.mxu0 0
      %3875 = vmatprep.subr.bf16.mxu0 0
      %3876 = vmatpush1.bf16.msra.mxu0 0
      %3877 = vmatprep.subr.bf16.mxu0 0
      %3878 = vmatpush1.bf16.msra.mxu0 0
      %3879 = vmatprep.subr.bf16.mxu0 0
      %3880 = vmatpush1.bf16.msra.mxu0 0
      %3881 = vmatprep.subr.bf16.mxu0 0
      %3882 = vmatpush1.bf16.msra.mxu0 0
      %3883 = vmatprep.mubr.bf16.mxu0 0
      %3884 = vmatmul.mubr.bf16.gmra.mrb[0].mxu0 %v3846
      %v3885 = vpop.f32.mrb[0].mxu0
      %v3886 = vadd.f32 0.0, %v3885
      %v3887 = vpop.f32.mrb[0].mxu0
      %v3888 = vpop.f32.mrb[0].mxu0
      %v3889 = vadd.f32 0.0, %v3888
      %v3890 = vpop.f32.mrb[0].mxu0
      %3891 = vmatprep.mubr.bf16.mxu0 0
      %3892 = vmatmul.mubr.bf16.gmra.mrb[0].mxu0 %v3849
      %v3893 = vpop.f32.mrb[0].mxu0
      %v3894 = vadd.f32 0.0, %v3893
      %v3895 = vpop.f32.mrb[0].mxu0
      %v3896 = vpop.f32.mrb[0].mxu0
      %v3897 = vadd.f32 0.0, %v3896
      %v3898 = vpop.f32.mrb[0].mxu0
      %3899 = vdwg.mxu0
      %3900 = vrot.lane.b32.xlu0 %v1193, 104
      %v3901 = vpop.permute.xlu0 %3900
      %3902 = vrot.lane.b32.xlu0 %v1194, 104
      %v3903 = vpop.permute.xlu0 %3902
      %v3907 = vsel %vm527, %v3833, 0
      %v3910 = vsel %vm527, %v3834, 0
      %3912 = vmatprep.subr.bf16.mxu0 0
      %3913 = vmatpush1.bf16.msra.mxu0 %v3901
      %3914 = vmatprep.subr.bf16.mxu0 0
      %3915 = vmatpush1.bf16.msra.mxu0 %v3903
      %3916 = vmatprep.subr.bf16.mxu0 0
      %3917 = vmatpush1.bf16.msra.mxu0 0
      %3918 = vmatprep.subr.bf16.mxu0 0
      %3919 = vmatpush1.bf16.msra.mxu0 0
      %3920 = vmatprep.subr.bf16.mxu0 0
      %3921 = vmatpush1.bf16.msra.mxu0 0
      %3922 = vmatprep.subr.bf16.mxu0 0
      %3923 = vmatpush1.bf16.msra.mxu0 0
      %3924 = vmatprep.subr.bf16.mxu0 0
      %3925 = vmatpush1.bf16.msra.mxu0 0
      %3926 = vmatprep.subr.bf16.mxu0 0
      %3927 = vmatpush1.bf16.msra.mxu0 0
      %3928 = vmatprep.subr.bf16.mxu0 0
      %3929 = vmatpush1.bf16.msra.mxu0 0
      %3930 = vmatprep.subr.bf16.mxu0 0
      %3931 = vmatpush1.bf16.msra.mxu0 0
      %3932 = vmatprep.subr.bf16.mxu0 0
      %3933 = vmatpush1.bf16.msra.mxu0 0
      %3934 = vmatprep.subr.bf16.mxu0 0
      %3935 = vmatpush1.bf16.msra.mxu0 0
      %3936 = vmatprep.subr.bf16.mxu0 0
      %3937 = vmatpush1.bf16.msra.mxu0 0
      %3938 = vmatprep.subr.bf16.mxu0 0
      %3939 = vmatpush1.bf16.msra.mxu0 0
      %3940 = vmatprep.subr.bf16.mxu0 0
      %3941 = vmatpush1.bf16.msra.mxu0 0
      %3942 = vmatprep.subr.bf16.mxu0 0
      %3943 = vmatpush1.bf16.msra.mxu0 0
      %3944 = vmatprep.mubr.bf16.mxu0 0
      %3945 = vmatmul.mubr.bf16.gmra.mrb[0].mxu0 %v3907
      %v3946 = vpop.f32.mrb[0].mxu0
      %v3947 = vadd.f32 0.0, %v3946
      %v3948 = vpop.f32.mrb[0].mxu0
      %v3949 = vpop.f32.mrb[0].mxu0
      %v3950 = vadd.f32 0.0, %v3949
      %v3951 = vpop.f32.mrb[0].mxu0
      %3952 = vmatprep.mubr.bf16.mxu0 0
      %3953 = vmatmul.mubr.bf16.gmra.mrb[0].mxu0 %v3910
      %v3954 = vpop.f32.mrb[0].mxu0
      %v3955 = vadd.f32 0.0, %v3954
      %v3956 = vpop.f32.mrb[0].mxu0
      %v3957 = vpop.f32.mrb[0].mxu0
      %v3958 = vadd.f32 0.0, %v3957
      %v3959 = vpop.f32.mrb[0].mxu0
      %3960 = vdwg.mxu0
      %3961 = vrot.lane.b32.xlu0 %v1195, 104
      %v3962 = vpop.permute.xlu0 %3961
      %3963 = vrot.lane.b32.xlu0 %v1196, 104
      %v3964 = vpop.permute.xlu0 %3963
      %v3968 = vsel %vm527, %v3835, 0
      %v3971 = vsel %vm527, %v3836, 0
      %3973 = vmatprep.subr.bf16.mxu0 0
      %3974 = vmatpush1.bf16.msra.mxu0 %v3962
      %3975 = vmatprep.subr.bf16.mxu0 0
      %3976 = vmatpush1.bf16.msra.mxu0 %v3964
      %3977 = vmatprep.subr.bf16.mxu0 0
      %3978 = vmatpush1.bf16.msra.mxu0 0
      %3979 = vmatprep.subr.bf16.mxu0 0
      %3980 = vmatpush1.bf16.msra.mxu0 0
      %3981 = vmatprep.subr.bf16.mxu0 0
      %3982 = vmatpush1.bf16.msra.mxu0 0
      %3983 = vmatprep.subr.bf16.mxu0 0
      %3984 = vmatpush1.bf16.msra.mxu0 0
      %3985 = vmatprep.subr.bf16.mxu0 0
      %3986 = vmatpush1.bf16.msra.mxu0 0
      %3987 = vmatprep.subr.bf16.mxu0 0
      %3988 = vmatpush1.bf16.msra.mxu0 0
      %3989 = vmatprep.subr.bf16.mxu0 0
      %3990 = vmatpush1.bf16.msra.mxu0 0
      %3991 = vmatprep.subr.bf16.mxu0 0
      %3992 = vmatpush1.bf16.msra.mxu0 0
      %3993 = vmatprep.subr.bf16.mxu0 0
      %3994 = vmatpush1.bf16.msra.mxu0 0
      %3995 = vmatprep.subr.bf16.mxu0 0
      %3996 = vmatpush1.bf16.msra.mxu0 0
      %3997 = vmatprep.subr.bf16.mxu0 0
      %3998 = vmatpush1.bf16.msra.mxu0 0
      %3999 = vmatprep.subr.bf16.mxu0 0
      %4000 = vmatpush1.bf16.msra.mxu0 0
      %4001 = vmatprep.subr.bf16.mxu0 0
      %4002 = vmatpush1.bf16.msra.mxu0 0
      %4003 = vmatprep.subr.bf16.mxu0 0
      %4004 = vmatpush1.bf16.msra.mxu0 0
      %4005 = vmatprep.mubr.bf16.mxu0 0
      %4006 = vmatmul.mubr.bf16.gmra.mrb[0].mxu0 %v3968
      %v4007 = vpop.f32.mrb[0].mxu0
      %v4008 = vadd.f32 0.0, %v4007
      %v4009 = vpop.f32.mrb[0].mxu0
      %v4010 = vpop.f32.mrb[0].mxu0
      %v4011 = vadd.f32 0.0, %v4010
      %v4012 = vpop.f32.mrb[0].mxu0
      %4013 = vmatprep.mubr.bf16.mxu0 0
      %4014 = vmatmul.mubr.bf16.gmra.mrb[0].mxu0 %v3971
      %v4015 = vpop.f32.mrb[0].mxu0
      %v4016 = vadd.f32 0.0, %v4015
      %v4017 = vpop.f32.mrb[0].mxu0
      %v4018 = vpop.f32.mrb[0].mxu0
      %v4019 = vadd.f32 0.0, %v4018
      %v4020 = vpop.f32.mrb[0].mxu0
      %4021 = vdwg.mxu0
      %4022 = vrot.lane.b32.xlu0 %v1197, 104
      %v4023 = vpop.permute.xlu0 %4022
      %4024 = vrot.lane.b32.xlu0 %v1198, 104
      %v4025 = vpop.permute.xlu0 %4024
      %v4029 = vsel %vm527, %v3837, 0
      %v4032 = vsel %vm527, %v3838, 0
      %4034 = vmatprep.subr.bf16.mxu0 0
      %4035 = vmatpush1.bf16.msra.mxu0 %v4023
      %4036 = vmatprep.subr.bf16.mxu0 0
      %4037 = vmatpush1.bf16.msra.mxu0 %v4025
      %4038 = vmatprep.subr.bf16.mxu0 0
      %4039 = vmatpush1.bf16.msra.mxu0 0
      %4040 = vmatprep.subr.bf16.mxu0 0
      %4041 = vmatpush1.bf16.msra.mxu0 0
      %4042 = vmatprep.subr.bf16.mxu0 0
      %4043 = vmatpush1.bf16.msra.mxu0 0
      %4044 = vmatprep.subr.bf16.mxu0 0
      %4045 = vmatpush1.bf16.msra.mxu0 0
      %4046 = vmatprep.subr.bf16.mxu0 0
      %4047 = vmatpush1.bf16.msra.mxu0 0
      %4048 = vmatprep.subr.bf16.mxu0 0
      %4049 = vmatpush1.bf16.msra.mxu0 0
      %4050 = vmatprep.subr.bf16.mxu0 0
      %4051 = vmatpush1.bf16.msra.mxu0 0
      %4052 = vmatprep.subr.bf16.mxu0 0
      %4053 = vmatpush1.bf16.msra.mxu0 0
      %4054 = vmatprep.subr.bf16.mxu0 0
      %4055 = vmatpush1.bf16.msra.mxu0 0
      %4056 = vmatprep.subr.bf16.mxu0 0
      %4057 = vmatpush1.bf16.msra.mxu0 0
      %4058 = vmatprep.subr.bf16.mxu0 0
      %4059 = vmatpush1.bf16.msra.mxu0 0
      %4060 = vmatprep.subr.bf16.mxu0 0
      %4061 = vmatpush1.bf16.msra.mxu0 0
      %4062 = vmatprep.subr.bf16.mxu0 0
      %4063 = vmatpush1.bf16.msra.mxu0 0
      %4064 = vmatprep.subr.bf16.mxu0 0
      %4065 = vmatpush1.bf16.msra.mxu0 0
      %4066 = vmatprep.mubr.bf16.mxu0 0
      %4067 = vmatmul.mubr.bf16.gmra.mrb[0].mxu0 %v4029
      %v4068 = vpop.f32.mrb[0].mxu0
      %v4069 = vadd.f32 0.0, %v4068
      %v4070 = vpop.f32.mrb[0].mxu0
      %v4071 = vpop.f32.mrb[0].mxu0
      %v4072 = vadd.f32 0.0, %v4071
      %v4073 = vpop.f32.mrb[0].mxu0
      %4074 = vmatprep.mubr.bf16.mxu0 0
      %4075 = vmatmul.mubr.bf16.gmra.mrb[0].mxu0 %v4032
      %v4076 = vpop.f32.mrb[0].mxu0
      %v4077 = vadd.f32 0.0, %v4076
      %v4078 = vpop.f32.mrb[0].mxu0
      %v4079 = vpop.f32.mrb[0].mxu0
      %v4080 = vadd.f32 0.0, %v4079
      %v4081 = vpop.f32.mrb[0].mxu0
      %4082 = vdwg.mxu0
      %4099 = vrot.lane.b32.xlu0 %v2430, 8
      %v4100 = vpop.permute.xlu0 %4099
      %4101 = vrot.lane.b32.xlu0 %v2433, 8
      %v4102 = vpop.permute.xlu0 %4101
      %4103 = vrot.lane.b32.xlu0 %v2438, 8
      %v4104 = vpop.permute.xlu0 %4103
      %4105 = vrot.lane.b32.xlu0 %v2441, 8
      %v4106 = vpop.permute.xlu0 %4105
      %4107 = vrot.lane.b32.xlu0 %v2493, 8
      %v4108 = vpop.permute.xlu0 %4107
      %4109 = vrot.lane.b32.xlu0 %v2496, 8
      %v4110 = vpop.permute.xlu0 %4109
      %4111 = vrot.lane.b32.xlu0 %v2501, 8
      %v4112 = vpop.permute.xlu0 %4111
      %4113 = vrot.lane.b32.xlu0 %v2504, 8
      %v4114 = vpop.permute.xlu0 %4113
      %4115 = vrot.lane.b32.xlu0 %v2556, 8
      %v4116 = vpop.permute.xlu0 %4115
      %4117 = vrot.lane.b32.xlu0 %v2559, 8
      %v4118 = vpop.permute.xlu0 %4117
      %4119 = vrot.lane.b32.xlu0 %v2564, 8
      %v4120 = vpop.permute.xlu0 %4119
      %4121 = vrot.lane.b32.xlu0 %v2567, 8
      %v4122 = vpop.permute.xlu0 %4121
      %4123 = vrot.lane.b32.xlu0 %v2619, 8
      %v4124 = vpop.permute.xlu0 %4123
      %4125 = vrot.lane.b32.xlu0 %v2622, 8
      %v4126 = vpop.permute.xlu0 %4125
      %4127 = vrot.lane.b32.xlu0 %v2627, 8
      %v4128 = vpop.permute.xlu0 %4127
      %4129 = vrot.lane.b32.xlu0 %v2630, 8
      %v4130 = vpop.permute.xlu0 %4129
      %4163 = vrot.lane.b32.xlu0 %v3161, 16
      %v4164 = vpop.permute.xlu0 %4163
      %4165 = vrot.lane.b32.xlu0 %v3164, 16
      %v4166 = vpop.permute.xlu0 %4165
      %4167 = vrot.lane.b32.xlu0 %v3169, 16
      %v4168 = vpop.permute.xlu0 %4167
      %4169 = vrot.lane.b32.xlu0 %v3172, 16
      %v4170 = vpop.permute.xlu0 %4169
      %4171 = vrot.lane.b32.xlu0 %v3222, 16
      %v4172 = vpop.permute.xlu0 %4171
      %4173 = vrot.lane.b32.xlu0 %v3225, 16
      %v4174 = vpop.permute.xlu0 %4173
      %4175 = vrot.lane.b32.xlu0 %v3230, 16
      %v4176 = vpop.permute.xlu0 %4175
      %4177 = vrot.lane.b32.xlu0 %v3233, 16
      %v4178 = vpop.permute.xlu0 %4177
      %4179 = vrot.lane.b32.xlu0 %v3283, 16
      %v4180 = vpop.permute.xlu0 %4179
      %4181 = vrot.lane.b32.xlu0 %v3286, 16
      %v4182 = vpop.permute.xlu0 %4181
      %4183 = vrot.lane.b32.xlu0 %v3291, 16
      %v4184 = vpop.permute.xlu0 %4183
      %4185 = vrot.lane.b32.xlu0 %v3294, 16
      %v4186 = vpop.permute.xlu0 %4185
      %4187 = vrot.lane.b32.xlu0 %v3344, 16
      %v4188 = vpop.permute.xlu0 %4187
      %4189 = vrot.lane.b32.xlu0 %v3347, 16
      %v4190 = vpop.permute.xlu0 %4189
      %4191 = vrot.lane.b32.xlu0 %v3352, 16
      %v4192 = vpop.permute.xlu0 %4191
      %4193 = vrot.lane.b32.xlu0 %v3355, 16
      %v4194 = vpop.permute.xlu0 %4193
      %4227 = vrot.lane.b32.xlu0 %v3886, 24
      %v4228 = vpop.permute.xlu0 %4227
      %4229 = vrot.lane.b32.xlu0 %v3889, 24
      %v4230 = vpop.permute.xlu0 %4229
      %4231 = vrot.lane.b32.xlu0 %v3894, 24
      %v4232 = vpop.permute.xlu0 %4231
      %4233 = vrot.lane.b32.xlu0 %v3897, 24
      %v4234 = vpop.permute.xlu0 %4233
      %4235 = vrot.lane.b32.xlu0 %v3947, 24
      %v4236 = vpop.permute.xlu0 %4235
      %4237 = vrot.lane.b32.xlu0 %v3950, 24
      %v4238 = vpop.permute.xlu0 %4237
      %4239 = vrot.lane.b32.xlu0 %v3955, 24
      %v4240 = vpop.permute.xlu0 %4239
      %4241 = vrot.lane.b32.xlu0 %v3958, 24
      %v4242 = vpop.permute.xlu0 %4241
      %4243 = vrot.lane.b32.xlu0 %v4008, 24
      %v4244 = vpop.permute.xlu0 %4243
      %4245 = vrot.lane.b32.xlu0 %v4011, 24
      %v4246 = vpop.permute.xlu0 %4245
      %4247 = vrot.lane.b32.xlu0 %v4016, 24
      %v4248 = vpop.permute.xlu0 %4247
      %4249 = vrot.lane.b32.xlu0 %v4019, 24
      %v4250 = vpop.permute.xlu0 %4249
      %4251 = vrot.lane.b32.xlu0 %v4069, 24
      %v4252 = vpop.permute.xlu0 %4251
      %4253 = vrot.lane.b32.xlu0 %v4072, 24
      %v4254 = vpop.permute.xlu0 %4253
      %4255 = vrot.lane.b32.xlu0 %v4077, 24
      %v4256 = vpop.permute.xlu0 %4255
      %4257 = vrot.lane.b32.xlu0 %v4080, 24
      %v4258 = vpop.permute.xlu0 %4257
      %v4275 = vsel %vm1219, %v1705, %v4100
      %v4276 = vsel %vm1219, %v1708, %v4102
      %v4277 = vsel %vm1219, %v1713, %v4104
      %v4278 = vsel %vm1219, %v1716, %v4106
      %v4279 = vsel %vm1219, %v1760, %v4108
      %v4280 = vsel %vm1219, %v1763, %v4110
      %v4281 = vsel %vm1219, %v1768, %v4112
      %v4282 = vsel %vm1219, %v1771, %v4114
      %v4283 = vsel %vm1219, %v1815, %v4116
      %v4284 = vsel %vm1219, %v1818, %v4118
      %v4285 = vsel %vm1219, %v1823, %v4120
      %v4286 = vsel %vm1219, %v1826, %v4122
      %v4287 = vsel %vm1219, %v1870, %v4124
      %v4288 = vsel %vm1219, %v1873, %v4126
      %v4289 = vsel %vm1219, %v1878, %v4128
      %v4290 = vsel %vm1219, %v1881, %v4130
      %vm4291 = vcmask 130048
      %v4292 = vsel %vm4291, %v4275, %v4164
      %v4293 = vsel %vm4291, %v4276, %v4166
      %v4294 = vsel %vm4291, %v4277, %v4168
      %v4295 = vsel %vm4291, %v4278, %v4170
      %v4296 = vsel %vm4291, %v4279, %v4172
      %v4297 = vsel %vm4291, %v4280, %v4174
      %v4298 = vsel %vm4291, %v4281, %v4176
      %v4299 = vsel %vm4291, %v4282, %v4178
      %v4300 = vsel %vm4291, %v4283, %v4180
      %v4301 = vsel %vm4291, %v4284, %v4182
      %v4302 = vsel %vm4291, %v4285, %v4184
      %v4303 = vsel %vm4291, %v4286, %v4186
      %v4304 = vsel %vm4291, %v4287, %v4188
      %v4305 = vsel %vm4291, %v4288, %v4190
      %v4306 = vsel %vm4291, %v4289, %v4192
      %v4307 = vsel %vm4291, %v4290, %v4194
      %vm4308 = vcmask 195584
      %v4309 = vsel %vm4308, %v4292, %v4228
      %v4310 = vsel %vm4308, %v4293, %v4230
      %v4311 = vsel %vm4308, %v4294, %v4232
      %v4312 = vsel %vm4308, %v4295, %v4234
      %v4313 = vsel %vm4308, %v4296, %v4236
      %v4314 = vsel %vm4308, %v4297, %v4238
      %v4315 = vsel %vm4308, %v4298, %v4240
      %v4316 = vsel %vm4308, %v4299, %v4242
      %v4317 = vsel %vm4308, %v4300, %v4244
      %v4318 = vsel %vm4308, %v4301, %v4246
      %v4319 = vsel %vm4308, %v4302, %v4248
      %v4320 = vsel %vm4308, %v4303, %v4250
      %v4321 = vsel %vm4308, %v4304, %v4252
      %v4322 = vsel %vm4308, %v4305, %v4254
      %v4323 = vsel %vm4308, %v4306, %v4256
      %v4324 = vsel %vm4308, %v4307, %v4258
      %v4325 = vpack.c.bf16 %v4310, %v4309
      %v4326 = vpack.c.bf16 %v4312, %v4311
      %v4327 = vpack.c.bf16 %v4314, %v4313
      %v4328 = vpack.c.bf16 %v4316, %v4315
      %v4329 = vpack.c.bf16 %v4318, %v4317
      %v4330 = vpack.c.bf16 %v4320, %v4319
      %v4331 = vpack.c.bf16 %v4322, %v4321
      %v4332 = vpack.c.bf16 %v4324, %v4323
      %v4333 = vld [vmem:[%s9] sm:$0xf]
      %v4334 = vld [vmem:[%s9 + $0x4] sm:$0xf]
      %v4335 = vld [vmem:[%s9 + $0x8] sm:$0xf]
      %v4336 = vld [vmem:[%s9 + $0xc] sm:$0xf]
      %v4337 = vld [vmem:[%s10] sm:$0x1]
      %v4339 = vlaneseq
      %v4340 = vshrl.u32 %v4339, 7
      %v4341 = vsub.s32 0, %v4340
      %v4342 = vrot.slane %v4337, %v4341
      %v4348 = vunpack.c.l.b16 %v4333
      %v4349 = vunpack.c.l.b16 %v4334
      %v4350 = vunpack.c.l.b16 %v4335
      %v4351 = vunpack.c.l.b16 %v4336
      %v4352 = vpack.c.b16 %v4349, %v4348
      %v4353 = vpack.c.b16 %v4351, %v4350
      %v4357 = vsel %vm527, %v4325, 0
      %v4360 = vsel %vm527, %v4326, 0
      %v4363 = vsel %vm527, %v4327, 0
      %v4366 = vsel %vm527, %v4328, 0
      %v4369 = vsel %vm527, %v4329, 0
      %v4372 = vsel %vm527, %v4330, 0
      %v4375 = vsel %vm527, %v4331, 0
      %v4378 = vsel %vm527, %v4332, 0
      %4380 = vmatprep.subr.bf16.mxu0 0
      %4381 = vmatpush1.bf16.msra.mxu0 %v4352
      %4382 = vmatprep.subr.bf16.mxu0 0
      %4383 = vmatpush1.bf16.msra.mxu0 %v4353
      %4384 = vmatprep.subr.bf16.mxu0 0
      %4385 = vmatpush1.bf16.msra.mxu0 0
      %4386 = vmatprep.subr.bf16.mxu0 0
      %4387 = vmatpush1.bf16.msra.mxu0 0
      %4388 = vmatprep.subr.bf16.mxu0 0
      %4389 = vmatpush1.bf16.msra.mxu0 0
      %4390 = vmatprep.subr.bf16.mxu0 0
      %4391 = vmatpush1.bf16.msra.mxu0 0
      %4392 = vmatprep.subr.bf16.mxu0 0
      %4393 = vmatpush1.bf16.msra.mxu0 0
      %4394 = vmatprep.subr.bf16.mxu0 0
      %4395 = vmatpush1.bf16.msra.mxu0 0
      %4396 = vmatprep.subr.bf16.mxu0 0
      %4397 = vmatpush1.bf16.msra.mxu0 0
      %4398 = vmatprep.subr.bf16.mxu0 0
      %4399 = vmatpush1.bf16.msra.mxu0 0
      %4400 = vmatprep.subr.bf16.mxu0 0
      %4401 = vmatpush1.bf16.msra.mxu0 0
      %4402 = vmatprep.subr.bf16.mxu0 0
      %4403 = vmatpush1.bf16.msra.mxu0 0
      %4404 = vmatprep.subr.bf16.mxu0 0
      %4405 = vmatpush1.bf16.msra.mxu0 0
      %4406 = vmatprep.subr.bf16.mxu0 0
      %4407 = vmatpush1.bf16.msra.mxu0 0
      %4408 = vmatprep.subr.bf16.mxu0 0
      %4409 = vmatpush1.bf16.msra.mxu0 0
      %4410 = vmatprep.subr.bf16.mxu0 0
      %4411 = vmatpush1.bf16.msra.mxu0 0
      %4412 = vmatprep.mubr.bf16.mxu0 0
      %4413 = vmatmul.mubr.bf16.gmra.mrb[0].mxu0 %v4357
      %v4414 = vpop.f32.mrb[0].mxu0
      %v4415 = vadd.f32 %v4342, %v4414
      %v4416 = vpop.f32.mrb[0].mxu0
      %v4417 = vpop.f32.mrb[0].mxu0
      %v4418 = vadd.f32 %v4342, %v4417
      %v4419 = vpop.f32.mrb[0].mxu0
      %4420 = vmatprep.mubr.bf16.mxu0 0
      %4421 = vmatmul.mubr.bf16.gmra.mrb[0].mxu0 %v4360
      %v4422 = vpop.f32.mrb[0].mxu0
      %v4423 = vadd.f32 %v4342, %v4422
      %v4424 = vpop.f32.mrb[0].mxu0
      %v4425 = vpop.f32.mrb[0].mxu0
      %v4426 = vadd.f32 %v4342, %v4425
      %v4427 = vpop.f32.mrb[0].mxu0
      %4428 = vmatprep.mubr.bf16.mxu0 0
      %4429 = vmatmul.mubr.bf16.gmra.mrb[0].mxu0 %v4363
      %v4430 = vpop.f32.mrb[0].mxu0
      %v4431 = vadd.f32 %v4342, %v4430
      %v4432 = vpop.f32.mrb[0].mxu0
      %v4433 = vpop.f32.mrb[0].mxu0
      %v4434 = vadd.f32 %v4342, %v4433
      %v4435 = vpop.f32.mrb[0].mxu0
      %4436 = vmatprep.mubr.bf16.mxu0 0
      %4437 = vmatmul.mubr.bf16.gmra.mrb[0].mxu0 %v4366
      %v4438 = vpop.f32.mrb[0].mxu0
      %v4439 = vadd.f32 %v4342, %v4438
      %v4440 = vpop.f32.mrb[0].mxu0
      %v4441 = vpop.f32.mrb[0].mxu0
      %v4442 = vadd.f32 %v4342, %v4441
      %v4443 = vpop.f32.mrb[0].mxu0
      %4444 = vmatprep.mubr.bf16.mxu0 0
      %4445 = vmatmul.mubr.bf16.gmra.mrb[0].mxu0 %v4369
      %v4446 = vpop.f32.mrb[0].mxu0
      %v4447 = vadd.f32 %v4342, %v4446
      %v4448 = vpop.f32.mrb[0].mxu0
      %v4449 = vpop.f32.mrb[0].mxu0
      %v4450 = vadd.f32 %v4342, %v4449
      %v4451 = vpop.f32.mrb[0].mxu0
      %4452 = vmatprep.mubr.bf16.mxu0 0
      %4453 = vmatmul.mubr.bf16.gmra.mrb[0].mxu0 %v4372
      %v4454 = vpop.f32.mrb[0].mxu0
      %v4455 = vadd.f32 %v4342, %v4454
      %v4456 = vpop.f32.mrb[0].mxu0
      %v4457 = vpop.f32.mrb[0].mxu0
      %v4458 = vadd.f32 %v4342, %v4457
      %v4459 = vpop.f32.mrb[0].mxu0
      %4460 = vmatprep.mubr.bf16.mxu0 0
      %4461 = vmatmul.mubr.bf16.gmra.mrb[0].mxu0 %v4375
      %v4462 = vpop.f32.mrb[0].mxu0
      %v4463 = vadd.f32 %v4342, %v4462
      %v4464 = vpop.f32.mrb[0].mxu0
      %v4465 = vpop.f32.mrb[0].mxu0
      %v4466 = vadd.f32 %v4342, %v4465
      %v4467 = vpop.f32.mrb[0].mxu0
      %4468 = vmatprep.mubr.bf16.mxu0 0
      %4469 = vmatmul.mubr.bf16.gmra.mrb[0].mxu0 %v4378
      %v4470 = vpop.f32.mrb[0].mxu0
      %v4471 = vadd.f32 %v4342, %v4470
      %v4472 = vpop.f32.mrb[0].mxu0
      %v4473 = vpop.f32.mrb[0].mxu0
      %v4474 = vadd.f32 %v4342, %v4473
      %v4475 = vpop.f32.mrb[0].mxu0
      %4476 = vdwg.mxu0
      %4477 = vst.msk [vmem:[%s506] sm:$0xff] %vm527, %v4415
      %4478 = vst.msk [vmem:[%s506 + $0x8] sm:$0xff] %vm527, %v4418
      %4479 = vst.msk [vmem:[%s506 + $0x10] sm:$0xff] %vm527, %v4423
      %4480 = vst.msk [vmem:[%s506 + $0x18] sm:$0xff] %vm527, %v4426
      %4481 = vst.msk [vmem:[%s506 + $0x20] sm:$0xff] %vm527, %v4431
      %4482 = vst.msk [vmem:[%s506 + $0x28] sm:$0xff] %vm527, %v4434
      %4483 = vst.msk [vmem:[%s506 + $0x30] sm:$0xff] %vm527, %v4439
      %4484 = vst.msk [vmem:[%s506 + $0x38] sm:$0xff] %vm527, %v4442
      %4485 = vst.msk [vmem:[%s506 + $0x40] sm:$0xff] %vm527, %v4447
      %4486 = vst.msk [vmem:[%s506 + $0x48] sm:$0xff] %vm527, %v4450
      %4487 = vst.msk [vmem:[%s506 + $0x50] sm:$0xff] %vm527, %v4455
      %4488 = vst.msk [vmem:[%s506 + $0x58] sm:$0xff] %vm527, %v4458
      %4489 = vst.msk [vmem:[%s506 + $0x60] sm:$0xff] %vm527, %v4463
      %4490 = vst.msk [vmem:[%s506 + $0x68] sm:$0xff] %vm527, %v4466
      %4491 = vst.msk [vmem:[%s506 + $0x70] sm:$0xff] %vm527, %v4471
      %4492 = vst.msk [vmem:[%s506 + $0x78] sm:$0xff] %vm527, %v4474
      %s4493 = smul.u32 %s28, 2
      %s4494 = sadd.s32 %s4493, %s29
      %s4495 = smul.u32 4, %s4494
      %p4496 = scmp.lt.s32.totalorder %s4495, 15
      %s4497 = scalar_select %p4496, %s4495, 15
      %s4498 = smul.addr %s4497, 4
      %s4499 = smul.addr %s4498, 8
      %s4500 = scalar_lea.vmem %s13, %s4499
      // Predicated region
      $region73: #{swin_block_forward.2} parent=71 // pred_check
        %p4501 = pneg %p345
      $region74: #{swin_block_forward.2} parent=71 // pred_check_branch
        %4503 = sbr.rel (%p4501) target = $region76
      $region75: #{swin_block_forward.2} parent=71 // pred_region
        %s4504 = smul.u32 %s28, 2
        %s4505 = sadd.s32 %s4504, %s29
        %s4506 = smul.u32 4, %s4505
      $region76: #{swin_block_forward.2} parent=71 // pred_fallthru
        _
    $region72: #{swin_block_forward.2} parent=5 // pred_fallthru
      _
    %p4507 = scmp.le.s32.totalorder 2, %s19
    // Predicated region
    $region77: #{swin_block_forward.2} parent=5 // pred_check
      %p4508 = pneg %p4507
    $region78: #{swin_block_forward.2} parent=5 // pred_check_branch
      %4510 = sbr.rel (%p4508) target = $region80
    $region79: #{swin_block_forward.2} parent=5 // pred_region
      %s4511 = ssub.s32 %s19, 2
      // Predicated region
      $region81: #{swin_block_forward.2} parent=79 // pred_check
        %p4512 = pneg %p351
      $region82: #{swin_block_forward.2} parent=79 // pred_check_branch
        %4514 = sbr.rel (%p4512) target = $region84
      $region83: #{swin_block_forward.2} parent=79 // pred_region
        %s4515 = smul.u32 %s30, 2
        %s4516 = sadd.s32 %s4515, %s31
        %s4517 = smul.u32 4, %s4516
        %p4518 = scmp.lt.s32.totalorder %s4517, 15
        %s4519 = scalar_select %p4518, %s4517, 15
        %s4520 = smul.addr %s4519, 4
        %s4521 = smul.addr %s4520, 8
        %s4522 = scalar_lea.vmem %s13, %s4521
      $region84: #{swin_block_forward.2} parent=79 // pred_fallthru
        _
    $region80: #{swin_block_forward.2} parent=5 // pred_fallthru
      _
  $region6: #{swin_block_forward.2} parent=0 // loop_footer
    %s23 = sadd.s32 1, %s19
  $region7: #{swin_block_forward.2} parent=0 // loop_footer_branch
    %18 = sbr.rel target = $region3
  $region8: #{swin_block_forward.2} parent=0 // loop_exit
    _

</llo_original>
